<compile_context>
chip_gen: v7x
topology: tpu7x:2x2x1
jax: 0.10.0
libtpu: 0.0.40
codegen_flags: <defaults>
</compile_context>

<pallas_src>
import functools

import jax
import jax.numpy as jnp
from jax.experimental import pallas as pl
from jax.experimental.pallas import tpu as pltpu


def _fused_kernel(x_ref, w1_ref, s1_ref, b1_ref, w2_ref, s2_ref, b2_ref,
                  w3_ref, s3_ref, b3_ref, o_ref,
                  pad0, pad1, pad2, *, NB, H, W, C0, C1, C2):
    M = NB * H * W

    # Zero ONLY the 1-pixel halo of each padded activation buffer (the interior
    # is fully overwritten every step, so no full-buffer memset).
    for pad_ref, c in ((pad0, C0), (pad1, C1), (pad2, C2)):
        wp = pad_ref.shape[2]                                   # == W + 2
        z_row = jnp.zeros((NB, 1, wp, c), pad_ref.dtype)
        z_col = jnp.zeros((NB, H + 2, 1, c), pad_ref.dtype)
        pad_ref[:, 0:1, :, :] = z_row                           # top halo row
        pad_ref[:, H + 1:H + 2, :, :] = z_row                   # bottom halo row
        pad_ref[:, :, 0:1, :] = z_col                           # left halo col
        pad_ref[:, :, W + 1:W + 2, :] = z_col                   # right halo col

    def conv_bn_relu(pad_ref, w_ref, s_ref, b_ref, cin, cout):
        # 3x3 conv = 9 tap matmuls accumulated in f32 (no im2col buffer).
        acc = jnp.zeros((M, cout), jnp.float32)
        for idx in range(9):
            dy, dx = divmod(idx, 3)
            xs = pad_ref[:, dy:dy + H, dx:dx + W, :].reshape(M, cin)  # bf16
            acc = acc + jnp.dot(xs, w_ref[idx],
                                preferred_element_type=jnp.float32)
        # conv bias + BatchNorm folded into scale/bias, then ReLU.
        return jnp.maximum(acc * s_ref[...] + b_ref[...], 0.0)   # (M, cout) f32

    pad0[:, 1:1 + H, 1:1 + W, :] = x_ref[...]                            # layer-1 in
    a1 = conv_bn_relu(pad0, w1_ref, s1_ref, b1_ref, C0, C1)              # (M, C1)
    pad1[:, 1:1 + H, 1:1 + W, :] = a1.reshape(NB, H, W, C1).astype(pad1.dtype)
    a2 = conv_bn_relu(pad1, w2_ref, s2_ref, b2_ref, C1, C2)              # (M, C2)
    pad2[:, 1:1 + H, 1:1 + W, :] = a2.reshape(NB, H, W, C2).astype(pad2.dtype)
    y3 = conv_bn_relu(pad2, w3_ref, s3_ref, b3_ref, C2, 2)               # (M, 2)

    # 2-way channel softmax: softmax([a,b])[0] = sigmoid(a-b) = .5*(1+tanh((a-b)/2))
    # (overflow-free; EUP only).  Reshape the logit difference lane-dense first.
    d = (y3[:, 0:1] - y3[:, 1:2]).reshape(NB, H * W)
    p0 = 0.5 * (1.0 + jnp.tanh(0.5 * d))
    out = jnp.concatenate([p0, 1.0 - p0], axis=-1)          # (NB, 2*H*W) flat NCHW
    o_ref[...] = out.reshape(NB, 1, 2 * H * W)               # single lane-dense store


def _round_up(x, m):
    return (x + m - 1) // m * m


def _vmem_capacity_bytes():
    try:
        return int(pltpu.get_tpu_info().vmem_capacity_bytes)
    except Exception:
        return 64 * 1024 * 1024          # conservative (v7x per-TC VMEM)


def _scratch_bytes(nb, h, w, cs):
    """Rough VMEM footprint (with sublane/lane padding) for one grid step."""
    total = 0
    for c in cs:                                              # padded act buffers
        total += nb * (h + 2) * _round_up(w + 2, 8) * _round_up(c, 128) * 2
    m = nb * h * w
    total += 2 * nb * h * _round_up(w, 8) * _round_up(cs[0], 128) * 2   # input dbuf
    total += 2 * _round_up(nb, 8) * _round_up(2 * h * w, 128) * 4       # output dbuf
    total += 2 * _round_up(m, 8) * _round_up(cs[1], 128) * 4            # f32 acc/temps
    return total


def _choose_batch_tile(n, h, w, cs, budget_bytes, target_rows=256):
    """Pick batch elems per grid step: fill the MXU (M >= target_rows) without
    forcing >=2 grid steps on single-TC chips; prefer an even step count only
    when the row target is already met (v7x: 2 TensorCores); fit VMEM budget."""
    divs = [d for d in range(1, n + 1) if n % d == 0]
    fits = [d for d in divs if _scratch_bytes(d, h, w, cs) <= budget_bytes] or [1]
    big = [d for d in fits if d * h * w >= target_rows]
    if big:
        even = [d for d in big if (n // d) % 2 == 0]
        return min(even) if even else min(big)
    return max(fits)


def state_mask_embed_forward(x_nchw, params):
    # x_nchw: (N, 256, H, W)  ->  (N, 2, H, W), softmax over the channel dim.
    N, C0, H, W = x_nchw.shape
    C1 = params[0]["w"].shape[2]
    C2 = params[1]["w"].shape[2]
    cap = _vmem_capacity_bytes()
    NB = _choose_batch_tile(N, H, W, (C0, C1, C2), budget_bytes=int(0.45 * cap))

    x = jnp.transpose(x_nchw, (0, 2, 3, 1)).astype(jnp.bfloat16)   # NCHW -> NHWC

    kernel = functools.partial(_fused_kernel, NB=NB, H=H, W=W,
                               C0=C0, C1=C1, C2=C2)

    def _const3(shape):    # per-tap weights: same block every step
        return pl.BlockSpec(shape, lambda i: (0, 0, 0))

    def _const2(shape):    # folded BN scale / bias
        return pl.BlockSpec(shape, lambda i: (0, 0))

    out3d = pl.pallas_call(
        kernel,
        out_shape=jax.ShapeDtypeStruct((N, 1, 2 * H * W), jnp.float32),
        grid=(N // NB,),
        in_specs=[
            pl.BlockSpec((NB, H, W, C0), lambda i: (i, 0, 0, 0)),
            _const3((9, C0, C1)), _const2((1, C1)), _const2((1, C1)),
            _const3((9, C1, C2)), _const2((1, C2)), _const2((1, C2)),
            _const3((9, C2, 2)), _const2((1, 2)), _const2((1, 2)),
        ],
        out_specs=pl.BlockSpec((NB, 1, 2 * H * W), lambda i: (i, 0, 0)),
        scratch_shapes=[
            pltpu.VMEM((NB, H + 2, W + 2, C0), jnp.bfloat16),   # padded input
            pltpu.VMEM((NB, H + 2, W + 2, C1), jnp.bfloat16),   # padded act1
            pltpu.VMEM((NB, H + 2, W + 2, C2), jnp.bfloat16),   # padded act2
        ],
        compiler_params=pltpu.CompilerParams(
            dimension_semantics=("parallel",),
            vmem_limit_bytes=int(0.85 * cap),
        ),
    )(x,
      params[0]["w"], params[0]["scale"], params[0]["bias"],
      params[1]["w"], params[1]["scale"], params[1]["bias"],
      params[2]["w"], params[2]["scale"], params[2]["bias"])

    # Flat per-sample layout is already channel-major (c*H*W + h*W + w): reshape
    # to NCHW is free (no transpose kernel).
    return out3d.reshape(N, 2, H, W)


def init_layer(key, cin, cout, eps=1e-5):
    """Deterministic synthetic conv + (inference-mode) BatchNorm parameters."""
    k = jax.random.split(key, 6)
    w_torch = jax.random.normal(k[0], (cout, cin, 3, 3), jnp.float32) * 0.05
    b_conv = jax.random.normal(k[1], (cout,), jnp.float32) * 0.05
    gamma = jax.random.uniform(k[2], (cout,), jnp.float32, 0.5, 1.5)
    beta = jax.random.normal(k[3], (cout,), jnp.float32) * 0.1
    r_mean = jax.random.normal(k[4], (cout,), jnp.float32) * 0.1
    r_var = jax.random.uniform(k[5], (cout,), jnp.float32, 0.5, 1.5)
    w_hwio = jnp.transpose(w_torch, (2, 3, 1, 0))             # (3,3,cin,cout)
    s = gamma / jnp.sqrt(r_var + eps)                         # BN fold
    eff_bias = (b_conv - r_mean) * s + beta
    return {
        "w": w_hwio.reshape(9, cin, cout).astype(jnp.bfloat16),  # per-tap (cin,cout)
        "w_hwio": w_hwio,                                        # f32 for reference
        "scale": s.reshape(1, cout),
        "bias": eff_bias.reshape(1, cout),
    }


def _reference_forward(x_nchw, params):
    """Pure-JAX f32 reference (lax conv) for correctness checking."""
    x = jnp.transpose(x_nchw, (0, 2, 3, 1))
    for p in params:
        x = jax.lax.conv_general_dilated(
            x, p["w_hwio"], window_strides=(1, 1), padding="SAME",
            dimension_numbers=("NHWC", "HWIO", "NHWC"))
        x = x * p["scale"].reshape(1, 1, 1, -1) + p["bias"].reshape(1, 1, 1, -1)
        x = jnp.maximum(x, 0.0)
    x = jax.nn.softmax(x, axis=-1)
    return jnp.transpose(x, (0, 3, 1, 2))


if __name__ == "__main__":
    key = jax.random.PRNGKey(0)
    kx, k1, k2, k3 = jax.random.split(key, 4)

    # Small deterministic input consistent with the module (Cin must be 256).
    N, C, H, W = 2, 256, 8, 8
    x = jax.random.normal(kx, (N, C, H, W), jnp.float32)

    params = [init_layer(k1, 256, 128),
              init_layer(k2, 128, 64),
              init_layer(k3, 64, 2)]

    out = jax.block_until_ready(jax.jit(state_mask_embed_forward)(x, params))
    ref = jax.block_until_ready(_reference_forward(x, params))

    assert out.shape == (N, 2, H, W)
    # bf16 MXU inputs / bf16 inter-layer activations vs. f32 reference => slightly
    # relaxed tolerance; any structural error (wrong tap / BN fold / softmax)
    # would be >> 0.1.
    assert jnp.allclose(out, ref, rtol=3e-2, atol=3e-2)

    print("KERNEL_OK")
</pallas_src>

<mosaic_0001>
module attributes {stable_mosaic.version = 11 : i64} {
  func.func @_fused_kernel(%arg0: i32, %arg1: memref<2x8x8x256xbf16, #tpu.memory_space<vmem>>, %arg2: memref<9x256x128xbf16, #tpu.memory_space<vmem>>, %arg3: memref<1x128xf32, #tpu.memory_space<vmem>>, %arg4: memref<1x128xf32, #tpu.memory_space<vmem>>, %arg5: memref<9x128x64xbf16, #tpu.memory_space<vmem>>, %arg6: memref<1x64xf32, #tpu.memory_space<vmem>>, %arg7: memref<1x64xf32, #tpu.memory_space<vmem>>, %arg8: memref<9x64x2xbf16, #tpu.memory_space<vmem>>, %arg9: memref<1x2xf32, #tpu.memory_space<vmem>>, %arg10: memref<1x2xf32, #tpu.memory_space<vmem>>, %arg11: memref<2x1x128xf32, #tpu.memory_space<vmem>>, %arg12: memref<2x10x10x256xbf16, #tpu.memory_space<vmem>>, %arg13: memref<2x10x10x128xbf16, #tpu.memory_space<vmem>>, %arg14: memref<2x10x10x64xbf16, #tpu.memory_space<vmem>>) attributes {dimension_semantics = [#tpu.dimension_semantics<parallel>], iteration_bounds = array<i64: 1>, scalar_prefetch = 0 : i64, scratch_operands = 3 : i64, tpu.core_type = #tpu.core_type<tc>, window_params = [{transform_indices = @transform_0, window_bounds = array<i64: 2, 8, 8, 256>}, {pipeline_mode = #tpu.pipeline_mode<synchronous>, transform_indices = @transform_1, window_bounds = array<i64: 9, 256, 128>}, {pipeline_mode = #tpu.pipeline_mode<synchronous>, transform_indices = @transform_2, window_bounds = array<i64: 1, 128>}, {pipeline_mode = #tpu.pipeline_mode<synchronous>, transform_indices = @transform_3, window_bounds = array<i64: 1, 128>}, {pipeline_mode = #tpu.pipeline_mode<synchronous>, transform_indices = @transform_4, window_bounds = array<i64: 9, 128, 64>}, {pipeline_mode = #tpu.pipeline_mode<synchronous>, transform_indices = @transform_5, window_bounds = array<i64: 1, 64>}, {pipeline_mode = #tpu.pipeline_mode<synchronous>, transform_indices = @transform_6, window_bounds = array<i64: 1, 64>}, {pipeline_mode = #tpu.pipeline_mode<synchronous>, transform_indices = @transform_7, window_bounds = array<i64: 9, 64, 2>}, {pipeline_mode = #tpu.pipeline_mode<synchronous>, transform_indices = @transform_8, window_bounds = array<i64: 1, 2>}, {pipeline_mode = #tpu.pipeline_mode<synchronous>, transform_indices = @transform_9, window_bounds = array<i64: 1, 2>}, {transform_indices = @transform_10, window_bounds = array<i64: 2, 1, 128>}]} {
    %cst = arith.constant 0.000000e+00 : bf16
    %0 = vector.broadcast %cst : bf16 to vector<2x1x10x256xbf16>
    %cst_0 = arith.constant 0.000000e+00 : bf16
    %1 = vector.broadcast %cst_0 : bf16 to vector<2x10x1x256xbf16>
    %c0 = arith.constant 0 : index
    %c0_1 = arith.constant 0 : index
    %c0_2 = arith.constant 0 : index
    %c0_3 = arith.constant 0 : index
    %2 = vector.load %arg12[%c0, %c0_1, %c0_2, %c0_3] : memref<2x10x10x256xbf16, #tpu.memory_space<vmem>>, vector<2x1x10x256xbf16>
    tpu.vector_store %arg12[%c0, %c0_1, %c0_2, %c0_3], %0 {strides = array<i32>} : memref<2x10x10x256xbf16, #tpu.memory_space<vmem>>, vector<2x1x10x256xbf16>,
    %c0_4 = arith.constant 0 : index
    %c9 = arith.constant 9 : index
    %c0_5 = arith.constant 0 : index
    %c0_6 = arith.constant 0 : index
    %3 = vector.load %arg12[%c0_4, %c9, %c0_5, %c0_6] : memref<2x10x10x256xbf16, #tpu.memory_space<vmem>>, vector<2x1x10x256xbf16>
    tpu.vector_store %arg12[%c0_4, %c9, %c0_5, %c0_6], %0 {strides = array<i32>} : memref<2x10x10x256xbf16, #tpu.memory_space<vmem>>, vector<2x1x10x256xbf16>,
    %c0_7 = arith.constant 0 : index
    %c0_8 = arith.constant 0 : index
    %c0_9 = arith.constant 0 : index
    %c0_10 = arith.constant 0 : index
    %4 = vector.load %arg12[%c0_7, %c0_8, %c0_9, %c0_10] : memref<2x10x10x256xbf16, #tpu.memory_space<vmem>>, vector<2x10x1x256xbf16>
    tpu.vector_store %arg12[%c0_7, %c0_8, %c0_9, %c0_10], %1 {strides = array<i32>} : memref<2x10x10x256xbf16, #tpu.memory_space<vmem>>, vector<2x10x1x256xbf16>,
    %c0_11 = arith.constant 0 : index
    %c0_12 = arith.constant 0 : index
    %c9_13 = arith.constant 9 : index
    %c0_14 = arith.constant 0 : index
    %5 = vector.load %arg12[%c0_11, %c0_12, %c9_13, %c0_14] : memref<2x10x10x256xbf16, #tpu.memory_space<vmem>>, vector<2x10x1x256xbf16>
    tpu.vector_store %arg12[%c0_11, %c0_12, %c9_13, %c0_14], %1 {strides = array<i32>} : memref<2x10x10x256xbf16, #tpu.memory_space<vmem>>, vector<2x10x1x256xbf16>,
    %cst_15 = arith.constant 0.000000e+00 : bf16
    %6 = vector.broadcast %cst_15 : bf16 to vector<2x1x10x128xbf16>
    %cst_16 = arith.constant 0.000000e+00 : bf16
    %7 = vector.broadcast %cst_16 : bf16 to vector<2x10x1x128xbf16>
    %c0_17 = arith.constant 0 : index
    %c0_18 = arith.constant 0 : index
    %c0_19 = arith.constant 0 : index
    %c0_20 = arith.constant 0 : index
    %8 = vector.load %arg13[%c0_17, %c0_18, %c0_19, %c0_20] : memref<2x10x10x128xbf16, #tpu.memory_space<vmem>>, vector<2x1x10x128xbf16>
    tpu.vector_store %arg13[%c0_17, %c0_18, %c0_19, %c0_20], %6 {strides = array<i32>} : memref<2x10x10x128xbf16, #tpu.memory_space<vmem>>, vector<2x1x10x128xbf16>,
    %c0_21 = arith.constant 0 : index
    %c9_22 = arith.constant 9 : index
    %c0_23 = arith.constant 0 : index
    %c0_24 = arith.constant 0 : index
    %9 = vector.load %arg13[%c0_21, %c9_22, %c0_23, %c0_24] : memref<2x10x10x128xbf16, #tpu.memory_space<vmem>>, vector<2x1x10x128xbf16>
    tpu.vector_store %arg13[%c0_21, %c9_22, %c0_23, %c0_24], %6 {strides = array<i32>} : memref<2x10x10x128xbf16, #tpu.memory_space<vmem>>, vector<2x1x10x128xbf16>,
    %c0_25 = arith.constant 0 : index
    %c0_26 = arith.constant 0 : index
    %c0_27 = arith.constant 0 : index
    %c0_28 = arith.constant 0 : index
    %10 = vector.load %arg13[%c0_25, %c0_26, %c0_27, %c0_28] : memref<2x10x10x128xbf16, #tpu.memory_space<vmem>>, vector<2x10x1x128xbf16>
    tpu.vector_store %arg13[%c0_25, %c0_26, %c0_27, %c0_28], %7 {strides = array<i32>} : memref<2x10x10x128xbf16, #tpu.memory_space<vmem>>, vector<2x10x1x128xbf16>,
    %c0_29 = arith.constant 0 : index
    %c0_30 = arith.constant 0 : index
    %c9_31 = arith.constant 9 : index
    %c0_32 = arith.constant 0 : index
    %11 = vector.load %arg13[%c0_29, %c0_30, %c9_31, %c0_32] : memref<2x10x10x128xbf16, #tpu.memory_space<vmem>>, vector<2x10x1x128xbf16>
    tpu.vector_store %arg13[%c0_29, %c0_30, %c9_31, %c0_32], %7 {strides = array<i32>} : memref<2x10x10x128xbf16, #tpu.memory_space<vmem>>, vector<2x10x1x128xbf16>,
    %cst_33 = arith.constant 0.000000e+00 : bf16
    %12 = vector.broadcast %cst_33 : bf16 to vector<2x1x10x64xbf16>
    %cst_34 = arith.constant 0.000000e+00 : bf16
    %13 = vector.broadcast %cst_34 : bf16 to vector<2x10x1x64xbf16>
    %c0_35 = arith.constant 0 : index
    %c0_36 = arith.constant 0 : index
    %c0_37 = arith.constant 0 : index
    %c0_38 = arith.constant 0 : index
    %14 = vector.load %arg14[%c0_35, %c0_36, %c0_37, %c0_38] : memref<2x10x10x64xbf16, #tpu.memory_space<vmem>>, vector<2x1x10x64xbf16>
    tpu.vector_store %arg14[%c0_35, %c0_36, %c0_37, %c0_38], %12 {strides = array<i32>} : memref<2x10x10x64xbf16, #tpu.memory_space<vmem>>, vector<2x1x10x64xbf16>,
    %c0_39 = arith.constant 0 : index
    %c9_40 = arith.constant 9 : index
    %c0_41 = arith.constant 0 : index
    %c0_42 = arith.constant 0 : index
    %15 = vector.load %arg14[%c0_39, %c9_40, %c0_41, %c0_42] : memref<2x10x10x64xbf16, #tpu.memory_space<vmem>>, vector<2x1x10x64xbf16>
    tpu.vector_store %arg14[%c0_39, %c9_40, %c0_41, %c0_42], %12 {strides = array<i32>} : memref<2x10x10x64xbf16, #tpu.memory_space<vmem>>, vector<2x1x10x64xbf16>,
    %c0_43 = arith.constant 0 : index
    %c0_44 = arith.constant 0 : index
    %c0_45 = arith.constant 0 : index
    %c0_46 = arith.constant 0 : index
    %16 = vector.load %arg14[%c0_43, %c0_44, %c0_45, %c0_46] : memref<2x10x10x64xbf16, #tpu.memory_space<vmem>>, vector<2x10x1x64xbf16>
    tpu.vector_store %arg14[%c0_43, %c0_44, %c0_45, %c0_46], %13 {strides = array<i32>} : memref<2x10x10x64xbf16, #tpu.memory_space<vmem>>, vector<2x10x1x64xbf16>,
    %c0_47 = arith.constant 0 : index
    %c0_48 = arith.constant 0 : index
    %c9_49 = arith.constant 9 : index
    %c0_50 = arith.constant 0 : index
    %17 = vector.load %arg14[%c0_47, %c0_48, %c9_49, %c0_50] : memref<2x10x10x64xbf16, #tpu.memory_space<vmem>>, vector<2x10x1x64xbf16>
    tpu.vector_store %arg14[%c0_47, %c0_48, %c9_49, %c0_50], %13 {strides = array<i32>} : memref<2x10x10x64xbf16, #tpu.memory_space<vmem>>, vector<2x10x1x64xbf16>,
    %c0_51 = arith.constant 0 : index
    %c0_52 = arith.constant 0 : index
    %c0_53 = arith.constant 0 : index
    %c0_54 = arith.constant 0 : index
    %18 = vector.load %arg1[%c0_51, %c0_52, %c0_53, %c0_54] : memref<2x8x8x256xbf16, #tpu.memory_space<vmem>>, vector<2x8x8x256xbf16>
    %c0_55 = arith.constant 0 : index
    %c1 = arith.constant 1 : index
    %c1_56 = arith.constant 1 : index
    %c0_57 = arith.constant 0 : index
    %19 = vector.load %arg12[%c0_55, %c1, %c1_56, %c0_57] : memref<2x10x10x256xbf16, #tpu.memory_space<vmem>>, vector<2x8x8x256xbf16>
    tpu.vector_store %arg12[%c0_55, %c1, %c1_56, %c0_57], %18 {strides = array<i32>} : memref<2x10x10x256xbf16, #tpu.memory_space<vmem>>, vector<2x8x8x256xbf16>,
    %cst_58 = arith.constant 0.000000e+00 : f32
    %20 = vector.broadcast %cst_58 : f32 to vector<128x128xf32>
    %c0_59 = arith.constant 0 : index
    %c0_60 = arith.constant 0 : index
    %c0_61 = arith.constant 0 : index
    %c0_62 = arith.constant 0 : index
    %21 = vector.load %arg12[%c0_59, %c0_60, %c0_61, %c0_62] : memref<2x10x10x256xbf16, #tpu.memory_space<vmem>>, vector<2x8x8x256xbf16>
    %22 = vector.shape_cast %21 : vector<2x8x8x256xbf16> to vector<128x256xbf16>
    %c0_63 = arith.constant 0 : index
    %c0_64 = arith.constant 0 : index
    %c0_65 = arith.constant 0 : index
    %23 = vector.load %arg2[%c0_63, %c0_64, %c0_65] : memref<9x256x128xbf16, #tpu.memory_space<vmem>>, vector<1x256x128xbf16>
    %24 = vector.shape_cast %23 : vector<1x256x128xbf16> to vector<256x128xbf16>
    %cst_66 = arith.constant dense<0.000000e+00> : vector<128x128xf32>
    %25 = tpu.matmul %22, %24, %cst_66 {dimension_numbers = #tpu.dot_dimension_numbers<[1], [0], [0], [1], [0, 0, 1, 1], [], []>} : vector<128x256xbf16>, vector<256x128xbf16>, vector<128x128xf32> -> vector<128x128xf32>
    %26 = arith.addf %20, %25 : vector<128x128xf32>
    %c0_67 = arith.constant 0 : index
    %c0_68 = arith.constant 0 : index
    %c1_69 = arith.constant 1 : index
    %c0_70 = arith.constant 0 : index
    %27 = vector.load %arg12[%c0_67, %c0_68, %c1_69, %c0_70] : memref<2x10x10x256xbf16, #tpu.memory_space<vmem>>, vector<2x8x8x256xbf16>
    %28 = vector.shape_cast %27 : vector<2x8x8x256xbf16> to vector<128x256xbf16>
    %c1_71 = arith.constant 1 : index
    %c0_72 = arith.constant 0 : index
    %c0_73 = arith.constant 0 : index
    %29 = vector.load %arg2[%c1_71, %c0_72, %c0_73] : memref<9x256x128xbf16, #tpu.memory_space<vmem>>, vector<1x256x128xbf16>
    %30 = vector.shape_cast %29 : vector<1x256x128xbf16> to vector<256x128xbf16>
    %cst_74 = arith.constant dense<0.000000e+00> : vector<128x128xf32>
    %31 = tpu.matmul %28, %30, %cst_74 {dimension_numbers = #tpu.dot_dimension_numbers<[1], [0], [0], [1], [0, 0, 1, 1], [], []>} : vector<128x256xbf16>, vector<256x128xbf16>, vector<128x128xf32> -> vector<128x128xf32>
    %32 = arith.addf %26, %31 : vector<128x128xf32>
    %c0_75 = arith.constant 0 : index
    %c0_76 = arith.constant 0 : index
    %c2 = arith.constant 2 : index
    %c0_77 = arith.constant 0 : index
    %33 = vector.load %arg12[%c0_75, %c0_76, %c2, %c0_77] : memref<2x10x10x256xbf16, #tpu.memory_space<vmem>>, vector<2x8x8x256xbf16>
    %34 = vector.shape_cast %33 : vector<2x8x8x256xbf16> to vector<128x256xbf16>
    %c2_78 = arith.constant 2 : index
    %c0_79 = arith.constant 0 : index
    %c0_80 = arith.constant 0 : index
    %35 = vector.load %arg2[%c2_78, %c0_79, %c0_80] : memref<9x256x128xbf16, #tpu.memory_space<vmem>>, vector<1x256x128xbf16>
    %36 = vector.shape_cast %35 : vector<1x256x128xbf16> to vector<256x128xbf16>
    %cst_81 = arith.constant dense<0.000000e+00> : vector<128x128xf32>
    %37 = tpu.matmul %34, %36, %cst_81 {dimension_numbers = #tpu.dot_dimension_numbers<[1], [0], [0], [1], [0, 0, 1, 1], [], []>} : vector<128x256xbf16>, vector<256x128xbf16>, vector<128x128xf32> -> vector<128x128xf32>
    %38 = arith.addf %32, %37 : vector<128x128xf32>
    %c0_82 = arith.constant 0 : index
    %c1_83 = arith.constant 1 : index
    %c0_84 = arith.constant 0 : index
    %c0_85 = arith.constant 0 : index
    %39 = vector.load %arg12[%c0_82, %c1_83, %c0_84, %c0_85] : memref<2x10x10x256xbf16, #tpu.memory_space<vmem>>, vector<2x8x8x256xbf16>
    %40 = vector.shape_cast %39 : vector<2x8x8x256xbf16> to vector<128x256xbf16>
    %c3 = arith.constant 3 : index
    %c0_86 = arith.constant 0 : index
    %c0_87 = arith.constant 0 : index
    %41 = vector.load %arg2[%c3, %c0_86, %c0_87] : memref<9x256x128xbf16, #tpu.memory_space<vmem>>, vector<1x256x128xbf16>
    %42 = vector.shape_cast %41 : vector<1x256x128xbf16> to vector<256x128xbf16>
    %cst_88 = arith.constant dense<0.000000e+00> : vector<128x128xf32>
    %43 = tpu.matmul %40, %42, %cst_88 {dimension_numbers = #tpu.dot_dimension_numbers<[1], [0], [0], [1], [0, 0, 1, 1], [], []>} : vector<128x256xbf16>, vector<256x128xbf16>, vector<128x128xf32> -> vector<128x128xf32>
    %44 = arith.addf %38, %43 : vector<128x128xf32>
    %c0_89 = arith.constant 0 : index
    %c1_90 = arith.constant 1 : index
    %c1_91 = arith.constant 1 : index
    %c0_92 = arith.constant 0 : index
    %45 = vector.load %arg12[%c0_89, %c1_90, %c1_91, %c0_92] : memref<2x10x10x256xbf16, #tpu.memory_space<vmem>>, vector<2x8x8x256xbf16>
    %46 = vector.shape_cast %45 : vector<2x8x8x256xbf16> to vector<128x256xbf16>
    %c4 = arith.constant 4 : index
    %c0_93 = arith.constant 0 : index
    %c0_94 = arith.constant 0 : index
    %47 = vector.load %arg2[%c4, %c0_93, %c0_94] : memref<9x256x128xbf16, #tpu.memory_space<vmem>>, vector<1x256x128xbf16>
    %48 = vector.shape_cast %47 : vector<1x256x128xbf16> to vector<256x128xbf16>
    %cst_95 = arith.constant dense<0.000000e+00> : vector<128x128xf32>
    %49 = tpu.matmul %46, %48, %cst_95 {dimension_numbers = #tpu.dot_dimension_numbers<[1], [0], [0], [1], [0, 0, 1, 1], [], []>} : vector<128x256xbf16>, vector<256x128xbf16>, vector<128x128xf32> -> vector<128x128xf32>
    %50 = arith.addf %44, %49 : vector<128x128xf32>
    %c0_96 = arith.constant 0 : index
    %c1_97 = arith.constant 1 : index
    %c2_98 = arith.constant 2 : index
    %c0_99 = arith.constant 0 : index
    %51 = vector.load %arg12[%c0_96, %c1_97, %c2_98, %c0_99] : memref<2x10x10x256xbf16, #tpu.memory_space<vmem>>, vector<2x8x8x256xbf16>
    %52 = vector.shape_cast %51 : vector<2x8x8x256xbf16> to vector<128x256xbf16>
    %c5 = arith.constant 5 : index
    %c0_100 = arith.constant 0 : index
    %c0_101 = arith.constant 0 : index
    %53 = vector.load %arg2[%c5, %c0_100, %c0_101] : memref<9x256x128xbf16, #tpu.memory_space<vmem>>, vector<1x256x128xbf16>
    %54 = vector.shape_cast %53 : vector<1x256x128xbf16> to vector<256x128xbf16>
    %cst_102 = arith.constant dense<0.000000e+00> : vector<128x128xf32>
    %55 = tpu.matmul %52, %54, %cst_102 {dimension_numbers = #tpu.dot_dimension_numbers<[1], [0], [0], [1], [0, 0, 1, 1], [], []>} : vector<128x256xbf16>, vector<256x128xbf16>, vector<128x128xf32> -> vector<128x128xf32>
    %56 = arith.addf %50, %55 : vector<128x128xf32>
    %c0_103 = arith.constant 0 : index
    %c2_104 = arith.constant 2 : index
    %c0_105 = arith.constant 0 : index
    %c0_106 = arith.constant 0 : index
    %57 = vector.load %arg12[%c0_103, %c2_104, %c0_105, %c0_106] : memref<2x10x10x256xbf16, #tpu.memory_space<vmem>>, vector<2x8x8x256xbf16>
    %58 = vector.shape_cast %57 : vector<2x8x8x256xbf16> to vector<128x256xbf16>
    %c6 = arith.constant 6 : index
    %c0_107 = arith.constant 0 : index
    %c0_108 = arith.constant 0 : index
    %59 = vector.load %arg2[%c6, %c0_107, %c0_108] : memref<9x256x128xbf16, #tpu.memory_space<vmem>>, vector<1x256x128xbf16>
    %60 = vector.shape_cast %59 : vector<1x256x128xbf16> to vector<256x128xbf16>
    %cst_109 = arith.constant dense<0.000000e+00> : vector<128x128xf32>
    %61 = tpu.matmul %58, %60, %cst_109 {dimension_numbers = #tpu.dot_dimension_numbers<[1], [0], [0], [1], [0, 0, 1, 1], [], []>} : vector<128x256xbf16>, vector<256x128xbf16>, vector<128x128xf32> -> vector<128x128xf32>
    %62 = arith.addf %56, %61 : vector<128x128xf32>
    %c0_110 = arith.constant 0 : index
    %c2_111 = arith.constant 2 : index
    %c1_112 = arith.constant 1 : index
    %c0_113 = arith.constant 0 : index
    %63 = vector.load %arg12[%c0_110, %c2_111, %c1_112, %c0_113] : memref<2x10x10x256xbf16, #tpu.memory_space<vmem>>, vector<2x8x8x256xbf16>
    %64 = vector.shape_cast %63 : vector<2x8x8x256xbf16> to vector<128x256xbf16>
    %c7 = arith.constant 7 : index
    %c0_114 = arith.constant 0 : index
    %c0_115 = arith.constant 0 : index
    %65 = vector.load %arg2[%c7, %c0_114, %c0_115] : memref<9x256x128xbf16, #tpu.memory_space<vmem>>, vector<1x256x128xbf16>
    %66 = vector.shape_cast %65 : vector<1x256x128xbf16> to vector<256x128xbf16>
    %cst_116 = arith.constant dense<0.000000e+00> : vector<128x128xf32>
    %67 = tpu.matmul %64, %66, %cst_116 {dimension_numbers = #tpu.dot_dimension_numbers<[1], [0], [0], [1], [0, 0, 1, 1], [], []>} : vector<128x256xbf16>, vector<256x128xbf16>, vector<128x128xf32> -> vector<128x128xf32>
    %68 = arith.addf %62, %67 : vector<128x128xf32>
    %c0_117 = arith.constant 0 : index
    %c2_118 = arith.constant 2 : index
    %c2_119 = arith.constant 2 : index
    %c0_120 = arith.constant 0 : index
    %69 = vector.load %arg12[%c0_117, %c2_118, %c2_119, %c0_120] : memref<2x10x10x256xbf16, #tpu.memory_space<vmem>>, vector<2x8x8x256xbf16>
    %70 = vector.shape_cast %69 : vector<2x8x8x256xbf16> to vector<128x256xbf16>
    %c8 = arith.constant 8 : index
    %c0_121 = arith.constant 0 : index
    %c0_122 = arith.constant 0 : index
    %71 = vector.load %arg2[%c8, %c0_121, %c0_122] : memref<9x256x128xbf16, #tpu.memory_space<vmem>>, vector<1x256x128xbf16>
    %72 = vector.shape_cast %71 : vector<1x256x128xbf16> to vector<256x128xbf16>
    %cst_123 = arith.constant dense<0.000000e+00> : vector<128x128xf32>
    %73 = tpu.matmul %70, %72, %cst_123 {dimension_numbers = #tpu.dot_dimension_numbers<[1], [0], [0], [1], [0, 0, 1, 1], [], []>} : vector<128x256xbf16>, vector<256x128xbf16>, vector<128x128xf32> -> vector<128x128xf32>
    %74 = arith.addf %68, %73 : vector<128x128xf32>
    %c0_124 = arith.constant 0 : index
    %c0_125 = arith.constant 0 : index
    %75 = vector.load %arg3[%c0_124, %c0_125] : memref<1x128xf32, #tpu.memory_space<vmem>>, vector<1x128xf32>
    %76 = vector.broadcast %75 : vector<1x128xf32> to vector<128x128xf32>
    %77 = arith.mulf %74, %76 : vector<128x128xf32>
    %c0_126 = arith.constant 0 : index
    %c0_127 = arith.constant 0 : index
    %78 = vector.load %arg4[%c0_126, %c0_127] : memref<1x128xf32, #tpu.memory_space<vmem>>, vector<1x128xf32>
    %79 = vector.broadcast %78 : vector<1x128xf32> to vector<128x128xf32>
    %80 = arith.addf %77, %79 : vector<128x128xf32>
    %cst_128 = arith.constant 0.000000e+00 : f32
    %81 = vector.broadcast %cst_128 : f32 to vector<128x128xf32>
    %82 = arith.maximumf %80, %81 : vector<128x128xf32>
    %83 = vector.shape_cast %82 : vector<128x128xf32> to vector<2x8x8x128xf32>
    %84 = arith.truncf %83 : vector<2x8x8x128xf32> to vector<2x8x8x128xbf16>
    %c0_129 = arith.constant 0 : index
    %c1_130 = arith.constant 1 : index
    %c1_131 = arith.constant 1 : index
    %c0_132 = arith.constant 0 : index
    %85 = vector.load %arg13[%c0_129, %c1_130, %c1_131, %c0_132] : memref<2x10x10x128xbf16, #tpu.memory_space<vmem>>, vector<2x8x8x128xbf16>
    tpu.vector_store %arg13[%c0_129, %c1_130, %c1_131, %c0_132], %84 {strides = array<i32>} : memref<2x10x10x128xbf16, #tpu.memory_space<vmem>>, vector<2x8x8x128xbf16>,
    %cst_133 = arith.constant 0.000000e+00 : f32
    %86 = vector.broadcast %cst_133 : f32 to vector<128x64xf32>
    %c0_134 = arith.constant 0 : index
    %c0_135 = arith.constant 0 : index
    %c0_136 = arith.constant 0 : index
    %c0_137 = arith.constant 0 : index
    %87 = vector.load %arg13[%c0_134, %c0_135, %c0_136, %c0_137] : memref<2x10x10x128xbf16, #tpu.memory_space<vmem>>, vector<2x8x8x128xbf16>
    %88 = vector.shape_cast %87 : vector<2x8x8x128xbf16> to vector<128x128xbf16>
    %c0_138 = arith.constant 0 : index
    %c0_139 = arith.constant 0 : index
    %c0_140 = arith.constant 0 : index
    %89 = vector.load %arg5[%c0_138, %c0_139, %c0_140] : memref<9x128x64xbf16, #tpu.memory_space<vmem>>, vector<1x128x64xbf16>
    %90 = vector.shape_cast %89 : vector<1x128x64xbf16> to vector<128x64xbf16>
    %cst_141 = arith.constant dense<0.000000e+00> : vector<128x64xf32>
    %91 = tpu.matmul %88, %90, %cst_141 {dimension_numbers = #tpu.dot_dimension_numbers<[1], [0], [0], [1], [0, 0, 1, 1], [], []>} : vector<128x128xbf16>, vector<128x64xbf16>, vector<128x64xf32> -> vector<128x64xf32>
    %92 = arith.addf %86, %91 : vector<128x64xf32>
    %c0_142 = arith.constant 0 : index
    %c0_143 = arith.constant 0 : index
    %c1_144 = arith.constant 1 : index
    %c0_145 = arith.constant 0 : index
    %93 = vector.load %arg13[%c0_142, %c0_143, %c1_144, %c0_145] : memref<2x10x10x128xbf16, #tpu.memory_space<vmem>>, vector<2x8x8x128xbf16>
    %94 = vector.shape_cast %93 : vector<2x8x8x128xbf16> to vector<128x128xbf16>
    %c1_146 = arith.constant 1 : index
    %c0_147 = arith.constant 0 : index
    %c0_148 = arith.constant 0 : index
    %95 = vector.load %arg5[%c1_146, %c0_147, %c0_148] : memref<9x128x64xbf16, #tpu.memory_space<vmem>>, vector<1x128x64xbf16>
    %96 = vector.shape_cast %95 : vector<1x128x64xbf16> to vector<128x64xbf16>
    %cst_149 = arith.constant dense<0.000000e+00> : vector<128x64xf32>
    %97 = tpu.matmul %94, %96, %cst_149 {dimension_numbers = #tpu.dot_dimension_numbers<[1], [0], [0], [1], [0, 0, 1, 1], [], []>} : vector<128x128xbf16>, vector<128x64xbf16>, vector<128x64xf32> -> vector<128x64xf32>
    %98 = arith.addf %92, %97 : vector<128x64xf32>
    %c0_150 = arith.constant 0 : index
    %c0_151 = arith.constant 0 : index
    %c2_152 = arith.constant 2 : index
    %c0_153 = arith.constant 0 : index
    %99 = vector.load %arg13[%c0_150, %c0_151, %c2_152, %c0_153] : memref<2x10x10x128xbf16, #tpu.memory_space<vmem>>, vector<2x8x8x128xbf16>
    %100 = vector.shape_cast %99 : vector<2x8x8x128xbf16> to vector<128x128xbf16>
    %c2_154 = arith.constant 2 : index
    %c0_155 = arith.constant 0 : index
    %c0_156 = arith.constant 0 : index
    %101 = vector.load %arg5[%c2_154, %c0_155, %c0_156] : memref<9x128x64xbf16, #tpu.memory_space<vmem>>, vector<1x128x64xbf16>
    %102 = vector.shape_cast %101 : vector<1x128x64xbf16> to vector<128x64xbf16>
    %cst_157 = arith.constant dense<0.000000e+00> : vector<128x64xf32>
    %103 = tpu.matmul %100, %102, %cst_157 {dimension_numbers = #tpu.dot_dimension_numbers<[1], [0], [0], [1], [0, 0, 1, 1], [], []>} : vector<128x128xbf16>, vector<128x64xbf16>, vector<128x64xf32> -> vector<128x64xf32>
    %104 = arith.addf %98, %103 : vector<128x64xf32>
    %c0_158 = arith.constant 0 : index
    %c1_159 = arith.constant 1 : index
    %c0_160 = arith.constant 0 : index
    %c0_161 = arith.constant 0 : index
    %105 = vector.load %arg13[%c0_158, %c1_159, %c0_160, %c0_161] : memref<2x10x10x128xbf16, #tpu.memory_space<vmem>>, vector<2x8x8x128xbf16>
    %106 = vector.shape_cast %105 : vector<2x8x8x128xbf16> to vector<128x128xbf16>
    %c3_162 = arith.constant 3 : index
    %c0_163 = arith.constant 0 : index
    %c0_164 = arith.constant 0 : index
    %107 = vector.load %arg5[%c3_162, %c0_163, %c0_164] : memref<9x128x64xbf16, #tpu.memory_space<vmem>>, vector<1x128x64xbf16>
    %108 = vector.shape_cast %107 : vector<1x128x64xbf16> to vector<128x64xbf16>
    %cst_165 = arith.constant dense<0.000000e+00> : vector<128x64xf32>
    %109 = tpu.matmul %106, %108, %cst_165 {dimension_numbers = #tpu.dot_dimension_numbers<[1], [0], [0], [1], [0, 0, 1, 1], [], []>} : vector<128x128xbf16>, vector<128x64xbf16>, vector<128x64xf32> -> vector<128x64xf32>
    %110 = arith.addf %104, %109 : vector<128x64xf32>
    %c0_166 = arith.constant 0 : index
    %c1_167 = arith.constant 1 : index
    %c1_168 = arith.constant 1 : index
    %c0_169 = arith.constant 0 : index
    %111 = vector.load %arg13[%c0_166, %c1_167, %c1_168, %c0_169] : memref<2x10x10x128xbf16, #tpu.memory_space<vmem>>, vector<2x8x8x128xbf16>
    %112 = vector.shape_cast %111 : vector<2x8x8x128xbf16> to vector<128x128xbf16>
    %c4_170 = arith.constant 4 : index
    %c0_171 = arith.constant 0 : index
    %c0_172 = arith.constant 0 : index
    %113 = vector.load %arg5[%c4_170, %c0_171, %c0_172] : memref<9x128x64xbf16, #tpu.memory_space<vmem>>, vector<1x128x64xbf16>
    %114 = vector.shape_cast %113 : vector<1x128x64xbf16> to vector<128x64xbf16>
    %cst_173 = arith.constant dense<0.000000e+00> : vector<128x64xf32>
    %115 = tpu.matmul %112, %114, %cst_173 {dimension_numbers = #tpu.dot_dimension_numbers<[1], [0], [0], [1], [0, 0, 1, 1], [], []>} : vector<128x128xbf16>, vector<128x64xbf16>, vector<128x64xf32> -> vector<128x64xf32>
    %116 = arith.addf %110, %115 : vector<128x64xf32>
    %c0_174 = arith.constant 0 : index
    %c1_175 = arith.constant 1 : index
    %c2_176 = arith.constant 2 : index
    %c0_177 = arith.constant 0 : index
    %117 = vector.load %arg13[%c0_174, %c1_175, %c2_176, %c0_177] : memref<2x10x10x128xbf16, #tpu.memory_space<vmem>>, vector<2x8x8x128xbf16>
    %118 = vector.shape_cast %117 : vector<2x8x8x128xbf16> to vector<128x128xbf16>
    %c5_178 = arith.constant 5 : index
    %c0_179 = arith.constant 0 : index
    %c0_180 = arith.constant 0 : index
    %119 = vector.load %arg5[%c5_178, %c0_179, %c0_180] : memref<9x128x64xbf16, #tpu.memory_space<vmem>>, vector<1x128x64xbf16>
    %120 = vector.shape_cast %119 : vector<1x128x64xbf16> to vector<128x64xbf16>
    %cst_181 = arith.constant dense<0.000000e+00> : vector<128x64xf32>
    %121 = tpu.matmul %118, %120, %cst_181 {dimension_numbers = #tpu.dot_dimension_numbers<[1], [0], [0], [1], [0, 0, 1, 1], [], []>} : vector<128x128xbf16>, vector<128x64xbf16>, vector<128x64xf32> -> vector<128x64xf32>
    %122 = arith.addf %116, %121 : vector<128x64xf32>
    %c0_182 = arith.constant 0 : index
    %c2_183 = arith.constant 2 : index
    %c0_184 = arith.constant 0 : index
    %c0_185 = arith.constant 0 : index
    %123 = vector.load %arg13[%c0_182, %c2_183, %c0_184, %c0_185] : memref<2x10x10x128xbf16, #tpu.memory_space<vmem>>, vector<2x8x8x128xbf16>
    %124 = vector.shape_cast %123 : vector<2x8x8x128xbf16> to vector<128x128xbf16>
    %c6_186 = arith.constant 6 : index
    %c0_187 = arith.constant 0 : index
    %c0_188 = arith.constant 0 : index
    %125 = vector.load %arg5[%c6_186, %c0_187, %c0_188] : memref<9x128x64xbf16, #tpu.memory_space<vmem>>, vector<1x128x64xbf16>
    %126 = vector.shape_cast %125 : vector<1x128x64xbf16> to vector<128x64xbf16>
    %cst_189 = arith.constant dense<0.000000e+00> : vector<128x64xf32>
    %127 = tpu.matmul %124, %126, %cst_189 {dimension_numbers = #tpu.dot_dimension_numbers<[1], [0], [0], [1], [0, 0, 1, 1], [], []>} : vector<128x128xbf16>, vector<128x64xbf16>, vector<128x64xf32> -> vector<128x64xf32>
    %128 = arith.addf %122, %127 : vector<128x64xf32>
    %c0_190 = arith.constant 0 : index
    %c2_191 = arith.constant 2 : index
    %c1_192 = arith.constant 1 : index
    %c0_193 = arith.constant 0 : index
    %129 = vector.load %arg13[%c0_190, %c2_191, %c1_192, %c0_193] : memref<2x10x10x128xbf16, #tpu.memory_space<vmem>>, vector<2x8x8x128xbf16>
    %130 = vector.shape_cast %129 : vector<2x8x8x128xbf16> to vector<128x128xbf16>
    %c7_194 = arith.constant 7 : index
    %c0_195 = arith.constant 0 : index
    %c0_196 = arith.constant 0 : index
    %131 = vector.load %arg5[%c7_194, %c0_195, %c0_196] : memref<9x128x64xbf16, #tpu.memory_space<vmem>>, vector<1x128x64xbf16>
    %132 = vector.shape_cast %131 : vector<1x128x64xbf16> to vector<128x64xbf16>
    %cst_197 = arith.constant dense<0.000000e+00> : vector<128x64xf32>
    %133 = tpu.matmul %130, %132, %cst_197 {dimension_numbers = #tpu.dot_dimension_numbers<[1], [0], [0], [1], [0, 0, 1, 1], [], []>} : vector<128x128xbf16>, vector<128x64xbf16>, vector<128x64xf32> -> vector<128x64xf32>
    %134 = arith.addf %128, %133 : vector<128x64xf32>
    %c0_198 = arith.constant 0 : index
    %c2_199 = arith.constant 2 : index
    %c2_200 = arith.constant 2 : index
    %c0_201 = arith.constant 0 : index
    %135 = vector.load %arg13[%c0_198, %c2_199, %c2_200, %c0_201] : memref<2x10x10x128xbf16, #tpu.memory_space<vmem>>, vector<2x8x8x128xbf16>
    %136 = vector.shape_cast %135 : vector<2x8x8x128xbf16> to vector<128x128xbf16>
    %c8_202 = arith.constant 8 : index
    %c0_203 = arith.constant 0 : index
    %c0_204 = arith.constant 0 : index
    %137 = vector.load %arg5[%c8_202, %c0_203, %c0_204] : memref<9x128x64xbf16, #tpu.memory_space<vmem>>, vector<1x128x64xbf16>
    %138 = vector.shape_cast %137 : vector<1x128x64xbf16> to vector<128x64xbf16>
    %cst_205 = arith.constant dense<0.000000e+00> : vector<128x64xf32>
    %139 = tpu.matmul %136, %138, %cst_205 {dimension_numbers = #tpu.dot_dimension_numbers<[1], [0], [0], [1], [0, 0, 1, 1], [], []>} : vector<128x128xbf16>, vector<128x64xbf16>, vector<128x64xf32> -> vector<128x64xf32>
    %140 = arith.addf %134, %139 : vector<128x64xf32>
    %c0_206 = arith.constant 0 : index
    %c0_207 = arith.constant 0 : index
    %141 = vector.load %arg6[%c0_206, %c0_207] : memref<1x64xf32, #tpu.memory_space<vmem>>, vector<1x64xf32>
    %142 = vector.broadcast %141 : vector<1x64xf32> to vector<128x64xf32>
    %143 = arith.mulf %140, %142 : vector<128x64xf32>
    %c0_208 = arith.constant 0 : index
    %c0_209 = arith.constant 0 : index
    %144 = vector.load %arg7[%c0_208, %c0_209] : memref<1x64xf32, #tpu.memory_space<vmem>>, vector<1x64xf32>
    %145 = vector.broadcast %144 : vector<1x64xf32> to vector<128x64xf32>
    %146 = arith.addf %143, %145 : vector<128x64xf32>
    %cst_210 = arith.constant 0.000000e+00 : f32
    %147 = vector.broadcast %cst_210 : f32 to vector<128x64xf32>
    %148 = arith.maximumf %146, %147 : vector<128x64xf32>
    %149 = vector.shape_cast %148 : vector<128x64xf32> to vector<2x8x8x64xf32>
    %150 = arith.truncf %149 : vector<2x8x8x64xf32> to vector<2x8x8x64xbf16>
    %c0_211 = arith.constant 0 : index
    %c1_212 = arith.constant 1 : index
    %c1_213 = arith.constant 1 : index
    %c0_214 = arith.constant 0 : index
    %151 = vector.load %arg14[%c0_211, %c1_212, %c1_213, %c0_214] : memref<2x10x10x64xbf16, #tpu.memory_space<vmem>>, vector<2x8x8x64xbf16>
    tpu.vector_store %arg14[%c0_211, %c1_212, %c1_213, %c0_214], %150 {strides = array<i32>} : memref<2x10x10x64xbf16, #tpu.memory_space<vmem>>, vector<2x8x8x64xbf16>,
    %cst_215 = arith.constant 0.000000e+00 : f32
    %152 = vector.broadcast %cst_215 : f32 to vector<128x2xf32>
    %c0_216 = arith.constant 0 : index
    %c0_217 = arith.constant 0 : index
    %c0_218 = arith.constant 0 : index
    %c0_219 = arith.constant 0 : index
    %153 = vector.load %arg14[%c0_216, %c0_217, %c0_218, %c0_219] : memref<2x10x10x64xbf16, #tpu.memory_space<vmem>>, vector<2x8x8x64xbf16>
    %154 = vector.shape_cast %153 : vector<2x8x8x64xbf16> to vector<128x64xbf16>
    %c0_220 = arith.constant 0 : index
    %c0_221 = arith.constant 0 : index
    %c0_222 = arith.constant 0 : index
    %155 = vector.load %arg8[%c0_220, %c0_221, %c0_222] : memref<9x64x2xbf16, #tpu.memory_space<vmem>>, vector<1x64x2xbf16>
    %156 = vector.shape_cast %155 : vector<1x64x2xbf16> to vector<64x2xbf16>
    %cst_223 = arith.constant dense<0.000000e+00> : vector<128x2xf32>
    %157 = tpu.matmul %154, %156, %cst_223 {dimension_numbers = #tpu.dot_dimension_numbers<[1], [0], [0], [1], [0, 0, 1, 1], [], []>} : vector<128x64xbf16>, vector<64x2xbf16>, vector<128x2xf32> -> vector<128x2xf32>
    %158 = arith.addf %152, %157 : vector<128x2xf32>
    %c0_224 = arith.constant 0 : index
    %c0_225 = arith.constant 0 : index
    %c1_226 = arith.constant 1 : index
    %c0_227 = arith.constant 0 : index
    %159 = vector.load %arg14[%c0_224, %c0_225, %c1_226, %c0_227] : memref<2x10x10x64xbf16, #tpu.memory_space<vmem>>, vector<2x8x8x64xbf16>
    %160 = vector.shape_cast %159 : vector<2x8x8x64xbf16> to vector<128x64xbf16>
    %c1_228 = arith.constant 1 : index
    %c0_229 = arith.constant 0 : index
    %c0_230 = arith.constant 0 : index
    %161 = vector.load %arg8[%c1_228, %c0_229, %c0_230] : memref<9x64x2xbf16, #tpu.memory_space<vmem>>, vector<1x64x2xbf16>
    %162 = vector.shape_cast %161 : vector<1x64x2xbf16> to vector<64x2xbf16>
    %cst_231 = arith.constant dense<0.000000e+00> : vector<128x2xf32>
    %163 = tpu.matmul %160, %162, %cst_231 {dimension_numbers = #tpu.dot_dimension_numbers<[1], [0], [0], [1], [0, 0, 1, 1], [], []>} : vector<128x64xbf16>, vector<64x2xbf16>, vector<128x2xf32> -> vector<128x2xf32>
    %164 = arith.addf %158, %163 : vector<128x2xf32>
    %c0_232 = arith.constant 0 : index
    %c0_233 = arith.constant 0 : index
    %c2_234 = arith.constant 2 : index
    %c0_235 = arith.constant 0 : index
    %165 = vector.load %arg14[%c0_232, %c0_233, %c2_234, %c0_235] : memref<2x10x10x64xbf16, #tpu.memory_space<vmem>>, vector<2x8x8x64xbf16>
    %166 = vector.shape_cast %165 : vector<2x8x8x64xbf16> to vector<128x64xbf16>
    %c2_236 = arith.constant 2 : index
    %c0_237 = arith.constant 0 : index
    %c0_238 = arith.constant 0 : index
    %167 = vector.load %arg8[%c2_236, %c0_237, %c0_238] : memref<9x64x2xbf16, #tpu.memory_space<vmem>>, vector<1x64x2xbf16>
    %168 = vector.shape_cast %167 : vector<1x64x2xbf16> to vector<64x2xbf16>
    %cst_239 = arith.constant dense<0.000000e+00> : vector<128x2xf32>
    %169 = tpu.matmul %166, %168, %cst_239 {dimension_numbers = #tpu.dot_dimension_numbers<[1], [0], [0], [1], [0, 0, 1, 1], [], []>} : vector<128x64xbf16>, vector<64x2xbf16>, vector<128x2xf32> -> vector<128x2xf32>
    %170 = arith.addf %164, %169 : vector<128x2xf32>
    %c0_240 = arith.constant 0 : index
    %c1_241 = arith.constant 1 : index
    %c0_242 = arith.constant 0 : index
    %c0_243 = arith.constant 0 : index
    %171 = vector.load %arg14[%c0_240, %c1_241, %c0_242, %c0_243] : memref<2x10x10x64xbf16, #tpu.memory_space<vmem>>, vector<2x8x8x64xbf16>
    %172 = vector.shape_cast %171 : vector<2x8x8x64xbf16> to vector<128x64xbf16>
    %c3_244 = arith.constant 3 : index
    %c0_245 = arith.constant 0 : index
    %c0_246 = arith.constant 0 : index
    %173 = vector.load %arg8[%c3_244, %c0_245, %c0_246] : memref<9x64x2xbf16, #tpu.memory_space<vmem>>, vector<1x64x2xbf16>
    %174 = vector.shape_cast %173 : vector<1x64x2xbf16> to vector<64x2xbf16>
    %cst_247 = arith.constant dense<0.000000e+00> : vector<128x2xf32>
    %175 = tpu.matmul %172, %174, %cst_247 {dimension_numbers = #tpu.dot_dimension_numbers<[1], [0], [0], [1], [0, 0, 1, 1], [], []>} : vector<128x64xbf16>, vector<64x2xbf16>, vector<128x2xf32> -> vector<128x2xf32>
    %176 = arith.addf %170, %175 : vector<128x2xf32>
    %c0_248 = arith.constant 0 : index
    %c1_249 = arith.constant 1 : index
    %c1_250 = arith.constant 1 : index
    %c0_251 = arith.constant 0 : index
    %177 = vector.load %arg14[%c0_248, %c1_249, %c1_250, %c0_251] : memref<2x10x10x64xbf16, #tpu.memory_space<vmem>>, vector<2x8x8x64xbf16>
    %178 = vector.shape_cast %177 : vector<2x8x8x64xbf16> to vector<128x64xbf16>
    %c4_252 = arith.constant 4 : index
    %c0_253 = arith.constant 0 : index
    %c0_254 = arith.constant 0 : index
    %179 = vector.load %arg8[%c4_252, %c0_253, %c0_254] : memref<9x64x2xbf16, #tpu.memory_space<vmem>>, vector<1x64x2xbf16>
    %180 = vector.shape_cast %179 : vector<1x64x2xbf16> to vector<64x2xbf16>
    %cst_255 = arith.constant dense<0.000000e+00> : vector<128x2xf32>
    %181 = tpu.matmul %178, %180, %cst_255 {dimension_numbers = #tpu.dot_dimension_numbers<[1], [0], [0], [1], [0, 0, 1, 1], [], []>} : vector<128x64xbf16>, vector<64x2xbf16>, vector<128x2xf32> -> vector<128x2xf32>
    %182 = arith.addf %176, %181 : vector<128x2xf32>
    %c0_256 = arith.constant 0 : index
    %c1_257 = arith.constant 1 : index
    %c2_258 = arith.constant 2 : index
    %c0_259 = arith.constant 0 : index
    %183 = vector.load %arg14[%c0_256, %c1_257, %c2_258, %c0_259] : memref<2x10x10x64xbf16, #tpu.memory_space<vmem>>, vector<2x8x8x64xbf16>
    %184 = vector.shape_cast %183 : vector<2x8x8x64xbf16> to vector<128x64xbf16>
    %c5_260 = arith.constant 5 : index
    %c0_261 = arith.constant 0 : index
    %c0_262 = arith.constant 0 : index
    %185 = vector.load %arg8[%c5_260, %c0_261, %c0_262] : memref<9x64x2xbf16, #tpu.memory_space<vmem>>, vector<1x64x2xbf16>
    %186 = vector.shape_cast %185 : vector<1x64x2xbf16> to vector<64x2xbf16>
    %cst_263 = arith.constant dense<0.000000e+00> : vector<128x2xf32>
    %187 = tpu.matmul %184, %186, %cst_263 {dimension_numbers = #tpu.dot_dimension_numbers<[1], [0], [0], [1], [0, 0, 1, 1], [], []>} : vector<128x64xbf16>, vector<64x2xbf16>, vector<128x2xf32> -> vector<128x2xf32>
    %188 = arith.addf %182, %187 : vector<128x2xf32>
    %c0_264 = arith.constant 0 : index
    %c2_265 = arith.constant 2 : index
    %c0_266 = arith.constant 0 : index
    %c0_267 = arith.constant 0 : index
    %189 = vector.load %arg14[%c0_264, %c2_265, %c0_266, %c0_267] : memref<2x10x10x64xbf16, #tpu.memory_space<vmem>>, vector<2x8x8x64xbf16>
    %190 = vector.shape_cast %189 : vector<2x8x8x64xbf16> to vector<128x64xbf16>
    %c6_268 = arith.constant 6 : index
    %c0_269 = arith.constant 0 : index
    %c0_270 = arith.constant 0 : index
    %191 = vector.load %arg8[%c6_268, %c0_269, %c0_270] : memref<9x64x2xbf16, #tpu.memory_space<vmem>>, vector<1x64x2xbf16>
    %192 = vector.shape_cast %191 : vector<1x64x2xbf16> to vector<64x2xbf16>
    %cst_271 = arith.constant dense<0.000000e+00> : vector<128x2xf32>
    %193 = tpu.matmul %190, %192, %cst_271 {dimension_numbers = #tpu.dot_dimension_numbers<[1], [0], [0], [1], [0, 0, 1, 1], [], []>} : vector<128x64xbf16>, vector<64x2xbf16>, vector<128x2xf32> -> vector<128x2xf32>
    %194 = arith.addf %188, %193 : vector<128x2xf32>
    %c0_272 = arith.constant 0 : index
    %c2_273 = arith.constant 2 : index
    %c1_274 = arith.constant 1 : index
    %c0_275 = arith.constant 0 : index
    %195 = vector.load %arg14[%c0_272, %c2_273, %c1_274, %c0_275] : memref<2x10x10x64xbf16, #tpu.memory_space<vmem>>, vector<2x8x8x64xbf16>
    %196 = vector.shape_cast %195 : vector<2x8x8x64xbf16> to vector<128x64xbf16>
    %c7_276 = arith.constant 7 : index
    %c0_277 = arith.constant 0 : index
    %c0_278 = arith.constant 0 : index
    %197 = vector.load %arg8[%c7_276, %c0_277, %c0_278] : memref<9x64x2xbf16, #tpu.memory_space<vmem>>, vector<1x64x2xbf16>
    %198 = vector.shape_cast %197 : vector<1x64x2xbf16> to vector<64x2xbf16>
    %cst_279 = arith.constant dense<0.000000e+00> : vector<128x2xf32>
    %199 = tpu.matmul %196, %198, %cst_279 {dimension_numbers = #tpu.dot_dimension_numbers<[1], [0], [0], [1], [0, 0, 1, 1], [], []>} : vector<128x64xbf16>, vector<64x2xbf16>, vector<128x2xf32> -> vector<128x2xf32>
    %200 = arith.addf %194, %199 : vector<128x2xf32>
    %c0_280 = arith.constant 0 : index
    %c2_281 = arith.constant 2 : index
    %c2_282 = arith.constant 2 : index
    %c0_283 = arith.constant 0 : index
    %201 = vector.load %arg14[%c0_280, %c2_281, %c2_282, %c0_283] : memref<2x10x10x64xbf16, #tpu.memory_space<vmem>>, vector<2x8x8x64xbf16>
    %202 = vector.shape_cast %201 : vector<2x8x8x64xbf16> to vector<128x64xbf16>
    %c8_284 = arith.constant 8 : index
    %c0_285 = arith.constant 0 : index
    %c0_286 = arith.constant 0 : index
    %203 = vector.load %arg8[%c8_284, %c0_285, %c0_286] : memref<9x64x2xbf16, #tpu.memory_space<vmem>>, vector<1x64x2xbf16>
    %204 = vector.shape_cast %203 : vector<1x64x2xbf16> to vector<64x2xbf16>
    %cst_287 = arith.constant dense<0.000000e+00> : vector<128x2xf32>
    %205 = tpu.matmul %202, %204, %cst_287 {dimension_numbers = #tpu.dot_dimension_numbers<[1], [0], [0], [1], [0, 0, 1, 1], [], []>} : vector<128x64xbf16>, vector<64x2xbf16>, vector<128x2xf32> -> vector<128x2xf32>
    %206 = arith.addf %200, %205 : vector<128x2xf32>
    %c0_288 = arith.constant 0 : index
    %c0_289 = arith.constant 0 : index
    %207 = vector.load %arg9[%c0_288, %c0_289] : memref<1x2xf32, #tpu.memory_space<vmem>>, vector<1x2xf32>
    %208 = vector.broadcast %207 : vector<1x2xf32> to vector<128x2xf32>
    %209 = arith.mulf %206, %208 : vector<128x2xf32>
    %c0_290 = arith.constant 0 : index
    %c0_291 = arith.constant 0 : index
    %210 = vector.load %arg10[%c0_290, %c0_291] : memref<1x2xf32, #tpu.memory_space<vmem>>, vector<1x2xf32>
    %211 = vector.broadcast %210 : vector<1x2xf32> to vector<128x2xf32>
    %212 = arith.addf %209, %211 : vector<128x2xf32>
    %cst_292 = arith.constant 0.000000e+00 : f32
    %213 = vector.broadcast %cst_292 : f32 to vector<128x2xf32>
    %214 = arith.maximumf %212, %213 : vector<128x2xf32>
    %215 = vector.extract_strided_slice %214 {offsets = [0, 0], sizes = [128, 1], strides = [1, 1]} : vector<128x2xf32> to vector<128x1xf32>
    %216 = vector.extract_strided_slice %214 {offsets = [0, 1], sizes = [128, 1], strides = [1, 1]} : vector<128x2xf32> to vector<128x1xf32>
    %217 = arith.subf %215, %216 : vector<128x1xf32>
    %218 = vector.shape_cast %217 : vector<128x1xf32> to vector<2x64xf32>
    %cst_293 = arith.constant 5.000000e-01 : f32
    %219 = vector.broadcast %cst_293 : f32 to vector<2x64xf32>
    %220 = arith.mulf %219, %218 : vector<2x64xf32>
    %221 = math.tanh %220 : vector<2x64xf32>
    %cst_294 = arith.constant 1.000000e+00 : f32
    %222 = vector.broadcast %cst_294 : f32 to vector<2x64xf32>
    %223 = arith.addf %222, %221 : vector<2x64xf32>
    %cst_295 = arith.constant 5.000000e-01 : f32
    %224 = vector.broadcast %cst_295 : f32 to vector<2x64xf32>
    %225 = arith.mulf %224, %223 : vector<2x64xf32>
    %cst_296 = arith.constant 1.000000e+00 : f32
    %226 = vector.broadcast %cst_296 : f32 to vector<2x64xf32>
    %227 = arith.subf %226, %225 : vector<2x64xf32>
    %228 = tpu.concatenate %225, %227 in 1 : vector<2x64xf32>, vector<2x64xf32> -> vector<2x128xf32>
    %229 = vector.shape_cast %228 : vector<2x128xf32> to vector<2x1x128xf32>
    %c0_297 = arith.constant 0 : index
    %c0_298 = arith.constant 0 : index
    %c0_299 = arith.constant 0 : index
    %230 = vector.load %arg11[%c0_297, %c0_298, %c0_299] : memref<2x1x128xf32, #tpu.memory_space<vmem>>, vector<2x1x128xf32>
    tpu.vector_store %arg11[%c0_297, %c0_298, %c0_299], %229 {strides = array<i32>} : memref<2x1x128xf32, #tpu.memory_space<vmem>>, vector<2x1x128xf32>,
    return
  }
  func.func @transform_0(%arg0: i32) -> (i32, i32, i32, i32) {
    %c0_i32 = arith.constant 0 : i32
    %c0_i32_0 = arith.constant 0 : i32
    %c0_i32_1 = arith.constant 0 : i32
    %c0_i32_2 = arith.constant 0 : i32
    return %arg0, %c0_i32, %c0_i32_0, %c0_i32_1 : i32, i32, i32, i32
  }
  func.func @transform_1(%arg0: i32) -> (i32, i32, i32) {
    %c0_i32 = arith.constant 0 : i32
    %c0_i32_0 = arith.constant 0 : i32
    %c0_i32_1 = arith.constant 0 : i32
    %c0_i32_2 = arith.constant 0 : i32
    return %c0_i32, %c0_i32_0, %c0_i32_1 : i32, i32, i32
  }
  func.func @transform_2(%arg0: i32) -> (i32, i32) {
    %c0_i32 = arith.constant 0 : i32
    %c0_i32_0 = arith.constant 0 : i32
    %c0_i32_1 = arith.constant 0 : i32
    return %c0_i32, %c0_i32_0 : i32, i32
  }
  func.func @transform_3(%arg0: i32) -> (i32, i32) {
    %c0_i32 = arith.constant 0 : i32
    %c0_i32_0 = arith.constant 0 : i32
    %c0_i32_1 = arith.constant 0 : i32
    return %c0_i32, %c0_i32_0 : i32, i32
  }
  func.func @transform_4(%arg0: i32) -> (i32, i32, i32) {
    %c0_i32 = arith.constant 0 : i32
    %c0_i32_0 = arith.constant 0 : i32
    %c0_i32_1 = arith.constant 0 : i32
    %c0_i32_2 = arith.constant 0 : i32
    return %c0_i32, %c0_i32_0, %c0_i32_1 : i32, i32, i32
  }
  func.func @transform_5(%arg0: i32) -> (i32, i32) {
    %c0_i32 = arith.constant 0 : i32
    %c0_i32_0 = arith.constant 0 : i32
    %c0_i32_1 = arith.constant 0 : i32
    return %c0_i32, %c0_i32_0 : i32, i32
  }
  func.func @transform_6(%arg0: i32) -> (i32, i32) {
    %c0_i32 = arith.constant 0 : i32
    %c0_i32_0 = arith.constant 0 : i32
    %c0_i32_1 = arith.constant 0 : i32
    return %c0_i32, %c0_i32_0 : i32, i32
  }
  func.func @transform_7(%arg0: i32) -> (i32, i32, i32) {
    %c0_i32 = arith.constant 0 : i32
    %c0_i32_0 = arith.constant 0 : i32
    %c0_i32_1 = arith.constant 0 : i32
    %c0_i32_2 = arith.constant 0 : i32
    return %c0_i32, %c0_i32_0, %c0_i32_1 : i32, i32, i32
  }
  func.func @transform_8(%arg0: i32) -> (i32, i32) {
    %c0_i32 = arith.constant 0 : i32
    %c0_i32_0 = arith.constant 0 : i32
    %c0_i32_1 = arith.constant 0 : i32
    return %c0_i32, %c0_i32_0 : i32, i32
  }
  func.func @transform_9(%arg0: i32) -> (i32, i32) {
    %c0_i32 = arith.constant 0 : i32
    %c0_i32_0 = arith.constant 0 : i32
    %c0_i32_1 = arith.constant 0 : i32
    return %c0_i32, %c0_i32_0 : i32, i32
  }
  func.func @transform_10(%arg0: i32) -> (i32, i32, i32) {
    %c0_i32 = arith.constant 0 : i32
    %c0_i32_0 = arith.constant 0 : i32
    %c0_i32_1 = arith.constant 0 : i32
    return %arg0, %c0_i32, %c0_i32_0 : i32, i32, i32
  }
}

</mosaic_0001>

<llo_original>
// kernel: state_mask_embed_forward.1
$region0: #{state_mask_embed_forward.1}
  #allocation0 [shape = 'u32[]', space=smem, size = 0x4, offset = 0x4, fixed_abs, tag = 'smem constant byte address 0x4 - core index']
  #allocation1 [shape = 'u32[144,128]{1,0:T(1,128)}', space=vmem, size = 0x12000, scoped, tag = 'internal scratch']
  #allocation2 [shape = 'bf16[2,10,10,256]{3,2,1,0:T(8,128)(2,1)}', space=vmem, size = 0x28000, scoped, tag = 'scratch operand']
  #allocation3 [shape = 'bf16[2,10,10,128]{3,2,1,0:T(8,128)(2,1)}', space=vmem, size = 0x14000, scoped, tag = 'scratch operand']
  #allocation4 [shape = 'bf16[2,10,10,64]{3,2,1,0:T(8,128)(2,1)}', space=vmem, size = 0x14000, scoped, tag = 'scratch operand']
  %s0 = inlined_call_operand.vmem [shape: bf16[2,8,8,256], index: 0, kind: input, shape index: {}]
  %s1 = inlined_call_operand.vmem [shape: bf16[9,256,128], index: 1, kind: input, shape index: {}]
  %s2 = inlined_call_operand.vmem [shape: f32[1,128], index: 2, kind: input, shape index: {}]
  %s3 = inlined_call_operand.vmem [shape: f32[1,128], index: 3, kind: input, shape index: {}]
  %s4 = inlined_call_operand.vmem [shape: bf16[9,128,64], index: 4, kind: input, shape index: {}]
  %s5 = inlined_call_operand.vmem [shape: f32[1,64], index: 5, kind: input, shape index: {}]
  %s6 = inlined_call_operand.vmem [shape: f32[1,64], index: 6, kind: input, shape index: {}]
  %s7 = inlined_call_operand.vmem [shape: bf16[9,64,2], index: 7, kind: input, shape index: {}]
  %s8 = inlined_call_operand.vmem [shape: f32[1,2], index: 8, kind: input, shape index: {}]
  %s9 = inlined_call_operand.vmem [shape: f32[1,2], index: 9, kind: input, shape index: {}]
  %s10 = inlined_call_operand.vmem [shape: f32[2,1,128], index: 10, kind: output, shape index: {}]
  %s11 = sld [smem:[#allocation0]]
  $region50: #{state_mask_embed_forward.1} parent=0
    _
  %s13 = ssub.s32 1, %s11
  %s14 = scalar_select 0, %s13, %s11
  // Predicated region
  $region2: #{state_mask_embed_forward.1} parent=0 // pred_check
    _
  $region3: #{state_mask_embed_forward.1} parent=0 // pred_check_branch
    %16 = sbr.rel (0) target = $region5
  $region4: #{state_mask_embed_forward.1} parent=0 // pred_region
    _
  $region5: #{state_mask_embed_forward.1} parent=0 // pred_fallthru
    _
  // Predicated region
  $region6: #{state_mask_embed_forward.1} parent=0 // pred_check
    _
  $region7: #{state_mask_embed_forward.1} parent=0 // pred_check_branch
    %18 = sbr.rel (0) target = $region9
  $region8: #{state_mask_embed_forward.1} parent=0 // pred_region
    _
  $region9: #{state_mask_embed_forward.1} parent=0 // pred_fallthru
    _
  // Predicated region
  $region10: #{state_mask_embed_forward.1} parent=0 // pred_check
    _
  $region11: #{state_mask_embed_forward.1} parent=0 // pred_check_branch
    %20 = sbr.rel (0) target = $region13
  $region12: #{state_mask_embed_forward.1} parent=0 // pred_region
    _
  $region13: #{state_mask_embed_forward.1} parent=0 // pred_fallthru
    _
  // Predicated region
  $region14: #{state_mask_embed_forward.1} parent=0 // pred_check
    _
  $region15: #{state_mask_embed_forward.1} parent=0 // pred_check_branch
    %22 = sbr.rel (0) target = $region17
  $region16: #{state_mask_embed_forward.1} parent=0 // pred_region
    _
  $region17: #{state_mask_embed_forward.1} parent=0 // pred_fallthru
    _
  // Predicated region
  $region18: #{state_mask_embed_forward.1} parent=0 // pred_check
    _
  $region19: #{state_mask_embed_forward.1} parent=0 // pred_check_branch
    %24 = sbr.rel (0) target = $region21
  $region20: #{state_mask_embed_forward.1} parent=0 // pred_region
    _
  $region21: #{state_mask_embed_forward.1} parent=0 // pred_fallthru
    _
  // Predicated region
  $region22: #{state_mask_embed_forward.1} parent=0 // pred_check
    _
  $region23: #{state_mask_embed_forward.1} parent=0 // pred_check_branch
    %26 = sbr.rel (0) target = $region25
  $region24: #{state_mask_embed_forward.1} parent=0 // pred_region
    _
  $region25: #{state_mask_embed_forward.1} parent=0 // pred_fallthru
    _
  // Predicated region
  $region26: #{state_mask_embed_forward.1} parent=0 // pred_check
    _
  $region27: #{state_mask_embed_forward.1} parent=0 // pred_check_branch
    %28 = sbr.rel (0) target = $region29
  $region28: #{state_mask_embed_forward.1} parent=0 // pred_region
    _
  $region29: #{state_mask_embed_forward.1} parent=0 // pred_fallthru
    _
  // Predicated region
  $region30: #{state_mask_embed_forward.1} parent=0 // pred_check
    _
  $region31: #{state_mask_embed_forward.1} parent=0 // pred_check_branch
    %30 = sbr.rel (0) target = $region33
  $region32: #{state_mask_embed_forward.1} parent=0 // pred_region
    _
  $region33: #{state_mask_embed_forward.1} parent=0 // pred_fallthru
    _
  // Predicated region
  $region34: #{state_mask_embed_forward.1} parent=0 // pred_check
    _
  $region35: #{state_mask_embed_forward.1} parent=0 // pred_check_branch
    %32 = sbr.rel (0) target = $region37
  $region36: #{state_mask_embed_forward.1} parent=0 // pred_region
    _
  $region37: #{state_mask_embed_forward.1} parent=0 // pred_fallthru
    _
  // Predicated region
  $region38: #{state_mask_embed_forward.1} parent=0 // pred_check
    _
  $region39: #{state_mask_embed_forward.1} parent=0 // pred_check_branch
    %34 = sbr.rel (0) target = $region41
  $region40: #{state_mask_embed_forward.1} parent=0 // pred_region
    _
  $region41: #{state_mask_embed_forward.1} parent=0 // pred_fallthru
    _
  %36 = vst [vmem:[#allocation2] sm:$0xff] 0
  %37 = vst [vmem:[#allocation2 + $0x8] sm:$0x11] 0
  %38 = vst [vmem:[#allocation2 + $0xa0] sm:$0xff] 0
  %39 = vst [vmem:[#allocation2 + $0xa8] sm:$0x11] 0
  %s40 = scalar_lea.vmem [#allocation2], 144
  %41 = vst [vmem:[%s40] sm:$0xff] 0
  %42 = vst [vmem:[%s40 + $0x8] sm:$0x11] 0
  %43 = vst [vmem:[%s40 + $0xa0] sm:$0xff] 0
  %44 = vst [vmem:[%s40 + $0xa8] sm:$0x11] 0
  %vm45 = vcmask 1040384
  %vm46 = vsmask.f32 256
  %vm47 = vmand %vm45, %vm46
  %vm48 = vcmask 1044484
  %vm49 = vsmask.f32 4352
  %vm50 = vmand %vm48, %vm49
  %vm51 = vmor %vm50, %vm47
  %v52 = vld [vmem:[#allocation2] sm:$0x11]
  %v53 = vsel %vm51, 0, %v52
  %54 = vst [vmem:[#allocation2] sm:$0x11] %v53
  %v55 = vld [vmem:[#allocation2 + $0x10] sm:$0x11]
  %v56 = vsel %vm51, 0, %v55
  %57 = vst [vmem:[#allocation2 + $0x10] sm:$0x11] %v56
  %v58 = vld [vmem:[#allocation2 + $0x20] sm:$0x11]
  %v59 = vsel %vm51, 0, %v58
  %60 = vst [vmem:[#allocation2 + $0x20] sm:$0x11] %v59
  %v61 = vld [vmem:[#allocation2 + $0x30] sm:$0x11]
  %v62 = vsel %vm51, 0, %v61
  %63 = vst [vmem:[#allocation2 + $0x30] sm:$0x11] %v62
  %v64 = vld [vmem:[#allocation2 + $0x40] sm:$0x11]
  %v65 = vsel %vm51, 0, %v64
  %66 = vst [vmem:[#allocation2 + $0x40] sm:$0x11] %v65
  %v67 = vld [vmem:[#allocation2 + $0x50] sm:$0x11]
  %v68 = vsel %vm51, 0, %v67
  %69 = vst [vmem:[#allocation2 + $0x50] sm:$0x11] %v68
  %v70 = vld [vmem:[#allocation2 + $0x60] sm:$0x11]
  %v71 = vsel %vm51, 0, %v70
  %72 = vst [vmem:[#allocation2 + $0x60] sm:$0x11] %v71
  %v73 = vld [vmem:[#allocation2 + $0x70] sm:$0x11]
  %v74 = vsel %vm51, 0, %v73
  %75 = vst [vmem:[#allocation2 + $0x70] sm:$0x11] %v74
  %v76 = vld [vmem:[#allocation2 + $0x80] sm:$0x11]
  %v77 = vsel %vm51, 0, %v76
  %78 = vst [vmem:[#allocation2 + $0x80] sm:$0x11] %v77
  %v79 = vld [vmem:[#allocation2 + $0x90] sm:$0x11]
  %v80 = vsel %vm51, 0, %v79
  %81 = vst [vmem:[#allocation2 + $0x90] sm:$0x11] %v80
  %v82 = vld [vmem:[#allocation2 + $0xa0] sm:$0x11]
  %v83 = vsel %vm51, 0, %v82
  %84 = vst [vmem:[#allocation2 + $0xa0] sm:$0x11] %v83
  %v85 = vld [vmem:[#allocation2 + $0xb0] sm:$0x11]
  %v86 = vsel %vm51, 0, %v85
  %87 = vst [vmem:[#allocation2 + $0xb0] sm:$0x11] %v86
  %v88 = vld [vmem:[#allocation2 + $0xc0] sm:$0x11]
  %v89 = vsel %vm51, 0, %v88
  %90 = vst [vmem:[#allocation2 + $0xc0] sm:$0x11] %v89
  %v91 = vld [vmem:[#allocation2 + $0xd0] sm:$0x11]
  %v92 = vsel %vm51, 0, %v91
  %93 = vst [vmem:[#allocation2 + $0xd0] sm:$0x11] %v92
  %v94 = vld [vmem:[#allocation2 + $0xe0] sm:$0x11]
  %v95 = vsel %vm51, 0, %v94
  %96 = vst [vmem:[#allocation2 + $0xe0] sm:$0x11] %v95
  %v97 = vld [vmem:[#allocation2 + $0xf0] sm:$0x11]
  %v98 = vsel %vm51, 0, %v97
  %99 = vst [vmem:[#allocation2 + $0xf0] sm:$0x11] %v98
  %v100 = vld [vmem:[#allocation2 + $0x100] sm:$0x11]
  %v101 = vsel %vm51, 0, %v100
  %102 = vst [vmem:[#allocation2 + $0x100] sm:$0x11] %v101
  %v103 = vld [vmem:[#allocation2 + $0x110] sm:$0x11]
  %v104 = vsel %vm51, 0, %v103
  %105 = vst [vmem:[#allocation2 + $0x110] sm:$0x11] %v104
  %v106 = vld [vmem:[#allocation2 + $0x120] sm:$0x11]
  %v107 = vsel %vm51, 0, %v106
  %108 = vst [vmem:[#allocation2 + $0x120] sm:$0x11] %v107
  %v109 = vld [vmem:[#allocation2 + $0x130] sm:$0x11]
  %v110 = vsel %vm51, 0, %v109
  %111 = vst [vmem:[#allocation2 + $0x130] sm:$0x11] %v110
  %vm112 = vsmask.f32 7938
  %vm113 = vmand %vm45, %vm112
  %vm114 = vsmask.f32 7954
  %vm115 = vmand %vm48, %vm114
  %vm116 = vmor %vm115, %vm113
  %v117 = vld [vmem:[#allocation2 + $0x8] sm:$0x11]
  %v118 = vsel %vm116, 0, %v117
  %119 = vst [vmem:[#allocation2 + $0x8] sm:$0x11] %v118
  %v120 = vld [vmem:[#allocation2 + $0x18] sm:$0x11]
  %v121 = vsel %vm116, 0, %v120
  %122 = vst [vmem:[#allocation2 + $0x18] sm:$0x11] %v121
  %v123 = vld [vmem:[#allocation2 + $0x28] sm:$0x11]
  %v124 = vsel %vm116, 0, %v123
  %125 = vst [vmem:[#allocation2 + $0x28] sm:$0x11] %v124
  %v126 = vld [vmem:[#allocation2 + $0x38] sm:$0x11]
  %v127 = vsel %vm116, 0, %v126
  %128 = vst [vmem:[#allocation2 + $0x38] sm:$0x11] %v127
  %v129 = vld [vmem:[#allocation2 + $0x48] sm:$0x11]
  %v130 = vsel %vm116, 0, %v129
  %131 = vst [vmem:[#allocation2 + $0x48] sm:$0x11] %v130
  %v132 = vld [vmem:[#allocation2 + $0x58] sm:$0x11]
  %v133 = vsel %vm116, 0, %v132
  %134 = vst [vmem:[#allocation2 + $0x58] sm:$0x11] %v133
  %v135 = vld [vmem:[#allocation2 + $0x68] sm:$0x11]
  %v136 = vsel %vm116, 0, %v135
  %137 = vst [vmem:[#allocation2 + $0x68] sm:$0x11] %v136
  %v138 = vld [vmem:[#allocation2 + $0x78] sm:$0x11]
  %v139 = vsel %vm116, 0, %v138
  %140 = vst [vmem:[#allocation2 + $0x78] sm:$0x11] %v139
  %v141 = vld [vmem:[#allocation2 + $0x88] sm:$0x11]
  %v142 = vsel %vm116, 0, %v141
  %143 = vst [vmem:[#allocation2 + $0x88] sm:$0x11] %v142
  %v144 = vld [vmem:[#allocation2 + $0x98] sm:$0x11]
  %v145 = vsel %vm116, 0, %v144
  %146 = vst [vmem:[#allocation2 + $0x98] sm:$0x11] %v145
  %v147 = vld [vmem:[#allocation2 + $0xa8] sm:$0x11]
  %v148 = vsel %vm116, 0, %v147
  %149 = vst [vmem:[#allocation2 + $0xa8] sm:$0x11] %v148
  %v150 = vld [vmem:[#allocation2 + $0xb8] sm:$0x11]
  %v151 = vsel %vm116, 0, %v150
  %152 = vst [vmem:[#allocation2 + $0xb8] sm:$0x11] %v151
  %v153 = vld [vmem:[#allocation2 + $0xc8] sm:$0x11]
  %v154 = vsel %vm116, 0, %v153
  %155 = vst [vmem:[#allocation2 + $0xc8] sm:$0x11] %v154
  %v156 = vld [vmem:[#allocation2 + $0xd8] sm:$0x11]
  %v157 = vsel %vm116, 0, %v156
  %158 = vst [vmem:[#allocation2 + $0xd8] sm:$0x11] %v157
  %v159 = vld [vmem:[#allocation2 + $0xe8] sm:$0x11]
  %v160 = vsel %vm116, 0, %v159
  %161 = vst [vmem:[#allocation2 + $0xe8] sm:$0x11] %v160
  %v162 = vld [vmem:[#allocation2 + $0xf8] sm:$0x11]
  %v163 = vsel %vm116, 0, %v162
  %164 = vst [vmem:[#allocation2 + $0xf8] sm:$0x11] %v163
  %v165 = vld [vmem:[#allocation2 + $0x108] sm:$0x11]
  %v166 = vsel %vm116, 0, %v165
  %167 = vst [vmem:[#allocation2 + $0x108] sm:$0x11] %v166
  %v168 = vld [vmem:[#allocation2 + $0x118] sm:$0x11]
  %v169 = vsel %vm116, 0, %v168
  %170 = vst [vmem:[#allocation2 + $0x118] sm:$0x11] %v169
  %v171 = vld [vmem:[#allocation2 + $0x128] sm:$0x11]
  %v172 = vsel %vm116, 0, %v171
  %173 = vst [vmem:[#allocation2 + $0x128] sm:$0x11] %v172
  %v174 = vld [vmem:[#allocation2 + $0x138] sm:$0x11]
  %v175 = vsel %vm116, 0, %v174
  %176 = vst [vmem:[#allocation2 + $0x138] sm:$0x11] %v175
  %177 = vst [vmem:[#allocation3] sm:$0xf] 0
  %178 = vst [vmem:[#allocation3 + $0x4] sm:$0x1] 0
  %179 = vst [vmem:[#allocation3 + $0x50] sm:$0xf] 0
  %180 = vst [vmem:[#allocation3 + $0x54] sm:$0x1] 0
  %s181 = scalar_lea.vmem [#allocation3], 72
  %182 = vst [vmem:[%s181] sm:$0xf] 0
  %183 = vst [vmem:[%s181 + $0x4] sm:$0x1] 0
  %184 = vst [vmem:[%s181 + $0x50] sm:$0xf] 0
  %185 = vst [vmem:[%s181 + $0x54] sm:$0x1] 0
  %v186 = vld [vmem:[#allocation3] sm:$0x1]
  %v187 = vsel %vm47, 0, %v186
  %188 = vst [vmem:[#allocation3] sm:$0x1] %v187
  %v189 = vld [vmem:[#allocation3 + $0x8] sm:$0x1]
  %v190 = vsel %vm47, 0, %v189
  %191 = vst [vmem:[#allocation3 + $0x8] sm:$0x1] %v190
  %v192 = vld [vmem:[#allocation3 + $0x10] sm:$0x1]
  %v193 = vsel %vm47, 0, %v192
  %194 = vst [vmem:[#allocation3 + $0x10] sm:$0x1] %v193
  %v195 = vld [vmem:[#allocation3 + $0x18] sm:$0x1]
  %v196 = vsel %vm47, 0, %v195
  %197 = vst [vmem:[#allocation3 + $0x18] sm:$0x1] %v196
  %v198 = vld [vmem:[#allocation3 + $0x20] sm:$0x1]
  %v199 = vsel %vm47, 0, %v198
  %200 = vst [vmem:[#allocation3 + $0x20] sm:$0x1] %v199
  %v201 = vld [vmem:[#allocation3 + $0x28] sm:$0x1]
  %v202 = vsel %vm47, 0, %v201
  %203 = vst [vmem:[#allocation3 + $0x28] sm:$0x1] %v202
  %v204 = vld [vmem:[#allocation3 + $0x30] sm:$0x1]
  %v205 = vsel %vm47, 0, %v204
  %206 = vst [vmem:[#allocation3 + $0x30] sm:$0x1] %v205
  %v207 = vld [vmem:[#allocation3 + $0x38] sm:$0x1]
  %v208 = vsel %vm47, 0, %v207
  %209 = vst [vmem:[#allocation3 + $0x38] sm:$0x1] %v208
  %v210 = vld [vmem:[#allocation3 + $0x40] sm:$0x1]
  %v211 = vsel %vm47, 0, %v210
  %212 = vst [vmem:[#allocation3 + $0x40] sm:$0x1] %v211
  %v213 = vld [vmem:[#allocation3 + $0x48] sm:$0x1]
  %v214 = vsel %vm47, 0, %v213
  %215 = vst [vmem:[#allocation3 + $0x48] sm:$0x1] %v214
  %v216 = vld [vmem:[#allocation3 + $0x50] sm:$0x1]
  %v217 = vsel %vm47, 0, %v216
  %218 = vst [vmem:[#allocation3 + $0x50] sm:$0x1] %v217
  %v219 = vld [vmem:[#allocation3 + $0x58] sm:$0x1]
  %v220 = vsel %vm47, 0, %v219
  %221 = vst [vmem:[#allocation3 + $0x58] sm:$0x1] %v220
  %v222 = vld [vmem:[#allocation3 + $0x60] sm:$0x1]
  %v223 = vsel %vm47, 0, %v222
  %224 = vst [vmem:[#allocation3 + $0x60] sm:$0x1] %v223
  %v225 = vld [vmem:[#allocation3 + $0x68] sm:$0x1]
  %v226 = vsel %vm47, 0, %v225
  %227 = vst [vmem:[#allocation3 + $0x68] sm:$0x1] %v226
  %v228 = vld [vmem:[#allocation3 + $0x70] sm:$0x1]
  %v229 = vsel %vm47, 0, %v228
  %230 = vst [vmem:[#allocation3 + $0x70] sm:$0x1] %v229
  %v231 = vld [vmem:[#allocation3 + $0x78] sm:$0x1]
  %v232 = vsel %vm47, 0, %v231
  %233 = vst [vmem:[#allocation3 + $0x78] sm:$0x1] %v232
  %v234 = vld [vmem:[#allocation3 + $0x80] sm:$0x1]
  %v235 = vsel %vm47, 0, %v234
  %236 = vst [vmem:[#allocation3 + $0x80] sm:$0x1] %v235
  %v237 = vld [vmem:[#allocation3 + $0x88] sm:$0x1]
  %v238 = vsel %vm47, 0, %v237
  %239 = vst [vmem:[#allocation3 + $0x88] sm:$0x1] %v238
  %v240 = vld [vmem:[#allocation3 + $0x90] sm:$0x1]
  %v241 = vsel %vm47, 0, %v240
  %242 = vst [vmem:[#allocation3 + $0x90] sm:$0x1] %v241
  %v243 = vld [vmem:[#allocation3 + $0x98] sm:$0x1]
  %v244 = vsel %vm47, 0, %v243
  %245 = vst [vmem:[#allocation3 + $0x98] sm:$0x1] %v244
  %v246 = vld [vmem:[#allocation3 + $0x4] sm:$0x1]
  %v247 = vsel %vm113, 0, %v246
  %248 = vst [vmem:[#allocation3 + $0x4] sm:$0x1] %v247
  %v249 = vld [vmem:[#allocation3 + $0xc] sm:$0x1]
  %v250 = vsel %vm113, 0, %v249
  %251 = vst [vmem:[#allocation3 + $0xc] sm:$0x1] %v250
  %v252 = vld [vmem:[#allocation3 + $0x14] sm:$0x1]
  %v253 = vsel %vm113, 0, %v252
  %254 = vst [vmem:[#allocation3 + $0x14] sm:$0x1] %v253
  %v255 = vld [vmem:[#allocation3 + $0x1c] sm:$0x1]
  %v256 = vsel %vm113, 0, %v255
  %257 = vst [vmem:[#allocation3 + $0x1c] sm:$0x1] %v256
  %v258 = vld [vmem:[#allocation3 + $0x24] sm:$0x1]
  %v259 = vsel %vm113, 0, %v258
  %260 = vst [vmem:[#allocation3 + $0x24] sm:$0x1] %v259
  %v261 = vld [vmem:[#allocation3 + $0x2c] sm:$0x1]
  %v262 = vsel %vm113, 0, %v261
  %263 = vst [vmem:[#allocation3 + $0x2c] sm:$0x1] %v262
  %v264 = vld [vmem:[#allocation3 + $0x34] sm:$0x1]
  %v265 = vsel %vm113, 0, %v264
  %266 = vst [vmem:[#allocation3 + $0x34] sm:$0x1] %v265
  %v267 = vld [vmem:[#allocation3 + $0x3c] sm:$0x1]
  %v268 = vsel %vm113, 0, %v267
  %269 = vst [vmem:[#allocation3 + $0x3c] sm:$0x1] %v268
  %v270 = vld [vmem:[#allocation3 + $0x44] sm:$0x1]
  %v271 = vsel %vm113, 0, %v270
  %272 = vst [vmem:[#allocation3 + $0x44] sm:$0x1] %v271
  %v273 = vld [vmem:[#allocation3 + $0x4c] sm:$0x1]
  %v274 = vsel %vm113, 0, %v273
  %275 = vst [vmem:[#allocation3 + $0x4c] sm:$0x1] %v274
  %v276 = vld [vmem:[#allocation3 + $0x54] sm:$0x1]
  %v277 = vsel %vm113, 0, %v276
  %278 = vst [vmem:[#allocation3 + $0x54] sm:$0x1] %v277
  %v279 = vld [vmem:[#allocation3 + $0x5c] sm:$0x1]
  %v280 = vsel %vm113, 0, %v279
  %281 = vst [vmem:[#allocation3 + $0x5c] sm:$0x1] %v280
  %v282 = vld [vmem:[#allocation3 + $0x64] sm:$0x1]
  %v283 = vsel %vm113, 0, %v282
  %284 = vst [vmem:[#allocation3 + $0x64] sm:$0x1] %v283
  %v285 = vld [vmem:[#allocation3 + $0x6c] sm:$0x1]
  %v286 = vsel %vm113, 0, %v285
  %287 = vst [vmem:[#allocation3 + $0x6c] sm:$0x1] %v286
  %v288 = vld [vmem:[#allocation3 + $0x74] sm:$0x1]
  %v289 = vsel %vm113, 0, %v288
  %290 = vst [vmem:[#allocation3 + $0x74] sm:$0x1] %v289
  %v291 = vld [vmem:[#allocation3 + $0x7c] sm:$0x1]
  %v292 = vsel %vm113, 0, %v291
  %293 = vst [vmem:[#allocation3 + $0x7c] sm:$0x1] %v292
  %v294 = vld [vmem:[#allocation3 + $0x84] sm:$0x1]
  %v295 = vsel %vm113, 0, %v294
  %296 = vst [vmem:[#allocation3 + $0x84] sm:$0x1] %v295
  %v297 = vld [vmem:[#allocation3 + $0x8c] sm:$0x1]
  %v298 = vsel %vm113, 0, %v297
  %299 = vst [vmem:[#allocation3 + $0x8c] sm:$0x1] %v298
  %v300 = vld [vmem:[#allocation3 + $0x94] sm:$0x1]
  %v301 = vsel %vm113, 0, %v300
  %302 = vst [vmem:[#allocation3 + $0x94] sm:$0x1] %v301
  %v303 = vld [vmem:[#allocation3 + $0x9c] sm:$0x1]
  %v304 = vsel %vm113, 0, %v303
  %305 = vst [vmem:[#allocation3 + $0x9c] sm:$0x1] %v304
  %vm306 = vcmask 519168
  %307 = vst.msk [vmem:[#allocation4] sm:$0xf] %vm306, 0
  %vm308 = vcmask 516096
  %309 = vst.msk [vmem:[#allocation4 + $0x4] sm:$0x1] %vm308, 0
  %310 = vst.msk [vmem:[#allocation4 + $0x50] sm:$0xf] %vm306, 0
  %311 = vst.msk [vmem:[#allocation4 + $0x54] sm:$0x1] %vm308, 0
  %s312 = scalar_lea.vmem [#allocation4], 72
  %313 = vst.msk [vmem:[%s312] sm:$0xf] %vm306, 0
  %314 = vst.msk [vmem:[%s312 + $0x4] sm:$0x1] %vm308, 0
  %315 = vst.msk [vmem:[%s312 + $0x50] sm:$0xf] %vm306, 0
  %316 = vst.msk [vmem:[%s312 + $0x54] sm:$0x1] %vm308, 0
  %vm317 = vcmask 516096
  %vm318 = vmand %vm317, %vm46
  %v319 = vld [vmem:[#allocation4] sm:$0x1]
  %v320 = vsel %vm318, 0, %v319
  %321 = vst [vmem:[#allocation4] sm:$0x1] %v320
  %v322 = vld [vmem:[#allocation4 + $0x8] sm:$0x1]
  %v323 = vsel %vm318, 0, %v322
  %324 = vst [vmem:[#allocation4 + $0x8] sm:$0x1] %v323
  %v325 = vld [vmem:[#allocation4 + $0x10] sm:$0x1]
  %v326 = vsel %vm318, 0, %v325
  %327 = vst [vmem:[#allocation4 + $0x10] sm:$0x1] %v326
  %v328 = vld [vmem:[#allocation4 + $0x18] sm:$0x1]
  %v329 = vsel %vm318, 0, %v328
  %330 = vst [vmem:[#allocation4 + $0x18] sm:$0x1] %v329
  %v331 = vld [vmem:[#allocation4 + $0x20] sm:$0x1]
  %v332 = vsel %vm318, 0, %v331
  %333 = vst [vmem:[#allocation4 + $0x20] sm:$0x1] %v332
  %v334 = vld [vmem:[#allocation4 + $0x28] sm:$0x1]
  %v335 = vsel %vm318, 0, %v334
  %336 = vst [vmem:[#allocation4 + $0x28] sm:$0x1] %v335
  %v337 = vld [vmem:[#allocation4 + $0x30] sm:$0x1]
  %v338 = vsel %vm318, 0, %v337
  %339 = vst [vmem:[#allocation4 + $0x30] sm:$0x1] %v338
  %v340 = vld [vmem:[#allocation4 + $0x38] sm:$0x1]
  %v341 = vsel %vm318, 0, %v340
  %342 = vst [vmem:[#allocation4 + $0x38] sm:$0x1] %v341
  %v343 = vld [vmem:[#allocation4 + $0x40] sm:$0x1]
  %v344 = vsel %vm318, 0, %v343
  %345 = vst [vmem:[#allocation4 + $0x40] sm:$0x1] %v344
  %v346 = vld [vmem:[#allocation4 + $0x48] sm:$0x1]
  %v347 = vsel %vm318, 0, %v346
  %348 = vst [vmem:[#allocation4 + $0x48] sm:$0x1] %v347
  %v349 = vld [vmem:[#allocation4 + $0x50] sm:$0x1]
  %v350 = vsel %vm318, 0, %v349
  %351 = vst [vmem:[#allocation4 + $0x50] sm:$0x1] %v350
  %v352 = vld [vmem:[#allocation4 + $0x58] sm:$0x1]
  %v353 = vsel %vm318, 0, %v352
  %354 = vst [vmem:[#allocation4 + $0x58] sm:$0x1] %v353
  %v355 = vld [vmem:[#allocation4 + $0x60] sm:$0x1]
  %v356 = vsel %vm318, 0, %v355
  %357 = vst [vmem:[#allocation4 + $0x60] sm:$0x1] %v356
  %v358 = vld [vmem:[#allocation4 + $0x68] sm:$0x1]
  %v359 = vsel %vm318, 0, %v358
  %360 = vst [vmem:[#allocation4 + $0x68] sm:$0x1] %v359
  %v361 = vld [vmem:[#allocation4 + $0x70] sm:$0x1]
  %v362 = vsel %vm318, 0, %v361
  %363 = vst [vmem:[#allocation4 + $0x70] sm:$0x1] %v362
  %v364 = vld [vmem:[#allocation4 + $0x78] sm:$0x1]
  %v365 = vsel %vm318, 0, %v364
  %366 = vst [vmem:[#allocation4 + $0x78] sm:$0x1] %v365
  %v367 = vld [vmem:[#allocation4 + $0x80] sm:$0x1]
  %v368 = vsel %vm318, 0, %v367
  %369 = vst [vmem:[#allocation4 + $0x80] sm:$0x1] %v368
  %v370 = vld [vmem:[#allocation4 + $0x88] sm:$0x1]
  %v371 = vsel %vm318, 0, %v370
  %372 = vst [vmem:[#allocation4 + $0x88] sm:$0x1] %v371
  %v373 = vld [vmem:[#allocation4 + $0x90] sm:$0x1]
  %v374 = vsel %vm318, 0, %v373
  %375 = vst [vmem:[#allocation4 + $0x90] sm:$0x1] %v374
  %v376 = vld [vmem:[#allocation4 + $0x98] sm:$0x1]
  %v377 = vsel %vm318, 0, %v376
  %378 = vst [vmem:[#allocation4 + $0x98] sm:$0x1] %v377
  %vm379 = vmand %vm317, %vm112
  %v380 = vld [vmem:[#allocation4 + $0x4] sm:$0x1]
  %v381 = vsel %vm379, 0, %v380
  %382 = vst [vmem:[#allocation4 + $0x4] sm:$0x1] %v381
  %v383 = vld [vmem:[#allocation4 + $0xc] sm:$0x1]
  %v384 = vsel %vm379, 0, %v383
  %385 = vst [vmem:[#allocation4 + $0xc] sm:$0x1] %v384
  %v386 = vld [vmem:[#allocation4 + $0x14] sm:$0x1]
  %v387 = vsel %vm379, 0, %v386
  %388 = vst [vmem:[#allocation4 + $0x14] sm:$0x1] %v387
  %v389 = vld [vmem:[#allocation4 + $0x1c] sm:$0x1]
  %v390 = vsel %vm379, 0, %v389
  %391 = vst [vmem:[#allocation4 + $0x1c] sm:$0x1] %v390
  %v392 = vld [vmem:[#allocation4 + $0x24] sm:$0x1]
  %v393 = vsel %vm379, 0, %v392
  %394 = vst [vmem:[#allocation4 + $0x24] sm:$0x1] %v393
  %v395 = vld [vmem:[#allocation4 + $0x2c] sm:$0x1]
  %v396 = vsel %vm379, 0, %v395
  %397 = vst [vmem:[#allocation4 + $0x2c] sm:$0x1] %v396
  %v398 = vld [vmem:[#allocation4 + $0x34] sm:$0x1]
  %v399 = vsel %vm379, 0, %v398
  %400 = vst [vmem:[#allocation4 + $0x34] sm:$0x1] %v399
  %v401 = vld [vmem:[#allocation4 + $0x3c] sm:$0x1]
  %v402 = vsel %vm379, 0, %v401
  %403 = vst [vmem:[#allocation4 + $0x3c] sm:$0x1] %v402
  %v404 = vld [vmem:[#allocation4 + $0x44] sm:$0x1]
  %v405 = vsel %vm379, 0, %v404
  %406 = vst [vmem:[#allocation4 + $0x44] sm:$0x1] %v405
  %v407 = vld [vmem:[#allocation4 + $0x4c] sm:$0x1]
  %v408 = vsel %vm379, 0, %v407
  %409 = vst [vmem:[#allocation4 + $0x4c] sm:$0x1] %v408
  %v410 = vld [vmem:[#allocation4 + $0x54] sm:$0x1]
  %v411 = vsel %vm379, 0, %v410
  %412 = vst [vmem:[#allocation4 + $0x54] sm:$0x1] %v411
  %v413 = vld [vmem:[#allocation4 + $0x5c] sm:$0x1]
  %v414 = vsel %vm379, 0, %v413
  %415 = vst [vmem:[#allocation4 + $0x5c] sm:$0x1] %v414
  %v416 = vld [vmem:[#allocation4 + $0x64] sm:$0x1]
  %v417 = vsel %vm379, 0, %v416
  %418 = vst [vmem:[#allocation4 + $0x64] sm:$0x1] %v417
  %v419 = vld [vmem:[#allocation4 + $0x6c] sm:$0x1]
  %v420 = vsel %vm379, 0, %v419
  %421 = vst [vmem:[#allocation4 + $0x6c] sm:$0x1] %v420
  %v422 = vld [vmem:[#allocation4 + $0x74] sm:$0x1]
  %v423 = vsel %vm379, 0, %v422
  %424 = vst [vmem:[#allocation4 + $0x74] sm:$0x1] %v423
  %v425 = vld [vmem:[#allocation4 + $0x7c] sm:$0x1]
  %v426 = vsel %vm379, 0, %v425
  %427 = vst [vmem:[#allocation4 + $0x7c] sm:$0x1] %v426
  %v428 = vld [vmem:[#allocation4 + $0x84] sm:$0x1]
  %v429 = vsel %vm379, 0, %v428
  %430 = vst [vmem:[#allocation4 + $0x84] sm:$0x1] %v429
  %v431 = vld [vmem:[#allocation4 + $0x8c] sm:$0x1]
  %v432 = vsel %vm379, 0, %v431
  %433 = vst [vmem:[#allocation4 + $0x8c] sm:$0x1] %v432
  %v434 = vld [vmem:[#allocation4 + $0x94] sm:$0x1]
  %v435 = vsel %vm379, 0, %v434
  %436 = vst [vmem:[#allocation4 + $0x94] sm:$0x1] %v435
  %v437 = vld [vmem:[#allocation4 + $0x9c] sm:$0x1]
  %v438 = vsel %vm379, 0, %v437
  %439 = vst [vmem:[#allocation4 + $0x9c] sm:$0x1] %v438
  %v440 = vld [vmem:[%s0] sm:$0xff]
  %v441 = vld [vmem:[%s0 + $0x8] sm:$0xff]
  %v442 = vld [vmem:[%s0 + $0x10] sm:$0xff]
  %v443 = vld [vmem:[%s0 + $0x18] sm:$0xff]
  %v444 = vld [vmem:[%s0 + $0x20] sm:$0xff]
  %v445 = vld [vmem:[%s0 + $0x28] sm:$0xff]
  %v446 = vld [vmem:[%s0 + $0x30] sm:$0xff]
  %v447 = vld [vmem:[%s0 + $0x38] sm:$0xff]
  %v448 = vld [vmem:[%s0 + $0x40] sm:$0xff]
  %v449 = vld [vmem:[%s0 + $0x48] sm:$0xff]
  %v450 = vld [vmem:[%s0 + $0x50] sm:$0xff]
  %v451 = vld [vmem:[%s0 + $0x58] sm:$0xff]
  %v452 = vld [vmem:[%s0 + $0x60] sm:$0xff]
  %v453 = vld [vmem:[%s0 + $0x68] sm:$0xff]
  %v454 = vld [vmem:[%s0 + $0x70] sm:$0xff]
  %v455 = vld [vmem:[%s0 + $0x78] sm:$0xff]
  %v457 = vshrl.u32 %v440, 16
  %v459 = vrot.slane %v457, 7
  %v460 = vshll.u32 %v440, 16
  %v462 = vor.u32 %v459, %v460
  %v463 = vrot.slane %v459, 4
  %v465 = vshrl.u32 %v441, 16
  %v467 = vrot.slane %v465, 7
  %v468 = vshll.u32 %v441, 16
  %v470 = vor.u32 %v467, %v468
  %v471 = vrot.slane %v467, 4
  %v473 = vshrl.u32 %v442, 16
  %v475 = vrot.slane %v473, 7
  %v476 = vshll.u32 %v442, 16
  %v478 = vor.u32 %v475, %v476
  %v479 = vrot.slane %v475, 4
  %v481 = vshrl.u32 %v443, 16
  %v483 = vrot.slane %v481, 7
  %v484 = vshll.u32 %v443, 16
  %v486 = vor.u32 %v483, %v484
  %v487 = vrot.slane %v483, 4
  %v489 = vshrl.u32 %v444, 16
  %v491 = vrot.slane %v489, 7
  %v492 = vshll.u32 %v444, 16
  %v494 = vor.u32 %v491, %v492
  %v495 = vrot.slane %v491, 4
  %v497 = vshrl.u32 %v445, 16
  %v499 = vrot.slane %v497, 7
  %v500 = vshll.u32 %v445, 16
  %v502 = vor.u32 %v499, %v500
  %v503 = vrot.slane %v499, 4
  %v505 = vshrl.u32 %v446, 16
  %v507 = vrot.slane %v505, 7
  %v508 = vshll.u32 %v446, 16
  %v510 = vor.u32 %v507, %v508
  %v511 = vrot.slane %v507, 4
  %v513 = vshrl.u32 %v447, 16
  %v515 = vrot.slane %v513, 7
  %v516 = vshll.u32 %v447, 16
  %v518 = vor.u32 %v515, %v516
  %v519 = vrot.slane %v515, 4
  %v521 = vshrl.u32 %v448, 16
  %v523 = vrot.slane %v521, 7
  %v524 = vshll.u32 %v448, 16
  %v526 = vor.u32 %v523, %v524
  %v527 = vrot.slane %v523, 4
  %v529 = vshrl.u32 %v449, 16
  %v531 = vrot.slane %v529, 7
  %v532 = vshll.u32 %v449, 16
  %v534 = vor.u32 %v531, %v532
  %v535 = vrot.slane %v531, 4
  %v537 = vshrl.u32 %v450, 16
  %v539 = vrot.slane %v537, 7
  %v540 = vshll.u32 %v450, 16
  %v542 = vor.u32 %v539, %v540
  %v543 = vrot.slane %v539, 4
  %v545 = vshrl.u32 %v451, 16
  %v547 = vrot.slane %v545, 7
  %v548 = vshll.u32 %v451, 16
  %v550 = vor.u32 %v547, %v548
  %v551 = vrot.slane %v547, 4
  %v553 = vshrl.u32 %v452, 16
  %v555 = vrot.slane %v553, 7
  %v556 = vshll.u32 %v452, 16
  %v558 = vor.u32 %v555, %v556
  %v559 = vrot.slane %v555, 4
  %v561 = vshrl.u32 %v453, 16
  %v563 = vrot.slane %v561, 7
  %v564 = vshll.u32 %v453, 16
  %v566 = vor.u32 %v563, %v564
  %v567 = vrot.slane %v563, 4
  %v569 = vshrl.u32 %v454, 16
  %v571 = vrot.slane %v569, 7
  %v572 = vshll.u32 %v454, 16
  %v574 = vor.u32 %v571, %v572
  %v575 = vrot.slane %v571, 4
  %v577 = vshrl.u32 %v455, 16
  %v579 = vrot.slane %v577, 7
  %v580 = vshll.u32 %v455, 16
  %v582 = vor.u32 %v579, %v580
  %v583 = vrot.slane %v579, 4
  %s616 = scalar_lea.vmem [#allocation2], 16
  %vm617 = vcmask 1043456
  %vm618 = vmand %vm617, %vm112
  %vm619 = vcmask 1047556
  %vm620 = vmand %vm619, %vm114
  %vm621 = vmor %vm620, %vm618
  %v622 = vld [vmem:[%s616] sm:$0xff]
  %v623 = vsel %vm621, %v462, %v622
  %624 = vst [vmem:[%s616] sm:$0xff] %v623
  %v625 = vld [vmem:[%s616 + $0x8] sm:$0x11]
  %v626 = vsel %vm51, %v463, %v625
  %627 = vst [vmem:[%s616 + $0x8] sm:$0x11] %v626
  %v628 = vld [vmem:[%s616 + $0x10] sm:$0xff]
  %v629 = vsel %vm621, %v470, %v628
  %630 = vst [vmem:[%s616 + $0x10] sm:$0xff] %v629
  %v631 = vld [vmem:[%s616 + $0x18] sm:$0x11]
  %v632 = vsel %vm51, %v471, %v631
  %633 = vst [vmem:[%s616 + $0x18] sm:$0x11] %v632
  %v634 = vld [vmem:[%s616 + $0x20] sm:$0xff]
  %v635 = vsel %vm621, %v478, %v634
  %636 = vst [vmem:[%s616 + $0x20] sm:$0xff] %v635
  %v637 = vld [vmem:[%s616 + $0x28] sm:$0x11]
  %v638 = vsel %vm51, %v479, %v637
  %639 = vst [vmem:[%s616 + $0x28] sm:$0x11] %v638
  %v640 = vld [vmem:[%s616 + $0x30] sm:$0xff]
  %v641 = vsel %vm621, %v486, %v640
  %642 = vst [vmem:[%s616 + $0x30] sm:$0xff] %v641
  %v643 = vld [vmem:[%s616 + $0x38] sm:$0x11]
  %v644 = vsel %vm51, %v487, %v643
  %645 = vst [vmem:[%s616 + $0x38] sm:$0x11] %v644
  %v646 = vld [vmem:[%s616 + $0x40] sm:$0xff]
  %v647 = vsel %vm621, %v494, %v646
  %648 = vst [vmem:[%s616 + $0x40] sm:$0xff] %v647
  %v649 = vld [vmem:[%s616 + $0x48] sm:$0x11]
  %v650 = vsel %vm51, %v495, %v649
  %651 = vst [vmem:[%s616 + $0x48] sm:$0x11] %v650
  %v652 = vld [vmem:[%s616 + $0x50] sm:$0xff]
  %v653 = vsel %vm621, %v502, %v652
  %654 = vst [vmem:[%s616 + $0x50] sm:$0xff] %v653
  %v655 = vld [vmem:[%s616 + $0x58] sm:$0x11]
  %v656 = vsel %vm51, %v503, %v655
  %657 = vst [vmem:[%s616 + $0x58] sm:$0x11] %v656
  %v658 = vld [vmem:[%s616 + $0x60] sm:$0xff]
  %v659 = vsel %vm621, %v510, %v658
  %660 = vst [vmem:[%s616 + $0x60] sm:$0xff] %v659
  %v661 = vld [vmem:[%s616 + $0x68] sm:$0x11]
  %v662 = vsel %vm51, %v511, %v661
  %663 = vst [vmem:[%s616 + $0x68] sm:$0x11] %v662
  %v664 = vld [vmem:[%s616 + $0x70] sm:$0xff]
  %v665 = vsel %vm621, %v518, %v664
  %666 = vst [vmem:[%s616 + $0x70] sm:$0xff] %v665
  %v667 = vld [vmem:[%s616 + $0x78] sm:$0x11]
  %v668 = vsel %vm51, %v519, %v667
  %669 = vst [vmem:[%s616 + $0x78] sm:$0x11] %v668
  %v670 = vld [vmem:[%s616 + $0xa0] sm:$0xff]
  %v671 = vsel %vm621, %v526, %v670
  %672 = vst [vmem:[%s616 + $0xa0] sm:$0xff] %v671
  %v673 = vld [vmem:[%s616 + $0xa8] sm:$0x11]
  %v674 = vsel %vm51, %v527, %v673
  %675 = vst [vmem:[%s616 + $0xa8] sm:$0x11] %v674
  %v676 = vld [vmem:[%s616 + $0xb0] sm:$0xff]
  %v677 = vsel %vm621, %v534, %v676
  %678 = vst [vmem:[%s616 + $0xb0] sm:$0xff] %v677
  %v679 = vld [vmem:[%s616 + $0xb8] sm:$0x11]
  %v680 = vsel %vm51, %v535, %v679
  %681 = vst [vmem:[%s616 + $0xb8] sm:$0x11] %v680
  %v682 = vld [vmem:[%s616 + $0xc0] sm:$0xff]
  %v683 = vsel %vm621, %v542, %v682
  %684 = vst [vmem:[%s616 + $0xc0] sm:$0xff] %v683
  %v685 = vld [vmem:[%s616 + $0xc8] sm:$0x11]
  %v686 = vsel %vm51, %v543, %v685
  %687 = vst [vmem:[%s616 + $0xc8] sm:$0x11] %v686
  %v688 = vld [vmem:[%s616 + $0xd0] sm:$0xff]
  %v689 = vsel %vm621, %v550, %v688
  %690 = vst [vmem:[%s616 + $0xd0] sm:$0xff] %v689
  %v691 = vld [vmem:[%s616 + $0xd8] sm:$0x11]
  %v692 = vsel %vm51, %v551, %v691
  %693 = vst [vmem:[%s616 + $0xd8] sm:$0x11] %v692
  %v694 = vld [vmem:[%s616 + $0xe0] sm:$0xff]
  %v695 = vsel %vm621, %v558, %v694
  %696 = vst [vmem:[%s616 + $0xe0] sm:$0xff] %v695
  %v697 = vld [vmem:[%s616 + $0xe8] sm:$0x11]
  %v698 = vsel %vm51, %v559, %v697
  %699 = vst [vmem:[%s616 + $0xe8] sm:$0x11] %v698
  %v700 = vld [vmem:[%s616 + $0xf0] sm:$0xff]
  %v701 = vsel %vm621, %v566, %v700
  %702 = vst [vmem:[%s616 + $0xf0] sm:$0xff] %v701
  %v703 = vld [vmem:[%s616 + $0xf8] sm:$0x11]
  %v704 = vsel %vm51, %v567, %v703
  %705 = vst [vmem:[%s616 + $0xf8] sm:$0x11] %v704
  %v706 = vld [vmem:[%s616 + $0x100] sm:$0xff]
  %v707 = vsel %vm621, %v574, %v706
  %708 = vst [vmem:[%s616 + $0x100] sm:$0xff] %v707
  %v709 = vld [vmem:[%s616 + $0x108] sm:$0x11]
  %v710 = vsel %vm51, %v575, %v709
  %711 = vst [vmem:[%s616 + $0x108] sm:$0x11] %v710
  %v712 = vld [vmem:[%s616 + $0x110] sm:$0xff]
  %v713 = vsel %vm621, %v582, %v712
  %714 = vst [vmem:[%s616 + $0x110] sm:$0xff] %v713
  %v715 = vld [vmem:[%s616 + $0x118] sm:$0x11]
  %v716 = vsel %vm51, %v583, %v715
  %717 = vst [vmem:[%s616 + $0x118] sm:$0x11] %v716
  %v718 = vld [vmem:[#allocation2] sm:$0xff]
  %v719 = vld [vmem:[#allocation2 + $0x10] sm:$0xff]
  %v720 = vld [vmem:[#allocation2 + $0x20] sm:$0xff]
  %v721 = vld [vmem:[#allocation2 + $0x30] sm:$0xff]
  %v722 = vld [vmem:[#allocation2 + $0x40] sm:$0xff]
  %v723 = vld [vmem:[#allocation2 + $0x50] sm:$0xff]
  %v724 = vld [vmem:[#allocation2 + $0x60] sm:$0xff]
  %v725 = vld [vmem:[#allocation2 + $0x70] sm:$0xff]
  %v726 = vld [vmem:[#allocation2 + $0xa0] sm:$0xff]
  %v727 = vld [vmem:[#allocation2 + $0xb0] sm:$0xff]
  %v728 = vld [vmem:[#allocation2 + $0xc0] sm:$0xff]
  %v729 = vld [vmem:[#allocation2 + $0xd0] sm:$0xff]
  %v730 = vld [vmem:[#allocation2 + $0xe0] sm:$0xff]
  %v731 = vld [vmem:[#allocation2 + $0xf0] sm:$0xff]
  %v732 = vld [vmem:[#allocation2 + $0x100] sm:$0xff]
  %v733 = vld [vmem:[#allocation2 + $0x110] sm:$0xff]
  %v734 = vld [vmem:[%s1] sm:$0xf]
  %v735 = vld [vmem:[%s1 + $0x4] sm:$0xf]
  %v736 = vld [vmem:[%s1 + $0x8] sm:$0xf]
  %v737 = vld [vmem:[%s1 + $0xc] sm:$0xf]
  %v738 = vld [vmem:[%s1 + $0x10] sm:$0xf]
  %v739 = vld [vmem:[%s1 + $0x14] sm:$0xf]
  %v740 = vld [vmem:[%s1 + $0x18] sm:$0xf]
  %v741 = vld [vmem:[%s1 + $0x1c] sm:$0xf]
  %v742 = vld [vmem:[%s1 + $0x20] sm:$0xf]
  %v743 = vld [vmem:[%s1 + $0x24] sm:$0xf]
  %v744 = vld [vmem:[%s1 + $0x28] sm:$0xf]
  %v745 = vld [vmem:[%s1 + $0x2c] sm:$0xf]
  %v746 = vld [vmem:[%s1 + $0x30] sm:$0xf]
  %v747 = vld [vmem:[%s1 + $0x34] sm:$0xf]
  %v748 = vld [vmem:[%s1 + $0x38] sm:$0xf]
  %v749 = vld [vmem:[%s1 + $0x3c] sm:$0xf]
  %v750 = vld [vmem:[%s1 + $0x40] sm:$0xf]
  %v751 = vld [vmem:[%s1 + $0x44] sm:$0xf]
  %v752 = vld [vmem:[%s1 + $0x48] sm:$0xf]
  %v753 = vld [vmem:[%s1 + $0x4c] sm:$0xf]
  %v754 = vld [vmem:[%s1 + $0x50] sm:$0xf]
  %v755 = vld [vmem:[%s1 + $0x54] sm:$0xf]
  %v756 = vld [vmem:[%s1 + $0x58] sm:$0xf]
  %v757 = vld [vmem:[%s1 + $0x5c] sm:$0xf]
  %v758 = vld [vmem:[%s1 + $0x60] sm:$0xf]
  %v759 = vld [vmem:[%s1 + $0x64] sm:$0xf]
  %v760 = vld [vmem:[%s1 + $0x68] sm:$0xf]
  %v761 = vld [vmem:[%s1 + $0x6c] sm:$0xf]
  %v762 = vld [vmem:[%s1 + $0x70] sm:$0xf]
  %v763 = vld [vmem:[%s1 + $0x74] sm:$0xf]
  %v764 = vld [vmem:[%s1 + $0x78] sm:$0xf]
  %v765 = vld [vmem:[%s1 + $0x7c] sm:$0xf]
  %v766 = vld [vmem:[#allocation2 + $0x8] sm:$0x11]
  %v767 = vld [vmem:[#allocation2 + $0x18] sm:$0x11]
  %v768 = vld [vmem:[#allocation2 + $0x28] sm:$0x11]
  %v769 = vld [vmem:[#allocation2 + $0x38] sm:$0x11]
  %v770 = vld [vmem:[#allocation2 + $0x48] sm:$0x11]
  %v771 = vld [vmem:[#allocation2 + $0x58] sm:$0x11]
  %v772 = vld [vmem:[#allocation2 + $0x68] sm:$0x11]
  %v773 = vld [vmem:[#allocation2 + $0x78] sm:$0x11]
  %v774 = vld [vmem:[#allocation2 + $0xa8] sm:$0x11]
  %v775 = vld [vmem:[#allocation2 + $0xb8] sm:$0x11]
  %v776 = vld [vmem:[#allocation2 + $0xc8] sm:$0x11]
  %v777 = vld [vmem:[#allocation2 + $0xd8] sm:$0x11]
  %v778 = vld [vmem:[#allocation2 + $0xe8] sm:$0x11]
  %v779 = vld [vmem:[#allocation2 + $0xf8] sm:$0x11]
  %v780 = vld [vmem:[#allocation2 + $0x108] sm:$0x11]
  %v781 = vld [vmem:[#allocation2 + $0x118] sm:$0x11]
  %vm782 = vsmask.f32 3328
  %vm783 = vsmask.f32 7440
  %vm784 = vmor %vm782, %vm783
  %v786 = vshrl.u32 %v718, 16
  %v788 = vrot.slane %v786, 4
  %v789 = vshll.u32 %v718, 16
  %v791 = vrot.slane %v789, 5
  %v792 = vor.u32 %v788, %v791
  %v793 = vrot.slane %v792, 4
  %v795 = vshll.u32 %v766, 16
  %v797 = vrot.slane %v795, 5
  %v798 = vsel %vm784, %v793, %v797
  %v800 = vshrl.u32 %v719, 16
  %v802 = vrot.slane %v800, 4
  %v803 = vshll.u32 %v719, 16
  %v805 = vrot.slane %v803, 5
  %v806 = vor.u32 %v802, %v805
  %v807 = vrot.slane %v806, 4
  %v809 = vshll.u32 %v767, 16
  %v811 = vrot.slane %v809, 5
  %v812 = vsel %vm784, %v807, %v811
  %v814 = vshrl.u32 %v720, 16
  %v816 = vrot.slane %v814, 4
  %v817 = vshll.u32 %v720, 16
  %v819 = vrot.slane %v817, 5
  %v820 = vor.u32 %v816, %v819
  %v821 = vrot.slane %v820, 4
  %v823 = vshll.u32 %v768, 16
  %v825 = vrot.slane %v823, 5
  %v826 = vsel %vm784, %v821, %v825
  %v828 = vshrl.u32 %v721, 16
  %v830 = vrot.slane %v828, 4
  %v831 = vshll.u32 %v721, 16
  %v833 = vrot.slane %v831, 5
  %v834 = vor.u32 %v830, %v833
  %v835 = vrot.slane %v834, 4
  %v837 = vshll.u32 %v769, 16
  %v839 = vrot.slane %v837, 5
  %v840 = vsel %vm784, %v835, %v839
  %v842 = vshrl.u32 %v722, 16
  %v844 = vrot.slane %v842, 4
  %v845 = vshll.u32 %v722, 16
  %v847 = vrot.slane %v845, 5
  %v848 = vor.u32 %v844, %v847
  %v849 = vrot.slane %v848, 4
  %v851 = vshll.u32 %v770, 16
  %v853 = vrot.slane %v851, 5
  %v854 = vsel %vm784, %v849, %v853
  %v856 = vshrl.u32 %v723, 16
  %v858 = vrot.slane %v856, 4
  %v859 = vshll.u32 %v723, 16
  %v861 = vrot.slane %v859, 5
  %v862 = vor.u32 %v858, %v861
  %v863 = vrot.slane %v862, 4
  %v865 = vshll.u32 %v771, 16
  %v867 = vrot.slane %v865, 5
  %v868 = vsel %vm784, %v863, %v867
  %v870 = vshrl.u32 %v724, 16
  %v872 = vrot.slane %v870, 4
  %v873 = vshll.u32 %v724, 16
  %v875 = vrot.slane %v873, 5
  %v876 = vor.u32 %v872, %v875
  %v877 = vrot.slane %v876, 4
  %v879 = vshll.u32 %v772, 16
  %v881 = vrot.slane %v879, 5
  %v882 = vsel %vm784, %v877, %v881
  %v884 = vshrl.u32 %v725, 16
  %v886 = vrot.slane %v884, 4
  %v887 = vshll.u32 %v725, 16
  %v889 = vrot.slane %v887, 5
  %v890 = vor.u32 %v886, %v889
  %v891 = vrot.slane %v890, 4
  %v893 = vshll.u32 %v773, 16
  %v895 = vrot.slane %v893, 5
  %v896 = vsel %vm784, %v891, %v895
  %v898 = vshrl.u32 %v726, 16
  %v900 = vrot.slane %v898, 4
  %v901 = vshll.u32 %v726, 16
  %v903 = vrot.slane %v901, 5
  %v904 = vor.u32 %v900, %v903
  %v905 = vrot.slane %v904, 4
  %v907 = vshll.u32 %v774, 16
  %v909 = vrot.slane %v907, 5
  %v910 = vsel %vm784, %v905, %v909
  %v912 = vshrl.u32 %v727, 16
  %v914 = vrot.slane %v912, 4
  %v915 = vshll.u32 %v727, 16
  %v917 = vrot.slane %v915, 5
  %v918 = vor.u32 %v914, %v917
  %v919 = vrot.slane %v918, 4
  %v921 = vshll.u32 %v775, 16
  %v923 = vrot.slane %v921, 5
  %v924 = vsel %vm784, %v919, %v923
  %v926 = vshrl.u32 %v728, 16
  %v928 = vrot.slane %v926, 4
  %v929 = vshll.u32 %v728, 16
  %v931 = vrot.slane %v929, 5
  %v932 = vor.u32 %v928, %v931
  %v933 = vrot.slane %v932, 4
  %v935 = vshll.u32 %v776, 16
  %v937 = vrot.slane %v935, 5
  %v938 = vsel %vm784, %v933, %v937
  %v940 = vshrl.u32 %v729, 16
  %v942 = vrot.slane %v940, 4
  %v943 = vshll.u32 %v729, 16
  %v945 = vrot.slane %v943, 5
  %v946 = vor.u32 %v942, %v945
  %v947 = vrot.slane %v946, 4
  %v949 = vshll.u32 %v777, 16
  %v951 = vrot.slane %v949, 5
  %v952 = vsel %vm784, %v947, %v951
  %v954 = vshrl.u32 %v730, 16
  %v956 = vrot.slane %v954, 4
  %v957 = vshll.u32 %v730, 16
  %v959 = vrot.slane %v957, 5
  %v960 = vor.u32 %v956, %v959
  %v961 = vrot.slane %v960, 4
  %v963 = vshll.u32 %v778, 16
  %v965 = vrot.slane %v963, 5
  %v966 = vsel %vm784, %v961, %v965
  %v968 = vshrl.u32 %v731, 16
  %v970 = vrot.slane %v968, 4
  %v971 = vshll.u32 %v731, 16
  %v973 = vrot.slane %v971, 5
  %v974 = vor.u32 %v970, %v973
  %v975 = vrot.slane %v974, 4
  %v977 = vshll.u32 %v779, 16
  %v979 = vrot.slane %v977, 5
  %v980 = vsel %vm784, %v975, %v979
  %v982 = vshrl.u32 %v732, 16
  %v984 = vrot.slane %v982, 4
  %v985 = vshll.u32 %v732, 16
  %v987 = vrot.slane %v985, 5
  %v988 = vor.u32 %v984, %v987
  %v989 = vrot.slane %v988, 4
  %v991 = vshll.u32 %v780, 16
  %v993 = vrot.slane %v991, 5
  %v994 = vsel %vm784, %v989, %v993
  %v996 = vshrl.u32 %v733, 16
  %v998 = vrot.slane %v996, 4
  %v999 = vshll.u32 %v733, 16
  %v1001 = vrot.slane %v999, 5
  %v1002 = vor.u32 %v998, %v1001
  %v1003 = vrot.slane %v1002, 4
  %v1005 = vshll.u32 %v781, 16
  %v1007 = vrot.slane %v1005, 5
  %v1008 = vsel %vm784, %v1003, %v1007
  %s1009 = scalar_lea.vmem %s1, 128
  %v1010 = vld [vmem:[%s1009] sm:$0xf]
  %v1011 = vld [vmem:[%s1009 + $0x4] sm:$0xf]
  %v1012 = vld [vmem:[%s1009 + $0x8] sm:$0xf]
  %v1013 = vld [vmem:[%s1009 + $0xc] sm:$0xf]
  %v1014 = vld [vmem:[%s1009 + $0x10] sm:$0xf]
  %v1015 = vld [vmem:[%s1009 + $0x14] sm:$0xf]
  %v1016 = vld [vmem:[%s1009 + $0x18] sm:$0xf]
  %v1017 = vld [vmem:[%s1009 + $0x1c] sm:$0xf]
  %v1018 = vld [vmem:[%s1009 + $0x20] sm:$0xf]
  %v1019 = vld [vmem:[%s1009 + $0x24] sm:$0xf]
  %v1020 = vld [vmem:[%s1009 + $0x28] sm:$0xf]
  %v1021 = vld [vmem:[%s1009 + $0x2c] sm:$0xf]
  %v1022 = vld [vmem:[%s1009 + $0x30] sm:$0xf]
  %v1023 = vld [vmem:[%s1009 + $0x34] sm:$0xf]
  %v1024 = vld [vmem:[%s1009 + $0x38] sm:$0xf]
  %v1025 = vld [vmem:[%s1009 + $0x3c] sm:$0xf]
  %v1026 = vld [vmem:[%s1009 + $0x40] sm:$0xf]
  %v1027 = vld [vmem:[%s1009 + $0x44] sm:$0xf]
  %v1028 = vld [vmem:[%s1009 + $0x48] sm:$0xf]
  %v1029 = vld [vmem:[%s1009 + $0x4c] sm:$0xf]
  %v1030 = vld [vmem:[%s1009 + $0x50] sm:$0xf]
  %v1031 = vld [vmem:[%s1009 + $0x54] sm:$0xf]
  %v1032 = vld [vmem:[%s1009 + $0x58] sm:$0xf]
  %v1033 = vld [vmem:[%s1009 + $0x5c] sm:$0xf]
  %v1034 = vld [vmem:[%s1009 + $0x60] sm:$0xf]
  %v1035 = vld [vmem:[%s1009 + $0x64] sm:$0xf]
  %v1036 = vld [vmem:[%s1009 + $0x68] sm:$0xf]
  %v1037 = vld [vmem:[%s1009 + $0x6c] sm:$0xf]
  %v1038 = vld [vmem:[%s1009 + $0x70] sm:$0xf]
  %v1039 = vld [vmem:[%s1009 + $0x74] sm:$0xf]
  %v1040 = vld [vmem:[%s1009 + $0x78] sm:$0xf]
  %v1041 = vld [vmem:[%s1009 + $0x7c] sm:$0xf]
  %v1042 = vunpack.c.l.b16 %v798
  %v1043 = vunpack.c.h.b16 %v798
  %v1044 = vunpack.c.l.b16 %v812
  %v1045 = vunpack.c.h.b16 %v812
  %v1046 = vunpack.c.l.b16 %v826
  %v1047 = vunpack.c.h.b16 %v826
  %v1048 = vunpack.c.l.b16 %v840
  %v1049 = vunpack.c.h.b16 %v840
  %v1050 = vunpack.c.l.b16 %v854
  %v1051 = vunpack.c.h.b16 %v854
  %v1052 = vunpack.c.l.b16 %v868
  %v1053 = vunpack.c.h.b16 %v868
  %v1054 = vunpack.c.l.b16 %v882
  %v1055 = vunpack.c.h.b16 %v882
  %v1056 = vunpack.c.l.b16 %v896
  %v1057 = vunpack.c.h.b16 %v896
  %v1058 = vunpack.c.l.b16 %v910
  %v1059 = vunpack.c.h.b16 %v910
  %v1060 = vunpack.c.l.b16 %v924
  %v1061 = vunpack.c.h.b16 %v924
  %v1062 = vunpack.c.l.b16 %v938
  %v1063 = vunpack.c.h.b16 %v938
  %v1064 = vunpack.c.l.b16 %v952
  %v1065 = vunpack.c.h.b16 %v952
  %v1066 = vunpack.c.l.b16 %v966
  %v1067 = vunpack.c.h.b16 %v966
  %v1068 = vunpack.c.l.b16 %v980
  %v1069 = vunpack.c.h.b16 %v980
  %v1070 = vunpack.c.l.b16 %v994
  %v1071 = vunpack.c.h.b16 %v994
  %v1072 = vunpack.c.l.b16 %v1008
  %v1073 = vunpack.c.h.b16 %v1008
  %v1074 = vpack.c.b16 %v1044, %v1042
  %v1075 = vpack.c.b16 %v1045, %v1043
  %v1076 = vpack.c.b16 %v1048, %v1046
  %v1077 = vpack.c.b16 %v1049, %v1047
  %v1078 = vpack.c.b16 %v1052, %v1050
  %v1079 = vpack.c.b16 %v1053, %v1051
  %v1080 = vpack.c.b16 %v1056, %v1054
  %v1081 = vpack.c.b16 %v1057, %v1055
  %v1082 = vpack.c.b16 %v1060, %v1058
  %v1083 = vpack.c.b16 %v1061, %v1059
  %v1084 = vpack.c.b16 %v1064, %v1062
  %v1085 = vpack.c.b16 %v1065, %v1063
  %v1086 = vpack.c.b16 %v1068, %v1066
  %v1087 = vpack.c.b16 %v1069, %v1067
  %v1088 = vpack.c.b16 %v1072, %v1070
  %v1089 = vpack.c.b16 %v1073, %v1071
  %v1138 = vunpack.c.l.b16 %v1010
  %v1139 = vunpack.c.l.b16 %v1011
  %v1140 = vunpack.c.l.b16 %v1012
  %v1141 = vunpack.c.l.b16 %v1013
  %v1142 = vunpack.c.l.b16 %v1014
  %v1143 = vunpack.c.l.b16 %v1015
  %v1144 = vunpack.c.l.b16 %v1016
  %v1145 = vunpack.c.l.b16 %v1017
  %v1146 = vunpack.c.l.b16 %v1018
  %v1147 = vunpack.c.l.b16 %v1019
  %v1148 = vunpack.c.l.b16 %v1020
  %v1149 = vunpack.c.l.b16 %v1021
  %v1150 = vunpack.c.l.b16 %v1022
  %v1151 = vunpack.c.l.b16 %v1023
  %v1152 = vunpack.c.l.b16 %v1024
  %v1153 = vunpack.c.l.b16 %v1025
  %v1154 = vunpack.c.l.b16 %v1026
  %v1155 = vunpack.c.l.b16 %v1027
  %v1156 = vunpack.c.l.b16 %v1028
  %v1157 = vunpack.c.l.b16 %v1029
  %v1158 = vunpack.c.l.b16 %v1030
  %v1159 = vunpack.c.l.b16 %v1031
  %v1160 = vunpack.c.l.b16 %v1032
  %v1161 = vunpack.c.l.b16 %v1033
  %v1162 = vunpack.c.l.b16 %v1034
  %v1163 = vunpack.c.l.b16 %v1035
  %v1164 = vunpack.c.l.b16 %v1036
  %v1165 = vunpack.c.l.b16 %v1037
  %v1166 = vunpack.c.l.b16 %v1038
  %v1167 = vunpack.c.l.b16 %v1039
  %v1168 = vunpack.c.l.b16 %v1040
  %v1169 = vunpack.c.l.b16 %v1041
  %v1170 = vpack.c.b16 %v1139, %v1138
  %v1171 = vpack.c.b16 %v1141, %v1140
  %v1172 = vpack.c.b16 %v1143, %v1142
  %v1173 = vpack.c.b16 %v1145, %v1144
  %v1174 = vpack.c.b16 %v1147, %v1146
  %v1175 = vpack.c.b16 %v1149, %v1148
  %v1176 = vpack.c.b16 %v1151, %v1150
  %v1177 = vpack.c.b16 %v1153, %v1152
  %v1178 = vpack.c.b16 %v1155, %v1154
  %v1179 = vpack.c.b16 %v1157, %v1156
  %v1180 = vpack.c.b16 %v1159, %v1158
  %v1181 = vpack.c.b16 %v1161, %v1160
  %v1182 = vpack.c.b16 %v1163, %v1162
  %v1183 = vpack.c.b16 %v1165, %v1164
  %v1184 = vpack.c.b16 %v1167, %v1166
  %v1185 = vpack.c.b16 %v1169, %v1168
  %1202 = vmatprep.subr.bf16.mxu0 0
  %1203 = vmatpush1.bf16.msra.mxu0 %v1170
  %1204 = vmatprep.subr.bf16.mxu0 0
  %1205 = vmatpush1.bf16.msra.mxu0 %v1171
  %1206 = vmatprep.subr.bf16.mxu0 0
  %1207 = vmatpush1.bf16.msra.mxu0 %v1172
  %1208 = vmatprep.subr.bf16.mxu0 0
  %1209 = vmatpush1.bf16.msra.mxu0 %v1173
  %1210 = vmatprep.subr.bf16.mxu0 0
  %1211 = vmatpush1.bf16.msra.mxu0 %v1174
  %1212 = vmatprep.subr.bf16.mxu0 0
  %1213 = vmatpush1.bf16.msra.mxu0 %v1175
  %1214 = vmatprep.subr.bf16.mxu0 0
  %1215 = vmatpush1.bf16.msra.mxu0 %v1176
  %1216 = vmatprep.subr.bf16.mxu0 0
  %1217 = vmatpush1.bf16.msra.mxu0 %v1177
  %1218 = vmatprep.subr.bf16.mxu0 0
  %1219 = vmatpush1.bf16.msra.mxu0 %v1178
  %1220 = vmatprep.subr.bf16.mxu0 0
  %1221 = vmatpush1.bf16.msra.mxu0 %v1179
  %1222 = vmatprep.subr.bf16.mxu0 0
  %1223 = vmatpush1.bf16.msra.mxu0 %v1180
  %1224 = vmatprep.subr.bf16.mxu0 0
  %1225 = vmatpush1.bf16.msra.mxu0 %v1181
  %1226 = vmatprep.subr.bf16.mxu0 0
  %1227 = vmatpush1.bf16.msra.mxu0 %v1182
  %1228 = vmatprep.subr.bf16.mxu0 0
  %1229 = vmatpush1.bf16.msra.mxu0 %v1183
  %1230 = vmatprep.subr.bf16.mxu0 0
  %1231 = vmatpush1.bf16.msra.mxu0 %v1184
  %1232 = vmatprep.subr.bf16.mxu0 0
  %1233 = vmatpush1.bf16.msra.mxu0 %v1185
  %1234 = vmatprep.mubr.bf16.mxu0 %v1075
  %1235 = vmatmul.mubr.bf16.gmra.mrb[0].mxu0 %v1074
  %v1236 = vpop.f32.mrb[0].mxu0
  %v1237 = vadd.f32 0.0, %v1236
  %v1238 = vpop.f32.mrb[0].mxu0
  %v1239 = vpop.f32.mrb[0].mxu0
  %v1240 = vadd.f32 0.0, %v1239
  %v1241 = vpop.f32.mrb[0].mxu0
  %1242 = vmatprep.mubr.bf16.mxu0 %v1077
  %1243 = vmatmul.mubr.bf16.gmra.mrb[0].mxu0 %v1076
  %v1244 = vpop.f32.mrb[0].mxu0
  %v1245 = vadd.f32 0.0, %v1244
  %v1246 = vpop.f32.mrb[0].mxu0
  %v1247 = vpop.f32.mrb[0].mxu0
  %v1248 = vadd.f32 0.0, %v1247
  %v1249 = vpop.f32.mrb[0].mxu0
  %1250 = vmatprep.mubr.bf16.mxu0 %v1079
  %1251 = vmatmul.mubr.bf16.gmra.mrb[0].mxu0 %v1078
  %v1252 = vpop.f32.mrb[0].mxu0
  %v1253 = vadd.f32 0.0, %v1252
  %v1254 = vpop.f32.mrb[0].mxu0
  %v1255 = vpop.f32.mrb[0].mxu0
  %v1256 = vadd.f32 0.0, %v1255
  %v1257 = vpop.f32.mrb[0].mxu0
  %1258 = vmatprep.mubr.bf16.mxu0 %v1081
  %1259 = vmatmul.mubr.bf16.gmra.mrb[0].mxu0 %v1080
  %v1260 = vpop.f32.mrb[0].mxu0
  %v1261 = vadd.f32 0.0, %v1260
  %v1262 = vpop.f32.mrb[0].mxu0
  %v1263 = vpop.f32.mrb[0].mxu0
  %v1264 = vadd.f32 0.0, %v1263
  %v1265 = vpop.f32.mrb[0].mxu0
  %1266 = vmatprep.mubr.bf16.mxu0 %v1083
  %1267 = vmatmul.mubr.bf16.gmra.mrb[0].mxu0 %v1082
  %v1268 = vpop.f32.mrb[0].mxu0
  %v1269 = vadd.f32 0.0, %v1268
  %v1270 = vpop.f32.mrb[0].mxu0
  %v1271 = vpop.f32.mrb[0].mxu0
  %v1272 = vadd.f32 0.0, %v1271
  %v1273 = vpop.f32.mrb[0].mxu0
  %1274 = vmatprep.mubr.bf16.mxu0 %v1085
  %1275 = vmatmul.mubr.bf16.gmra.mrb[0].mxu0 %v1084
  %v1276 = vpop.f32.mrb[0].mxu0
  %v1277 = vadd.f32 0.0, %v1276
  %v1278 = vpop.f32.mrb[0].mxu0
  %v1279 = vpop.f32.mrb[0].mxu0
  %v1280 = vadd.f32 0.0, %v1279
  %v1281 = vpop.f32.mrb[0].mxu0
  %1282 = vmatprep.mubr.bf16.mxu0 %v1087
  %1283 = vmatmul.mubr.bf16.gmra.mrb[0].mxu0 %v1086
  %v1284 = vpop.f32.mrb[0].mxu0
  %v1285 = vadd.f32 0.0, %v1284
  %v1286 = vpop.f32.mrb[0].mxu0
  %v1287 = vpop.f32.mrb[0].mxu0
  %v1288 = vadd.f32 0.0, %v1287
  %v1289 = vpop.f32.mrb[0].mxu0
  %1290 = vmatprep.mubr.bf16.mxu0 %v1089
  %1291 = vmatmul.mubr.bf16.gmra.mrb[0].mxu0 %v1088
  %v1292 = vpop.f32.mrb[0].mxu0
  %v1293 = vadd.f32 0.0, %v1292
  %v1294 = vpop.f32.mrb[0].mxu0
  %v1295 = vpop.f32.mrb[0].mxu0
  %v1296 = vadd.f32 0.0, %v1295
  %v1297 = vpop.f32.mrb[0].mxu0
  %1298 = vdwg.mxu0
  %v1315 = vunpack.c.l.b16 %v718
  %v1316 = vunpack.c.h.b16 %v718
  %v1317 = vunpack.c.l.b16 %v719
  %v1318 = vunpack.c.h.b16 %v719
  %v1319 = vunpack.c.l.b16 %v720
  %v1320 = vunpack.c.h.b16 %v720
  %v1321 = vunpack.c.l.b16 %v721
  %v1322 = vunpack.c.h.b16 %v721
  %v1323 = vunpack.c.l.b16 %v722
  %v1324 = vunpack.c.h.b16 %v722
  %v1325 = vunpack.c.l.b16 %v723
  %v1326 = vunpack.c.h.b16 %v723
  %v1327 = vunpack.c.l.b16 %v724
  %v1328 = vunpack.c.h.b16 %v724
  %v1329 = vunpack.c.l.b16 %v725
  %v1330 = vunpack.c.h.b16 %v725
  %v1331 = vunpack.c.l.b16 %v726
  %v1332 = vunpack.c.h.b16 %v726
  %v1333 = vunpack.c.l.b16 %v727
  %v1334 = vunpack.c.h.b16 %v727
  %v1335 = vunpack.c.l.b16 %v728
  %v1336 = vunpack.c.h.b16 %v728
  %v1337 = vunpack.c.l.b16 %v729
  %v1338 = vunpack.c.h.b16 %v729
  %v1339 = vunpack.c.l.b16 %v730
  %v1340 = vunpack.c.h.b16 %v730
  %v1341 = vunpack.c.l.b16 %v731
  %v1342 = vunpack.c.h.b16 %v731
  %v1343 = vunpack.c.l.b16 %v732
  %v1344 = vunpack.c.h.b16 %v732
  %v1345 = vunpack.c.l.b16 %v733
  %v1346 = vunpack.c.h.b16 %v733
  %v1347 = vpack.c.b16 %v1317, %v1315
  %v1348 = vpack.c.b16 %v1318, %v1316
  %v1349 = vpack.c.b16 %v1321, %v1319
  %v1350 = vpack.c.b16 %v1322, %v1320
  %v1351 = vpack.c.b16 %v1325, %v1323
  %v1352 = vpack.c.b16 %v1326, %v1324
  %v1353 = vpack.c.b16 %v1329, %v1327
  %v1354 = vpack.c.b16 %v1330, %v1328
  %v1355 = vpack.c.b16 %v1333, %v1331
  %v1356 = vpack.c.b16 %v1334, %v1332
  %v1357 = vpack.c.b16 %v1337, %v1335
  %v1358 = vpack.c.b16 %v1338, %v1336
  %v1359 = vpack.c.b16 %v1341, %v1339
  %v1360 = vpack.c.b16 %v1342, %v1340
  %v1361 = vpack.c.b16 %v1345, %v1343
  %v1362 = vpack.c.b16 %v1346, %v1344
  %v1411 = vunpack.c.l.b16 %v734
  %v1412 = vunpack.c.l.b16 %v735
  %v1413 = vunpack.c.l.b16 %v736
  %v1414 = vunpack.c.l.b16 %v737
  %v1415 = vunpack.c.l.b16 %v738
  %v1416 = vunpack.c.l.b16 %v739
  %v1417 = vunpack.c.l.b16 %v740
  %v1418 = vunpack.c.l.b16 %v741
  %v1419 = vunpack.c.l.b16 %v742
  %v1420 = vunpack.c.l.b16 %v743
  %v1421 = vunpack.c.l.b16 %v744
  %v1422 = vunpack.c.l.b16 %v745
  %v1423 = vunpack.c.l.b16 %v746
  %v1424 = vunpack.c.l.b16 %v747
  %v1425 = vunpack.c.l.b16 %v748
  %v1426 = vunpack.c.l.b16 %v749
  %v1427 = vunpack.c.l.b16 %v750
  %v1428 = vunpack.c.l.b16 %v751
  %v1429 = vunpack.c.l.b16 %v752
  %v1430 = vunpack.c.l.b16 %v753
  %v1431 = vunpack.c.l.b16 %v754
  %v1432 = vunpack.c.l.b16 %v755
  %v1433 = vunpack.c.l.b16 %v756
  %v1434 = vunpack.c.l.b16 %v757
  %v1435 = vunpack.c.l.b16 %v758
  %v1436 = vunpack.c.l.b16 %v759
  %v1437 = vunpack.c.l.b16 %v760
  %v1438 = vunpack.c.l.b16 %v761
  %v1439 = vunpack.c.l.b16 %v762
  %v1440 = vunpack.c.l.b16 %v763
  %v1441 = vunpack.c.l.b16 %v764
  %v1442 = vunpack.c.l.b16 %v765
  %v1443 = vpack.c.b16 %v1412, %v1411
  %v1444 = vpack.c.b16 %v1414, %v1413
  %v1445 = vpack.c.b16 %v1416, %v1415
  %v1446 = vpack.c.b16 %v1418, %v1417
  %v1447 = vpack.c.b16 %v1420, %v1419
  %v1448 = vpack.c.b16 %v1422, %v1421
  %v1449 = vpack.c.b16 %v1424, %v1423
  %v1450 = vpack.c.b16 %v1426, %v1425
  %v1451 = vpack.c.b16 %v1428, %v1427
  %v1452 = vpack.c.b16 %v1430, %v1429
  %v1453 = vpack.c.b16 %v1432, %v1431
  %v1454 = vpack.c.b16 %v1434, %v1433
  %v1455 = vpack.c.b16 %v1436, %v1435
  %v1456 = vpack.c.b16 %v1438, %v1437
  %v1457 = vpack.c.b16 %v1440, %v1439
  %v1458 = vpack.c.b16 %v1442, %v1441
  %1475 = vmatprep.subr.bf16.mxu0 0
  %1476 = vmatpush1.bf16.msra.mxu0 %v1443
  %1477 = vmatprep.subr.bf16.mxu0 0
  %1478 = vmatpush1.bf16.msra.mxu0 %v1444
  %1479 = vmatprep.subr.bf16.mxu0 0
  %1480 = vmatpush1.bf16.msra.mxu0 %v1445
  %1481 = vmatprep.subr.bf16.mxu0 0
  %1482 = vmatpush1.bf16.msra.mxu0 %v1446
  %1483 = vmatprep.subr.bf16.mxu0 0
  %1484 = vmatpush1.bf16.msra.mxu0 %v1447
  %1485 = vmatprep.subr.bf16.mxu0 0
  %1486 = vmatpush1.bf16.msra.mxu0 %v1448
  %1487 = vmatprep.subr.bf16.mxu0 0
  %1488 = vmatpush1.bf16.msra.mxu0 %v1449
  %1489 = vmatprep.subr.bf16.mxu0 0
  %1490 = vmatpush1.bf16.msra.mxu0 %v1450
  %1491 = vmatprep.subr.bf16.mxu0 0
  %1492 = vmatpush1.bf16.msra.mxu0 %v1451
  %1493 = vmatprep.subr.bf16.mxu0 0
  %1494 = vmatpush1.bf16.msra.mxu0 %v1452
  %1495 = vmatprep.subr.bf16.mxu0 0
  %1496 = vmatpush1.bf16.msra.mxu0 %v1453
  %1497 = vmatprep.subr.bf16.mxu0 0
  %1498 = vmatpush1.bf16.msra.mxu0 %v1454
  %1499 = vmatprep.subr.bf16.mxu0 0
  %1500 = vmatpush1.bf16.msra.mxu0 %v1455
  %1501 = vmatprep.subr.bf16.mxu0 0
  %1502 = vmatpush1.bf16.msra.mxu0 %v1456
  %1503 = vmatprep.subr.bf16.mxu0 0
  %1504 = vmatpush1.bf16.msra.mxu0 %v1457
  %1505 = vmatprep.subr.bf16.mxu0 0
  %1506 = vmatpush1.bf16.msra.mxu0 %v1458
  %1507 = vmatprep.mubr.bf16.mxu0 %v1348
  %1508 = vmatmul.mubr.bf16.gmra.mrb[0].mxu0 %v1347
  %v1509 = vpop.f32.mrb[0].mxu0
  %v1510 = vadd.f32 %v1237, %v1509
  %v1511 = vpop.f32.mrb[0].mxu0
  %v1512 = vpop.f32.mrb[0].mxu0
  %v1513 = vadd.f32 %v1240, %v1512
  %v1514 = vpop.f32.mrb[0].mxu0
  %1515 = vmatprep.mubr.bf16.mxu0 %v1350
  %1516 = vmatmul.mubr.bf16.gmra.mrb[0].mxu0 %v1349
  %v1517 = vpop.f32.mrb[0].mxu0
  %v1518 = vadd.f32 %v1245, %v1517
  %v1519 = vpop.f32.mrb[0].mxu0
  %v1520 = vpop.f32.mrb[0].mxu0
  %v1521 = vadd.f32 %v1248, %v1520
  %v1522 = vpop.f32.mrb[0].mxu0
  %1523 = vmatprep.mubr.bf16.mxu0 %v1352
  %1524 = vmatmul.mubr.bf16.gmra.mrb[0].mxu0 %v1351
  %v1525 = vpop.f32.mrb[0].mxu0
  %v1526 = vadd.f32 %v1253, %v1525
  %v1527 = vpop.f32.mrb[0].mxu0
  %v1528 = vpop.f32.mrb[0].mxu0
  %v1529 = vadd.f32 %v1256, %v1528
  %v1530 = vpop.f32.mrb[0].mxu0
  %1531 = vmatprep.mubr.bf16.mxu0 %v1354
  %1532 = vmatmul.mubr.bf16.gmra.mrb[0].mxu0 %v1353
  %v1533 = vpop.f32.mrb[0].mxu0
  %v1534 = vadd.f32 %v1261, %v1533
  %v1535 = vpop.f32.mrb[0].mxu0
  %v1536 = vpop.f32.mrb[0].mxu0
  %v1537 = vadd.f32 %v1264, %v1536
  %v1538 = vpop.f32.mrb[0].mxu0
  %1539 = vmatprep.mubr.bf16.mxu0 %v1356
  %1540 = vmatmul.mubr.bf16.gmra.mrb[0].mxu0 %v1355
  %v1541 = vpop.f32.mrb[0].mxu0
  %v1542 = vadd.f32 %v1269, %v1541
  %v1543 = vpop.f32.mrb[0].mxu0
  %v1544 = vpop.f32.mrb[0].mxu0
  %v1545 = vadd.f32 %v1272, %v1544
  %v1546 = vpop.f32.mrb[0].mxu0
  %1547 = vmatprep.mubr.bf16.mxu0 %v1358
  %1548 = vmatmul.mubr.bf16.gmra.mrb[0].mxu0 %v1357
  %v1549 = vpop.f32.mrb[0].mxu0
  %v1550 = vadd.f32 %v1277, %v1549
  %v1551 = vpop.f32.mrb[0].mxu0
  %v1552 = vpop.f32.mrb[0].mxu0
  %v1553 = vadd.f32 %v1280, %v1552
  %v1554 = vpop.f32.mrb[0].mxu0
  %1555 = vmatprep.mubr.bf16.mxu0 %v1360
  %1556 = vmatmul.mubr.bf16.gmra.mrb[0].mxu0 %v1359
  %v1557 = vpop.f32.mrb[0].mxu0
  %v1558 = vadd.f32 %v1285, %v1557
  %v1559 = vpop.f32.mrb[0].mxu0
  %v1560 = vpop.f32.mrb[0].mxu0
  %v1561 = vadd.f32 %v1288, %v1560
  %v1562 = vpop.f32.mrb[0].mxu0
  %1563 = vmatprep.mubr.bf16.mxu0 %v1362
  %1564 = vmatmul.mubr.bf16.gmra.mrb[0].mxu0 %v1361
  %v1565 = vpop.f32.mrb[0].mxu0
  %v1566 = vadd.f32 %v1293, %v1565
  %v1567 = vpop.f32.mrb[0].mxu0
  %v1568 = vpop.f32.mrb[0].mxu0
  %v1569 = vadd.f32 %v1296, %v1568
  %v1570 = vpop.f32.mrb[0].mxu0
  %1571 = vdwg.mxu0
  %v1572 = vld [vmem:[#allocation2] sm:$0xee]
  %v1573 = vld [vmem:[#allocation2 + $0x10] sm:$0xee]
  %v1574 = vld [vmem:[#allocation2 + $0x20] sm:$0xee]
  %v1575 = vld [vmem:[#allocation2 + $0x30] sm:$0xee]
  %v1576 = vld [vmem:[#allocation2 + $0x40] sm:$0xee]
  %v1577 = vld [vmem:[#allocation2 + $0x50] sm:$0xee]
  %v1578 = vld [vmem:[#allocation2 + $0x60] sm:$0xee]
  %v1579 = vld [vmem:[#allocation2 + $0x70] sm:$0xee]
  %v1580 = vld [vmem:[#allocation2 + $0xa0] sm:$0xee]
  %v1581 = vld [vmem:[#allocation2 + $0xb0] sm:$0xee]
  %v1582 = vld [vmem:[#allocation2 + $0xc0] sm:$0xee]
  %v1583 = vld [vmem:[#allocation2 + $0xd0] sm:$0xee]
  %v1584 = vld [vmem:[#allocation2 + $0xe0] sm:$0xee]
  %v1585 = vld [vmem:[#allocation2 + $0xf0] sm:$0xee]
  %v1586 = vld [vmem:[#allocation2 + $0x100] sm:$0xee]
  %v1587 = vld [vmem:[#allocation2 + $0x110] sm:$0xee]
  %vm1620 = vcmask 1042432
  %vm1621 = vcmask 1046532
  %vm1622 = vmor %vm1620, %vm1621
  %v1623 = vrot.slane %v1572, 5
  %v1624 = vrot.slane %v1623, 4
  %v1625 = vrot.slane %v766, 5
  %v1626 = vsel %vm1622, %v1624, %v1625
  %v1627 = vrot.slane %v1573, 5
  %v1628 = vrot.slane %v1627, 4
  %v1629 = vrot.slane %v767, 5
  %v1630 = vsel %vm1622, %v1628, %v1629
  %v1631 = vrot.slane %v1574, 5
  %v1632 = vrot.slane %v1631, 4
  %v1633 = vrot.slane %v768, 5
  %v1634 = vsel %vm1622, %v1632, %v1633
  %v1635 = vrot.slane %v1575, 5
  %v1636 = vrot.slane %v1635, 4
  %v1637 = vrot.slane %v769, 5
  %v1638 = vsel %vm1622, %v1636, %v1637
  %v1639 = vrot.slane %v1576, 5
  %v1640 = vrot.slane %v1639, 4
  %v1641 = vrot.slane %v770, 5
  %v1642 = vsel %vm1622, %v1640, %v1641
  %v1643 = vrot.slane %v1577, 5
  %v1644 = vrot.slane %v1643, 4
  %v1645 = vrot.slane %v771, 5
  %v1646 = vsel %vm1622, %v1644, %v1645
  %v1647 = vrot.slane %v1578, 5
  %v1648 = vrot.slane %v1647, 4
  %v1649 = vrot.slane %v772, 5
  %v1650 = vsel %vm1622, %v1648, %v1649
  %v1651 = vrot.slane %v1579, 5
  %v1652 = vrot.slane %v1651, 4
  %v1653 = vrot.slane %v773, 5
  %v1654 = vsel %vm1622, %v1652, %v1653
  %v1655 = vrot.slane %v1580, 5
  %v1656 = vrot.slane %v1655, 4
  %v1657 = vrot.slane %v774, 5
  %v1658 = vsel %vm1622, %v1656, %v1657
  %v1659 = vrot.slane %v1581, 5
  %v1660 = vrot.slane %v1659, 4
  %v1661 = vrot.slane %v775, 5
  %v1662 = vsel %vm1622, %v1660, %v1661
  %v1663 = vrot.slane %v1582, 5
  %v1664 = vrot.slane %v1663, 4
  %v1665 = vrot.slane %v776, 5
  %v1666 = vsel %vm1622, %v1664, %v1665
  %v1667 = vrot.slane %v1583, 5
  %v1668 = vrot.slane %v1667, 4
  %v1669 = vrot.slane %v777, 5
  %v1670 = vsel %vm1622, %v1668, %v1669
  %v1671 = vrot.slane %v1584, 5
  %v1672 = vrot.slane %v1671, 4
  %v1673 = vrot.slane %v778, 5
  %v1674 = vsel %vm1622, %v1672, %v1673
  %v1675 = vrot.slane %v1585, 5
  %v1676 = vrot.slane %v1675, 4
  %v1677 = vrot.slane %v779, 5
  %v1678 = vsel %vm1622, %v1676, %v1677
  %v1679 = vrot.slane %v1586, 5
  %v1680 = vrot.slane %v1679, 4
  %v1681 = vrot.slane %v780, 5
  %v1682 = vsel %vm1622, %v1680, %v1681
  %v1683 = vrot.slane %v1587, 5
  %v1684 = vrot.slane %v1683, 4
  %v1685 = vrot.slane %v781, 5
  %v1686 = vsel %vm1622, %v1684, %v1685
  %s1687 = scalar_lea.vmem %s1, 256
  %v1688 = vld [vmem:[%s1687] sm:$0xf]
  %v1689 = vld [vmem:[%s1687 + $0x4] sm:$0xf]
  %v1690 = vld [vmem:[%s1687 + $0x8] sm:$0xf]
  %v1691 = vld [vmem:[%s1687 + $0xc] sm:$0xf]
  %v1692 = vld [vmem:[%s1687 + $0x10] sm:$0xf]
  %v1693 = vld [vmem:[%s1687 + $0x14] sm:$0xf]
  %v1694 = vld [vmem:[%s1687 + $0x18] sm:$0xf]
  %v1695 = vld [vmem:[%s1687 + $0x1c] sm:$0xf]
  %v1696 = vld [vmem:[%s1687 + $0x20] sm:$0xf]
  %v1697 = vld [vmem:[%s1687 + $0x24] sm:$0xf]
  %v1698 = vld [vmem:[%s1687 + $0x28] sm:$0xf]
  %v1699 = vld [vmem:[%s1687 + $0x2c] sm:$0xf]
  %v1700 = vld [vmem:[%s1687 + $0x30] sm:$0xf]
  %v1701 = vld [vmem:[%s1687 + $0x34] sm:$0xf]
  %v1702 = vld [vmem:[%s1687 + $0x38] sm:$0xf]
  %v1703 = vld [vmem:[%s1687 + $0x3c] sm:$0xf]
  %v1704 = vld [vmem:[%s1687 + $0x40] sm:$0xf]
  %v1705 = vld [vmem:[%s1687 + $0x44] sm:$0xf]
  %v1706 = vld [vmem:[%s1687 + $0x48] sm:$0xf]
  %v1707 = vld [vmem:[%s1687 + $0x4c] sm:$0xf]
  %v1708 = vld [vmem:[%s1687 + $0x50] sm:$0xf]
  %v1709 = vld [vmem:[%s1687 + $0x54] sm:$0xf]
  %v1710 = vld [vmem:[%s1687 + $0x58] sm:$0xf]
  %v1711 = vld [vmem:[%s1687 + $0x5c] sm:$0xf]
  %v1712 = vld [vmem:[%s1687 + $0x60] sm:$0xf]
  %v1713 = vld [vmem:[%s1687 + $0x64] sm:$0xf]
  %v1714 = vld [vmem:[%s1687 + $0x68] sm:$0xf]
  %v1715 = vld [vmem:[%s1687 + $0x6c] sm:$0xf]
  %v1716 = vld [vmem:[%s1687 + $0x70] sm:$0xf]
  %v1717 = vld [vmem:[%s1687 + $0x74] sm:$0xf]
  %v1718 = vld [vmem:[%s1687 + $0x78] sm:$0xf]
  %v1719 = vld [vmem:[%s1687 + $0x7c] sm:$0xf]
  %v1720 = vunpack.c.l.b16 %v1626
  %v1721 = vunpack.c.h.b16 %v1626
  %v1722 = vunpack.c.l.b16 %v1630
  %v1723 = vunpack.c.h.b16 %v1630
  %v1724 = vunpack.c.l.b16 %v1634
  %v1725 = vunpack.c.h.b16 %v1634
  %v1726 = vunpack.c.l.b16 %v1638
  %v1727 = vunpack.c.h.b16 %v1638
  %v1728 = vunpack.c.l.b16 %v1642
  %v1729 = vunpack.c.h.b16 %v1642
  %v1730 = vunpack.c.l.b16 %v1646
  %v1731 = vunpack.c.h.b16 %v1646
  %v1732 = vunpack.c.l.b16 %v1650
  %v1733 = vunpack.c.h.b16 %v1650
  %v1734 = vunpack.c.l.b16 %v1654
  %v1735 = vunpack.c.h.b16 %v1654
  %v1736 = vunpack.c.l.b16 %v1658
  %v1737 = vunpack.c.h.b16 %v1658
  %v1738 = vunpack.c.l.b16 %v1662
  %v1739 = vunpack.c.h.b16 %v1662
  %v1740 = vunpack.c.l.b16 %v1666
  %v1741 = vunpack.c.h.b16 %v1666
  %v1742 = vunpack.c.l.b16 %v1670
  %v1743 = vunpack.c.h.b16 %v1670
  %v1744 = vunpack.c.l.b16 %v1674
  %v1745 = vunpack.c.h.b16 %v1674
  %v1746 = vunpack.c.l.b16 %v1678
  %v1747 = vunpack.c.h.b16 %v1678
  %v1748 = vunpack.c.l.b16 %v1682
  %v1749 = vunpack.c.h.b16 %v1682
  %v1750 = vunpack.c.l.b16 %v1686
  %v1751 = vunpack.c.h.b16 %v1686
  %v1752 = vpack.c.b16 %v1722, %v1720
  %v1753 = vpack.c.b16 %v1723, %v1721
  %v1754 = vpack.c.b16 %v1726, %v1724
  %v1755 = vpack.c.b16 %v1727, %v1725
  %v1756 = vpack.c.b16 %v1730, %v1728
  %v1757 = vpack.c.b16 %v1731, %v1729
  %v1758 = vpack.c.b16 %v1734, %v1732
  %v1759 = vpack.c.b16 %v1735, %v1733
  %v1760 = vpack.c.b16 %v1738, %v1736
  %v1761 = vpack.c.b16 %v1739, %v1737
  %v1762 = vpack.c.b16 %v1742, %v1740
  %v1763 = vpack.c.b16 %v1743, %v1741
  %v1764 = vpack.c.b16 %v1746, %v1744
  %v1765 = vpack.c.b16 %v1747, %v1745
  %v1766 = vpack.c.b16 %v1750, %v1748
  %v1767 = vpack.c.b16 %v1751, %v1749
  %v1816 = vunpack.c.l.b16 %v1688
  %v1817 = vunpack.c.l.b16 %v1689
  %v1818 = vunpack.c.l.b16 %v1690
  %v1819 = vunpack.c.l.b16 %v1691
  %v1820 = vunpack.c.l.b16 %v1692
  %v1821 = vunpack.c.l.b16 %v1693
  %v1822 = vunpack.c.l.b16 %v1694
  %v1823 = vunpack.c.l.b16 %v1695
  %v1824 = vunpack.c.l.b16 %v1696
  %v1825 = vunpack.c.l.b16 %v1697
  %v1826 = vunpack.c.l.b16 %v1698
  %v1827 = vunpack.c.l.b16 %v1699
  %v1828 = vunpack.c.l.b16 %v1700
  %v1829 = vunpack.c.l.b16 %v1701
  %v1830 = vunpack.c.l.b16 %v1702
  %v1831 = vunpack.c.l.b16 %v1703
  %v1832 = vunpack.c.l.b16 %v1704
  %v1833 = vunpack.c.l.b16 %v1705
  %v1834 = vunpack.c.l.b16 %v1706
  %v1835 = vunpack.c.l.b16 %v1707
  %v1836 = vunpack.c.l.b16 %v1708
  %v1837 = vunpack.c.l.b16 %v1709
  %v1838 = vunpack.c.l.b16 %v1710
  %v1839 = vunpack.c.l.b16 %v1711
  %v1840 = vunpack.c.l.b16 %v1712
  %v1841 = vunpack.c.l.b16 %v1713
  %v1842 = vunpack.c.l.b16 %v1714
  %v1843 = vunpack.c.l.b16 %v1715
  %v1844 = vunpack.c.l.b16 %v1716
  %v1845 = vunpack.c.l.b16 %v1717
  %v1846 = vunpack.c.l.b16 %v1718
  %v1847 = vunpack.c.l.b16 %v1719
  %v1848 = vpack.c.b16 %v1817, %v1816
  %v1849 = vpack.c.b16 %v1819, %v1818
  %v1850 = vpack.c.b16 %v1821, %v1820
  %v1851 = vpack.c.b16 %v1823, %v1822
  %v1852 = vpack.c.b16 %v1825, %v1824
  %v1853 = vpack.c.b16 %v1827, %v1826
  %v1854 = vpack.c.b16 %v1829, %v1828
  %v1855 = vpack.c.b16 %v1831, %v1830
  %v1856 = vpack.c.b16 %v1833, %v1832
  %v1857 = vpack.c.b16 %v1835, %v1834
  %v1858 = vpack.c.b16 %v1837, %v1836
  %v1859 = vpack.c.b16 %v1839, %v1838
  %v1860 = vpack.c.b16 %v1841, %v1840
  %v1861 = vpack.c.b16 %v1843, %v1842
  %v1862 = vpack.c.b16 %v1845, %v1844
  %v1863 = vpack.c.b16 %v1847, %v1846
  %1880 = vmatprep.subr.bf16.mxu0 0
  %1881 = vmatpush1.bf16.msra.mxu0 %v1848
  %1882 = vmatprep.subr.bf16.mxu0 0
  %1883 = vmatpush1.bf16.msra.mxu0 %v1849
  %1884 = vmatprep.subr.bf16.mxu0 0
  %1885 = vmatpush1.bf16.msra.mxu0 %v1850
  %1886 = vmatprep.subr.bf16.mxu0 0
  %1887 = vmatpush1.bf16.msra.mxu0 %v1851
  %1888 = vmatprep.subr.bf16.mxu0 0
  %1889 = vmatpush1.bf16.msra.mxu0 %v1852
  %1890 = vmatprep.subr.bf16.mxu0 0
  %1891 = vmatpush1.bf16.msra.mxu0 %v1853
  %1892 = vmatprep.subr.bf16.mxu0 0
  %1893 = vmatpush1.bf16.msra.mxu0 %v1854
  %1894 = vmatprep.subr.bf16.mxu0 0
  %1895 = vmatpush1.bf16.msra.mxu0 %v1855
  %1896 = vmatprep.subr.bf16.mxu0 0
  %1897 = vmatpush1.bf16.msra.mxu0 %v1856
  %1898 = vmatprep.subr.bf16.mxu0 0
  %1899 = vmatpush1.bf16.msra.mxu0 %v1857
  %1900 = vmatprep.subr.bf16.mxu0 0
  %1901 = vmatpush1.bf16.msra.mxu0 %v1858
  %1902 = vmatprep.subr.bf16.mxu0 0
  %1903 = vmatpush1.bf16.msra.mxu0 %v1859
  %1904 = vmatprep.subr.bf16.mxu0 0
  %1905 = vmatpush1.bf16.msra.mxu0 %v1860
  %1906 = vmatprep.subr.bf16.mxu0 0
  %1907 = vmatpush1.bf16.msra.mxu0 %v1861
  %1908 = vmatprep.subr.bf16.mxu0 0
  %1909 = vmatpush1.bf16.msra.mxu0 %v1862
  %1910 = vmatprep.subr.bf16.mxu0 0
  %1911 = vmatpush1.bf16.msra.mxu0 %v1863
  %1912 = vmatprep.mubr.bf16.mxu0 %v1753
  %1913 = vmatmul.mubr.bf16.gmra.mrb[0].mxu0 %v1752
  %v1914 = vpop.f32.mrb[0].mxu0
  %v1915 = vadd.f32 0.0, %v1914
  %v1916 = vpop.f32.mrb[0].mxu0
  %v1917 = vpop.f32.mrb[0].mxu0
  %v1918 = vadd.f32 0.0, %v1917
  %v1919 = vpop.f32.mrb[0].mxu0
  %1920 = vmatprep.mubr.bf16.mxu0 %v1755
  %1921 = vmatmul.mubr.bf16.gmra.mrb[0].mxu0 %v1754
  %v1922 = vpop.f32.mrb[0].mxu0
  %v1923 = vadd.f32 0.0, %v1922
  %v1924 = vpop.f32.mrb[0].mxu0
  %v1925 = vpop.f32.mrb[0].mxu0
  %v1926 = vadd.f32 0.0, %v1925
  %v1927 = vpop.f32.mrb[0].mxu0
  %1928 = vmatprep.mubr.bf16.mxu0 %v1757
  %1929 = vmatmul.mubr.bf16.gmra.mrb[0].mxu0 %v1756
  %v1930 = vpop.f32.mrb[0].mxu0
  %v1931 = vadd.f32 0.0, %v1930
  %v1932 = vpop.f32.mrb[0].mxu0
  %v1933 = vpop.f32.mrb[0].mxu0
  %v1934 = vadd.f32 0.0, %v1933
  %v1935 = vpop.f32.mrb[0].mxu0
  %1936 = vmatprep.mubr.bf16.mxu0 %v1759
  %1937 = vmatmul.mubr.bf16.gmra.mrb[0].mxu0 %v1758
  %v1938 = vpop.f32.mrb[0].mxu0
  %v1939 = vadd.f32 0.0, %v1938
  %v1940 = vpop.f32.mrb[0].mxu0
  %v1941 = vpop.f32.mrb[0].mxu0
  %v1942 = vadd.f32 0.0, %v1941
  %v1943 = vpop.f32.mrb[0].mxu0
  %1944 = vmatprep.mubr.bf16.mxu0 %v1761
  %1945 = vmatmul.mubr.bf16.gmra.mrb[0].mxu0 %v1760
  %v1946 = vpop.f32.mrb[0].mxu0
  %v1947 = vadd.f32 0.0, %v1946
  %v1948 = vpop.f32.mrb[0].mxu0
  %v1949 = vpop.f32.mrb[0].mxu0
  %v1950 = vadd.f32 0.0, %v1949
  %v1951 = vpop.f32.mrb[0].mxu0
  %1952 = vmatprep.mubr.bf16.mxu0 %v1763
  %1953 = vmatmul.mubr.bf16.gmra.mrb[0].mxu0 %v1762
  %v1954 = vpop.f32.mrb[0].mxu0
  %v1955 = vadd.f32 0.0, %v1954
  %v1956 = vpop.f32.mrb[0].mxu0
  %v1957 = vpop.f32.mrb[0].mxu0
  %v1958 = vadd.f32 0.0, %v1957
  %v1959 = vpop.f32.mrb[0].mxu0
  %1960 = vmatprep.mubr.bf16.mxu0 %v1765
  %1961 = vmatmul.mubr.bf16.gmra.mrb[0].mxu0 %v1764
  %v1962 = vpop.f32.mrb[0].mxu0
  %v1963 = vadd.f32 0.0, %v1962
  %v1964 = vpop.f32.mrb[0].mxu0
  %v1965 = vpop.f32.mrb[0].mxu0
  %v1966 = vadd.f32 0.0, %v1965
  %v1967 = vpop.f32.mrb[0].mxu0
  %1968 = vmatprep.mubr.bf16.mxu0 %v1767
  %1969 = vmatmul.mubr.bf16.gmra.mrb[0].mxu0 %v1766
  %v1970 = vpop.f32.mrb[0].mxu0
  %v1971 = vadd.f32 0.0, %v1970
  %v1972 = vpop.f32.mrb[0].mxu0
  %v1973 = vpop.f32.mrb[0].mxu0
  %v1974 = vadd.f32 0.0, %v1973
  %v1975 = vpop.f32.mrb[0].mxu0
  %1976 = vdwg.mxu0
  %v1977 = vadd.f32 %v1510, %v1915
  %v1978 = vadd.f32 %v1513, %v1918
  %v1979 = vadd.f32 %v1518, %v1923
  %v1980 = vadd.f32 %v1521, %v1926
  %v1981 = vadd.f32 %v1526, %v1931
  %v1982 = vadd.f32 %v1529, %v1934
  %v1983 = vadd.f32 %v1534, %v1939
  %v1984 = vadd.f32 %v1537, %v1942
  %v1985 = vadd.f32 %v1542, %v1947
  %v1986 = vadd.f32 %v1545, %v1950
  %v1987 = vadd.f32 %v1550, %v1955
  %v1988 = vadd.f32 %v1553, %v1958
  %v1989 = vadd.f32 %v1558, %v1963
  %v1990 = vadd.f32 %v1561, %v1966
  %v1991 = vadd.f32 %v1566, %v1971
  %v1992 = vadd.f32 %v1569, %v1974
  %v1993 = vld [vmem:[%s616] sm:$0xff]
  %v1994 = vld [vmem:[%s616 + $0x10] sm:$0xff]
  %v1995 = vld [vmem:[%s616 + $0x20] sm:$0xff]
  %v1996 = vld [vmem:[%s616 + $0x30] sm:$0xff]
  %v1997 = vld [vmem:[%s616 + $0x40] sm:$0xff]
  %v1998 = vld [vmem:[%s616 + $0x50] sm:$0xff]
  %v1999 = vld [vmem:[%s616 + $0x60] sm:$0xff]
  %v2000 = vld [vmem:[%s616 + $0x70] sm:$0xff]
  %v2001 = vld [vmem:[%s616 + $0xa0] sm:$0xff]
  %v2002 = vld [vmem:[%s616 + $0xb0] sm:$0xff]
  %v2003 = vld [vmem:[%s616 + $0xc0] sm:$0xff]
  %v2004 = vld [vmem:[%s616 + $0xd0] sm:$0xff]
  %v2005 = vld [vmem:[%s616 + $0xe0] sm:$0xff]
  %v2006 = vld [vmem:[%s616 + $0xf0] sm:$0xff]
  %v2007 = vld [vmem:[%s616 + $0x100] sm:$0xff]
  %v2008 = vld [vmem:[%s616 + $0x110] sm:$0xff]
  %s2009 = scalar_lea.vmem %s1, 384
  %v2010 = vld [vmem:[%s2009] sm:$0xf]
  %v2011 = vld [vmem:[%s2009 + $0x4] sm:$0xf]
  %v2012 = vld [vmem:[%s2009 + $0x8] sm:$0xf]
  %v2013 = vld [vmem:[%s2009 + $0xc] sm:$0xf]
  %v2014 = vld [vmem:[%s2009 + $0x10] sm:$0xf]
  %v2015 = vld [vmem:[%s2009 + $0x14] sm:$0xf]
  %v2016 = vld [vmem:[%s2009 + $0x18] sm:$0xf]
  %v2017 = vld [vmem:[%s2009 + $0x1c] sm:$0xf]
  %v2018 = vld [vmem:[%s2009 + $0x20] sm:$0xf]
  %v2019 = vld [vmem:[%s2009 + $0x24] sm:$0xf]
  %v2020 = vld [vmem:[%s2009 + $0x28] sm:$0xf]
  %v2021 = vld [vmem:[%s2009 + $0x2c] sm:$0xf]
  %v2022 = vld [vmem:[%s2009 + $0x30] sm:$0xf]
  %v2023 = vld [vmem:[%s2009 + $0x34] sm:$0xf]
  %v2024 = vld [vmem:[%s2009 + $0x38] sm:$0xf]
  %v2025 = vld [vmem:[%s2009 + $0x3c] sm:$0xf]
  %v2026 = vld [vmem:[%s2009 + $0x40] sm:$0xf]
  %v2027 = vld [vmem:[%s2009 + $0x44] sm:$0xf]
  %v2028 = vld [vmem:[%s2009 + $0x48] sm:$0xf]
  %v2029 = vld [vmem:[%s2009 + $0x4c] sm:$0xf]
  %v2030 = vld [vmem:[%s2009 + $0x50] sm:$0xf]
  %v2031 = vld [vmem:[%s2009 + $0x54] sm:$0xf]
  %v2032 = vld [vmem:[%s2009 + $0x58] sm:$0xf]
  %v2033 = vld [vmem:[%s2009 + $0x5c] sm:$0xf]
  %v2034 = vld [vmem:[%s2009 + $0x60] sm:$0xf]
  %v2035 = vld [vmem:[%s2009 + $0x64] sm:$0xf]
  %v2036 = vld [vmem:[%s2009 + $0x68] sm:$0xf]
  %v2037 = vld [vmem:[%s2009 + $0x6c] sm:$0xf]
  %v2038 = vld [vmem:[%s2009 + $0x70] sm:$0xf]
  %v2039 = vld [vmem:[%s2009 + $0x74] sm:$0xf]
  %v2040 = vld [vmem:[%s2009 + $0x78] sm:$0xf]
  %v2041 = vld [vmem:[%s2009 + $0x7c] sm:$0xf]
  %v2058 = vunpack.c.l.b16 %v1993
  %v2059 = vunpack.c.h.b16 %v1993
  %v2060 = vunpack.c.l.b16 %v1994
  %v2061 = vunpack.c.h.b16 %v1994
  %v2062 = vunpack.c.l.b16 %v1995
  %v2063 = vunpack.c.h.b16 %v1995
  %v2064 = vunpack.c.l.b16 %v1996
  %v2065 = vunpack.c.h.b16 %v1996
  %v2066 = vunpack.c.l.b16 %v1997
  %v2067 = vunpack.c.h.b16 %v1997
  %v2068 = vunpack.c.l.b16 %v1998
  %v2069 = vunpack.c.h.b16 %v1998
  %v2070 = vunpack.c.l.b16 %v1999
  %v2071 = vunpack.c.h.b16 %v1999
  %v2072 = vunpack.c.l.b16 %v2000
  %v2073 = vunpack.c.h.b16 %v2000
  %v2074 = vunpack.c.l.b16 %v2001
  %v2075 = vunpack.c.h.b16 %v2001
  %v2076 = vunpack.c.l.b16 %v2002
  %v2077 = vunpack.c.h.b16 %v2002
  %v2078 = vunpack.c.l.b16 %v2003
  %v2079 = vunpack.c.h.b16 %v2003
  %v2080 = vunpack.c.l.b16 %v2004
  %v2081 = vunpack.c.h.b16 %v2004
  %v2082 = vunpack.c.l.b16 %v2005
  %v2083 = vunpack.c.h.b16 %v2005
  %v2084 = vunpack.c.l.b16 %v2006
  %v2085 = vunpack.c.h.b16 %v2006
  %v2086 = vunpack.c.l.b16 %v2007
  %v2087 = vunpack.c.h.b16 %v2007
  %v2088 = vunpack.c.l.b16 %v2008
  %v2089 = vunpack.c.h.b16 %v2008
  %v2090 = vpack.c.b16 %v2060, %v2058
  %v2091 = vpack.c.b16 %v2061, %v2059
  %v2092 = vpack.c.b16 %v2064, %v2062
  %v2093 = vpack.c.b16 %v2065, %v2063
  %v2094 = vpack.c.b16 %v2068, %v2066
  %v2095 = vpack.c.b16 %v2069, %v2067
  %v2096 = vpack.c.b16 %v2072, %v2070
  %v2097 = vpack.c.b16 %v2073, %v2071
  %v2098 = vpack.c.b16 %v2076, %v2074
  %v2099 = vpack.c.b16 %v2077, %v2075
  %v2100 = vpack.c.b16 %v2080, %v2078
  %v2101 = vpack.c.b16 %v2081, %v2079
  %v2102 = vpack.c.b16 %v2084, %v2082
  %v2103 = vpack.c.b16 %v2085, %v2083
  %v2104 = vpack.c.b16 %v2088, %v2086
  %v2105 = vpack.c.b16 %v2089, %v2087
  %v2154 = vunpack.c.l.b16 %v2010
  %v2155 = vunpack.c.l.b16 %v2011
  %v2156 = vunpack.c.l.b16 %v2012
  %v2157 = vunpack.c.l.b16 %v2013
  %v2158 = vunpack.c.l.b16 %v2014
  %v2159 = vunpack.c.l.b16 %v2015
  %v2160 = vunpack.c.l.b16 %v2016
  %v2161 = vunpack.c.l.b16 %v2017
  %v2162 = vunpack.c.l.b16 %v2018
  %v2163 = vunpack.c.l.b16 %v2019
  %v2164 = vunpack.c.l.b16 %v2020
  %v2165 = vunpack.c.l.b16 %v2021
  %v2166 = vunpack.c.l.b16 %v2022
  %v2167 = vunpack.c.l.b16 %v2023
  %v2168 = vunpack.c.l.b16 %v2024
  %v2169 = vunpack.c.l.b16 %v2025
  %v2170 = vunpack.c.l.b16 %v2026
  %v2171 = vunpack.c.l.b16 %v2027
  %v2172 = vunpack.c.l.b16 %v2028
  %v2173 = vunpack.c.l.b16 %v2029
  %v2174 = vunpack.c.l.b16 %v2030
  %v2175 = vunpack.c.l.b16 %v2031
  %v2176 = vunpack.c.l.b16 %v2032
  %v2177 = vunpack.c.l.b16 %v2033
  %v2178 = vunpack.c.l.b16 %v2034
  %v2179 = vunpack.c.l.b16 %v2035
  %v2180 = vunpack.c.l.b16 %v2036
  %v2181 = vunpack.c.l.b16 %v2037
  %v2182 = vunpack.c.l.b16 %v2038
  %v2183 = vunpack.c.l.b16 %v2039
  %v2184 = vunpack.c.l.b16 %v2040
  %v2185 = vunpack.c.l.b16 %v2041
  %v2186 = vpack.c.b16 %v2155, %v2154
  %v2187 = vpack.c.b16 %v2157, %v2156
  %v2188 = vpack.c.b16 %v2159, %v2158
  %v2189 = vpack.c.b16 %v2161, %v2160
  %v2190 = vpack.c.b16 %v2163, %v2162
  %v2191 = vpack.c.b16 %v2165, %v2164
  %v2192 = vpack.c.b16 %v2167, %v2166
  %v2193 = vpack.c.b16 %v2169, %v2168
  %v2194 = vpack.c.b16 %v2171, %v2170
  %v2195 = vpack.c.b16 %v2173, %v2172
  %v2196 = vpack.c.b16 %v2175, %v2174
  %v2197 = vpack.c.b16 %v2177, %v2176
  %v2198 = vpack.c.b16 %v2179, %v2178
  %v2199 = vpack.c.b16 %v2181, %v2180
  %v2200 = vpack.c.b16 %v2183, %v2182
  %v2201 = vpack.c.b16 %v2185, %v2184
  %2218 = vmatprep.subr.bf16.mxu0 0
  %2219 = vmatpush1.bf16.msra.mxu0 %v2186
  %2220 = vmatprep.subr.bf16.mxu0 0
  %2221 = vmatpush1.bf16.msra.mxu0 %v2187
  %2222 = vmatprep.subr.bf16.mxu0 0
  %2223 = vmatpush1.bf16.msra.mxu0 %v2188
  %2224 = vmatprep.subr.bf16.mxu0 0
  %2225 = vmatpush1.bf16.msra.mxu0 %v2189
  %2226 = vmatprep.subr.bf16.mxu0 0
  %2227 = vmatpush1.bf16.msra.mxu0 %v2190
  %2228 = vmatprep.subr.bf16.mxu0 0
  %2229 = vmatpush1.bf16.msra.mxu0 %v2191
  %2230 = vmatprep.subr.bf16.mxu0 0
  %2231 = vmatpush1.bf16.msra.mxu0 %v2192
  %2232 = vmatprep.subr.bf16.mxu0 0
  %2233 = vmatpush1.bf16.msra.mxu0 %v2193
  %2234 = vmatprep.subr.bf16.mxu0 0
  %2235 = vmatpush1.bf16.msra.mxu0 %v2194
  %2236 = vmatprep.subr.bf16.mxu0 0
  %2237 = vmatpush1.bf16.msra.mxu0 %v2195
  %2238 = vmatprep.subr.bf16.mxu0 0
  %2239 = vmatpush1.bf16.msra.mxu0 %v2196
  %2240 = vmatprep.subr.bf16.mxu0 0
  %2241 = vmatpush1.bf16.msra.mxu0 %v2197
  %2242 = vmatprep.subr.bf16.mxu0 0
  %2243 = vmatpush1.bf16.msra.mxu0 %v2198
  %2244 = vmatprep.subr.bf16.mxu0 0
  %2245 = vmatpush1.bf16.msra.mxu0 %v2199
  %2246 = vmatprep.subr.bf16.mxu0 0
  %2247 = vmatpush1.bf16.msra.mxu0 %v2200
  %2248 = vmatprep.subr.bf16.mxu0 0
  %2249 = vmatpush1.bf16.msra.mxu0 %v2201
  %2250 = vmatprep.mubr.bf16.mxu0 %v2091
  %2251 = vmatmul.mubr.bf16.gmra.mrb[0].mxu0 %v2090
  %v2252 = vpop.f32.mrb[0].mxu0
  %v2253 = vadd.f32 0.0, %v2252
  %v2254 = vpop.f32.mrb[0].mxu0
  %v2255 = vpop.f32.mrb[0].mxu0
  %v2256 = vadd.f32 0.0, %v2255
  %v2257 = vpop.f32.mrb[0].mxu0
  %2258 = vmatprep.mubr.bf16.mxu0 %v2093
  %2259 = vmatmul.mubr.bf16.gmra.mrb[0].mxu0 %v2092
  %v2260 = vpop.f32.mrb[0].mxu0
  %v2261 = vadd.f32 0.0, %v2260
  %v2262 = vpop.f32.mrb[0].mxu0
  %v2263 = vpop.f32.mrb[0].mxu0
  %v2264 = vadd.f32 0.0, %v2263
  %v2265 = vpop.f32.mrb[0].mxu0
  %2266 = vmatprep.mubr.bf16.mxu0 %v2095
  %2267 = vmatmul.mubr.bf16.gmra.mrb[0].mxu0 %v2094
  %v2268 = vpop.f32.mrb[0].mxu0
  %v2269 = vadd.f32 0.0, %v2268
  %v2270 = vpop.f32.mrb[0].mxu0
  %v2271 = vpop.f32.mrb[0].mxu0
  %v2272 = vadd.f32 0.0, %v2271
  %v2273 = vpop.f32.mrb[0].mxu0
  %2274 = vmatprep.mubr.bf16.mxu0 %v2097
  %2275 = vmatmul.mubr.bf16.gmra.mrb[0].mxu0 %v2096
  %v2276 = vpop.f32.mrb[0].mxu0
  %v2277 = vadd.f32 0.0, %v2276
  %v2278 = vpop.f32.mrb[0].mxu0
  %v2279 = vpop.f32.mrb[0].mxu0
  %v2280 = vadd.f32 0.0, %v2279
  %v2281 = vpop.f32.mrb[0].mxu0
  %2282 = vmatprep.mubr.bf16.mxu0 %v2099
  %2283 = vmatmul.mubr.bf16.gmra.mrb[0].mxu0 %v2098
  %v2284 = vpop.f32.mrb[0].mxu0
  %v2285 = vadd.f32 0.0, %v2284
  %v2286 = vpop.f32.mrb[0].mxu0
  %v2287 = vpop.f32.mrb[0].mxu0
  %v2288 = vadd.f32 0.0, %v2287
  %v2289 = vpop.f32.mrb[0].mxu0
  %2290 = vmatprep.mubr.bf16.mxu0 %v2101
  %2291 = vmatmul.mubr.bf16.gmra.mrb[0].mxu0 %v2100
  %v2292 = vpop.f32.mrb[0].mxu0
  %v2293 = vadd.f32 0.0, %v2292
  %v2294 = vpop.f32.mrb[0].mxu0
  %v2295 = vpop.f32.mrb[0].mxu0
  %v2296 = vadd.f32 0.0, %v2295
  %v2297 = vpop.f32.mrb[0].mxu0
  %2298 = vmatprep.mubr.bf16.mxu0 %v2103
  %2299 = vmatmul.mubr.bf16.gmra.mrb[0].mxu0 %v2102
  %v2300 = vpop.f32.mrb[0].mxu0
  %v2301 = vadd.f32 0.0, %v2300
  %v2302 = vpop.f32.mrb[0].mxu0
  %v2303 = vpop.f32.mrb[0].mxu0
  %v2304 = vadd.f32 0.0, %v2303
  %v2305 = vpop.f32.mrb[0].mxu0
  %2306 = vmatprep.mubr.bf16.mxu0 %v2105
  %2307 = vmatmul.mubr.bf16.gmra.mrb[0].mxu0 %v2104
  %v2308 = vpop.f32.mrb[0].mxu0
  %v2309 = vadd.f32 0.0, %v2308
  %v2310 = vpop.f32.mrb[0].mxu0
  %v2311 = vpop.f32.mrb[0].mxu0
  %v2312 = vadd.f32 0.0, %v2311
  %v2313 = vpop.f32.mrb[0].mxu0
  %2314 = vdwg.mxu0
  %v2315 = vadd.f32 %v1977, %v2253
  %v2316 = vadd.f32 %v1978, %v2256
  %v2317 = vadd.f32 %v1979, %v2261
  %v2318 = vadd.f32 %v1980, %v2264
  %v2319 = vadd.f32 %v1981, %v2269
  %v2320 = vadd.f32 %v1982, %v2272
  %v2321 = vadd.f32 %v1983, %v2277
  %v2322 = vadd.f32 %v1984, %v2280
  %v2323 = vadd.f32 %v1985, %v2285
  %v2324 = vadd.f32 %v1986, %v2288
  %v2325 = vadd.f32 %v1987, %v2293
  %v2326 = vadd.f32 %v1988, %v2296
  %v2327 = vadd.f32 %v1989, %v2301
  %v2328 = vadd.f32 %v1990, %v2304
  %v2329 = vadd.f32 %v1991, %v2309
  %v2330 = vadd.f32 %v1992, %v2312
  %v2331 = vld [vmem:[%s616] sm:$0xff]
  %v2332 = vld [vmem:[%s616 + $0x8] sm:$0x11]
  %v2333 = vld [vmem:[%s616 + $0x10] sm:$0xff]
  %v2334 = vld [vmem:[%s616 + $0x18] sm:$0x11]
  %v2335 = vld [vmem:[%s616 + $0x20] sm:$0xff]
  %v2336 = vld [vmem:[%s616 + $0x28] sm:$0x11]
  %v2337 = vld [vmem:[%s616 + $0x30] sm:$0xff]
  %v2338 = vld [vmem:[%s616 + $0x38] sm:$0x11]
  %v2339 = vld [vmem:[%s616 + $0x40] sm:$0xff]
  %v2340 = vld [vmem:[%s616 + $0x48] sm:$0x11]
  %v2341 = vld [vmem:[%s616 + $0x50] sm:$0xff]
  %v2342 = vld [vmem:[%s616 + $0x58] sm:$0x11]
  %v2343 = vld [vmem:[%s616 + $0x60] sm:$0xff]
  %v2344 = vld [vmem:[%s616 + $0x68] sm:$0x11]
  %v2345 = vld [vmem:[%s616 + $0x70] sm:$0xff]
  %v2346 = vld [vmem:[%s616 + $0x78] sm:$0x11]
  %v2347 = vld [vmem:[%s616 + $0xa0] sm:$0xff]
  %v2348 = vld [vmem:[%s616 + $0xa8] sm:$0x11]
  %v2349 = vld [vmem:[%s616 + $0xb0] sm:$0xff]
  %v2350 = vld [vmem:[%s616 + $0xb8] sm:$0x11]
  %v2351 = vld [vmem:[%s616 + $0xc0] sm:$0xff]
  %v2352 = vld [vmem:[%s616 + $0xc8] sm:$0x11]
  %v2353 = vld [vmem:[%s616 + $0xd0] sm:$0xff]
  %v2354 = vld [vmem:[%s616 + $0xd8] sm:$0x11]
  %v2355 = vld [vmem:[%s616 + $0xe0] sm:$0xff]
  %v2356 = vld [vmem:[%s616 + $0xe8] sm:$0x11]
  %v2357 = vld [vmem:[%s616 + $0xf0] sm:$0xff]
  %v2358 = vld [vmem:[%s616 + $0xf8] sm:$0x11]
  %v2359 = vld [vmem:[%s616 + $0x100] sm:$0xff]
  %v2360 = vld [vmem:[%s616 + $0x108] sm:$0x11]
  %v2361 = vld [vmem:[%s616 + $0x110] sm:$0xff]
  %v2362 = vld [vmem:[%s616 + $0x118] sm:$0x11]
  %v2364 = vshrl.u32 %v2331, 16
  %v2366 = vrot.slane %v2364, 4
  %v2367 = vshll.u32 %v2331, 16
  %v2369 = vrot.slane %v2367, 5
  %v2370 = vor.u32 %v2366, %v2369
  %v2371 = vrot.slane %v2370, 4
  %v2373 = vshll.u32 %v2332, 16
  %v2375 = vrot.slane %v2373, 5
  %v2376 = vsel %vm784, %v2371, %v2375
  %v2378 = vshrl.u32 %v2333, 16
  %v2380 = vrot.slane %v2378, 4
  %v2381 = vshll.u32 %v2333, 16
  %v2383 = vrot.slane %v2381, 5
  %v2384 = vor.u32 %v2380, %v2383
  %v2385 = vrot.slane %v2384, 4
  %v2387 = vshll.u32 %v2334, 16
  %v2389 = vrot.slane %v2387, 5
  %v2390 = vsel %vm784, %v2385, %v2389
  %v2392 = vshrl.u32 %v2335, 16
  %v2394 = vrot.slane %v2392, 4
  %v2395 = vshll.u32 %v2335, 16
  %v2397 = vrot.slane %v2395, 5
  %v2398 = vor.u32 %v2394, %v2397
  %v2399 = vrot.slane %v2398, 4
  %v2401 = vshll.u32 %v2336, 16
  %v2403 = vrot.slane %v2401, 5
  %v2404 = vsel %vm784, %v2399, %v2403
  %v2406 = vshrl.u32 %v2337, 16
  %v2408 = vrot.slane %v2406, 4
  %v2409 = vshll.u32 %v2337, 16
  %v2411 = vrot.slane %v2409, 5
  %v2412 = vor.u32 %v2408, %v2411
  %v2413 = vrot.slane %v2412, 4
  %v2415 = vshll.u32 %v2338, 16
  %v2417 = vrot.slane %v2415, 5
  %v2418 = vsel %vm784, %v2413, %v2417
  %v2420 = vshrl.u32 %v2339, 16
  %v2422 = vrot.slane %v2420, 4
  %v2423 = vshll.u32 %v2339, 16
  %v2425 = vrot.slane %v2423, 5
  %v2426 = vor.u32 %v2422, %v2425
  %v2427 = vrot.slane %v2426, 4
  %v2429 = vshll.u32 %v2340, 16
  %v2431 = vrot.slane %v2429, 5
  %v2432 = vsel %vm784, %v2427, %v2431
  %v2434 = vshrl.u32 %v2341, 16
  %v2436 = vrot.slane %v2434, 4
  %v2437 = vshll.u32 %v2341, 16
  %v2439 = vrot.slane %v2437, 5
  %v2440 = vor.u32 %v2436, %v2439
  %v2441 = vrot.slane %v2440, 4
  %v2443 = vshll.u32 %v2342, 16
  %v2445 = vrot.slane %v2443, 5
  %v2446 = vsel %vm784, %v2441, %v2445
  %v2448 = vshrl.u32 %v2343, 16
  %v2450 = vrot.slane %v2448, 4
  %v2451 = vshll.u32 %v2343, 16
  %v2453 = vrot.slane %v2451, 5
  %v2454 = vor.u32 %v2450, %v2453
  %v2455 = vrot.slane %v2454, 4
  %v2457 = vshll.u32 %v2344, 16
  %v2459 = vrot.slane %v2457, 5
  %v2460 = vsel %vm784, %v2455, %v2459
  %v2462 = vshrl.u32 %v2345, 16
  %v2464 = vrot.slane %v2462, 4
  %v2465 = vshll.u32 %v2345, 16
  %v2467 = vrot.slane %v2465, 5
  %v2468 = vor.u32 %v2464, %v2467
  %v2469 = vrot.slane %v2468, 4
  %v2471 = vshll.u32 %v2346, 16
  %v2473 = vrot.slane %v2471, 5
  %v2474 = vsel %vm784, %v2469, %v2473
  %v2476 = vshrl.u32 %v2347, 16
  %v2478 = vrot.slane %v2476, 4
  %v2479 = vshll.u32 %v2347, 16
  %v2481 = vrot.slane %v2479, 5
  %v2482 = vor.u32 %v2478, %v2481
  %v2483 = vrot.slane %v2482, 4
  %v2485 = vshll.u32 %v2348, 16
  %v2487 = vrot.slane %v2485, 5
  %v2488 = vsel %vm784, %v2483, %v2487
  %v2490 = vshrl.u32 %v2349, 16
  %v2492 = vrot.slane %v2490, 4
  %v2493 = vshll.u32 %v2349, 16
  %v2495 = vrot.slane %v2493, 5
  %v2496 = vor.u32 %v2492, %v2495
  %v2497 = vrot.slane %v2496, 4
  %v2499 = vshll.u32 %v2350, 16
  %v2501 = vrot.slane %v2499, 5
  %v2502 = vsel %vm784, %v2497, %v2501
  %v2504 = vshrl.u32 %v2351, 16
  %v2506 = vrot.slane %v2504, 4
  %v2507 = vshll.u32 %v2351, 16
  %v2509 = vrot.slane %v2507, 5
  %v2510 = vor.u32 %v2506, %v2509
  %v2511 = vrot.slane %v2510, 4
  %v2513 = vshll.u32 %v2352, 16
  %v2515 = vrot.slane %v2513, 5
  %v2516 = vsel %vm784, %v2511, %v2515
  %v2518 = vshrl.u32 %v2353, 16
  %v2520 = vrot.slane %v2518, 4
  %v2521 = vshll.u32 %v2353, 16
  %v2523 = vrot.slane %v2521, 5
  %v2524 = vor.u32 %v2520, %v2523
  %v2525 = vrot.slane %v2524, 4
  %v2527 = vshll.u32 %v2354, 16
  %v2529 = vrot.slane %v2527, 5
  %v2530 = vsel %vm784, %v2525, %v2529
  %v2532 = vshrl.u32 %v2355, 16
  %v2534 = vrot.slane %v2532, 4
  %v2535 = vshll.u32 %v2355, 16
  %v2537 = vrot.slane %v2535, 5
  %v2538 = vor.u32 %v2534, %v2537
  %v2539 = vrot.slane %v2538, 4
  %v2541 = vshll.u32 %v2356, 16
  %v2543 = vrot.slane %v2541, 5
  %v2544 = vsel %vm784, %v2539, %v2543
  %v2546 = vshrl.u32 %v2357, 16
  %v2548 = vrot.slane %v2546, 4
  %v2549 = vshll.u32 %v2357, 16
  %v2551 = vrot.slane %v2549, 5
  %v2552 = vor.u32 %v2548, %v2551
  %v2553 = vrot.slane %v2552, 4
  %v2555 = vshll.u32 %v2358, 16
  %v2557 = vrot.slane %v2555, 5
  %v2558 = vsel %vm784, %v2553, %v2557
  %v2560 = vshrl.u32 %v2359, 16
  %v2562 = vrot.slane %v2560, 4
  %v2563 = vshll.u32 %v2359, 16
  %v2565 = vrot.slane %v2563, 5
  %v2566 = vor.u32 %v2562, %v2565
  %v2567 = vrot.slane %v2566, 4
  %v2569 = vshll.u32 %v2360, 16
  %v2571 = vrot.slane %v2569, 5
  %v2572 = vsel %vm784, %v2567, %v2571
  %v2574 = vshrl.u32 %v2361, 16
  %v2576 = vrot.slane %v2574, 4
  %v2577 = vshll.u32 %v2361, 16
  %v2579 = vrot.slane %v2577, 5
  %v2580 = vor.u32 %v2576, %v2579
  %v2581 = vrot.slane %v2580, 4
  %v2583 = vshll.u32 %v2362, 16
  %v2585 = vrot.slane %v2583, 5
  %v2586 = vsel %vm784, %v2581, %v2585
  %s2587 = scalar_lea.vmem %s1, 512
  %v2588 = vld [vmem:[%s2587] sm:$0xf]
  %v2589 = vld [vmem:[%s2587 + $0x4] sm:$0xf]
  %v2590 = vld [vmem:[%s2587 + $0x8] sm:$0xf]
  %v2591 = vld [vmem:[%s2587 + $0xc] sm:$0xf]
  %v2592 = vld [vmem:[%s2587 + $0x10] sm:$0xf]
  %v2593 = vld [vmem:[%s2587 + $0x14] sm:$0xf]
  %v2594 = vld [vmem:[%s2587 + $0x18] sm:$0xf]
  %v2595 = vld [vmem:[%s2587 + $0x1c] sm:$0xf]
  %v2596 = vld [vmem:[%s2587 + $0x20] sm:$0xf]
  %v2597 = vld [vmem:[%s2587 + $0x24] sm:$0xf]
  %v2598 = vld [vmem:[%s2587 + $0x28] sm:$0xf]
  %v2599 = vld [vmem:[%s2587 + $0x2c] sm:$0xf]
  %v2600 = vld [vmem:[%s2587 + $0x30] sm:$0xf]
  %v2601 = vld [vmem:[%s2587 + $0x34] sm:$0xf]
  %v2602 = vld [vmem:[%s2587 + $0x38] sm:$0xf]
  %v2603 = vld [vmem:[%s2587 + $0x3c] sm:$0xf]
  %v2604 = vld [vmem:[%s2587 + $0x40] sm:$0xf]
  %v2605 = vld [vmem:[%s2587 + $0x44] sm:$0xf]
  %v2606 = vld [vmem:[%s2587 + $0x48] sm:$0xf]
  %v2607 = vld [vmem:[%s2587 + $0x4c] sm:$0xf]
  %v2608 = vld [vmem:[%s2587 + $0x50] sm:$0xf]
  %v2609 = vld [vmem:[%s2587 + $0x54] sm:$0xf]
  %v2610 = vld [vmem:[%s2587 + $0x58] sm:$0xf]
  %v2611 = vld [vmem:[%s2587 + $0x5c] sm:$0xf]
  %v2612 = vld [vmem:[%s2587 + $0x60] sm:$0xf]
  %v2613 = vld [vmem:[%s2587 + $0x64] sm:$0xf]
  %v2614 = vld [vmem:[%s2587 + $0x68] sm:$0xf]
  %v2615 = vld [vmem:[%s2587 + $0x6c] sm:$0xf]
  %v2616 = vld [vmem:[%s2587 + $0x70] sm:$0xf]
  %v2617 = vld [vmem:[%s2587 + $0x74] sm:$0xf]
  %v2618 = vld [vmem:[%s2587 + $0x78] sm:$0xf]
  %v2619 = vld [vmem:[%s2587 + $0x7c] sm:$0xf]
  %v2620 = vunpack.c.l.b16 %v2376
  %v2621 = vunpack.c.h.b16 %v2376
  %v2622 = vunpack.c.l.b16 %v2390
  %v2623 = vunpack.c.h.b16 %v2390
  %v2624 = vunpack.c.l.b16 %v2404
  %v2625 = vunpack.c.h.b16 %v2404
  %v2626 = vunpack.c.l.b16 %v2418
  %v2627 = vunpack.c.h.b16 %v2418
  %v2628 = vunpack.c.l.b16 %v2432
  %v2629 = vunpack.c.h.b16 %v2432
  %v2630 = vunpack.c.l.b16 %v2446
  %v2631 = vunpack.c.h.b16 %v2446
  %v2632 = vunpack.c.l.b16 %v2460
  %v2633 = vunpack.c.h.b16 %v2460
  %v2634 = vunpack.c.l.b16 %v2474
  %v2635 = vunpack.c.h.b16 %v2474
  %v2636 = vunpack.c.l.b16 %v2488
  %v2637 = vunpack.c.h.b16 %v2488
  %v2638 = vunpack.c.l.b16 %v2502
  %v2639 = vunpack.c.h.b16 %v2502
  %v2640 = vunpack.c.l.b16 %v2516
  %v2641 = vunpack.c.h.b16 %v2516
  %v2642 = vunpack.c.l.b16 %v2530
  %v2643 = vunpack.c.h.b16 %v2530
  %v2644 = vunpack.c.l.b16 %v2544
  %v2645 = vunpack.c.h.b16 %v2544
  %v2646 = vunpack.c.l.b16 %v2558
  %v2647 = vunpack.c.h.b16 %v2558
  %v2648 = vunpack.c.l.b16 %v2572
  %v2649 = vunpack.c.h.b16 %v2572
  %v2650 = vunpack.c.l.b16 %v2586
  %v2651 = vunpack.c.h.b16 %v2586
  %v2652 = vpack.c.b16 %v2622, %v2620
  %v2653 = vpack.c.b16 %v2623, %v2621
  %v2654 = vpack.c.b16 %v2626, %v2624
  %v2655 = vpack.c.b16 %v2627, %v2625
  %v2656 = vpack.c.b16 %v2630, %v2628
  %v2657 = vpack.c.b16 %v2631, %v2629
  %v2658 = vpack.c.b16 %v2634, %v2632
  %v2659 = vpack.c.b16 %v2635, %v2633
  %v2660 = vpack.c.b16 %v2638, %v2636
  %v2661 = vpack.c.b16 %v2639, %v2637
  %v2662 = vpack.c.b16 %v2642, %v2640
  %v2663 = vpack.c.b16 %v2643, %v2641
  %v2664 = vpack.c.b16 %v2646, %v2644
  %v2665 = vpack.c.b16 %v2647, %v2645
  %v2666 = vpack.c.b16 %v2650, %v2648
  %v2667 = vpack.c.b16 %v2651, %v2649
  %v2716 = vunpack.c.l.b16 %v2588
  %v2717 = vunpack.c.l.b16 %v2589
  %v2718 = vunpack.c.l.b16 %v2590
  %v2719 = vunpack.c.l.b16 %v2591
  %v2720 = vunpack.c.l.b16 %v2592
  %v2721 = vunpack.c.l.b16 %v2593
  %v2722 = vunpack.c.l.b16 %v2594
  %v2723 = vunpack.c.l.b16 %v2595
  %v2724 = vunpack.c.l.b16 %v2596
  %v2725 = vunpack.c.l.b16 %v2597
  %v2726 = vunpack.c.l.b16 %v2598
  %v2727 = vunpack.c.l.b16 %v2599
  %v2728 = vunpack.c.l.b16 %v2600
  %v2729 = vunpack.c.l.b16 %v2601
  %v2730 = vunpack.c.l.b16 %v2602
  %v2731 = vunpack.c.l.b16 %v2603
  %v2732 = vunpack.c.l.b16 %v2604
  %v2733 = vunpack.c.l.b16 %v2605
  %v2734 = vunpack.c.l.b16 %v2606
  %v2735 = vunpack.c.l.b16 %v2607
  %v2736 = vunpack.c.l.b16 %v2608
  %v2737 = vunpack.c.l.b16 %v2609
  %v2738 = vunpack.c.l.b16 %v2610
  %v2739 = vunpack.c.l.b16 %v2611
  %v2740 = vunpack.c.l.b16 %v2612
  %v2741 = vunpack.c.l.b16 %v2613
  %v2742 = vunpack.c.l.b16 %v2614
  %v2743 = vunpack.c.l.b16 %v2615
  %v2744 = vunpack.c.l.b16 %v2616
  %v2745 = vunpack.c.l.b16 %v2617
  %v2746 = vunpack.c.l.b16 %v2618
  %v2747 = vunpack.c.l.b16 %v2619
  %v2748 = vpack.c.b16 %v2717, %v2716
  %v2749 = vpack.c.b16 %v2719, %v2718
  %v2750 = vpack.c.b16 %v2721, %v2720
  %v2751 = vpack.c.b16 %v2723, %v2722
  %v2752 = vpack.c.b16 %v2725, %v2724
  %v2753 = vpack.c.b16 %v2727, %v2726
  %v2754 = vpack.c.b16 %v2729, %v2728
  %v2755 = vpack.c.b16 %v2731, %v2730
  %v2756 = vpack.c.b16 %v2733, %v2732
  %v2757 = vpack.c.b16 %v2735, %v2734
  %v2758 = vpack.c.b16 %v2737, %v2736
  %v2759 = vpack.c.b16 %v2739, %v2738
  %v2760 = vpack.c.b16 %v2741, %v2740
  %v2761 = vpack.c.b16 %v2743, %v2742
  %v2762 = vpack.c.b16 %v2745, %v2744
  %v2763 = vpack.c.b16 %v2747, %v2746
  %2780 = vmatprep.subr.bf16.mxu0 0
  %2781 = vmatpush1.bf16.msra.mxu0 %v2748
  %2782 = vmatprep.subr.bf16.mxu0 0
  %2783 = vmatpush1.bf16.msra.mxu0 %v2749
  %2784 = vmatprep.subr.bf16.mxu0 0
  %2785 = vmatpush1.bf16.msra.mxu0 %v2750
  %2786 = vmatprep.subr.bf16.mxu0 0
  %2787 = vmatpush1.bf16.msra.mxu0 %v2751
  %2788 = vmatprep.subr.bf16.mxu0 0
  %2789 = vmatpush1.bf16.msra.mxu0 %v2752
  %2790 = vmatprep.subr.bf16.mxu0 0
  %2791 = vmatpush1.bf16.msra.mxu0 %v2753
  %2792 = vmatprep.subr.bf16.mxu0 0
  %2793 = vmatpush1.bf16.msra.mxu0 %v2754
  %2794 = vmatprep.subr.bf16.mxu0 0
  %2795 = vmatpush1.bf16.msra.mxu0 %v2755
  %2796 = vmatprep.subr.bf16.mxu0 0
  %2797 = vmatpush1.bf16.msra.mxu0 %v2756
  %2798 = vmatprep.subr.bf16.mxu0 0
  %2799 = vmatpush1.bf16.msra.mxu0 %v2757
  %2800 = vmatprep.subr.bf16.mxu0 0
  %2801 = vmatpush1.bf16.msra.mxu0 %v2758
  %2802 = vmatprep.subr.bf16.mxu0 0
  %2803 = vmatpush1.bf16.msra.mxu0 %v2759
  %2804 = vmatprep.subr.bf16.mxu0 0
  %2805 = vmatpush1.bf16.msra.mxu0 %v2760
  %2806 = vmatprep.subr.bf16.mxu0 0
  %2807 = vmatpush1.bf16.msra.mxu0 %v2761
  %2808 = vmatprep.subr.bf16.mxu0 0
  %2809 = vmatpush1.bf16.msra.mxu0 %v2762
  %2810 = vmatprep.subr.bf16.mxu0 0
  %2811 = vmatpush1.bf16.msra.mxu0 %v2763
  %2812 = vmatprep.mubr.bf16.mxu0 %v2653
  %2813 = vmatmul.mubr.bf16.gmra.mrb[0].mxu0 %v2652
  %v2814 = vpop.f32.mrb[0].mxu0
  %v2815 = vadd.f32 0.0, %v2814
  %v2816 = vpop.f32.mrb[0].mxu0
  %v2817 = vpop.f32.mrb[0].mxu0
  %v2818 = vadd.f32 0.0, %v2817
  %v2819 = vpop.f32.mrb[0].mxu0
  %2820 = vmatprep.mubr.bf16.mxu0 %v2655
  %2821 = vmatmul.mubr.bf16.gmra.mrb[0].mxu0 %v2654
  %v2822 = vpop.f32.mrb[0].mxu0
  %v2823 = vadd.f32 0.0, %v2822
  %v2824 = vpop.f32.mrb[0].mxu0
  %v2825 = vpop.f32.mrb[0].mxu0
  %v2826 = vadd.f32 0.0, %v2825
  %v2827 = vpop.f32.mrb[0].mxu0
  %2828 = vmatprep.mubr.bf16.mxu0 %v2657
  %2829 = vmatmul.mubr.bf16.gmra.mrb[0].mxu0 %v2656
  %v2830 = vpop.f32.mrb[0].mxu0
  %v2831 = vadd.f32 0.0, %v2830
  %v2832 = vpop.f32.mrb[0].mxu0
  %v2833 = vpop.f32.mrb[0].mxu0
  %v2834 = vadd.f32 0.0, %v2833
  %v2835 = vpop.f32.mrb[0].mxu0
  %2836 = vmatprep.mubr.bf16.mxu0 %v2659
  %2837 = vmatmul.mubr.bf16.gmra.mrb[0].mxu0 %v2658
  %v2838 = vpop.f32.mrb[0].mxu0
  %v2839 = vadd.f32 0.0, %v2838
  %v2840 = vpop.f32.mrb[0].mxu0
  %v2841 = vpop.f32.mrb[0].mxu0
  %v2842 = vadd.f32 0.0, %v2841
  %v2843 = vpop.f32.mrb[0].mxu0
  %2844 = vmatprep.mubr.bf16.mxu0 %v2661
  %2845 = vmatmul.mubr.bf16.gmra.mrb[0].mxu0 %v2660
  %v2846 = vpop.f32.mrb[0].mxu0
  %v2847 = vadd.f32 0.0, %v2846
  %v2848 = vpop.f32.mrb[0].mxu0
  %v2849 = vpop.f32.mrb[0].mxu0
  %v2850 = vadd.f32 0.0, %v2849
  %v2851 = vpop.f32.mrb[0].mxu0
  %2852 = vmatprep.mubr.bf16.mxu0 %v2663
  %2853 = vmatmul.mubr.bf16.gmra.mrb[0].mxu0 %v2662
  %v2854 = vpop.f32.mrb[0].mxu0
  %v2855 = vadd.f32 0.0, %v2854
  %v2856 = vpop.f32.mrb[0].mxu0
  %v2857 = vpop.f32.mrb[0].mxu0
  %v2858 = vadd.f32 0.0, %v2857
  %v2859 = vpop.f32.mrb[0].mxu0
  %2860 = vmatprep.mubr.bf16.mxu0 %v2665
  %2861 = vmatmul.mubr.bf16.gmra.mrb[0].mxu0 %v2664
  %v2862 = vpop.f32.mrb[0].mxu0
  %v2863 = vadd.f32 0.0, %v2862
  %v2864 = vpop.f32.mrb[0].mxu0
  %v2865 = vpop.f32.mrb[0].mxu0
  %v2866 = vadd.f32 0.0, %v2865
  %v2867 = vpop.f32.mrb[0].mxu0
  %2868 = vmatprep.mubr.bf16.mxu0 %v2667
  %2869 = vmatmul.mubr.bf16.gmra.mrb[0].mxu0 %v2666
  %v2870 = vpop.f32.mrb[0].mxu0
  %v2871 = vadd.f32 0.0, %v2870
  %v2872 = vpop.f32.mrb[0].mxu0
  %v2873 = vpop.f32.mrb[0].mxu0
  %v2874 = vadd.f32 0.0, %v2873
  %v2875 = vpop.f32.mrb[0].mxu0
  %2876 = vdwg.mxu0
  %v2877 = vadd.f32 %v2315, %v2815
  %v2878 = vadd.f32 %v2316, %v2818
  %v2879 = vadd.f32 %v2317, %v2823
  %v2880 = vadd.f32 %v2318, %v2826
  %v2881 = vadd.f32 %v2319, %v2831
  %v2882 = vadd.f32 %v2320, %v2834
  %v2883 = vadd.f32 %v2321, %v2839
  %v2884 = vadd.f32 %v2322, %v2842
  %v2885 = vadd.f32 %v2323, %v2847
  %v2886 = vadd.f32 %v2324, %v2850
  %v2887 = vadd.f32 %v2325, %v2855
  %v2888 = vadd.f32 %v2326, %v2858
  %v2889 = vadd.f32 %v2327, %v2863
  %v2890 = vadd.f32 %v2328, %v2866
  %v2891 = vadd.f32 %v2329, %v2871
  %v2892 = vadd.f32 %v2330, %v2874
  %v2893 = vld [vmem:[%s616] sm:$0xee]
  %v2894 = vld [vmem:[%s616 + $0x10] sm:$0xee]
  %v2895 = vld [vmem:[%s616 + $0x20] sm:$0xee]
  %v2896 = vld [vmem:[%s616 + $0x30] sm:$0xee]
  %v2897 = vld [vmem:[%s616 + $0x40] sm:$0xee]
  %v2898 = vld [vmem:[%s616 + $0x50] sm:$0xee]
  %v2899 = vld [vmem:[%s616 + $0x60] sm:$0xee]
  %v2900 = vld [vmem:[%s616 + $0x70] sm:$0xee]
  %v2901 = vld [vmem:[%s616 + $0xa0] sm:$0xee]
  %v2902 = vld [vmem:[%s616 + $0xb0] sm:$0xee]
  %v2903 = vld [vmem:[%s616 + $0xc0] sm:$0xee]
  %v2904 = vld [vmem:[%s616 + $0xd0] sm:$0xee]
  %v2905 = vld [vmem:[%s616 + $0xe0] sm:$0xee]
  %v2906 = vld [vmem:[%s616 + $0xf0] sm:$0xee]
  %v2907 = vld [vmem:[%s616 + $0x100] sm:$0xee]
  %v2908 = vld [vmem:[%s616 + $0x110] sm:$0xee]
  %v2941 = vrot.slane %v2893, 5
  %v2942 = vrot.slane %v2941, 4
  %v2943 = vrot.slane %v2332, 5
  %v2944 = vsel %vm1622, %v2942, %v2943
  %v2945 = vrot.slane %v2894, 5
  %v2946 = vrot.slane %v2945, 4
  %v2947 = vrot.slane %v2334, 5
  %v2948 = vsel %vm1622, %v2946, %v2947
  %v2949 = vrot.slane %v2895, 5
  %v2950 = vrot.slane %v2949, 4
  %v2951 = vrot.slane %v2336, 5
  %v2952 = vsel %vm1622, %v2950, %v2951
  %v2953 = vrot.slane %v2896, 5
  %v2954 = vrot.slane %v2953, 4
  %v2955 = vrot.slane %v2338, 5
  %v2956 = vsel %vm1622, %v2954, %v2955
  %v2957 = vrot.slane %v2897, 5
  %v2958 = vrot.slane %v2957, 4
  %v2959 = vrot.slane %v2340, 5
  %v2960 = vsel %vm1622, %v2958, %v2959
  %v2961 = vrot.slane %v2898, 5
  %v2962 = vrot.slane %v2961, 4
  %v2963 = vrot.slane %v2342, 5
  %v2964 = vsel %vm1622, %v2962, %v2963
  %v2965 = vrot.slane %v2899, 5
  %v2966 = vrot.slane %v2965, 4
  %v2967 = vrot.slane %v2344, 5
  %v2968 = vsel %vm1622, %v2966, %v2967
  %v2969 = vrot.slane %v2900, 5
  %v2970 = vrot.slane %v2969, 4
  %v2971 = vrot.slane %v2346, 5
  %v2972 = vsel %vm1622, %v2970, %v2971
  %v2973 = vrot.slane %v2901, 5
  %v2974 = vrot.slane %v2973, 4
  %v2975 = vrot.slane %v2348, 5
  %v2976 = vsel %vm1622, %v2974, %v2975
  %v2977 = vrot.slane %v2902, 5
  %v2978 = vrot.slane %v2977, 4
  %v2979 = vrot.slane %v2350, 5
  %v2980 = vsel %vm1622, %v2978, %v2979
  %v2981 = vrot.slane %v2903, 5
  %v2982 = vrot.slane %v2981, 4
  %v2983 = vrot.slane %v2352, 5
  %v2984 = vsel %vm1622, %v2982, %v2983
  %v2985 = vrot.slane %v2904, 5
  %v2986 = vrot.slane %v2985, 4
  %v2987 = vrot.slane %v2354, 5
  %v2988 = vsel %vm1622, %v2986, %v2987
  %v2989 = vrot.slane %v2905, 5
  %v2990 = vrot.slane %v2989, 4
  %v2991 = vrot.slane %v2356, 5
  %v2992 = vsel %vm1622, %v2990, %v2991
  %v2993 = vrot.slane %v2906, 5
  %v2994 = vrot.slane %v2993, 4
  %v2995 = vrot.slane %v2358, 5
  %v2996 = vsel %vm1622, %v2994, %v2995
  %v2997 = vrot.slane %v2907, 5
  %v2998 = vrot.slane %v2997, 4
  %v2999 = vrot.slane %v2360, 5
  %v3000 = vsel %vm1622, %v2998, %v2999
  %v3001 = vrot.slane %v2908, 5
  %v3002 = vrot.slane %v3001, 4
  %v3003 = vrot.slane %v2362, 5
  %v3004 = vsel %vm1622, %v3002, %v3003
  %s3005 = scalar_lea.vmem %s1, 640
  %v3006 = vld [vmem:[%s3005] sm:$0xf]
  %v3007 = vld [vmem:[%s3005 + $0x4] sm:$0xf]
  %v3008 = vld [vmem:[%s3005 + $0x8] sm:$0xf]
  %v3009 = vld [vmem:[%s3005 + $0xc] sm:$0xf]
  %v3010 = vld [vmem:[%s3005 + $0x10] sm:$0xf]
  %v3011 = vld [vmem:[%s3005 + $0x14] sm:$0xf]
  %v3012 = vld [vmem:[%s3005 + $0x18] sm:$0xf]
  %v3013 = vld [vmem:[%s3005 + $0x1c] sm:$0xf]
  %v3014 = vld [vmem:[%s3005 + $0x20] sm:$0xf]
  %v3015 = vld [vmem:[%s3005 + $0x24] sm:$0xf]
  %v3016 = vld [vmem:[%s3005 + $0x28] sm:$0xf]
  %v3017 = vld [vmem:[%s3005 + $0x2c] sm:$0xf]
  %v3018 = vld [vmem:[%s3005 + $0x30] sm:$0xf]
  %v3019 = vld [vmem:[%s3005 + $0x34] sm:$0xf]
  %v3020 = vld [vmem:[%s3005 + $0x38] sm:$0xf]
  %v3021 = vld [vmem:[%s3005 + $0x3c] sm:$0xf]
  %v3022 = vld [vmem:[%s3005 + $0x40] sm:$0xf]
  %v3023 = vld [vmem:[%s3005 + $0x44] sm:$0xf]
  %v3024 = vld [vmem:[%s3005 + $0x48] sm:$0xf]
  %v3025 = vld [vmem:[%s3005 + $0x4c] sm:$0xf]
  %v3026 = vld [vmem:[%s3005 + $0x50] sm:$0xf]
  %v3027 = vld [vmem:[%s3005 + $0x54] sm:$0xf]
  %v3028 = vld [vmem:[%s3005 + $0x58] sm:$0xf]
  %v3029 = vld [vmem:[%s3005 + $0x5c] sm:$0xf]
  %v3030 = vld [vmem:[%s3005 + $0x60] sm:$0xf]
  %v3031 = vld [vmem:[%s3005 + $0x64] sm:$0xf]
  %v3032 = vld [vmem:[%s3005 + $0x68] sm:$0xf]
  %v3033 = vld [vmem:[%s3005 + $0x6c] sm:$0xf]
  %v3034 = vld [vmem:[%s3005 + $0x70] sm:$0xf]
  %v3035 = vld [vmem:[%s3005 + $0x74] sm:$0xf]
  %v3036 = vld [vmem:[%s3005 + $0x78] sm:$0xf]
  %v3037 = vld [vmem:[%s3005 + $0x7c] sm:$0xf]
  %v3038 = vunpack.c.l.b16 %v2944
  %v3039 = vunpack.c.h.b16 %v2944
  %v3040 = vunpack.c.l.b16 %v2948
  %v3041 = vunpack.c.h.b16 %v2948
  %v3042 = vunpack.c.l.b16 %v2952
  %v3043 = vunpack.c.h.b16 %v2952
  %v3044 = vunpack.c.l.b16 %v2956
  %v3045 = vunpack.c.h.b16 %v2956
  %v3046 = vunpack.c.l.b16 %v2960
  %v3047 = vunpack.c.h.b16 %v2960
  %v3048 = vunpack.c.l.b16 %v2964
  %v3049 = vunpack.c.h.b16 %v2964
  %v3050 = vunpack.c.l.b16 %v2968
  %v3051 = vunpack.c.h.b16 %v2968
  %v3052 = vunpack.c.l.b16 %v2972
  %v3053 = vunpack.c.h.b16 %v2972
  %v3054 = vunpack.c.l.b16 %v2976
  %v3055 = vunpack.c.h.b16 %v2976
  %v3056 = vunpack.c.l.b16 %v2980
  %v3057 = vunpack.c.h.b16 %v2980
  %v3058 = vunpack.c.l.b16 %v2984
  %v3059 = vunpack.c.h.b16 %v2984
  %v3060 = vunpack.c.l.b16 %v2988
  %v3061 = vunpack.c.h.b16 %v2988
  %v3062 = vunpack.c.l.b16 %v2992
  %v3063 = vunpack.c.h.b16 %v2992
  %v3064 = vunpack.c.l.b16 %v2996
  %v3065 = vunpack.c.h.b16 %v2996
  %v3066 = vunpack.c.l.b16 %v3000
  %v3067 = vunpack.c.h.b16 %v3000
  %v3068 = vunpack.c.l.b16 %v3004
  %v3069 = vunpack.c.h.b16 %v3004
  %v3070 = vpack.c.b16 %v3040, %v3038
  %v3071 = vpack.c.b16 %v3041, %v3039
  %v3072 = vpack.c.b16 %v3044, %v3042
  %v3073 = vpack.c.b16 %v3045, %v3043
  %v3074 = vpack.c.b16 %v3048, %v3046
  %v3075 = vpack.c.b16 %v3049, %v3047
  %v3076 = vpack.c.b16 %v3052, %v3050
  %v3077 = vpack.c.b16 %v3053, %v3051
  %v3078 = vpack.c.b16 %v3056, %v3054
  %v3079 = vpack.c.b16 %v3057, %v3055
  %v3080 = vpack.c.b16 %v3060, %v3058
  %v3081 = vpack.c.b16 %v3061, %v3059
  %v3082 = vpack.c.b16 %v3064, %v3062
  %v3083 = vpack.c.b16 %v3065, %v3063
  %v3084 = vpack.c.b16 %v3068, %v3066
  %v3085 = vpack.c.b16 %v3069, %v3067
  %v3134 = vunpack.c.l.b16 %v3006
  %v3135 = vunpack.c.l.b16 %v3007
  %v3136 = vunpack.c.l.b16 %v3008
  %v3137 = vunpack.c.l.b16 %v3009
  %v3138 = vunpack.c.l.b16 %v3010
  %v3139 = vunpack.c.l.b16 %v3011
  %v3140 = vunpack.c.l.b16 %v3012
  %v3141 = vunpack.c.l.b16 %v3013
  %v3142 = vunpack.c.l.b16 %v3014
  %v3143 = vunpack.c.l.b16 %v3015
  %v3144 = vunpack.c.l.b16 %v3016
  %v3145 = vunpack.c.l.b16 %v3017
  %v3146 = vunpack.c.l.b16 %v3018
  %v3147 = vunpack.c.l.b16 %v3019
  %v3148 = vunpack.c.l.b16 %v3020
  %v3149 = vunpack.c.l.b16 %v3021
  %v3150 = vunpack.c.l.b16 %v3022
  %v3151 = vunpack.c.l.b16 %v3023
  %v3152 = vunpack.c.l.b16 %v3024
  %v3153 = vunpack.c.l.b16 %v3025
  %v3154 = vunpack.c.l.b16 %v3026
  %v3155 = vunpack.c.l.b16 %v3027
  %v3156 = vunpack.c.l.b16 %v3028
  %v3157 = vunpack.c.l.b16 %v3029
  %v3158 = vunpack.c.l.b16 %v3030
  %v3159 = vunpack.c.l.b16 %v3031
  %v3160 = vunpack.c.l.b16 %v3032
  %v3161 = vunpack.c.l.b16 %v3033
  %v3162 = vunpack.c.l.b16 %v3034
  %v3163 = vunpack.c.l.b16 %v3035
  %v3164 = vunpack.c.l.b16 %v3036
  %v3165 = vunpack.c.l.b16 %v3037
  %v3166 = vpack.c.b16 %v3135, %v3134
  %v3167 = vpack.c.b16 %v3137, %v3136
  %v3168 = vpack.c.b16 %v3139, %v3138
  %v3169 = vpack.c.b16 %v3141, %v3140
  %v3170 = vpack.c.b16 %v3143, %v3142
  %v3171 = vpack.c.b16 %v3145, %v3144
  %v3172 = vpack.c.b16 %v3147, %v3146
  %v3173 = vpack.c.b16 %v3149, %v3148
  %v3174 = vpack.c.b16 %v3151, %v3150
  %v3175 = vpack.c.b16 %v3153, %v3152
  %v3176 = vpack.c.b16 %v3155, %v3154
  %v3177 = vpack.c.b16 %v3157, %v3156
  %v3178 = vpack.c.b16 %v3159, %v3158
  %v3179 = vpack.c.b16 %v3161, %v3160
  %v3180 = vpack.c.b16 %v3163, %v3162
  %v3181 = vpack.c.b16 %v3165, %v3164
  %3198 = vmatprep.subr.bf16.mxu0 0
  %3199 = vmatpush1.bf16.msra.mxu0 %v3166
  %3200 = vmatprep.subr.bf16.mxu0 0
  %3201 = vmatpush1.bf16.msra.mxu0 %v3167
  %3202 = vmatprep.subr.bf16.mxu0 0
  %3203 = vmatpush1.bf16.msra.mxu0 %v3168
  %3204 = vmatprep.subr.bf16.mxu0 0
  %3205 = vmatpush1.bf16.msra.mxu0 %v3169
  %3206 = vmatprep.subr.bf16.mxu0 0
  %3207 = vmatpush1.bf16.msra.mxu0 %v3170
  %3208 = vmatprep.subr.bf16.mxu0 0
  %3209 = vmatpush1.bf16.msra.mxu0 %v3171
  %3210 = vmatprep.subr.bf16.mxu0 0
  %3211 = vmatpush1.bf16.msra.mxu0 %v3172
  %3212 = vmatprep.subr.bf16.mxu0 0
  %3213 = vmatpush1.bf16.msra.mxu0 %v3173
  %3214 = vmatprep.subr.bf16.mxu0 0
  %3215 = vmatpush1.bf16.msra.mxu0 %v3174
  %3216 = vmatprep.subr.bf16.mxu0 0
  %3217 = vmatpush1.bf16.msra.mxu0 %v3175
  %3218 = vmatprep.subr.bf16.mxu0 0
  %3219 = vmatpush1.bf16.msra.mxu0 %v3176
  %3220 = vmatprep.subr.bf16.mxu0 0
  %3221 = vmatpush1.bf16.msra.mxu0 %v3177
  %3222 = vmatprep.subr.bf16.mxu0 0
  %3223 = vmatpush1.bf16.msra.mxu0 %v3178
  %3224 = vmatprep.subr.bf16.mxu0 0
  %3225 = vmatpush1.bf16.msra.mxu0 %v3179
  %3226 = vmatprep.subr.bf16.mxu0 0
  %3227 = vmatpush1.bf16.msra.mxu0 %v3180
  %3228 = vmatprep.subr.bf16.mxu0 0
  %3229 = vmatpush1.bf16.msra.mxu0 %v3181
  %3230 = vmatprep.mubr.bf16.mxu0 %v3071
  %3231 = vmatmul.mubr.bf16.gmra.mrb[0].mxu0 %v3070
  %v3232 = vpop.f32.mrb[0].mxu0
  %v3233 = vadd.f32 0.0, %v3232
  %v3234 = vpop.f32.mrb[0].mxu0
  %v3235 = vpop.f32.mrb[0].mxu0
  %v3236 = vadd.f32 0.0, %v3235
  %v3237 = vpop.f32.mrb[0].mxu0
  %3238 = vmatprep.mubr.bf16.mxu0 %v3073
  %3239 = vmatmul.mubr.bf16.gmra.mrb[0].mxu0 %v3072
  %v3240 = vpop.f32.mrb[0].mxu0
  %v3241 = vadd.f32 0.0, %v3240
  %v3242 = vpop.f32.mrb[0].mxu0
  %v3243 = vpop.f32.mrb[0].mxu0
  %v3244 = vadd.f32 0.0, %v3243
  %v3245 = vpop.f32.mrb[0].mxu0
  %3246 = vmatprep.mubr.bf16.mxu0 %v3075
  %3247 = vmatmul.mubr.bf16.gmra.mrb[0].mxu0 %v3074
  %v3248 = vpop.f32.mrb[0].mxu0
  %v3249 = vadd.f32 0.0, %v3248
  %v3250 = vpop.f32.mrb[0].mxu0
  %v3251 = vpop.f32.mrb[0].mxu0
  %v3252 = vadd.f32 0.0, %v3251
  %v3253 = vpop.f32.mrb[0].mxu0
  %3254 = vmatprep.mubr.bf16.mxu0 %v3077
  %3255 = vmatmul.mubr.bf16.gmra.mrb[0].mxu0 %v3076
  %v3256 = vpop.f32.mrb[0].mxu0
  %v3257 = vadd.f32 0.0, %v3256
  %v3258 = vpop.f32.mrb[0].mxu0
  %v3259 = vpop.f32.mrb[0].mxu0
  %v3260 = vadd.f32 0.0, %v3259
  %v3261 = vpop.f32.mrb[0].mxu0
  %3262 = vmatprep.mubr.bf16.mxu0 %v3079
  %3263 = vmatmul.mubr.bf16.gmra.mrb[0].mxu0 %v3078
  %v3264 = vpop.f32.mrb[0].mxu0
  %v3265 = vadd.f32 0.0, %v3264
  %v3266 = vpop.f32.mrb[0].mxu0
  %v3267 = vpop.f32.mrb[0].mxu0
  %v3268 = vadd.f32 0.0, %v3267
  %v3269 = vpop.f32.mrb[0].mxu0
  %3270 = vmatprep.mubr.bf16.mxu0 %v3081
  %3271 = vmatmul.mubr.bf16.gmra.mrb[0].mxu0 %v3080
  %v3272 = vpop.f32.mrb[0].mxu0
  %v3273 = vadd.f32 0.0, %v3272
  %v3274 = vpop.f32.mrb[0].mxu0
  %v3275 = vpop.f32.mrb[0].mxu0
  %v3276 = vadd.f32 0.0, %v3275
  %v3277 = vpop.f32.mrb[0].mxu0
  %3278 = vmatprep.mubr.bf16.mxu0 %v3083
  %3279 = vmatmul.mubr.bf16.gmra.mrb[0].mxu0 %v3082
  %v3280 = vpop.f32.mrb[0].mxu0
  %v3281 = vadd.f32 0.0, %v3280
  %v3282 = vpop.f32.mrb[0].mxu0
  %v3283 = vpop.f32.mrb[0].mxu0
  %v3284 = vadd.f32 0.0, %v3283
  %v3285 = vpop.f32.mrb[0].mxu0
  %3286 = vmatprep.mubr.bf16.mxu0 %v3085
  %3287 = vmatmul.mubr.bf16.gmra.mrb[0].mxu0 %v3084
  %v3288 = vpop.f32.mrb[0].mxu0
  %v3289 = vadd.f32 0.0, %v3288
  %v3290 = vpop.f32.mrb[0].mxu0
  %v3291 = vpop.f32.mrb[0].mxu0
  %v3292 = vadd.f32 0.0, %v3291
  %v3293 = vpop.f32.mrb[0].mxu0
  %3294 = vdwg.mxu0
  %v3295 = vadd.f32 %v2877, %v3233
  %v3296 = vadd.f32 %v2878, %v3236
  %v3297 = vadd.f32 %v2879, %v3241
  %v3298 = vadd.f32 %v2880, %v3244
  %v3299 = vadd.f32 %v2881, %v3249
  %v3300 = vadd.f32 %v2882, %v3252
  %v3301 = vadd.f32 %v2883, %v3257
  %v3302 = vadd.f32 %v2884, %v3260
  %v3303 = vadd.f32 %v2885, %v3265
  %v3304 = vadd.f32 %v2886, %v3268
  %v3305 = vadd.f32 %v2887, %v3273
  %v3306 = vadd.f32 %v2888, %v3276
  %v3307 = vadd.f32 %v2889, %v3281
  %v3308 = vadd.f32 %v2890, %v3284
  %v3309 = vadd.f32 %v2891, %v3289
  %v3310 = vadd.f32 %v2892, %v3292
  %s3311 = scalar_lea.vmem [#allocation2], 32
  %v3312 = vld [vmem:[%s3311] sm:$0xff]
  %v3313 = vld [vmem:[%s3311 + $0x10] sm:$0xff]
  %v3314 = vld [vmem:[%s3311 + $0x20] sm:$0xff]
  %v3315 = vld [vmem:[%s3311 + $0x30] sm:$0xff]
  %v3316 = vld [vmem:[%s3311 + $0x40] sm:$0xff]
  %v3317 = vld [vmem:[%s3311 + $0x50] sm:$0xff]
  %v3318 = vld [vmem:[%s3311 + $0x60] sm:$0xff]
  %v3319 = vld [vmem:[%s3311 + $0x70] sm:$0xff]
  %v3320 = vld [vmem:[%s3311 + $0xa0] sm:$0xff]
  %v3321 = vld [vmem:[%s3311 + $0xb0] sm:$0xff]
  %v3322 = vld [vmem:[%s3311 + $0xc0] sm:$0xff]
  %v3323 = vld [vmem:[%s3311 + $0xd0] sm:$0xff]
  %v3324 = vld [vmem:[%s3311 + $0xe0] sm:$0xff]
  %v3325 = vld [vmem:[%s3311 + $0xf0] sm:$0xff]
  %v3326 = vld [vmem:[%s3311 + $0x100] sm:$0xff]
  %v3327 = vld [vmem:[%s3311 + $0x110] sm:$0xff]
  %s3328 = scalar_lea.vmem %s1, 768
  %v3329 = vld [vmem:[%s3328] sm:$0xf]
  %v3330 = vld [vmem:[%s3328 + $0x4] sm:$0xf]
  %v3331 = vld [vmem:[%s3328 + $0x8] sm:$0xf]
  %v3332 = vld [vmem:[%s3328 + $0xc] sm:$0xf]
  %v3333 = vld [vmem:[%s3328 + $0x10] sm:$0xf]
  %v3334 = vld [vmem:[%s3328 + $0x14] sm:$0xf]
  %v3335 = vld [vmem:[%s3328 + $0x18] sm:$0xf]
  %v3336 = vld [vmem:[%s3328 + $0x1c] sm:$0xf]
  %v3337 = vld [vmem:[%s3328 + $0x20] sm:$0xf]
  %v3338 = vld [vmem:[%s3328 + $0x24] sm:$0xf]
  %v3339 = vld [vmem:[%s3328 + $0x28] sm:$0xf]
  %v3340 = vld [vmem:[%s3328 + $0x2c] sm:$0xf]
  %v3341 = vld [vmem:[%s3328 + $0x30] sm:$0xf]
  %v3342 = vld [vmem:[%s3328 + $0x34] sm:$0xf]
  %v3343 = vld [vmem:[%s3328 + $0x38] sm:$0xf]
  %v3344 = vld [vmem:[%s3328 + $0x3c] sm:$0xf]
  %v3345 = vld [vmem:[%s3328 + $0x40] sm:$0xf]
  %v3346 = vld [vmem:[%s3328 + $0x44] sm:$0xf]
  %v3347 = vld [vmem:[%s3328 + $0x48] sm:$0xf]
  %v3348 = vld [vmem:[%s3328 + $0x4c] sm:$0xf]
  %v3349 = vld [vmem:[%s3328 + $0x50] sm:$0xf]
  %v3350 = vld [vmem:[%s3328 + $0x54] sm:$0xf]
  %v3351 = vld [vmem:[%s3328 + $0x58] sm:$0xf]
  %v3352 = vld [vmem:[%s3328 + $0x5c] sm:$0xf]
  %v3353 = vld [vmem:[%s3328 + $0x60] sm:$0xf]
  %v3354 = vld [vmem:[%s3328 + $0x64] sm:$0xf]
  %v3355 = vld [vmem:[%s3328 + $0x68] sm:$0xf]
  %v3356 = vld [vmem:[%s3328 + $0x6c] sm:$0xf]
  %v3357 = vld [vmem:[%s3328 + $0x70] sm:$0xf]
  %v3358 = vld [vmem:[%s3328 + $0x74] sm:$0xf]
  %v3359 = vld [vmem:[%s3328 + $0x78] sm:$0xf]
  %v3360 = vld [vmem:[%s3328 + $0x7c] sm:$0xf]
  %v3377 = vunpack.c.l.b16 %v3312
  %v3378 = vunpack.c.h.b16 %v3312
  %v3379 = vunpack.c.l.b16 %v3313
  %v3380 = vunpack.c.h.b16 %v3313
  %v3381 = vunpack.c.l.b16 %v3314
  %v3382 = vunpack.c.h.b16 %v3314
  %v3383 = vunpack.c.l.b16 %v3315
  %v3384 = vunpack.c.h.b16 %v3315
  %v3385 = vunpack.c.l.b16 %v3316
  %v3386 = vunpack.c.h.b16 %v3316
  %v3387 = vunpack.c.l.b16 %v3317
  %v3388 = vunpack.c.h.b16 %v3317
  %v3389 = vunpack.c.l.b16 %v3318
  %v3390 = vunpack.c.h.b16 %v3318
  %v3391 = vunpack.c.l.b16 %v3319
  %v3392 = vunpack.c.h.b16 %v3319
  %v3393 = vunpack.c.l.b16 %v3320
  %v3394 = vunpack.c.h.b16 %v3320
  %v3395 = vunpack.c.l.b16 %v3321
  %v3396 = vunpack.c.h.b16 %v3321
  %v3397 = vunpack.c.l.b16 %v3322
  %v3398 = vunpack.c.h.b16 %v3322
  %v3399 = vunpack.c.l.b16 %v3323
  %v3400 = vunpack.c.h.b16 %v3323
  %v3401 = vunpack.c.l.b16 %v3324
  %v3402 = vunpack.c.h.b16 %v3324
  %v3403 = vunpack.c.l.b16 %v3325
  %v3404 = vunpack.c.h.b16 %v3325
  %v3405 = vunpack.c.l.b16 %v3326
  %v3406 = vunpack.c.h.b16 %v3326
  %v3407 = vunpack.c.l.b16 %v3327
  %v3408 = vunpack.c.h.b16 %v3327
  %v3409 = vpack.c.b16 %v3379, %v3377
  %v3410 = vpack.c.b16 %v3380, %v3378
  %v3411 = vpack.c.b16 %v3383, %v3381
  %v3412 = vpack.c.b16 %v3384, %v3382
  %v3413 = vpack.c.b16 %v3387, %v3385
  %v3414 = vpack.c.b16 %v3388, %v3386
  %v3415 = vpack.c.b16 %v3391, %v3389
  %v3416 = vpack.c.b16 %v3392, %v3390
  %v3417 = vpack.c.b16 %v3395, %v3393
  %v3418 = vpack.c.b16 %v3396, %v3394
  %v3419 = vpack.c.b16 %v3399, %v3397
  %v3420 = vpack.c.b16 %v3400, %v3398
  %v3421 = vpack.c.b16 %v3403, %v3401
  %v3422 = vpack.c.b16 %v3404, %v3402
  %v3423 = vpack.c.b16 %v3407, %v3405
  %v3424 = vpack.c.b16 %v3408, %v3406
  %v3473 = vunpack.c.l.b16 %v3329
  %v3474 = vunpack.c.l.b16 %v3330
  %v3475 = vunpack.c.l.b16 %v3331
  %v3476 = vunpack.c.l.b16 %v3332
  %v3477 = vunpack.c.l.b16 %v3333
  %v3478 = vunpack.c.l.b16 %v3334
  %v3479 = vunpack.c.l.b16 %v3335
  %v3480 = vunpack.c.l.b16 %v3336
  %v3481 = vunpack.c.l.b16 %v3337
  %v3482 = vunpack.c.l.b16 %v3338
  %v3483 = vunpack.c.l.b16 %v3339
  %v3484 = vunpack.c.l.b16 %v3340
  %v3485 = vunpack.c.l.b16 %v3341
  %v3486 = vunpack.c.l.b16 %v3342
  %v3487 = vunpack.c.l.b16 %v3343
  %v3488 = vunpack.c.l.b16 %v3344
  %v3489 = vunpack.c.l.b16 %v3345
  %v3490 = vunpack.c.l.b16 %v3346
  %v3491 = vunpack.c.l.b16 %v3347
  %v3492 = vunpack.c.l.b16 %v3348
  %v3493 = vunpack.c.l.b16 %v3349
  %v3494 = vunpack.c.l.b16 %v3350
  %v3495 = vunpack.c.l.b16 %v3351
  %v3496 = vunpack.c.l.b16 %v3352
  %v3497 = vunpack.c.l.b16 %v3353
  %v3498 = vunpack.c.l.b16 %v3354
  %v3499 = vunpack.c.l.b16 %v3355
  %v3500 = vunpack.c.l.b16 %v3356
  %v3501 = vunpack.c.l.b16 %v3357
  %v3502 = vunpack.c.l.b16 %v3358
  %v3503 = vunpack.c.l.b16 %v3359
  %v3504 = vunpack.c.l.b16 %v3360
  %v3505 = vpack.c.b16 %v3474, %v3473
  %v3506 = vpack.c.b16 %v3476, %v3475
  %v3507 = vpack.c.b16 %v3478, %v3477
  %v3508 = vpack.c.b16 %v3480, %v3479
  %v3509 = vpack.c.b16 %v3482, %v3481
  %v3510 = vpack.c.b16 %v3484, %v3483
  %v3511 = vpack.c.b16 %v3486, %v3485
  %v3512 = vpack.c.b16 %v3488, %v3487
  %v3513 = vpack.c.b16 %v3490, %v3489
  %v3514 = vpack.c.b16 %v3492, %v3491
  %v3515 = vpack.c.b16 %v3494, %v3493
  %v3516 = vpack.c.b16 %v3496, %v3495
  %v3517 = vpack.c.b16 %v3498, %v3497
  %v3518 = vpack.c.b16 %v3500, %v3499
  %v3519 = vpack.c.b16 %v3502, %v3501
  %v3520 = vpack.c.b16 %v3504, %v3503
  %3537 = vmatprep.subr.bf16.mxu0 0
  %3538 = vmatpush1.bf16.msra.mxu0 %v3505
  %3539 = vmatprep.subr.bf16.mxu0 0
  %3540 = vmatpush1.bf16.msra.mxu0 %v3506
  %3541 = vmatprep.subr.bf16.mxu0 0
  %3542 = vmatpush1.bf16.msra.mxu0 %v3507
  %3543 = vmatprep.subr.bf16.mxu0 0
  %3544 = vmatpush1.bf16.msra.mxu0 %v3508
  %3545 = vmatprep.subr.bf16.mxu0 0
  %3546 = vmatpush1.bf16.msra.mxu0 %v3509
  %3547 = vmatprep.subr.bf16.mxu0 0
  %3548 = vmatpush1.bf16.msra.mxu0 %v3510
  %3549 = vmatprep.subr.bf16.mxu0 0
  %3550 = vmatpush1.bf16.msra.mxu0 %v3511
  %3551 = vmatprep.subr.bf16.mxu0 0
  %3552 = vmatpush1.bf16.msra.mxu0 %v3512
  %3553 = vmatprep.subr.bf16.mxu0 0
  %3554 = vmatpush1.bf16.msra.mxu0 %v3513
  %3555 = vmatprep.subr.bf16.mxu0 0
  %3556 = vmatpush1.bf16.msra.mxu0 %v3514
  %3557 = vmatprep.subr.bf16.mxu0 0
  %3558 = vmatpush1.bf16.msra.mxu0 %v3515
  %3559 = vmatprep.subr.bf16.mxu0 0
  %3560 = vmatpush1.bf16.msra.mxu0 %v3516
  %3561 = vmatprep.subr.bf16.mxu0 0
  %3562 = vmatpush1.bf16.msra.mxu0 %v3517
  %3563 = vmatprep.subr.bf16.mxu0 0
  %3564 = vmatpush1.bf16.msra.mxu0 %v3518
  %3565 = vmatprep.subr.bf16.mxu0 0
  %3566 = vmatpush1.bf16.msra.mxu0 %v3519
  %3567 = vmatprep.subr.bf16.mxu0 0
  %3568 = vmatpush1.bf16.msra.mxu0 %v3520
  %3569 = vmatprep.mubr.bf16.mxu0 %v3410
  %3570 = vmatmul.mubr.bf16.gmra.mrb[0].mxu0 %v3409
  %v3571 = vpop.f32.mrb[0].mxu0
  %v3572 = vadd.f32 0.0, %v3571
  %v3573 = vpop.f32.mrb[0].mxu0
  %v3574 = vpop.f32.mrb[0].mxu0
  %v3575 = vadd.f32 0.0, %v3574
  %v3576 = vpop.f32.mrb[0].mxu0
  %3577 = vmatprep.mubr.bf16.mxu0 %v3412
  %3578 = vmatmul.mubr.bf16.gmra.mrb[0].mxu0 %v3411
  %v3579 = vpop.f32.mrb[0].mxu0
  %v3580 = vadd.f32 0.0, %v3579
  %v3581 = vpop.f32.mrb[0].mxu0
  %v3582 = vpop.f32.mrb[0].mxu0
  %v3583 = vadd.f32 0.0, %v3582
  %v3584 = vpop.f32.mrb[0].mxu0
  %3585 = vmatprep.mubr.bf16.mxu0 %v3414
  %3586 = vmatmul.mubr.bf16.gmra.mrb[0].mxu0 %v3413
  %v3587 = vpop.f32.mrb[0].mxu0
  %v3588 = vadd.f32 0.0, %v3587
  %v3589 = vpop.f32.mrb[0].mxu0
  %v3590 = vpop.f32.mrb[0].mxu0
  %v3591 = vadd.f32 0.0, %v3590
  %v3592 = vpop.f32.mrb[0].mxu0
  %3593 = vmatprep.mubr.bf16.mxu0 %v3416
  %3594 = vmatmul.mubr.bf16.gmra.mrb[0].mxu0 %v3415
  %v3595 = vpop.f32.mrb[0].mxu0
  %v3596 = vadd.f32 0.0, %v3595
  %v3597 = vpop.f32.mrb[0].mxu0
  %v3598 = vpop.f32.mrb[0].mxu0
  %v3599 = vadd.f32 0.0, %v3598
  %v3600 = vpop.f32.mrb[0].mxu0
  %3601 = vmatprep.mubr.bf16.mxu0 %v3418
  %3602 = vmatmul.mubr.bf16.gmra.mrb[0].mxu0 %v3417
  %v3603 = vpop.f32.mrb[0].mxu0
  %v3604 = vadd.f32 0.0, %v3603
  %v3605 = vpop.f32.mrb[0].mxu0
  %v3606 = vpop.f32.mrb[0].mxu0
  %v3607 = vadd.f32 0.0, %v3606
  %v3608 = vpop.f32.mrb[0].mxu0
  %3609 = vmatprep.mubr.bf16.mxu0 %v3420
  %3610 = vmatmul.mubr.bf16.gmra.mrb[0].mxu0 %v3419
  %v3611 = vpop.f32.mrb[0].mxu0
  %v3612 = vadd.f32 0.0, %v3611
  %v3613 = vpop.f32.mrb[0].mxu0
  %v3614 = vpop.f32.mrb[0].mxu0
  %v3615 = vadd.f32 0.0, %v3614
  %v3616 = vpop.f32.mrb[0].mxu0
  %3617 = vmatprep.mubr.bf16.mxu0 %v3422
  %3618 = vmatmul.mubr.bf16.gmra.mrb[0].mxu0 %v3421
  %v3619 = vpop.f32.mrb[0].mxu0
  %v3620 = vadd.f32 0.0, %v3619
  %v3621 = vpop.f32.mrb[0].mxu0
  %v3622 = vpop.f32.mrb[0].mxu0
  %v3623 = vadd.f32 0.0, %v3622
  %v3624 = vpop.f32.mrb[0].mxu0
  %3625 = vmatprep.mubr.bf16.mxu0 %v3424
  %3626 = vmatmul.mubr.bf16.gmra.mrb[0].mxu0 %v3423
  %v3627 = vpop.f32.mrb[0].mxu0
  %v3628 = vadd.f32 0.0, %v3627
  %v3629 = vpop.f32.mrb[0].mxu0
  %v3630 = vpop.f32.mrb[0].mxu0
  %v3631 = vadd.f32 0.0, %v3630
  %v3632 = vpop.f32.mrb[0].mxu0
  %3633 = vdwg.mxu0
  %v3634 = vadd.f32 %v3295, %v3572
  %v3635 = vadd.f32 %v3296, %v3575
  %v3636 = vadd.f32 %v3297, %v3580
  %v3637 = vadd.f32 %v3298, %v3583
  %v3638 = vadd.f32 %v3299, %v3588
  %v3639 = vadd.f32 %v3300, %v3591
  %v3640 = vadd.f32 %v3301, %v3596
  %v3641 = vadd.f32 %v3302, %v3599
  %v3642 = vadd.f32 %v3303, %v3604
  %v3643 = vadd.f32 %v3304, %v3607
  %v3644 = vadd.f32 %v3305, %v3612
  %v3645 = vadd.f32 %v3306, %v3615
  %v3646 = vadd.f32 %v3307, %v3620
  %v3647 = vadd.f32 %v3308, %v3623
  %v3648 = vadd.f32 %v3309, %v3628
  %v3649 = vadd.f32 %v3310, %v3631
  %v3650 = vld [vmem:[%s3311] sm:$0xff]
  %v3651 = vld [vmem:[%s3311 + $0x8] sm:$0x11]
  %v3652 = vld [vmem:[%s3311 + $0x10] sm:$0xff]
  %v3653 = vld [vmem:[%s3311 + $0x18] sm:$0x11]
  %v3654 = vld [vmem:[%s3311 + $0x20] sm:$0xff]
  %v3655 = vld [vmem:[%s3311 + $0x28] sm:$0x11]
  %v3656 = vld [vmem:[%s3311 + $0x30] sm:$0xff]
  %v3657 = vld [vmem:[%s3311 + $0x38] sm:$0x11]
  %v3658 = vld [vmem:[%s3311 + $0x40] sm:$0xff]
  %v3659 = vld [vmem:[%s3311 + $0x48] sm:$0x11]
  %v3660 = vld [vmem:[%s3311 + $0x50] sm:$0xff]
  %v3661 = vld [vmem:[%s3311 + $0x58] sm:$0x11]
  %v3662 = vld [vmem:[%s3311 + $0x60] sm:$0xff]
  %v3663 = vld [vmem:[%s3311 + $0x68] sm:$0x11]
  %v3664 = vld [vmem:[%s3311 + $0x70] sm:$0xff]
  %v3665 = vld [vmem:[%s3311 + $0x78] sm:$0x11]
  %v3666 = vld [vmem:[%s3311 + $0xa0] sm:$0xff]
  %v3667 = vld [vmem:[%s3311 + $0xa8] sm:$0x11]
  %v3668 = vld [vmem:[%s3311 + $0xb0] sm:$0xff]
  %v3669 = vld [vmem:[%s3311 + $0xb8] sm:$0x11]
  %v3670 = vld [vmem:[%s3311 + $0xc0] sm:$0xff]
  %v3671 = vld [vmem:[%s3311 + $0xc8] sm:$0x11]
  %v3672 = vld [vmem:[%s3311 + $0xd0] sm:$0xff]
  %v3673 = vld [vmem:[%s3311 + $0xd8] sm:$0x11]
  %v3674 = vld [vmem:[%s3311 + $0xe0] sm:$0xff]
  %v3675 = vld [vmem:[%s3311 + $0xe8] sm:$0x11]
  %v3676 = vld [vmem:[%s3311 + $0xf0] sm:$0xff]
  %v3677 = vld [vmem:[%s3311 + $0xf8] sm:$0x11]
  %v3678 = vld [vmem:[%s3311 + $0x100] sm:$0xff]
  %v3679 = vld [vmem:[%s3311 + $0x108] sm:$0x11]
  %v3680 = vld [vmem:[%s3311 + $0x110] sm:$0xff]
  %v3681 = vld [vmem:[%s3311 + $0x118] sm:$0x11]
  %v3683 = vshrl.u32 %v3650, 16
  %v3685 = vrot.slane %v3683, 4
  %v3686 = vshll.u32 %v3650, 16
  %v3688 = vrot.slane %v3686, 5
  %v3689 = vor.u32 %v3685, %v3688
  %v3690 = vrot.slane %v3689, 4
  %v3692 = vshll.u32 %v3651, 16
  %v3694 = vrot.slane %v3692, 5
  %v3695 = vsel %vm784, %v3690, %v3694
  %v3697 = vshrl.u32 %v3652, 16
  %v3699 = vrot.slane %v3697, 4
  %v3700 = vshll.u32 %v3652, 16
  %v3702 = vrot.slane %v3700, 5
  %v3703 = vor.u32 %v3699, %v3702
  %v3704 = vrot.slane %v3703, 4
  %v3706 = vshll.u32 %v3653, 16
  %v3708 = vrot.slane %v3706, 5
  %v3709 = vsel %vm784, %v3704, %v3708
  %v3711 = vshrl.u32 %v3654, 16
  %v3713 = vrot.slane %v3711, 4
  %v3714 = vshll.u32 %v3654, 16
  %v3716 = vrot.slane %v3714, 5
  %v3717 = vor.u32 %v3713, %v3716
  %v3718 = vrot.slane %v3717, 4
  %v3720 = vshll.u32 %v3655, 16
  %v3722 = vrot.slane %v3720, 5
  %v3723 = vsel %vm784, %v3718, %v3722
  %v3725 = vshrl.u32 %v3656, 16
  %v3727 = vrot.slane %v3725, 4
  %v3728 = vshll.u32 %v3656, 16
  %v3730 = vrot.slane %v3728, 5
  %v3731 = vor.u32 %v3727, %v3730
  %v3732 = vrot.slane %v3731, 4
  %v3734 = vshll.u32 %v3657, 16
  %v3736 = vrot.slane %v3734, 5
  %v3737 = vsel %vm784, %v3732, %v3736
  %v3739 = vshrl.u32 %v3658, 16
  %v3741 = vrot.slane %v3739, 4
  %v3742 = vshll.u32 %v3658, 16
  %v3744 = vrot.slane %v3742, 5
  %v3745 = vor.u32 %v3741, %v3744
  %v3746 = vrot.slane %v3745, 4
  %v3748 = vshll.u32 %v3659, 16
  %v3750 = vrot.slane %v3748, 5
  %v3751 = vsel %vm784, %v3746, %v3750
  %v3753 = vshrl.u32 %v3660, 16
  %v3755 = vrot.slane %v3753, 4
  %v3756 = vshll.u32 %v3660, 16
  %v3758 = vrot.slane %v3756, 5
  %v3759 = vor.u32 %v3755, %v3758
  %v3760 = vrot.slane %v3759, 4
  %v3762 = vshll.u32 %v3661, 16
  %v3764 = vrot.slane %v3762, 5
  %v3765 = vsel %vm784, %v3760, %v3764
  %v3767 = vshrl.u32 %v3662, 16
  %v3769 = vrot.slane %v3767, 4
  %v3770 = vshll.u32 %v3662, 16
  %v3772 = vrot.slane %v3770, 5
  %v3773 = vor.u32 %v3769, %v3772
  %v3774 = vrot.slane %v3773, 4
  %v3776 = vshll.u32 %v3663, 16
  %v3778 = vrot.slane %v3776, 5
  %v3779 = vsel %vm784, %v3774, %v3778
  %v3781 = vshrl.u32 %v3664, 16
  %v3783 = vrot.slane %v3781, 4
  %v3784 = vshll.u32 %v3664, 16
  %v3786 = vrot.slane %v3784, 5
  %v3787 = vor.u32 %v3783, %v3786
  %v3788 = vrot.slane %v3787, 4
  %v3790 = vshll.u32 %v3665, 16
  %v3792 = vrot.slane %v3790, 5
  %v3793 = vsel %vm784, %v3788, %v3792
  %v3795 = vshrl.u32 %v3666, 16
  %v3797 = vrot.slane %v3795, 4
  %v3798 = vshll.u32 %v3666, 16
  %v3800 = vrot.slane %v3798, 5
  %v3801 = vor.u32 %v3797, %v3800
  %v3802 = vrot.slane %v3801, 4
  %v3804 = vshll.u32 %v3667, 16
  %v3806 = vrot.slane %v3804, 5
  %v3807 = vsel %vm784, %v3802, %v3806
  %v3809 = vshrl.u32 %v3668, 16
  %v3811 = vrot.slane %v3809, 4
  %v3812 = vshll.u32 %v3668, 16
  %v3814 = vrot.slane %v3812, 5
  %v3815 = vor.u32 %v3811, %v3814
  %v3816 = vrot.slane %v3815, 4
  %v3818 = vshll.u32 %v3669, 16
  %v3820 = vrot.slane %v3818, 5
  %v3821 = vsel %vm784, %v3816, %v3820
  %v3823 = vshrl.u32 %v3670, 16
  %v3825 = vrot.slane %v3823, 4
  %v3826 = vshll.u32 %v3670, 16
  %v3828 = vrot.slane %v3826, 5
  %v3829 = vor.u32 %v3825, %v3828
  %v3830 = vrot.slane %v3829, 4
  %v3832 = vshll.u32 %v3671, 16
  %v3834 = vrot.slane %v3832, 5
  %v3835 = vsel %vm784, %v3830, %v3834
  %v3837 = vshrl.u32 %v3672, 16
  %v3839 = vrot.slane %v3837, 4
  %v3840 = vshll.u32 %v3672, 16
  %v3842 = vrot.slane %v3840, 5
  %v3843 = vor.u32 %v3839, %v3842
  %v3844 = vrot.slane %v3843, 4
  %v3846 = vshll.u32 %v3673, 16
  %v3848 = vrot.slane %v3846, 5
  %v3849 = vsel %vm784, %v3844, %v3848
  %v3851 = vshrl.u32 %v3674, 16
  %v3853 = vrot.slane %v3851, 4
  %v3854 = vshll.u32 %v3674, 16
  %v3856 = vrot.slane %v3854, 5
  %v3857 = vor.u32 %v3853, %v3856
  %v3858 = vrot.slane %v3857, 4
  %v3860 = vshll.u32 %v3675, 16
  %v3862 = vrot.slane %v3860, 5
  %v3863 = vsel %vm784, %v3858, %v3862
  %v3865 = vshrl.u32 %v3676, 16
  %v3867 = vrot.slane %v3865, 4
  %v3868 = vshll.u32 %v3676, 16
  %v3870 = vrot.slane %v3868, 5
  %v3871 = vor.u32 %v3867, %v3870
  %v3872 = vrot.slane %v3871, 4
  %v3874 = vshll.u32 %v3677, 16
  %v3876 = vrot.slane %v3874, 5
  %v3877 = vsel %vm784, %v3872, %v3876
  %v3879 = vshrl.u32 %v3678, 16
  %v3881 = vrot.slane %v3879, 4
  %v3882 = vshll.u32 %v3678, 16
  %v3884 = vrot.slane %v3882, 5
  %v3885 = vor.u32 %v3881, %v3884
  %v3886 = vrot.slane %v3885, 4
  %v3888 = vshll.u32 %v3679, 16
  %v3890 = vrot.slane %v3888, 5
  %v3891 = vsel %vm784, %v3886, %v3890
  %v3893 = vshrl.u32 %v3680, 16
  %v3895 = vrot.slane %v3893, 4
  %v3896 = vshll.u32 %v3680, 16
  %v3898 = vrot.slane %v3896, 5
  %v3899 = vor.u32 %v3895, %v3898
  %v3900 = vrot.slane %v3899, 4
  %v3902 = vshll.u32 %v3681, 16
  %v3904 = vrot.slane %v3902, 5
  %v3905 = vsel %vm784, %v3900, %v3904
  %s3906 = scalar_lea.vmem %s1, 896
  %v3907 = vld [vmem:[%s3906] sm:$0xf]
  %v3908 = vld [vmem:[%s3906 + $0x4] sm:$0xf]
  %v3909 = vld [vmem:[%s3906 + $0x8] sm:$0xf]
  %v3910 = vld [vmem:[%s3906 + $0xc] sm:$0xf]
  %v3911 = vld [vmem:[%s3906 + $0x10] sm:$0xf]
  %v3912 = vld [vmem:[%s3906 + $0x14] sm:$0xf]
  %v3913 = vld [vmem:[%s3906 + $0x18] sm:$0xf]
  %v3914 = vld [vmem:[%s3906 + $0x1c] sm:$0xf]
  %v3915 = vld [vmem:[%s3906 + $0x20] sm:$0xf]
  %v3916 = vld [vmem:[%s3906 + $0x24] sm:$0xf]
  %v3917 = vld [vmem:[%s3906 + $0x28] sm:$0xf]
  %v3918 = vld [vmem:[%s3906 + $0x2c] sm:$0xf]
  %v3919 = vld [vmem:[%s3906 + $0x30] sm:$0xf]
  %v3920 = vld [vmem:[%s3906 + $0x34] sm:$0xf]
  %v3921 = vld [vmem:[%s3906 + $0x38] sm:$0xf]
  %v3922 = vld [vmem:[%s3906 + $0x3c] sm:$0xf]
  %v3923 = vld [vmem:[%s3906 + $0x40] sm:$0xf]
  %v3924 = vld [vmem:[%s3906 + $0x44] sm:$0xf]
  %v3925 = vld [vmem:[%s3906 + $0x48] sm:$0xf]
  %v3926 = vld [vmem:[%s3906 + $0x4c] sm:$0xf]
  %v3927 = vld [vmem:[%s3906 + $0x50] sm:$0xf]
  %v3928 = vld [vmem:[%s3906 + $0x54] sm:$0xf]
  %v3929 = vld [vmem:[%s3906 + $0x58] sm:$0xf]
  %v3930 = vld [vmem:[%s3906 + $0x5c] sm:$0xf]
  %v3931 = vld [vmem:[%s3906 + $0x60] sm:$0xf]
  %v3932 = vld [vmem:[%s3906 + $0x64] sm:$0xf]
  %v3933 = vld [vmem:[%s3906 + $0x68] sm:$0xf]
  %v3934 = vld [vmem:[%s3906 + $0x6c] sm:$0xf]
  %v3935 = vld [vmem:[%s3906 + $0x70] sm:$0xf]
  %v3936 = vld [vmem:[%s3906 + $0x74] sm:$0xf]
  %v3937 = vld [vmem:[%s3906 + $0x78] sm:$0xf]
  %v3938 = vld [vmem:[%s3906 + $0x7c] sm:$0xf]
  %v3939 = vunpack.c.l.b16 %v3695
  %v3940 = vunpack.c.h.b16 %v3695
  %v3941 = vunpack.c.l.b16 %v3709
  %v3942 = vunpack.c.h.b16 %v3709
  %v3943 = vunpack.c.l.b16 %v3723
  %v3944 = vunpack.c.h.b16 %v3723
  %v3945 = vunpack.c.l.b16 %v3737
  %v3946 = vunpack.c.h.b16 %v3737
  %v3947 = vunpack.c.l.b16 %v3751
  %v3948 = vunpack.c.h.b16 %v3751
  %v3949 = vunpack.c.l.b16 %v3765
  %v3950 = vunpack.c.h.b16 %v3765
  %v3951 = vunpack.c.l.b16 %v3779
  %v3952 = vunpack.c.h.b16 %v3779
  %v3953 = vunpack.c.l.b16 %v3793
  %v3954 = vunpack.c.h.b16 %v3793
  %v3955 = vunpack.c.l.b16 %v3807
  %v3956 = vunpack.c.h.b16 %v3807
  %v3957 = vunpack.c.l.b16 %v3821
  %v3958 = vunpack.c.h.b16 %v3821
  %v3959 = vunpack.c.l.b16 %v3835
  %v3960 = vunpack.c.h.b16 %v3835
  %v3961 = vunpack.c.l.b16 %v3849
  %v3962 = vunpack.c.h.b16 %v3849
  %v3963 = vunpack.c.l.b16 %v3863
  %v3964 = vunpack.c.h.b16 %v3863
  %v3965 = vunpack.c.l.b16 %v3877
  %v3966 = vunpack.c.h.b16 %v3877
  %v3967 = vunpack.c.l.b16 %v3891
  %v3968 = vunpack.c.h.b16 %v3891
  %v3969 = vunpack.c.l.b16 %v3905
  %v3970 = vunpack.c.h.b16 %v3905
  %v3971 = vpack.c.b16 %v3941, %v3939
  %v3972 = vpack.c.b16 %v3942, %v3940
  %v3973 = vpack.c.b16 %v3945, %v3943
  %v3974 = vpack.c.b16 %v3946, %v3944
  %v3975 = vpack.c.b16 %v3949, %v3947
  %v3976 = vpack.c.b16 %v3950, %v3948
  %v3977 = vpack.c.b16 %v3953, %v3951
  %v3978 = vpack.c.b16 %v3954, %v3952
  %v3979 = vpack.c.b16 %v3957, %v3955
  %v3980 = vpack.c.b16 %v3958, %v3956
  %v3981 = vpack.c.b16 %v3961, %v3959
  %v3982 = vpack.c.b16 %v3962, %v3960
  %v3983 = vpack.c.b16 %v3965, %v3963
  %v3984 = vpack.c.b16 %v3966, %v3964
  %v3985 = vpack.c.b16 %v3969, %v3967
  %v3986 = vpack.c.b16 %v3970, %v3968
  %v4035 = vunpack.c.l.b16 %v3907
  %v4036 = vunpack.c.l.b16 %v3908
  %v4037 = vunpack.c.l.b16 %v3909
  %v4038 = vunpack.c.l.b16 %v3910
  %v4039 = vunpack.c.l.b16 %v3911
  %v4040 = vunpack.c.l.b16 %v3912
  %v4041 = vunpack.c.l.b16 %v3913
  %v4042 = vunpack.c.l.b16 %v3914
  %v4043 = vunpack.c.l.b16 %v3915
  %v4044 = vunpack.c.l.b16 %v3916
  %v4045 = vunpack.c.l.b16 %v3917
  %v4046 = vunpack.c.l.b16 %v3918
  %v4047 = vunpack.c.l.b16 %v3919
  %v4048 = vunpack.c.l.b16 %v3920
  %v4049 = vunpack.c.l.b16 %v3921
  %v4050 = vunpack.c.l.b16 %v3922
  %v4051 = vunpack.c.l.b16 %v3923
  %v4052 = vunpack.c.l.b16 %v3924
  %v4053 = vunpack.c.l.b16 %v3925
  %v4054 = vunpack.c.l.b16 %v3926
  %v4055 = vunpack.c.l.b16 %v3927
  %v4056 = vunpack.c.l.b16 %v3928
  %v4057 = vunpack.c.l.b16 %v3929
  %v4058 = vunpack.c.l.b16 %v3930
  %v4059 = vunpack.c.l.b16 %v3931
  %v4060 = vunpack.c.l.b16 %v3932
  %v4061 = vunpack.c.l.b16 %v3933
  %v4062 = vunpack.c.l.b16 %v3934
  %v4063 = vunpack.c.l.b16 %v3935
  %v4064 = vunpack.c.l.b16 %v3936
  %v4065 = vunpack.c.l.b16 %v3937
  %v4066 = vunpack.c.l.b16 %v3938
  %v4067 = vpack.c.b16 %v4036, %v4035
  %v4068 = vpack.c.b16 %v4038, %v4037
  %v4069 = vpack.c.b16 %v4040, %v4039
  %v4070 = vpack.c.b16 %v4042, %v4041
  %v4071 = vpack.c.b16 %v4044, %v4043
  %v4072 = vpack.c.b16 %v4046, %v4045
  %v4073 = vpack.c.b16 %v4048, %v4047
  %v4074 = vpack.c.b16 %v4050, %v4049
  %v4075 = vpack.c.b16 %v4052, %v4051
  %v4076 = vpack.c.b16 %v4054, %v4053
  %v4077 = vpack.c.b16 %v4056, %v4055
  %v4078 = vpack.c.b16 %v4058, %v4057
  %v4079 = vpack.c.b16 %v4060, %v4059
  %v4080 = vpack.c.b16 %v4062, %v4061
  %v4081 = vpack.c.b16 %v4064, %v4063
  %v4082 = vpack.c.b16 %v4066, %v4065
  %4099 = vmatprep.subr.bf16.mxu0 0
  %4100 = vmatpush1.bf16.msra.mxu0 %v4067
  %4101 = vmatprep.subr.bf16.mxu0 0
  %4102 = vmatpush1.bf16.msra.mxu0 %v4068
  %4103 = vmatprep.subr.bf16.mxu0 0
  %4104 = vmatpush1.bf16.msra.mxu0 %v4069
  %4105 = vmatprep.subr.bf16.mxu0 0
  %4106 = vmatpush1.bf16.msra.mxu0 %v4070
  %4107 = vmatprep.subr.bf16.mxu0 0
  %4108 = vmatpush1.bf16.msra.mxu0 %v4071
  %4109 = vmatprep.subr.bf16.mxu0 0
  %4110 = vmatpush1.bf16.msra.mxu0 %v4072
  %4111 = vmatprep.subr.bf16.mxu0 0
  %4112 = vmatpush1.bf16.msra.mxu0 %v4073
  %4113 = vmatprep.subr.bf16.mxu0 0
  %4114 = vmatpush1.bf16.msra.mxu0 %v4074
  %4115 = vmatprep.subr.bf16.mxu0 0
  %4116 = vmatpush1.bf16.msra.mxu0 %v4075
  %4117 = vmatprep.subr.bf16.mxu0 0
  %4118 = vmatpush1.bf16.msra.mxu0 %v4076
  %4119 = vmatprep.subr.bf16.mxu0 0
  %4120 = vmatpush1.bf16.msra.mxu0 %v4077
  %4121 = vmatprep.subr.bf16.mxu0 0
  %4122 = vmatpush1.bf16.msra.mxu0 %v4078
  %4123 = vmatprep.subr.bf16.mxu0 0
  %4124 = vmatpush1.bf16.msra.mxu0 %v4079
  %4125 = vmatprep.subr.bf16.mxu0 0
  %4126 = vmatpush1.bf16.msra.mxu0 %v4080
  %4127 = vmatprep.subr.bf16.mxu0 0
  %4128 = vmatpush1.bf16.msra.mxu0 %v4081
  %4129 = vmatprep.subr.bf16.mxu0 0
  %4130 = vmatpush1.bf16.msra.mxu0 %v4082
  %4131 = vmatprep.mubr.bf16.mxu0 %v3972
  %4132 = vmatmul.mubr.bf16.gmra.mrb[0].mxu0 %v3971
  %v4133 = vpop.f32.mrb[0].mxu0
  %v4134 = vadd.f32 0.0, %v4133
  %v4135 = vpop.f32.mrb[0].mxu0
  %v4136 = vpop.f32.mrb[0].mxu0
  %v4137 = vadd.f32 0.0, %v4136
  %v4138 = vpop.f32.mrb[0].mxu0
  %4139 = vmatprep.mubr.bf16.mxu0 %v3974
  %4140 = vmatmul.mubr.bf16.gmra.mrb[0].mxu0 %v3973
  %v4141 = vpop.f32.mrb[0].mxu0
  %v4142 = vadd.f32 0.0, %v4141
  %v4143 = vpop.f32.mrb[0].mxu0
  %v4144 = vpop.f32.mrb[0].mxu0
  %v4145 = vadd.f32 0.0, %v4144
  %v4146 = vpop.f32.mrb[0].mxu0
  %4147 = vmatprep.mubr.bf16.mxu0 %v3976
  %4148 = vmatmul.mubr.bf16.gmra.mrb[0].mxu0 %v3975
  %v4149 = vpop.f32.mrb[0].mxu0
  %v4150 = vadd.f32 0.0, %v4149
  %v4151 = vpop.f32.mrb[0].mxu0
  %v4152 = vpop.f32.mrb[0].mxu0
  %v4153 = vadd.f32 0.0, %v4152
  %v4154 = vpop.f32.mrb[0].mxu0
  %4155 = vmatprep.mubr.bf16.mxu0 %v3978
  %4156 = vmatmul.mubr.bf16.gmra.mrb[0].mxu0 %v3977
  %v4157 = vpop.f32.mrb[0].mxu0
  %v4158 = vadd.f32 0.0, %v4157
  %v4159 = vpop.f32.mrb[0].mxu0
  %v4160 = vpop.f32.mrb[0].mxu0
  %v4161 = vadd.f32 0.0, %v4160
  %v4162 = vpop.f32.mrb[0].mxu0
  %4163 = vmatprep.mubr.bf16.mxu0 %v3980
  %4164 = vmatmul.mubr.bf16.gmra.mrb[0].mxu0 %v3979
  %v4165 = vpop.f32.mrb[0].mxu0
  %v4166 = vadd.f32 0.0, %v4165
  %v4167 = vpop.f32.mrb[0].mxu0
  %v4168 = vpop.f32.mrb[0].mxu0
  %v4169 = vadd.f32 0.0, %v4168
  %v4170 = vpop.f32.mrb[0].mxu0
  %4171 = vmatprep.mubr.bf16.mxu0 %v3982
  %4172 = vmatmul.mubr.bf16.gmra.mrb[0].mxu0 %v3981
  %v4173 = vpop.f32.mrb[0].mxu0
  %v4174 = vadd.f32 0.0, %v4173
  %v4175 = vpop.f32.mrb[0].mxu0
  %v4176 = vpop.f32.mrb[0].mxu0
  %v4177 = vadd.f32 0.0, %v4176
  %v4178 = vpop.f32.mrb[0].mxu0
  %4179 = vmatprep.mubr.bf16.mxu0 %v3984
  %4180 = vmatmul.mubr.bf16.gmra.mrb[0].mxu0 %v3983
  %v4181 = vpop.f32.mrb[0].mxu0
  %v4182 = vadd.f32 0.0, %v4181
  %v4183 = vpop.f32.mrb[0].mxu0
  %v4184 = vpop.f32.mrb[0].mxu0
  %v4185 = vadd.f32 0.0, %v4184
  %v4186 = vpop.f32.mrb[0].mxu0
  %4187 = vmatprep.mubr.bf16.mxu0 %v3986
  %4188 = vmatmul.mubr.bf16.gmra.mrb[0].mxu0 %v3985
  %v4189 = vpop.f32.mrb[0].mxu0
  %v4190 = vadd.f32 0.0, %v4189
  %v4191 = vpop.f32.mrb[0].mxu0
  %v4192 = vpop.f32.mrb[0].mxu0
  %v4193 = vadd.f32 0.0, %v4192
  %v4194 = vpop.f32.mrb[0].mxu0
  %4195 = vdwg.mxu0
  %v4196 = vadd.f32 %v3634, %v4134
  %v4197 = vadd.f32 %v3635, %v4137
  %v4198 = vadd.f32 %v3636, %v4142
  %v4199 = vadd.f32 %v3637, %v4145
  %v4200 = vadd.f32 %v3638, %v4150
  %v4201 = vadd.f32 %v3639, %v4153
  %v4202 = vadd.f32 %v3640, %v4158
  %v4203 = vadd.f32 %v3641, %v4161
  %v4204 = vadd.f32 %v3642, %v4166
  %v4205 = vadd.f32 %v3643, %v4169
  %v4206 = vadd.f32 %v3644, %v4174
  %v4207 = vadd.f32 %v3645, %v4177
  %v4208 = vadd.f32 %v3646, %v4182
  %v4209 = vadd.f32 %v3647, %v4185
  %v4210 = vadd.f32 %v3648, %v4190
  %v4211 = vadd.f32 %v3649, %v4193
  %v4212 = vld [vmem:[%s3311] sm:$0xee]
  %v4213 = vld [vmem:[%s3311 + $0x10] sm:$0xee]
  %v4214 = vld [vmem:[%s3311 + $0x20] sm:$0xee]
  %v4215 = vld [vmem:[%s3311 + $0x30] sm:$0xee]
  %v4216 = vld [vmem:[%s3311 + $0x40] sm:$0xee]
  %v4217 = vld [vmem:[%s3311 + $0x50] sm:$0xee]
  %v4218 = vld [vmem:[%s3311 + $0x60] sm:$0xee]
  %v4219 = vld [vmem:[%s3311 + $0x70] sm:$0xee]
  %v4220 = vld [vmem:[%s3311 + $0xa0] sm:$0xee]
  %v4221 = vld [vmem:[%s3311 + $0xb0] sm:$0xee]
  %v4222 = vld [vmem:[%s3311 + $0xc0] sm:$0xee]
  %v4223 = vld [vmem:[%s3311 + $0xd0] sm:$0xee]
  %v4224 = vld [vmem:[%s3311 + $0xe0] sm:$0xee]
  %v4225 = vld [vmem:[%s3311 + $0xf0] sm:$0xee]
  %v4226 = vld [vmem:[%s3311 + $0x100] sm:$0xee]
  %v4227 = vld [vmem:[%s3311 + $0x110] sm:$0xee]
  %v4260 = vrot.slane %v4212, 5
  %v4261 = vrot.slane %v4260, 4
  %v4262 = vrot.slane %v3651, 5
  %v4263 = vsel %vm1622, %v4261, %v4262
  %v4264 = vrot.slane %v4213, 5
  %v4265 = vrot.slane %v4264, 4
  %v4266 = vrot.slane %v3653, 5
  %v4267 = vsel %vm1622, %v4265, %v4266
  %v4268 = vrot.slane %v4214, 5
  %v4269 = vrot.slane %v4268, 4
  %v4270 = vrot.slane %v3655, 5
  %v4271 = vsel %vm1622, %v4269, %v4270
  %v4272 = vrot.slane %v4215, 5
  %v4273 = vrot.slane %v4272, 4
  %v4274 = vrot.slane %v3657, 5
  %v4275 = vsel %vm1622, %v4273, %v4274
  %v4276 = vrot.slane %v4216, 5
  %v4277 = vrot.slane %v4276, 4
  %v4278 = vrot.slane %v3659, 5
  %v4279 = vsel %vm1622, %v4277, %v4278
  %v4280 = vrot.slane %v4217, 5
  %v4281 = vrot.slane %v4280, 4
  %v4282 = vrot.slane %v3661, 5
  %v4283 = vsel %vm1622, %v4281, %v4282
  %v4284 = vrot.slane %v4218, 5
  %v4285 = vrot.slane %v4284, 4
  %v4286 = vrot.slane %v3663, 5
  %v4287 = vsel %vm1622, %v4285, %v4286
  %v4288 = vrot.slane %v4219, 5
  %v4289 = vrot.slane %v4288, 4
  %v4290 = vrot.slane %v3665, 5
  %v4291 = vsel %vm1622, %v4289, %v4290
  %v4292 = vrot.slane %v4220, 5
  %v4293 = vrot.slane %v4292, 4
  %v4294 = vrot.slane %v3667, 5
  %v4295 = vsel %vm1622, %v4293, %v4294
  %v4296 = vrot.slane %v4221, 5
  %v4297 = vrot.slane %v4296, 4
  %v4298 = vrot.slane %v3669, 5
  %v4299 = vsel %vm1622, %v4297, %v4298
  %v4300 = vrot.slane %v4222, 5
  %v4301 = vrot.slane %v4300, 4
  %v4302 = vrot.slane %v3671, 5
  %v4303 = vsel %vm1622, %v4301, %v4302
  %v4304 = vrot.slane %v4223, 5
  %v4305 = vrot.slane %v4304, 4
  %v4306 = vrot.slane %v3673, 5
  %v4307 = vsel %vm1622, %v4305, %v4306
  %v4308 = vrot.slane %v4224, 5
  %v4309 = vrot.slane %v4308, 4
  %v4310 = vrot.slane %v3675, 5
  %v4311 = vsel %vm1622, %v4309, %v4310
  %v4312 = vrot.slane %v4225, 5
  %v4313 = vrot.slane %v4312, 4
  %v4314 = vrot.slane %v3677, 5
  %v4315 = vsel %vm1622, %v4313, %v4314
  %v4316 = vrot.slane %v4226, 5
  %v4317 = vrot.slane %v4316, 4
  %v4318 = vrot.slane %v3679, 5
  %v4319 = vsel %vm1622, %v4317, %v4318
  %v4320 = vrot.slane %v4227, 5
  %v4321 = vrot.slane %v4320, 4
  %v4322 = vrot.slane %v3681, 5
  %v4323 = vsel %vm1622, %v4321, %v4322
  %s4324 = scalar_lea.vmem %s1, 1024
  %v4325 = vld [vmem:[%s4324] sm:$0xf]
  %v4326 = vld [vmem:[%s4324 + $0x4] sm:$0xf]
  %v4327 = vld [vmem:[%s4324 + $0x8] sm:$0xf]
  %v4328 = vld [vmem:[%s4324 + $0xc] sm:$0xf]
  %v4329 = vld [vmem:[%s4324 + $0x10] sm:$0xf]
  %v4330 = vld [vmem:[%s4324 + $0x14] sm:$0xf]
  %v4331 = vld [vmem:[%s4324 + $0x18] sm:$0xf]
  %v4332 = vld [vmem:[%s4324 + $0x1c] sm:$0xf]
  %v4333 = vld [vmem:[%s4324 + $0x20] sm:$0xf]
  %v4334 = vld [vmem:[%s4324 + $0x24] sm:$0xf]
  %v4335 = vld [vmem:[%s4324 + $0x28] sm:$0xf]
  %v4336 = vld [vmem:[%s4324 + $0x2c] sm:$0xf]
  %v4337 = vld [vmem:[%s4324 + $0x30] sm:$0xf]
  %v4338 = vld [vmem:[%s4324 + $0x34] sm:$0xf]
  %v4339 = vld [vmem:[%s4324 + $0x38] sm:$0xf]
  %v4340 = vld [vmem:[%s4324 + $0x3c] sm:$0xf]
  %v4341 = vld [vmem:[%s4324 + $0x40] sm:$0xf]
  %v4342 = vld [vmem:[%s4324 + $0x44] sm:$0xf]
  %v4343 = vld [vmem:[%s4324 + $0x48] sm:$0xf]
  %v4344 = vld [vmem:[%s4324 + $0x4c] sm:$0xf]
  %v4345 = vld [vmem:[%s4324 + $0x50] sm:$0xf]
  %v4346 = vld [vmem:[%s4324 + $0x54] sm:$0xf]
  %v4347 = vld [vmem:[%s4324 + $0x58] sm:$0xf]
  %v4348 = vld [vmem:[%s4324 + $0x5c] sm:$0xf]
  %v4349 = vld [vmem:[%s4324 + $0x60] sm:$0xf]
  %v4350 = vld [vmem:[%s4324 + $0x64] sm:$0xf]
  %v4351 = vld [vmem:[%s4324 + $0x68] sm:$0xf]
  %v4352 = vld [vmem:[%s4324 + $0x6c] sm:$0xf]
  %v4353 = vld [vmem:[%s4324 + $0x70] sm:$0xf]
  %v4354 = vld [vmem:[%s4324 + $0x74] sm:$0xf]
  %v4355 = vld [vmem:[%s4324 + $0x78] sm:$0xf]
  %v4356 = vld [vmem:[%s4324 + $0x7c] sm:$0xf]
  %v4357 = vunpack.c.l.b16 %v4263
  %v4358 = vunpack.c.h.b16 %v4263
  %v4359 = vunpack.c.l.b16 %v4267
  %v4360 = vunpack.c.h.b16 %v4267
  %v4361 = vunpack.c.l.b16 %v4271
  %v4362 = vunpack.c.h.b16 %v4271
  %v4363 = vunpack.c.l.b16 %v4275
  %v4364 = vunpack.c.h.b16 %v4275
  %v4365 = vunpack.c.l.b16 %v4279
  %v4366 = vunpack.c.h.b16 %v4279
  %v4367 = vunpack.c.l.b16 %v4283
  %v4368 = vunpack.c.h.b16 %v4283
  %v4369 = vunpack.c.l.b16 %v4287
  %v4370 = vunpack.c.h.b16 %v4287
  %v4371 = vunpack.c.l.b16 %v4291
  %v4372 = vunpack.c.h.b16 %v4291
  %v4373 = vunpack.c.l.b16 %v4295
  %v4374 = vunpack.c.h.b16 %v4295
  %v4375 = vunpack.c.l.b16 %v4299
  %v4376 = vunpack.c.h.b16 %v4299
  %v4377 = vunpack.c.l.b16 %v4303
  %v4378 = vunpack.c.h.b16 %v4303
  %v4379 = vunpack.c.l.b16 %v4307
  %v4380 = vunpack.c.h.b16 %v4307
  %v4381 = vunpack.c.l.b16 %v4311
  %v4382 = vunpack.c.h.b16 %v4311
  %v4383 = vunpack.c.l.b16 %v4315
  %v4384 = vunpack.c.h.b16 %v4315
  %v4385 = vunpack.c.l.b16 %v4319
  %v4386 = vunpack.c.h.b16 %v4319
  %v4387 = vunpack.c.l.b16 %v4323
  %v4388 = vunpack.c.h.b16 %v4323
  %v4389 = vpack.c.b16 %v4359, %v4357
  %v4390 = vpack.c.b16 %v4360, %v4358
  %v4391 = vpack.c.b16 %v4363, %v4361
  %v4392 = vpack.c.b16 %v4364, %v4362
  %v4393 = vpack.c.b16 %v4367, %v4365
  %v4394 = vpack.c.b16 %v4368, %v4366
  %v4395 = vpack.c.b16 %v4371, %v4369
  %v4396 = vpack.c.b16 %v4372, %v4370
  %v4397 = vpack.c.b16 %v4375, %v4373
  %v4398 = vpack.c.b16 %v4376, %v4374
  %v4399 = vpack.c.b16 %v4379, %v4377
  %v4400 = vpack.c.b16 %v4380, %v4378
  %v4401 = vpack.c.b16 %v4383, %v4381
  %v4402 = vpack.c.b16 %v4384, %v4382
  %v4403 = vpack.c.b16 %v4387, %v4385
  %v4404 = vpack.c.b16 %v4388, %v4386
  %v4453 = vunpack.c.l.b16 %v4325
  %v4454 = vunpack.c.l.b16 %v4326
  %v4455 = vunpack.c.l.b16 %v4327
  %v4456 = vunpack.c.l.b16 %v4328
  %v4457 = vunpack.c.l.b16 %v4329
  %v4458 = vunpack.c.l.b16 %v4330
  %v4459 = vunpack.c.l.b16 %v4331
  %v4460 = vunpack.c.l.b16 %v4332
  %v4461 = vunpack.c.l.b16 %v4333
  %v4462 = vunpack.c.l.b16 %v4334
  %v4463 = vunpack.c.l.b16 %v4335
  %v4464 = vunpack.c.l.b16 %v4336
  %v4465 = vunpack.c.l.b16 %v4337
  %v4466 = vunpack.c.l.b16 %v4338
  %v4467 = vunpack.c.l.b16 %v4339
  %v4468 = vunpack.c.l.b16 %v4340
  %v4469 = vunpack.c.l.b16 %v4341
  %v4470 = vunpack.c.l.b16 %v4342
  %v4471 = vunpack.c.l.b16 %v4343
  %v4472 = vunpack.c.l.b16 %v4344
  %v4473 = vunpack.c.l.b16 %v4345
  %v4474 = vunpack.c.l.b16 %v4346
  %v4475 = vunpack.c.l.b16 %v4347
  %v4476 = vunpack.c.l.b16 %v4348
  %v4477 = vunpack.c.l.b16 %v4349
  %v4478 = vunpack.c.l.b16 %v4350
  %v4479 = vunpack.c.l.b16 %v4351
  %v4480 = vunpack.c.l.b16 %v4352
  %v4481 = vunpack.c.l.b16 %v4353
  %v4482 = vunpack.c.l.b16 %v4354
  %v4483 = vunpack.c.l.b16 %v4355
  %v4484 = vunpack.c.l.b16 %v4356
  %v4485 = vpack.c.b16 %v4454, %v4453
  %v4486 = vpack.c.b16 %v4456, %v4455
  %v4487 = vpack.c.b16 %v4458, %v4457
  %v4488 = vpack.c.b16 %v4460, %v4459
  %v4489 = vpack.c.b16 %v4462, %v4461
  %v4490 = vpack.c.b16 %v4464, %v4463
  %v4491 = vpack.c.b16 %v4466, %v4465
  %v4492 = vpack.c.b16 %v4468, %v4467
  %v4493 = vpack.c.b16 %v4470, %v4469
  %v4494 = vpack.c.b16 %v4472, %v4471
  %v4495 = vpack.c.b16 %v4474, %v4473
  %v4496 = vpack.c.b16 %v4476, %v4475
  %v4497 = vpack.c.b16 %v4478, %v4477
  %v4498 = vpack.c.b16 %v4480, %v4479
  %v4499 = vpack.c.b16 %v4482, %v4481
  %v4500 = vpack.c.b16 %v4484, %v4483
  %4517 = vmatprep.subr.bf16.mxu0 0
  %4518 = vmatpush1.bf16.msra.mxu0 %v4485
  %4519 = vmatprep.subr.bf16.mxu0 0
  %4520 = vmatpush1.bf16.msra.mxu0 %v4486
  %4521 = vmatprep.subr.bf16.mxu0 0
  %4522 = vmatpush1.bf16.msra.mxu0 %v4487
  %4523 = vmatprep.subr.bf16.mxu0 0
  %4524 = vmatpush1.bf16.msra.mxu0 %v4488
  %4525 = vmatprep.subr.bf16.mxu0 0
  %4526 = vmatpush1.bf16.msra.mxu0 %v4489
  %4527 = vmatprep.subr.bf16.mxu0 0
  %4528 = vmatpush1.bf16.msra.mxu0 %v4490
  %4529 = vmatprep.subr.bf16.mxu0 0
  %4530 = vmatpush1.bf16.msra.mxu0 %v4491
  %4531 = vmatprep.subr.bf16.mxu0 0
  %4532 = vmatpush1.bf16.msra.mxu0 %v4492
  %4533 = vmatprep.subr.bf16.mxu0 0
  %4534 = vmatpush1.bf16.msra.mxu0 %v4493
  %4535 = vmatprep.subr.bf16.mxu0 0
  %4536 = vmatpush1.bf16.msra.mxu0 %v4494
  %4537 = vmatprep.subr.bf16.mxu0 0
  %4538 = vmatpush1.bf16.msra.mxu0 %v4495
  %4539 = vmatprep.subr.bf16.mxu0 0
  %4540 = vmatpush1.bf16.msra.mxu0 %v4496
  %4541 = vmatprep.subr.bf16.mxu0 0
  %4542 = vmatpush1.bf16.msra.mxu0 %v4497
  %4543 = vmatprep.subr.bf16.mxu0 0
  %4544 = vmatpush1.bf16.msra.mxu0 %v4498
  %4545 = vmatprep.subr.bf16.mxu0 0
  %4546 = vmatpush1.bf16.msra.mxu0 %v4499
  %4547 = vmatprep.subr.bf16.mxu0 0
  %4548 = vmatpush1.bf16.msra.mxu0 %v4500
  %4549 = vmatprep.mubr.bf16.mxu0 %v4390
  %4550 = vmatmul.mubr.bf16.gmra.mrb[0].mxu0 %v4389
  %v4551 = vpop.f32.mrb[0].mxu0
  %v4552 = vadd.f32 0.0, %v4551
  %v4553 = vpop.f32.mrb[0].mxu0
  %v4554 = vpop.f32.mrb[0].mxu0
  %v4555 = vadd.f32 0.0, %v4554
  %v4556 = vpop.f32.mrb[0].mxu0
  %4557 = vmatprep.mubr.bf16.mxu0 %v4392
  %4558 = vmatmul.mubr.bf16.gmra.mrb[0].mxu0 %v4391
  %v4559 = vpop.f32.mrb[0].mxu0
  %v4560 = vadd.f32 0.0, %v4559
  %v4561 = vpop.f32.mrb[0].mxu0
  %v4562 = vpop.f32.mrb[0].mxu0
  %v4563 = vadd.f32 0.0, %v4562
  %v4564 = vpop.f32.mrb[0].mxu0
  %4565 = vmatprep.mubr.bf16.mxu0 %v4394
  %4566 = vmatmul.mubr.bf16.gmra.mrb[0].mxu0 %v4393
  %v4567 = vpop.f32.mrb[0].mxu0
  %v4568 = vadd.f32 0.0, %v4567
  %v4569 = vpop.f32.mrb[0].mxu0
  %v4570 = vpop.f32.mrb[0].mxu0
  %v4571 = vadd.f32 0.0, %v4570
  %v4572 = vpop.f32.mrb[0].mxu0
  %4573 = vmatprep.mubr.bf16.mxu0 %v4396
  %4574 = vmatmul.mubr.bf16.gmra.mrb[0].mxu0 %v4395
  %v4575 = vpop.f32.mrb[0].mxu0
  %v4576 = vadd.f32 0.0, %v4575
  %v4577 = vpop.f32.mrb[0].mxu0
  %v4578 = vpop.f32.mrb[0].mxu0
  %v4579 = vadd.f32 0.0, %v4578
  %v4580 = vpop.f32.mrb[0].mxu0
  %4581 = vmatprep.mubr.bf16.mxu0 %v4398
  %4582 = vmatmul.mubr.bf16.gmra.mrb[0].mxu0 %v4397
  %v4583 = vpop.f32.mrb[0].mxu0
  %v4584 = vadd.f32 0.0, %v4583
  %v4585 = vpop.f32.mrb[0].mxu0
  %v4586 = vpop.f32.mrb[0].mxu0
  %v4587 = vadd.f32 0.0, %v4586
  %v4588 = vpop.f32.mrb[0].mxu0
  %4589 = vmatprep.mubr.bf16.mxu0 %v4400
  %4590 = vmatmul.mubr.bf16.gmra.mrb[0].mxu0 %v4399
  %v4591 = vpop.f32.mrb[0].mxu0
  %v4592 = vadd.f32 0.0, %v4591
  %v4593 = vpop.f32.mrb[0].mxu0
  %v4594 = vpop.f32.mrb[0].mxu0
  %v4595 = vadd.f32 0.0, %v4594
  %v4596 = vpop.f32.mrb[0].mxu0
  %4597 = vmatprep.mubr.bf16.mxu0 %v4402
  %4598 = vmatmul.mubr.bf16.gmra.mrb[0].mxu0 %v4401
  %v4599 = vpop.f32.mrb[0].mxu0
  %v4600 = vadd.f32 0.0, %v4599
  %v4601 = vpop.f32.mrb[0].mxu0
  %v4602 = vpop.f32.mrb[0].mxu0
  %v4603 = vadd.f32 0.0, %v4602
  %v4604 = vpop.f32.mrb[0].mxu0
  %4605 = vmatprep.mubr.bf16.mxu0 %v4404
  %4606 = vmatmul.mubr.bf16.gmra.mrb[0].mxu0 %v4403
  %v4607 = vpop.f32.mrb[0].mxu0
  %v4608 = vadd.f32 0.0, %v4607
  %v4609 = vpop.f32.mrb[0].mxu0
  %v4610 = vpop.f32.mrb[0].mxu0
  %v4611 = vadd.f32 0.0, %v4610
  %v4612 = vpop.f32.mrb[0].mxu0
  %4613 = vdwg.mxu0
  %v4614 = vadd.f32 %v4196, %v4552
  %v4615 = vadd.f32 %v4197, %v4555
  %v4616 = vadd.f32 %v4198, %v4560
  %v4617 = vadd.f32 %v4199, %v4563
  %v4618 = vadd.f32 %v4200, %v4568
  %v4619 = vadd.f32 %v4201, %v4571
  %v4620 = vadd.f32 %v4202, %v4576
  %v4621 = vadd.f32 %v4203, %v4579
  %v4622 = vadd.f32 %v4204, %v4584
  %v4623 = vadd.f32 %v4205, %v4587
  %v4624 = vadd.f32 %v4206, %v4592
  %v4625 = vadd.f32 %v4207, %v4595
  %v4626 = vadd.f32 %v4208, %v4600
  %v4627 = vadd.f32 %v4209, %v4603
  %v4628 = vadd.f32 %v4210, %v4608
  %v4629 = vadd.f32 %v4211, %v4611
  %v4630 = vld [vmem:[%s2] sm:$0x1]
  %v4632 = vlaneseq
  %v4633 = vshrl.u32 %v4632, 7
  %v4634 = vsub.s32 0, %v4633
  %v4635 = vrot.slane %v4630, %v4634
  %v4637 = vmul.f32 %v4614, %v4635
  %v4638 = vmul.f32 %v4615, %v4635
  %v4639 = vmul.f32 %v4616, %v4635
  %v4640 = vmul.f32 %v4617, %v4635
  %v4641 = vmul.f32 %v4618, %v4635
  %v4642 = vmul.f32 %v4619, %v4635
  %v4643 = vmul.f32 %v4620, %v4635
  %v4644 = vmul.f32 %v4621, %v4635
  %v4645 = vmul.f32 %v4622, %v4635
  %v4646 = vmul.f32 %v4623, %v4635
  %v4647 = vmul.f32 %v4624, %v4635
  %v4648 = vmul.f32 %v4625, %v4635
  %v4649 = vmul.f32 %v4626, %v4635
  %v4650 = vmul.f32 %v4627, %v4635
  %v4651 = vmul.f32 %v4628, %v4635
  %v4652 = vmul.f32 %v4629, %v4635
  %v4653 = vld [vmem:[%s3] sm:$0x1]
  %v4655 = vlaneseq
  %v4656 = vshrl.u32 %v4655, 7
  %v4657 = vsub.s32 0, %v4656
  %v4658 = vrot.slane %v4653, %v4657
  %v4660 = vadd.f32 %v4637, %v4658
  %v4661 = vadd.f32 %v4638, %v4658
  %v4662 = vadd.f32 %v4639, %v4658
  %v4663 = vadd.f32 %v4640, %v4658
  %v4664 = vadd.f32 %v4641, %v4658
  %v4665 = vadd.f32 %v4642, %v4658
  %v4666 = vadd.f32 %v4643, %v4658
  %v4667 = vadd.f32 %v4644, %v4658
  %v4668 = vadd.f32 %v4645, %v4658
  %v4669 = vadd.f32 %v4646, %v4658
  %v4670 = vadd.f32 %v4647, %v4658
  %v4671 = vadd.f32 %v4648, %v4658
  %v4672 = vadd.f32 %v4649, %v4658
  %v4673 = vadd.f32 %v4650, %v4658
  %v4674 = vadd.f32 %v4651, %v4658
  %v4675 = vadd.f32 %v4652, %v4658
  %v4676 = vmax.f32 %v4660, 0.0
  %v4677 = vmax.f32 %v4661, 0.0
  %v4678 = vmax.f32 %v4662, 0.0
  %v4679 = vmax.f32 %v4663, 0.0
  %v4680 = vmax.f32 %v4664, 0.0
  %v4681 = vmax.f32 %v4665, 0.0
  %v4682 = vmax.f32 %v4666, 0.0
  %v4683 = vmax.f32 %v4667, 0.0
  %v4684 = vmax.f32 %v4668, 0.0
  %v4685 = vmax.f32 %v4669, 0.0
  %v4686 = vmax.f32 %v4670, 0.0
  %v4687 = vmax.f32 %v4671, 0.0
  %v4688 = vmax.f32 %v4672, 0.0
  %v4689 = vmax.f32 %v4673, 0.0
  %v4690 = vmax.f32 %v4674, 0.0
  %v4691 = vmax.f32 %v4675, 0.0
  %v4692 = vpack.c.bf16 %v4676, %v4676
  %v4693 = vpack.c.bf16 %v4677, %v4677
  %v4694 = vpack.c.bf16 %v4678, %v4678
  %v4695 = vpack.c.bf16 %v4679, %v4679
  %v4696 = vpack.c.bf16 %v4680, %v4680
  %v4697 = vpack.c.bf16 %v4681, %v4681
  %v4698 = vpack.c.bf16 %v4682, %v4682
  %v4699 = vpack.c.bf16 %v4683, %v4683
  %v4700 = vpack.c.bf16 %v4684, %v4684
  %v4701 = vpack.c.bf16 %v4685, %v4685
  %v4702 = vpack.c.bf16 %v4686, %v4686
  %v4703 = vpack.c.bf16 %v4687, %v4687
  %v4704 = vpack.c.bf16 %v4688, %v4688
  %v4705 = vpack.c.bf16 %v4689, %v4689
  %v4706 = vpack.c.bf16 %v4690, %v4690
  %v4707 = vpack.c.bf16 %v4691, %v4691
  %v4724 = vunpack.c.l.b16 %v4692
  %v4725 = vunpack.c.l.b16 %v4693
  %v4726 = vunpack.c.l.b16 %v4694
  %v4727 = vunpack.c.l.b16 %v4695
  %v4728 = vunpack.c.l.b16 %v4696
  %v4729 = vunpack.c.l.b16 %v4697
  %v4730 = vunpack.c.l.b16 %v4698
  %v4731 = vunpack.c.l.b16 %v4699
  %v4732 = vunpack.c.l.b16 %v4700
  %v4733 = vunpack.c.l.b16 %v4701
  %v4734 = vunpack.c.l.b16 %v4702
  %v4735 = vunpack.c.l.b16 %v4703
  %v4736 = vunpack.c.l.b16 %v4704
  %v4737 = vunpack.c.l.b16 %v4705
  %v4738 = vunpack.c.l.b16 %v4706
  %v4739 = vunpack.c.l.b16 %v4707
  %v4740 = vpack.c.b16 %v4724, %v4724
  %v4741 = vpack.c.b16 %v4725, %v4725
  %v4742 = vpack.c.b16 %v4726, %v4726
  %v4743 = vpack.c.b16 %v4727, %v4727
  %v4744 = vpack.c.b16 %v4728, %v4728
  %v4745 = vpack.c.b16 %v4729, %v4729
  %v4746 = vpack.c.b16 %v4730, %v4730
  %v4747 = vpack.c.b16 %v4731, %v4731
  %v4748 = vpack.c.b16 %v4732, %v4732
  %v4749 = vpack.c.b16 %v4733, %v4733
  %v4750 = vpack.c.b16 %v4734, %v4734
  %v4751 = vpack.c.b16 %v4735, %v4735
  %v4752 = vpack.c.b16 %v4736, %v4736
  %v4753 = vpack.c.b16 %v4737, %v4737
  %v4754 = vpack.c.b16 %v4738, %v4738
  %v4755 = vpack.c.b16 %v4739, %v4739
  %v4757 = vshrl.u32 %v4740, 16
  %v4759 = vrot.slane %v4757, 7
  %v4760 = vshll.u32 %v4740, 16
  %v4762 = vor.u32 %v4759, %v4760
  %v4763 = vrot.slane %v4759, 4
  %v4765 = vshrl.u32 %v4741, 16
  %v4767 = vrot.slane %v4765, 7
  %v4768 = vshll.u32 %v4741, 16
  %v4770 = vor.u32 %v4767, %v4768
  %v4771 = vrot.slane %v4767, 4
  %v4773 = vshrl.u32 %v4742, 16
  %v4775 = vrot.slane %v4773, 7
  %v4776 = vshll.u32 %v4742, 16
  %v4778 = vor.u32 %v4775, %v4776
  %v4779 = vrot.slane %v4775, 4
  %v4781 = vshrl.u32 %v4743, 16
  %v4783 = vrot.slane %v4781, 7
  %v4784 = vshll.u32 %v4743, 16
  %v4786 = vor.u32 %v4783, %v4784
  %v4787 = vrot.slane %v4783, 4
  %v4789 = vshrl.u32 %v4744, 16
  %v4791 = vrot.slane %v4789, 7
  %v4792 = vshll.u32 %v4744, 16
  %v4794 = vor.u32 %v4791, %v4792
  %v4795 = vrot.slane %v4791, 4
  %v4797 = vshrl.u32 %v4745, 16
  %v4799 = vrot.slane %v4797, 7
  %v4800 = vshll.u32 %v4745, 16
  %v4802 = vor.u32 %v4799, %v4800
  %v4803 = vrot.slane %v4799, 4
  %v4805 = vshrl.u32 %v4746, 16
  %v4807 = vrot.slane %v4805, 7
  %v4808 = vshll.u32 %v4746, 16
  %v4810 = vor.u32 %v4807, %v4808
  %v4811 = vrot.slane %v4807, 4
  %v4813 = vshrl.u32 %v4747, 16
  %v4815 = vrot.slane %v4813, 7
  %v4816 = vshll.u32 %v4747, 16
  %v4818 = vor.u32 %v4815, %v4816
  %v4819 = vrot.slane %v4815, 4
  %v4821 = vshrl.u32 %v4748, 16
  %v4823 = vrot.slane %v4821, 7
  %v4824 = vshll.u32 %v4748, 16
  %v4826 = vor.u32 %v4823, %v4824
  %v4827 = vrot.slane %v4823, 4
  %v4829 = vshrl.u32 %v4749, 16
  %v4831 = vrot.slane %v4829, 7
  %v4832 = vshll.u32 %v4749, 16
  %v4834 = vor.u32 %v4831, %v4832
  %v4835 = vrot.slane %v4831, 4
  %v4837 = vshrl.u32 %v4750, 16
  %v4839 = vrot.slane %v4837, 7
  %v4840 = vshll.u32 %v4750, 16
  %v4842 = vor.u32 %v4839, %v4840
  %v4843 = vrot.slane %v4839, 4
  %v4845 = vshrl.u32 %v4751, 16
  %v4847 = vrot.slane %v4845, 7
  %v4848 = vshll.u32 %v4751, 16
  %v4850 = vor.u32 %v4847, %v4848
  %v4851 = vrot.slane %v4847, 4
  %v4853 = vshrl.u32 %v4752, 16
  %v4855 = vrot.slane %v4853, 7
  %v4856 = vshll.u32 %v4752, 16
  %v4858 = vor.u32 %v4855, %v4856
  %v4859 = vrot.slane %v4855, 4
  %v4861 = vshrl.u32 %v4753, 16
  %v4863 = vrot.slane %v4861, 7
  %v4864 = vshll.u32 %v4753, 16
  %v4866 = vor.u32 %v4863, %v4864
  %v4867 = vrot.slane %v4863, 4
  %v4869 = vshrl.u32 %v4754, 16
  %v4871 = vrot.slane %v4869, 7
  %v4872 = vshll.u32 %v4754, 16
  %v4874 = vor.u32 %v4871, %v4872
  %v4875 = vrot.slane %v4871, 4
  %v4877 = vshrl.u32 %v4755, 16
  %v4879 = vrot.slane %v4877, 7
  %v4880 = vshll.u32 %v4755, 16
  %v4882 = vor.u32 %v4879, %v4880
  %v4883 = vrot.slane %v4879, 4
  %s4916 = scalar_lea.vmem [#allocation3], 8
  %v4917 = vld [vmem:[%s4916] sm:$0xf]
  %v4918 = vsel %vm618, %v4762, %v4917
  %4919 = vst [vmem:[%s4916] sm:$0xf] %v4918
  %v4920 = vld [vmem:[%s4916 + $0x4] sm:$0x1]
  %v4921 = vsel %vm47, %v4763, %v4920
  %4922 = vst [vmem:[%s4916 + $0x4] sm:$0x1] %v4921
  %v4923 = vld [vmem:[%s4916 + $0x8] sm:$0xf]
  %v4924 = vsel %vm618, %v4770, %v4923
  %4925 = vst [vmem:[%s4916 + $0x8] sm:$0xf] %v4924
  %v4926 = vld [vmem:[%s4916 + $0xc] sm:$0x1]
  %v4927 = vsel %vm47, %v4771, %v4926
  %4928 = vst [vmem:[%s4916 + $0xc] sm:$0x1] %v4927
  %v4929 = vld [vmem:[%s4916 + $0x10] sm:$0xf]
  %v4930 = vsel %vm618, %v4778, %v4929
  %4931 = vst [vmem:[%s4916 + $0x10] sm:$0xf] %v4930
  %v4932 = vld [vmem:[%s4916 + $0x14] sm:$0x1]
  %v4933 = vsel %vm47, %v4779, %v4932
  %4934 = vst [vmem:[%s4916 + $0x14] sm:$0x1] %v4933
  %v4935 = vld [vmem:[%s4916 + $0x18] sm:$0xf]
  %v4936 = vsel %vm618, %v4786, %v4935
  %4937 = vst [vmem:[%s4916 + $0x18] sm:$0xf] %v4936
  %v4938 = vld [vmem:[%s4916 + $0x1c] sm:$0x1]
  %v4939 = vsel %vm47, %v4787, %v4938
  %4940 = vst [vmem:[%s4916 + $0x1c] sm:$0x1] %v4939
  %v4941 = vld [vmem:[%s4916 + $0x20] sm:$0xf]
  %v4942 = vsel %vm618, %v4794, %v4941
  %4943 = vst [vmem:[%s4916 + $0x20] sm:$0xf] %v4942
  %v4944 = vld [vmem:[%s4916 + $0x24] sm:$0x1]
  %v4945 = vsel %vm47, %v4795, %v4944
  %4946 = vst [vmem:[%s4916 + $0x24] sm:$0x1] %v4945
  %v4947 = vld [vmem:[%s4916 + $0x28] sm:$0xf]
  %v4948 = vsel %vm618, %v4802, %v4947
  %4949 = vst [vmem:[%s4916 + $0x28] sm:$0xf] %v4948
  %v4950 = vld [vmem:[%s4916 + $0x2c] sm:$0x1]
  %v4951 = vsel %vm47, %v4803, %v4950
  %4952 = vst [vmem:[%s4916 + $0x2c] sm:$0x1] %v4951
  %v4953 = vld [vmem:[%s4916 + $0x30] sm:$0xf]
  %v4954 = vsel %vm618, %v4810, %v4953
  %4955 = vst [vmem:[%s4916 + $0x30] sm:$0xf] %v4954
  %v4956 = vld [vmem:[%s4916 + $0x34] sm:$0x1]
  %v4957 = vsel %vm47, %v4811, %v4956
  %4958 = vst [vmem:[%s4916 + $0x34] sm:$0x1] %v4957
  %v4959 = vld [vmem:[%s4916 + $0x38] sm:$0xf]
  %v4960 = vsel %vm618, %v4818, %v4959
  %4961 = vst [vmem:[%s4916 + $0x38] sm:$0xf] %v4960
  %v4962 = vld [vmem:[%s4916 + $0x3c] sm:$0x1]
  %v4963 = vsel %vm47, %v4819, %v4962
  %4964 = vst [vmem:[%s4916 + $0x3c] sm:$0x1] %v4963
  %v4965 = vld [vmem:[%s4916 + $0x50] sm:$0xf]
  %v4966 = vsel %vm618, %v4826, %v4965
  %4967 = vst [vmem:[%s4916 + $0x50] sm:$0xf] %v4966
  %v4968 = vld [vmem:[%s4916 + $0x54] sm:$0x1]
  %v4969 = vsel %vm47, %v4827, %v4968
  %4970 = vst [vmem:[%s4916 + $0x54] sm:$0x1] %v4969
  %v4971 = vld [vmem:[%s4916 + $0x58] sm:$0xf]
  %v4972 = vsel %vm618, %v4834, %v4971
  %4973 = vst [vmem:[%s4916 + $0x58] sm:$0xf] %v4972
  %v4974 = vld [vmem:[%s4916 + $0x5c] sm:$0x1]
  %v4975 = vsel %vm47, %v4835, %v4974
  %4976 = vst [vmem:[%s4916 + $0x5c] sm:$0x1] %v4975
  %v4977 = vld [vmem:[%s4916 + $0x60] sm:$0xf]
  %v4978 = vsel %vm618, %v4842, %v4977
  %4979 = vst [vmem:[%s4916 + $0x60] sm:$0xf] %v4978
  %v4980 = vld [vmem:[%s4916 + $0x64] sm:$0x1]
  %v4981 = vsel %vm47, %v4843, %v4980
  %4982 = vst [vmem:[%s4916 + $0x64] sm:$0x1] %v4981
  %v4983 = vld [vmem:[%s4916 + $0x68] sm:$0xf]
  %v4984 = vsel %vm618, %v4850, %v4983
  %4985 = vst [vmem:[%s4916 + $0x68] sm:$0xf] %v4984
  %v4986 = vld [vmem:[%s4916 + $0x6c] sm:$0x1]
  %v4987 = vsel %vm47, %v4851, %v4986
  %4988 = vst [vmem:[%s4916 + $0x6c] sm:$0x1] %v4987
  %v4989 = vld [vmem:[%s4916 + $0x70] sm:$0xf]
  %v4990 = vsel %vm618, %v4858, %v4989
  %4991 = vst [vmem:[%s4916 + $0x70] sm:$0xf] %v4990
  %v4992 = vld [vmem:[%s4916 + $0x74] sm:$0x1]
  %v4993 = vsel %vm47, %v4859, %v4992
  %4994 = vst [vmem:[%s4916 + $0x74] sm:$0x1] %v4993
  %v4995 = vld [vmem:[%s4916 + $0x78] sm:$0xf]
  %v4996 = vsel %vm618, %v4866, %v4995
  %4997 = vst [vmem:[%s4916 + $0x78] sm:$0xf] %v4996
  %v4998 = vld [vmem:[%s4916 + $0x7c] sm:$0x1]
  %v4999 = vsel %vm47, %v4867, %v4998
  %5000 = vst [vmem:[%s4916 + $0x7c] sm:$0x1] %v4999
  %v5001 = vld [vmem:[%s4916 + $0x80] sm:$0xf]
  %v5002 = vsel %vm618, %v4874, %v5001
  %5003 = vst [vmem:[%s4916 + $0x80] sm:$0xf] %v5002
  %v5004 = vld [vmem:[%s4916 + $0x84] sm:$0x1]
  %v5005 = vsel %vm47, %v4875, %v5004
  %5006 = vst [vmem:[%s4916 + $0x84] sm:$0x1] %v5005
  %v5007 = vld [vmem:[%s4916 + $0x88] sm:$0xf]
  %v5008 = vsel %vm618, %v4882, %v5007
  %5009 = vst [vmem:[%s4916 + $0x88] sm:$0xf] %v5008
  %v5010 = vld [vmem:[%s4916 + $0x8c] sm:$0x1]
  %v5011 = vsel %vm47, %v4883, %v5010
  %5012 = vst [vmem:[%s4916 + $0x8c] sm:$0x1] %v5011
  %v5013 = vld [vmem:[#allocation3] sm:$0xf]
  %v5014 = vld [vmem:[#allocation3 + $0x8] sm:$0xf]
  %v5015 = vld [vmem:[#allocation3 + $0x10] sm:$0xf]
  %v5016 = vld [vmem:[#allocation3 + $0x18] sm:$0xf]
  %v5017 = vld [vmem:[#allocation3 + $0x20] sm:$0xf]
  %v5018 = vld [vmem:[#allocation3 + $0x28] sm:$0xf]
  %v5019 = vld [vmem:[#allocation3 + $0x30] sm:$0xf]
  %v5020 = vld [vmem:[#allocation3 + $0x38] sm:$0xf]
  %v5021 = vld [vmem:[#allocation3 + $0x50] sm:$0xf]
  %v5022 = vld [vmem:[#allocation3 + $0x58] sm:$0xf]
  %v5023 = vld [vmem:[#allocation3 + $0x60] sm:$0xf]
  %v5024 = vld [vmem:[#allocation3 + $0x68] sm:$0xf]
  %v5025 = vld [vmem:[#allocation3 + $0x70] sm:$0xf]
  %v5026 = vld [vmem:[#allocation3 + $0x78] sm:$0xf]
  %v5027 = vld [vmem:[#allocation3 + $0x80] sm:$0xf]
  %v5028 = vld [vmem:[#allocation3 + $0x88] sm:$0xf]
  %v5029 = vld [vmem:[%s4] sm:$0xf]
  %v5030 = vld [vmem:[%s4 + $0x4] sm:$0xf]
  %v5031 = vld [vmem:[%s4 + $0x8] sm:$0xf]
  %v5032 = vld [vmem:[%s4 + $0xc] sm:$0xf]
  %v5033 = vld [vmem:[%s4 + $0x10] sm:$0xf]
  %v5034 = vld [vmem:[%s4 + $0x14] sm:$0xf]
  %v5035 = vld [vmem:[%s4 + $0x18] sm:$0xf]
  %v5036 = vld [vmem:[%s4 + $0x1c] sm:$0xf]
  %v5037 = vld [vmem:[%s4 + $0x20] sm:$0xf]
  %v5038 = vld [vmem:[%s4 + $0x24] sm:$0xf]
  %v5039 = vld [vmem:[%s4 + $0x28] sm:$0xf]
  %v5040 = vld [vmem:[%s4 + $0x2c] sm:$0xf]
  %v5041 = vld [vmem:[%s4 + $0x30] sm:$0xf]
  %v5042 = vld [vmem:[%s4 + $0x34] sm:$0xf]
  %v5043 = vld [vmem:[%s4 + $0x38] sm:$0xf]
  %v5044 = vld [vmem:[%s4 + $0x3c] sm:$0xf]
  %v5045 = vld [vmem:[#allocation3 + $0x4] sm:$0x1]
  %v5046 = vld [vmem:[#allocation3 + $0xc] sm:$0x1]
  %v5047 = vld [vmem:[#allocation3 + $0x14] sm:$0x1]
  %v5048 = vld [vmem:[#allocation3 + $0x1c] sm:$0x1]
  %v5049 = vld [vmem:[#allocation3 + $0x24] sm:$0x1]
  %v5050 = vld [vmem:[#allocation3 + $0x2c] sm:$0x1]
  %v5051 = vld [vmem:[#allocation3 + $0x34] sm:$0x1]
  %v5052 = vld [vmem:[#allocation3 + $0x3c] sm:$0x1]
  %v5053 = vld [vmem:[#allocation3 + $0x54] sm:$0x1]
  %v5054 = vld [vmem:[#allocation3 + $0x5c] sm:$0x1]
  %v5055 = vld [vmem:[#allocation3 + $0x64] sm:$0x1]
  %v5056 = vld [vmem:[#allocation3 + $0x6c] sm:$0x1]
  %v5057 = vld [vmem:[#allocation3 + $0x74] sm:$0x1]
  %v5058 = vld [vmem:[#allocation3 + $0x7c] sm:$0x1]
  %v5059 = vld [vmem:[#allocation3 + $0x84] sm:$0x1]
  %v5060 = vld [vmem:[#allocation3 + $0x8c] sm:$0x1]
  %v5062 = vshrl.u32 %v5013, 16
  %v5064 = vrot.slane %v5062, 4
  %v5065 = vshll.u32 %v5013, 16
  %v5067 = vrot.slane %v5065, 5
  %v5068 = vor.u32 %v5064, %v5067
  %v5069 = vrot.slane %v5068, 4
  %v5071 = vshll.u32 %v5045, 16
  %v5073 = vrot.slane %v5071, 5
  %v5074 = vsel %vm784, %v5069, %v5073
  %v5076 = vshrl.u32 %v5014, 16
  %v5078 = vrot.slane %v5076, 4
  %v5079 = vshll.u32 %v5014, 16
  %v5081 = vrot.slane %v5079, 5
  %v5082 = vor.u32 %v5078, %v5081
  %v5083 = vrot.slane %v5082, 4
  %v5085 = vshll.u32 %v5046, 16
  %v5087 = vrot.slane %v5085, 5
  %v5088 = vsel %vm784, %v5083, %v5087
  %v5090 = vshrl.u32 %v5015, 16
  %v5092 = vrot.slane %v5090, 4
  %v5093 = vshll.u32 %v5015, 16
  %v5095 = vrot.slane %v5093, 5
  %v5096 = vor.u32 %v5092, %v5095
  %v5097 = vrot.slane %v5096, 4
  %v5099 = vshll.u32 %v5047, 16
  %v5101 = vrot.slane %v5099, 5
  %v5102 = vsel %vm784, %v5097, %v5101
  %v5104 = vshrl.u32 %v5016, 16
  %v5106 = vrot.slane %v5104, 4
  %v5107 = vshll.u32 %v5016, 16
  %v5109 = vrot.slane %v5107, 5
  %v5110 = vor.u32 %v5106, %v5109
  %v5111 = vrot.slane %v5110, 4
  %v5113 = vshll.u32 %v5048, 16
  %v5115 = vrot.slane %v5113, 5
  %v5116 = vsel %vm784, %v5111, %v5115
  %v5118 = vshrl.u32 %v5017, 16
  %v5120 = vrot.slane %v5118, 4
  %v5121 = vshll.u32 %v5017, 16
  %v5123 = vrot.slane %v5121, 5
  %v5124 = vor.u32 %v5120, %v5123
  %v5125 = vrot.slane %v5124, 4
  %v5127 = vshll.u32 %v5049, 16
  %v5129 = vrot.slane %v5127, 5
  %v5130 = vsel %vm784, %v5125, %v5129
  %v5132 = vshrl.u32 %v5018, 16
  %v5134 = vrot.slane %v5132, 4
  %v5135 = vshll.u32 %v5018, 16
  %v5137 = vrot.slane %v5135, 5
  %v5138 = vor.u32 %v5134, %v5137
  %v5139 = vrot.slane %v5138, 4
  %v5141 = vshll.u32 %v5050, 16
  %v5143 = vrot.slane %v5141, 5
  %v5144 = vsel %vm784, %v5139, %v5143
  %v5146 = vshrl.u32 %v5019, 16
  %v5148 = vrot.slane %v5146, 4
  %v5149 = vshll.u32 %v5019, 16
  %v5151 = vrot.slane %v5149, 5
  %v5152 = vor.u32 %v5148, %v5151
  %v5153 = vrot.slane %v5152, 4
  %v5155 = vshll.u32 %v5051, 16
  %v5157 = vrot.slane %v5155, 5
  %v5158 = vsel %vm784, %v5153, %v5157
  %v5160 = vshrl.u32 %v5020, 16
  %v5162 = vrot.slane %v5160, 4
  %v5163 = vshll.u32 %v5020, 16
  %v5165 = vrot.slane %v5163, 5
  %v5166 = vor.u32 %v5162, %v5165
  %v5167 = vrot.slane %v5166, 4
  %v5169 = vshll.u32 %v5052, 16
  %v5171 = vrot.slane %v5169, 5
  %v5172 = vsel %vm784, %v5167, %v5171
  %v5174 = vshrl.u32 %v5021, 16
  %v5176 = vrot.slane %v5174, 4
  %v5177 = vshll.u32 %v5021, 16
  %v5179 = vrot.slane %v5177, 5
  %v5180 = vor.u32 %v5176, %v5179
  %v5181 = vrot.slane %v5180, 4
  %v5183 = vshll.u32 %v5053, 16
  %v5185 = vrot.slane %v5183, 5
  %v5186 = vsel %vm784, %v5181, %v5185
  %v5188 = vshrl.u32 %v5022, 16
  %v5190 = vrot.slane %v5188, 4
  %v5191 = vshll.u32 %v5022, 16
  %v5193 = vrot.slane %v5191, 5
  %v5194 = vor.u32 %v5190, %v5193
  %v5195 = vrot.slane %v5194, 4
  %v5197 = vshll.u32 %v5054, 16
  %v5199 = vrot.slane %v5197, 5
  %v5200 = vsel %vm784, %v5195, %v5199
  %v5202 = vshrl.u32 %v5023, 16
  %v5204 = vrot.slane %v5202, 4
  %v5205 = vshll.u32 %v5023, 16
  %v5207 = vrot.slane %v5205, 5
  %v5208 = vor.u32 %v5204, %v5207
  %v5209 = vrot.slane %v5208, 4
  %v5211 = vshll.u32 %v5055, 16
  %v5213 = vrot.slane %v5211, 5
  %v5214 = vsel %vm784, %v5209, %v5213
  %v5216 = vshrl.u32 %v5024, 16
  %v5218 = vrot.slane %v5216, 4
  %v5219 = vshll.u32 %v5024, 16
  %v5221 = vrot.slane %v5219, 5
  %v5222 = vor.u32 %v5218, %v5221
  %v5223 = vrot.slane %v5222, 4
  %v5225 = vshll.u32 %v5056, 16
  %v5227 = vrot.slane %v5225, 5
  %v5228 = vsel %vm784, %v5223, %v5227
  %v5230 = vshrl.u32 %v5025, 16
  %v5232 = vrot.slane %v5230, 4
  %v5233 = vshll.u32 %v5025, 16
  %v5235 = vrot.slane %v5233, 5
  %v5236 = vor.u32 %v5232, %v5235
  %v5237 = vrot.slane %v5236, 4
  %v5239 = vshll.u32 %v5057, 16
  %v5241 = vrot.slane %v5239, 5
  %v5242 = vsel %vm784, %v5237, %v5241
  %v5244 = vshrl.u32 %v5026, 16
  %v5246 = vrot.slane %v5244, 4
  %v5247 = vshll.u32 %v5026, 16
  %v5249 = vrot.slane %v5247, 5
  %v5250 = vor.u32 %v5246, %v5249
  %v5251 = vrot.slane %v5250, 4
  %v5253 = vshll.u32 %v5058, 16
  %v5255 = vrot.slane %v5253, 5
  %v5256 = vsel %vm784, %v5251, %v5255
  %v5258 = vshrl.u32 %v5027, 16
  %v5260 = vrot.slane %v5258, 4
  %v5261 = vshll.u32 %v5027, 16
  %v5263 = vrot.slane %v5261, 5
  %v5264 = vor.u32 %v5260, %v5263
  %v5265 = vrot.slane %v5264, 4
  %v5267 = vshll.u32 %v5059, 16
  %v5269 = vrot.slane %v5267, 5
  %v5270 = vsel %vm784, %v5265, %v5269
  %v5272 = vshrl.u32 %v5028, 16
  %v5274 = vrot.slane %v5272, 4
  %v5275 = vshll.u32 %v5028, 16
  %v5277 = vrot.slane %v5275, 5
  %v5278 = vor.u32 %v5274, %v5277
  %v5279 = vrot.slane %v5278, 4
  %v5281 = vshll.u32 %v5060, 16
  %v5283 = vrot.slane %v5281, 5
  %v5284 = vsel %vm784, %v5279, %v5283
  %s5285 = scalar_lea.vmem %s4, 64
  %v5286 = vld [vmem:[%s5285] sm:$0xf]
  %v5287 = vld [vmem:[%s5285 + $0x4] sm:$0xf]
  %v5288 = vld [vmem:[%s5285 + $0x8] sm:$0xf]
  %v5289 = vld [vmem:[%s5285 + $0xc] sm:$0xf]
  %v5290 = vld [vmem:[%s5285 + $0x10] sm:$0xf]
  %v5291 = vld [vmem:[%s5285 + $0x14] sm:$0xf]
  %v5292 = vld [vmem:[%s5285 + $0x18] sm:$0xf]
  %v5293 = vld [vmem:[%s5285 + $0x1c] sm:$0xf]
  %v5294 = vld [vmem:[%s5285 + $0x20] sm:$0xf]
  %v5295 = vld [vmem:[%s5285 + $0x24] sm:$0xf]
  %v5296 = vld [vmem:[%s5285 + $0x28] sm:$0xf]
  %v5297 = vld [vmem:[%s5285 + $0x2c] sm:$0xf]
  %v5298 = vld [vmem:[%s5285 + $0x30] sm:$0xf]
  %v5299 = vld [vmem:[%s5285 + $0x34] sm:$0xf]
  %v5300 = vld [vmem:[%s5285 + $0x38] sm:$0xf]
  %v5301 = vld [vmem:[%s5285 + $0x3c] sm:$0xf]
  %v5302 = vunpack.c.l.b16 %v5074
  %v5303 = vunpack.c.l.b16 %v5088
  %v5304 = vunpack.c.l.b16 %v5102
  %v5305 = vunpack.c.l.b16 %v5116
  %v5306 = vunpack.c.l.b16 %v5130
  %v5307 = vunpack.c.l.b16 %v5144
  %v5308 = vunpack.c.l.b16 %v5158
  %v5309 = vunpack.c.l.b16 %v5172
  %v5310 = vunpack.c.l.b16 %v5186
  %v5311 = vunpack.c.l.b16 %v5200
  %v5312 = vunpack.c.l.b16 %v5214
  %v5313 = vunpack.c.l.b16 %v5228
  %v5314 = vunpack.c.l.b16 %v5242
  %v5315 = vunpack.c.l.b16 %v5256
  %v5316 = vunpack.c.l.b16 %v5270
  %v5317 = vunpack.c.l.b16 %v5284
  %v5318 = vpack.c.b16 %v5303, %v5302
  %v5319 = vpack.c.b16 %v5305, %v5304
  %v5320 = vpack.c.b16 %v5307, %v5306
  %v5321 = vpack.c.b16 %v5309, %v5308
  %v5322 = vpack.c.b16 %v5311, %v5310
  %v5323 = vpack.c.b16 %v5313, %v5312
  %v5324 = vpack.c.b16 %v5315, %v5314
  %v5325 = vpack.c.b16 %v5317, %v5316
  %v5350 = vunpack.c.l.b16 %v5286
  %v5351 = vunpack.c.l.b16 %v5287
  %v5352 = vunpack.c.l.b16 %v5288
  %v5353 = vunpack.c.l.b16 %v5289
  %v5354 = vunpack.c.l.b16 %v5290
  %v5355 = vunpack.c.l.b16 %v5291
  %v5356 = vunpack.c.l.b16 %v5292
  %v5357 = vunpack.c.l.b16 %v5293
  %v5358 = vunpack.c.l.b16 %v5294
  %v5359 = vunpack.c.l.b16 %v5295
  %v5360 = vunpack.c.l.b16 %v5296
  %v5361 = vunpack.c.l.b16 %v5297
  %v5362 = vunpack.c.l.b16 %v5298
  %v5363 = vunpack.c.l.b16 %v5299
  %v5364 = vunpack.c.l.b16 %v5300
  %v5365 = vunpack.c.l.b16 %v5301
  %v5366 = vpack.c.b16 %v5351, %v5350
  %v5367 = vpack.c.b16 %v5353, %v5352
  %v5368 = vpack.c.b16 %v5355, %v5354
  %v5369 = vpack.c.b16 %v5357, %v5356
  %v5370 = vpack.c.b16 %v5359, %v5358
  %v5371 = vpack.c.b16 %v5361, %v5360
  %v5372 = vpack.c.b16 %v5363, %v5362
  %v5373 = vpack.c.b16 %v5365, %v5364
  %5382 = vmatprep.subr.bf16.mxu0 0
  %5383 = vmatpush1.bf16.msra.mxu0 %v5366
  %5384 = vmatprep.subr.bf16.mxu0 0
  %5385 = vmatpush1.bf16.msra.mxu0 %v5367
  %5386 = vmatprep.subr.bf16.mxu0 0
  %5387 = vmatpush1.bf16.msra.mxu0 %v5368
  %5388 = vmatprep.subr.bf16.mxu0 0
  %5389 = vmatpush1.bf16.msra.mxu0 %v5369
  %5390 = vmatprep.subr.bf16.mxu0 0
  %5391 = vmatpush1.bf16.msra.mxu0 %v5370
  %5392 = vmatprep.subr.bf16.mxu0 0
  %5393 = vmatpush1.bf16.msra.mxu0 %v5371
  %5394 = vmatprep.subr.bf16.mxu0 0
  %5395 = vmatpush1.bf16.msra.mxu0 %v5372
  %5396 = vmatprep.subr.bf16.mxu0 0
  %5397 = vmatpush1.bf16.msra.mxu0 %v5373
  %5398 = vmatprep.subr.bf16.mxu0 0
  %5399 = vmatpush1.bf16.msra.mxu0 0
  %5400 = vmatprep.subr.bf16.mxu0 0
  %5401 = vmatpush1.bf16.msra.mxu0 0
  %5402 = vmatprep.subr.bf16.mxu0 0
  %5403 = vmatpush1.bf16.msra.mxu0 0
  %5404 = vmatprep.subr.bf16.mxu0 0
  %5405 = vmatpush1.bf16.msra.mxu0 0
  %5406 = vmatprep.subr.bf16.mxu0 0
  %5407 = vmatpush1.bf16.msra.mxu0 0
  %5408 = vmatprep.subr.bf16.mxu0 0
  %5409 = vmatpush1.bf16.msra.mxu0 0
  %5410 = vmatprep.subr.bf16.mxu0 0
  %5411 = vmatpush1.bf16.msra.mxu0 0
  %5412 = vmatprep.subr.bf16.mxu0 0
  %5413 = vmatpush1.bf16.msra.mxu0 0
  %5414 = vmatprep.mubr.bf16.mxu0 0
  %5415 = vmatmul.mubr.bf16.gmra.mrb[0].mxu0 %v5318
  %v5416 = vpop.f32.mrb[0].mxu0
  %v5417 = vadd.f32 0.0, %v5416
  %v5418 = vpop.f32.mrb[0].mxu0
  %v5419 = vpop.f32.mrb[0].mxu0
  %v5420 = vadd.f32 0.0, %v5419
  %v5421 = vpop.f32.mrb[0].mxu0
  %5422 = vmatprep.mubr.bf16.mxu0 0
  %5423 = vmatmul.mubr.bf16.gmra.mrb[0].mxu0 %v5319
  %v5424 = vpop.f32.mrb[0].mxu0
  %v5425 = vadd.f32 0.0, %v5424
  %v5426 = vpop.f32.mrb[0].mxu0
  %v5427 = vpop.f32.mrb[0].mxu0
  %v5428 = vadd.f32 0.0, %v5427
  %v5429 = vpop.f32.mrb[0].mxu0
  %5430 = vmatprep.mubr.bf16.mxu0 0
  %5431 = vmatmul.mubr.bf16.gmra.mrb[0].mxu0 %v5320
  %v5432 = vpop.f32.mrb[0].mxu0
  %v5433 = vadd.f32 0.0, %v5432
  %v5434 = vpop.f32.mrb[0].mxu0
  %v5435 = vpop.f32.mrb[0].mxu0
  %v5436 = vadd.f32 0.0, %v5435
  %v5437 = vpop.f32.mrb[0].mxu0
  %5438 = vmatprep.mubr.bf16.mxu0 0
  %5439 = vmatmul.mubr.bf16.gmra.mrb[0].mxu0 %v5321
  %v5440 = vpop.f32.mrb[0].mxu0
  %v5441 = vadd.f32 0.0, %v5440
  %v5442 = vpop.f32.mrb[0].mxu0
  %v5443 = vpop.f32.mrb[0].mxu0
  %v5444 = vadd.f32 0.0, %v5443
  %v5445 = vpop.f32.mrb[0].mxu0
  %5446 = vmatprep.mubr.bf16.mxu0 0
  %5447 = vmatmul.mubr.bf16.gmra.mrb[0].mxu0 %v5322
  %v5448 = vpop.f32.mrb[0].mxu0
  %v5449 = vadd.f32 0.0, %v5448
  %v5450 = vpop.f32.mrb[0].mxu0
  %v5451 = vpop.f32.mrb[0].mxu0
  %v5452 = vadd.f32 0.0, %v5451
  %v5453 = vpop.f32.mrb[0].mxu0
  %5454 = vmatprep.mubr.bf16.mxu0 0
  %5455 = vmatmul.mubr.bf16.gmra.mrb[0].mxu0 %v5323
  %v5456 = vpop.f32.mrb[0].mxu0
  %v5457 = vadd.f32 0.0, %v5456
  %v5458 = vpop.f32.mrb[0].mxu0
  %v5459 = vpop.f32.mrb[0].mxu0
  %v5460 = vadd.f32 0.0, %v5459
  %v5461 = vpop.f32.mrb[0].mxu0
  %5462 = vmatprep.mubr.bf16.mxu0 0
  %5463 = vmatmul.mubr.bf16.gmra.mrb[0].mxu0 %v5324
  %v5464 = vpop.f32.mrb[0].mxu0
  %v5465 = vadd.f32 0.0, %v5464
  %v5466 = vpop.f32.mrb[0].mxu0
  %v5467 = vpop.f32.mrb[0].mxu0
  %v5468 = vadd.f32 0.0, %v5467
  %v5469 = vpop.f32.mrb[0].mxu0
  %5470 = vmatprep.mubr.bf16.mxu0 0
  %5471 = vmatmul.mubr.bf16.gmra.mrb[0].mxu0 %v5325
  %v5472 = vpop.f32.mrb[0].mxu0
  %v5473 = vadd.f32 0.0, %v5472
  %v5474 = vpop.f32.mrb[0].mxu0
  %v5475 = vpop.f32.mrb[0].mxu0
  %v5476 = vadd.f32 0.0, %v5475
  %v5477 = vpop.f32.mrb[0].mxu0
  %5478 = vdwg.mxu0
  %v5495 = vunpack.c.l.b16 %v5013
  %v5496 = vunpack.c.l.b16 %v5014
  %v5497 = vunpack.c.l.b16 %v5015
  %v5498 = vunpack.c.l.b16 %v5016
  %v5499 = vunpack.c.l.b16 %v5017
  %v5500 = vunpack.c.l.b16 %v5018
  %v5501 = vunpack.c.l.b16 %v5019
  %v5502 = vunpack.c.l.b16 %v5020
  %v5503 = vunpack.c.l.b16 %v5021
  %v5504 = vunpack.c.l.b16 %v5022
  %v5505 = vunpack.c.l.b16 %v5023
  %v5506 = vunpack.c.l.b16 %v5024
  %v5507 = vunpack.c.l.b16 %v5025
  %v5508 = vunpack.c.l.b16 %v5026
  %v5509 = vunpack.c.l.b16 %v5027
  %v5510 = vunpack.c.l.b16 %v5028
  %v5511 = vpack.c.b16 %v5496, %v5495
  %v5512 = vpack.c.b16 %v5498, %v5497
  %v5513 = vpack.c.b16 %v5500, %v5499
  %v5514 = vpack.c.b16 %v5502, %v5501
  %v5515 = vpack.c.b16 %v5504, %v5503
  %v5516 = vpack.c.b16 %v5506, %v5505
  %v5517 = vpack.c.b16 %v5508, %v5507
  %v5518 = vpack.c.b16 %v5510, %v5509
  %v5543 = vunpack.c.l.b16 %v5029
  %v5544 = vunpack.c.l.b16 %v5030
  %v5545 = vunpack.c.l.b16 %v5031
  %v5546 = vunpack.c.l.b16 %v5032
  %v5547 = vunpack.c.l.b16 %v5033
  %v5548 = vunpack.c.l.b16 %v5034
  %v5549 = vunpack.c.l.b16 %v5035
  %v5550 = vunpack.c.l.b16 %v5036
  %v5551 = vunpack.c.l.b16 %v5037
  %v5552 = vunpack.c.l.b16 %v5038
  %v5553 = vunpack.c.l.b16 %v5039
  %v5554 = vunpack.c.l.b16 %v5040
  %v5555 = vunpack.c.l.b16 %v5041
  %v5556 = vunpack.c.l.b16 %v5042
  %v5557 = vunpack.c.l.b16 %v5043
  %v5558 = vunpack.c.l.b16 %v5044
  %v5559 = vpack.c.b16 %v5544, %v5543
  %v5560 = vpack.c.b16 %v5546, %v5545
  %v5561 = vpack.c.b16 %v5548, %v5547
  %v5562 = vpack.c.b16 %v5550, %v5549
  %v5563 = vpack.c.b16 %v5552, %v5551
  %v5564 = vpack.c.b16 %v5554, %v5553
  %v5565 = vpack.c.b16 %v5556, %v5555
  %v5566 = vpack.c.b16 %v5558, %v5557
  %5575 = vmatprep.subr.bf16.mxu0 0
  %5576 = vmatpush1.bf16.msra.mxu0 %v5559
  %5577 = vmatprep.subr.bf16.mxu0 0
  %5578 = vmatpush1.bf16.msra.mxu0 %v5560
  %5579 = vmatprep.subr.bf16.mxu0 0
  %5580 = vmatpush1.bf16.msra.mxu0 %v5561
  %5581 = vmatprep.subr.bf16.mxu0 0
  %5582 = vmatpush1.bf16.msra.mxu0 %v5562
  %5583 = vmatprep.subr.bf16.mxu0 0
  %5584 = vmatpush1.bf16.msra.mxu0 %v5563
  %5585 = vmatprep.subr.bf16.mxu0 0
  %5586 = vmatpush1.bf16.msra.mxu0 %v5564
  %5587 = vmatprep.subr.bf16.mxu0 0
  %5588 = vmatpush1.bf16.msra.mxu0 %v5565
  %5589 = vmatprep.subr.bf16.mxu0 0
  %5590 = vmatpush1.bf16.msra.mxu0 %v5566
  %5591 = vmatprep.subr.bf16.mxu0 0
  %5592 = vmatpush1.bf16.msra.mxu0 0
  %5593 = vmatprep.subr.bf16.mxu0 0
  %5594 = vmatpush1.bf16.msra.mxu0 0
  %5595 = vmatprep.subr.bf16.mxu0 0
  %5596 = vmatpush1.bf16.msra.mxu0 0
  %5597 = vmatprep.subr.bf16.mxu0 0
  %5598 = vmatpush1.bf16.msra.mxu0 0
  %5599 = vmatprep.subr.bf16.mxu0 0
  %5600 = vmatpush1.bf16.msra.mxu0 0
  %5601 = vmatprep.subr.bf16.mxu0 0
  %5602 = vmatpush1.bf16.msra.mxu0 0
  %5603 = vmatprep.subr.bf16.mxu0 0
  %5604 = vmatpush1.bf16.msra.mxu0 0
  %5605 = vmatprep.subr.bf16.mxu0 0
  %5606 = vmatpush1.bf16.msra.mxu0 0
  %5607 = vmatprep.mubr.bf16.mxu0 0
  %5608 = vmatmul.mubr.bf16.gmra.mrb[0].mxu0 %v5511
  %v5609 = vpop.f32.mrb[0].mxu0
  %v5610 = vadd.f32 %v5417, %v5609
  %v5611 = vpop.f32.mrb[0].mxu0
  %v5612 = vpop.f32.mrb[0].mxu0
  %v5613 = vadd.f32 %v5420, %v5612
  %v5614 = vpop.f32.mrb[0].mxu0
  %5615 = vmatprep.mubr.bf16.mxu0 0
  %5616 = vmatmul.mubr.bf16.gmra.mrb[0].mxu0 %v5512
  %v5617 = vpop.f32.mrb[0].mxu0
  %v5618 = vadd.f32 %v5425, %v5617
  %v5619 = vpop.f32.mrb[0].mxu0
  %v5620 = vpop.f32.mrb[0].mxu0
  %v5621 = vadd.f32 %v5428, %v5620
  %v5622 = vpop.f32.mrb[0].mxu0
  %5623 = vmatprep.mubr.bf16.mxu0 0
  %5624 = vmatmul.mubr.bf16.gmra.mrb[0].mxu0 %v5513
  %v5625 = vpop.f32.mrb[0].mxu0
  %v5626 = vadd.f32 %v5433, %v5625
  %v5627 = vpop.f32.mrb[0].mxu0
  %v5628 = vpop.f32.mrb[0].mxu0
  %v5629 = vadd.f32 %v5436, %v5628
  %v5630 = vpop.f32.mrb[0].mxu0
  %5631 = vmatprep.mubr.bf16.mxu0 0
  %5632 = vmatmul.mubr.bf16.gmra.mrb[0].mxu0 %v5514
  %v5633 = vpop.f32.mrb[0].mxu0
  %v5634 = vadd.f32 %v5441, %v5633
  %v5635 = vpop.f32.mrb[0].mxu0
  %v5636 = vpop.f32.mrb[0].mxu0
  %v5637 = vadd.f32 %v5444, %v5636
  %v5638 = vpop.f32.mrb[0].mxu0
  %5639 = vmatprep.mubr.bf16.mxu0 0
  %5640 = vmatmul.mubr.bf16.gmra.mrb[0].mxu0 %v5515
  %v5641 = vpop.f32.mrb[0].mxu0
  %v5642 = vadd.f32 %v5449, %v5641
  %v5643 = vpop.f32.mrb[0].mxu0
  %v5644 = vpop.f32.mrb[0].mxu0
  %v5645 = vadd.f32 %v5452, %v5644
  %v5646 = vpop.f32.mrb[0].mxu0
  %5647 = vmatprep.mubr.bf16.mxu0 0
  %5648 = vmatmul.mubr.bf16.gmra.mrb[0].mxu0 %v5516
  %v5649 = vpop.f32.mrb[0].mxu0
  %v5650 = vadd.f32 %v5457, %v5649
  %v5651 = vpop.f32.mrb[0].mxu0
  %v5652 = vpop.f32.mrb[0].mxu0
  %v5653 = vadd.f32 %v5460, %v5652
  %v5654 = vpop.f32.mrb[0].mxu0
  %5655 = vmatprep.mubr.bf16.mxu0 0
  %5656 = vmatmul.mubr.bf16.gmra.mrb[0].mxu0 %v5517
  %v5657 = vpop.f32.mrb[0].mxu0
  %v5658 = vadd.f32 %v5465, %v5657
  %v5659 = vpop.f32.mrb[0].mxu0
  %v5660 = vpop.f32.mrb[0].mxu0
  %v5661 = vadd.f32 %v5468, %v5660
  %v5662 = vpop.f32.mrb[0].mxu0
  %5663 = vmatprep.mubr.bf16.mxu0 0
  %5664 = vmatmul.mubr.bf16.gmra.mrb[0].mxu0 %v5518
  %v5665 = vpop.f32.mrb[0].mxu0
  %v5666 = vadd.f32 %v5473, %v5665
  %v5667 = vpop.f32.mrb[0].mxu0
  %v5668 = vpop.f32.mrb[0].mxu0
  %v5669 = vadd.f32 %v5476, %v5668
  %v5670 = vpop.f32.mrb[0].mxu0
  %5671 = vdwg.mxu0
  %v5672 = vld [vmem:[#allocation3] sm:$0xe]
  %v5673 = vld [vmem:[#allocation3 + $0x8] sm:$0xe]
  %v5674 = vld [vmem:[#allocation3 + $0x10] sm:$0xe]
  %v5675 = vld [vmem:[#allocation3 + $0x18] sm:$0xe]
  %v5676 = vld [vmem:[#allocation3 + $0x20] sm:$0xe]
  %v5677 = vld [vmem:[#allocation3 + $0x28] sm:$0xe]
  %v5678 = vld [vmem:[#allocation3 + $0x30] sm:$0xe]
  %v5679 = vld [vmem:[#allocation3 + $0x38] sm:$0xe]
  %v5680 = vld [vmem:[#allocation3 + $0x50] sm:$0xe]
  %v5681 = vld [vmem:[#allocation3 + $0x58] sm:$0xe]
  %v5682 = vld [vmem:[#allocation3 + $0x60] sm:$0xe]
  %v5683 = vld [vmem:[#allocation3 + $0x68] sm:$0xe]
  %v5684 = vld [vmem:[#allocation3 + $0x70] sm:$0xe]
  %v5685 = vld [vmem:[#allocation3 + $0x78] sm:$0xe]
  %v5686 = vld [vmem:[#allocation3 + $0x80] sm:$0xe]
  %v5687 = vld [vmem:[#allocation3 + $0x88] sm:$0xe]
  %v5720 = vrot.slane %v5672, 5
  %v5721 = vrot.slane %v5720, 4
  %v5722 = vrot.slane %v5045, 5
  %v5723 = vsel %vm1622, %v5721, %v5722
  %v5724 = vrot.slane %v5673, 5
  %v5725 = vrot.slane %v5724, 4
  %v5726 = vrot.slane %v5046, 5
  %v5727 = vsel %vm1622, %v5725, %v5726
  %v5728 = vrot.slane %v5674, 5
  %v5729 = vrot.slane %v5728, 4
  %v5730 = vrot.slane %v5047, 5
  %v5731 = vsel %vm1622, %v5729, %v5730
  %v5732 = vrot.slane %v5675, 5
  %v5733 = vrot.slane %v5732, 4
  %v5734 = vrot.slane %v5048, 5
  %v5735 = vsel %vm1622, %v5733, %v5734
  %v5736 = vrot.slane %v5676, 5
  %v5737 = vrot.slane %v5736, 4
  %v5738 = vrot.slane %v5049, 5
  %v5739 = vsel %vm1622, %v5737, %v5738
  %v5740 = vrot.slane %v5677, 5
  %v5741 = vrot.slane %v5740, 4
  %v5742 = vrot.slane %v5050, 5
  %v5743 = vsel %vm1622, %v5741, %v5742
  %v5744 = vrot.slane %v5678, 5
  %v5745 = vrot.slane %v5744, 4
  %v5746 = vrot.slane %v5051, 5
  %v5747 = vsel %vm1622, %v5745, %v5746
  %v5748 = vrot.slane %v5679, 5
  %v5749 = vrot.slane %v5748, 4
  %v5750 = vrot.slane %v5052, 5
  %v5751 = vsel %vm1622, %v5749, %v5750
  %v5752 = vrot.slane %v5680, 5
  %v5753 = vrot.slane %v5752, 4
  %v5754 = vrot.slane %v5053, 5
  %v5755 = vsel %vm1622, %v5753, %v5754
  %v5756 = vrot.slane %v5681, 5
  %v5757 = vrot.slane %v5756, 4
  %v5758 = vrot.slane %v5054, 5
  %v5759 = vsel %vm1622, %v5757, %v5758
  %v5760 = vrot.slane %v5682, 5
  %v5761 = vrot.slane %v5760, 4
  %v5762 = vrot.slane %v5055, 5
  %v5763 = vsel %vm1622, %v5761, %v5762
  %v5764 = vrot.slane %v5683, 5
  %v5765 = vrot.slane %v5764, 4
  %v5766 = vrot.slane %v5056, 5
  %v5767 = vsel %vm1622, %v5765, %v5766
  %v5768 = vrot.slane %v5684, 5
  %v5769 = vrot.slane %v5768, 4
  %v5770 = vrot.slane %v5057, 5
  %v5771 = vsel %vm1622, %v5769, %v5770
  %v5772 = vrot.slane %v5685, 5
  %v5773 = vrot.slane %v5772, 4
  %v5774 = vrot.slane %v5058, 5
  %v5775 = vsel %vm1622, %v5773, %v5774
  %v5776 = vrot.slane %v5686, 5
  %v5777 = vrot.slane %v5776, 4
  %v5778 = vrot.slane %v5059, 5
  %v5779 = vsel %vm1622, %v5777, %v5778
  %v5780 = vrot.slane %v5687, 5
  %v5781 = vrot.slane %v5780, 4
  %v5782 = vrot.slane %v5060, 5
  %v5783 = vsel %vm1622, %v5781, %v5782
  %s5784 = scalar_lea.vmem %s4, 128
  %v5785 = vld [vmem:[%s5784] sm:$0xf]
  %v5786 = vld [vmem:[%s5784 + $0x4] sm:$0xf]
  %v5787 = vld [vmem:[%s5784 + $0x8] sm:$0xf]
  %v5788 = vld [vmem:[%s5784 + $0xc] sm:$0xf]
  %v5789 = vld [vmem:[%s5784 + $0x10] sm:$0xf]
  %v5790 = vld [vmem:[%s5784 + $0x14] sm:$0xf]
  %v5791 = vld [vmem:[%s5784 + $0x18] sm:$0xf]
  %v5792 = vld [vmem:[%s5784 + $0x1c] sm:$0xf]
  %v5793 = vld [vmem:[%s5784 + $0x20] sm:$0xf]
  %v5794 = vld [vmem:[%s5784 + $0x24] sm:$0xf]
  %v5795 = vld [vmem:[%s5784 + $0x28] sm:$0xf]
  %v5796 = vld [vmem:[%s5784 + $0x2c] sm:$0xf]
  %v5797 = vld [vmem:[%s5784 + $0x30] sm:$0xf]
  %v5798 = vld [vmem:[%s5784 + $0x34] sm:$0xf]
  %v5799 = vld [vmem:[%s5784 + $0x38] sm:$0xf]
  %v5800 = vld [vmem:[%s5784 + $0x3c] sm:$0xf]
  %v5801 = vunpack.c.l.b16 %v5723
  %v5802 = vunpack.c.l.b16 %v5727
  %v5803 = vunpack.c.l.b16 %v5731
  %v5804 = vunpack.c.l.b16 %v5735
  %v5805 = vunpack.c.l.b16 %v5739
  %v5806 = vunpack.c.l.b16 %v5743
  %v5807 = vunpack.c.l.b16 %v5747
  %v5808 = vunpack.c.l.b16 %v5751
  %v5809 = vunpack.c.l.b16 %v5755
  %v5810 = vunpack.c.l.b16 %v5759
  %v5811 = vunpack.c.l.b16 %v5763
  %v5812 = vunpack.c.l.b16 %v5767
  %v5813 = vunpack.c.l.b16 %v5771
  %v5814 = vunpack.c.l.b16 %v5775
  %v5815 = vunpack.c.l.b16 %v5779
  %v5816 = vunpack.c.l.b16 %v5783
  %v5817 = vpack.c.b16 %v5802, %v5801
  %v5818 = vpack.c.b16 %v5804, %v5803
  %v5819 = vpack.c.b16 %v5806, %v5805
  %v5820 = vpack.c.b16 %v5808, %v5807
  %v5821 = vpack.c.b16 %v5810, %v5809
  %v5822 = vpack.c.b16 %v5812, %v5811
  %v5823 = vpack.c.b16 %v5814, %v5813
  %v5824 = vpack.c.b16 %v5816, %v5815
  %v5849 = vunpack.c.l.b16 %v5785
  %v5850 = vunpack.c.l.b16 %v5786
  %v5851 = vunpack.c.l.b16 %v5787
  %v5852 = vunpack.c.l.b16 %v5788
  %v5853 = vunpack.c.l.b16 %v5789
  %v5854 = vunpack.c.l.b16 %v5790
  %v5855 = vunpack.c.l.b16 %v5791
  %v5856 = vunpack.c.l.b16 %v5792
  %v5857 = vunpack.c.l.b16 %v5793
  %v5858 = vunpack.c.l.b16 %v5794
  %v5859 = vunpack.c.l.b16 %v5795
  %v5860 = vunpack.c.l.b16 %v5796
  %v5861 = vunpack.c.l.b16 %v5797
  %v5862 = vunpack.c.l.b16 %v5798
  %v5863 = vunpack.c.l.b16 %v5799
  %v5864 = vunpack.c.l.b16 %v5800
  %v5865 = vpack.c.b16 %v5850, %v5849
  %v5866 = vpack.c.b16 %v5852, %v5851
  %v5867 = vpack.c.b16 %v5854, %v5853
  %v5868 = vpack.c.b16 %v5856, %v5855
  %v5869 = vpack.c.b16 %v5858, %v5857
  %v5870 = vpack.c.b16 %v5860, %v5859
  %v5871 = vpack.c.b16 %v5862, %v5861
  %v5872 = vpack.c.b16 %v5864, %v5863
  %5881 = vmatprep.subr.bf16.mxu0 0
  %5882 = vmatpush1.bf16.msra.mxu0 %v5865
  %5883 = vmatprep.subr.bf16.mxu0 0
  %5884 = vmatpush1.bf16.msra.mxu0 %v5866
  %5885 = vmatprep.subr.bf16.mxu0 0
  %5886 = vmatpush1.bf16.msra.mxu0 %v5867
  %5887 = vmatprep.subr.bf16.mxu0 0
  %5888 = vmatpush1.bf16.msra.mxu0 %v5868
  %5889 = vmatprep.subr.bf16.mxu0 0
  %5890 = vmatpush1.bf16.msra.mxu0 %v5869
  %5891 = vmatprep.subr.bf16.mxu0 0
  %5892 = vmatpush1.bf16.msra.mxu0 %v5870
  %5893 = vmatprep.subr.bf16.mxu0 0
  %5894 = vmatpush1.bf16.msra.mxu0 %v5871
  %5895 = vmatprep.subr.bf16.mxu0 0
  %5896 = vmatpush1.bf16.msra.mxu0 %v5872
  %5897 = vmatprep.subr.bf16.mxu0 0
  %5898 = vmatpush1.bf16.msra.mxu0 0
  %5899 = vmatprep.subr.bf16.mxu0 0
  %5900 = vmatpush1.bf16.msra.mxu0 0
  %5901 = vmatprep.subr.bf16.mxu0 0
  %5902 = vmatpush1.bf16.msra.mxu0 0
  %5903 = vmatprep.subr.bf16.mxu0 0
  %5904 = vmatpush1.bf16.msra.mxu0 0
  %5905 = vmatprep.subr.bf16.mxu0 0
  %5906 = vmatpush1.bf16.msra.mxu0 0
  %5907 = vmatprep.subr.bf16.mxu0 0
  %5908 = vmatpush1.bf16.msra.mxu0 0
  %5909 = vmatprep.subr.bf16.mxu0 0
  %5910 = vmatpush1.bf16.msra.mxu0 0
  %5911 = vmatprep.subr.bf16.mxu0 0
  %5912 = vmatpush1.bf16.msra.mxu0 0
  %5913 = vmatprep.mubr.bf16.mxu0 0
  %5914 = vmatmul.mubr.bf16.gmra.mrb[0].mxu0 %v5817
  %v5915 = vpop.f32.mrb[0].mxu0
  %v5916 = vadd.f32 0.0, %v5915
  %v5917 = vpop.f32.mrb[0].mxu0
  %v5918 = vpop.f32.mrb[0].mxu0
  %v5919 = vadd.f32 0.0, %v5918
  %v5920 = vpop.f32.mrb[0].mxu0
  %5921 = vmatprep.mubr.bf16.mxu0 0
  %5922 = vmatmul.mubr.bf16.gmra.mrb[0].mxu0 %v5818
  %v5923 = vpop.f32.mrb[0].mxu0
  %v5924 = vadd.f32 0.0, %v5923
  %v5925 = vpop.f32.mrb[0].mxu0
  %v5926 = vpop.f32.mrb[0].mxu0
  %v5927 = vadd.f32 0.0, %v5926
  %v5928 = vpop.f32.mrb[0].mxu0
  %5929 = vmatprep.mubr.bf16.mxu0 0
  %5930 = vmatmul.mubr.bf16.gmra.mrb[0].mxu0 %v5819
  %v5931 = vpop.f32.mrb[0].mxu0
  %v5932 = vadd.f32 0.0, %v5931
  %v5933 = vpop.f32.mrb[0].mxu0
  %v5934 = vpop.f32.mrb[0].mxu0
  %v5935 = vadd.f32 0.0, %v5934
  %v5936 = vpop.f32.mrb[0].mxu0
  %5937 = vmatprep.mubr.bf16.mxu0 0
  %5938 = vmatmul.mubr.bf16.gmra.mrb[0].mxu0 %v5820
  %v5939 = vpop.f32.mrb[0].mxu0
  %v5940 = vadd.f32 0.0, %v5939
  %v5941 = vpop.f32.mrb[0].mxu0
  %v5942 = vpop.f32.mrb[0].mxu0
  %v5943 = vadd.f32 0.0, %v5942
  %v5944 = vpop.f32.mrb[0].mxu0
  %5945 = vmatprep.mubr.bf16.mxu0 0
  %5946 = vmatmul.mubr.bf16.gmra.mrb[0].mxu0 %v5821
  %v5947 = vpop.f32.mrb[0].mxu0
  %v5948 = vadd.f32 0.0, %v5947
  %v5949 = vpop.f32.mrb[0].mxu0
  %v5950 = vpop.f32.mrb[0].mxu0
  %v5951 = vadd.f32 0.0, %v5950
  %v5952 = vpop.f32.mrb[0].mxu0
  %5953 = vmatprep.mubr.bf16.mxu0 0
  %5954 = vmatmul.mubr.bf16.gmra.mrb[0].mxu0 %v5822
  %v5955 = vpop.f32.mrb[0].mxu0
  %v5956 = vadd.f32 0.0, %v5955
  %v5957 = vpop.f32.mrb[0].mxu0
  %v5958 = vpop.f32.mrb[0].mxu0
  %v5959 = vadd.f32 0.0, %v5958
  %v5960 = vpop.f32.mrb[0].mxu0
  %5961 = vmatprep.mubr.bf16.mxu0 0
  %5962 = vmatmul.mubr.bf16.gmra.mrb[0].mxu0 %v5823
  %v5963 = vpop.f32.mrb[0].mxu0
  %v5964 = vadd.f32 0.0, %v5963
  %v5965 = vpop.f32.mrb[0].mxu0
  %v5966 = vpop.f32.mrb[0].mxu0
  %v5967 = vadd.f32 0.0, %v5966
  %v5968 = vpop.f32.mrb[0].mxu0
  %5969 = vmatprep.mubr.bf16.mxu0 0
  %5970 = vmatmul.mubr.bf16.gmra.mrb[0].mxu0 %v5824
  %v5971 = vpop.f32.mrb[0].mxu0
  %v5972 = vadd.f32 0.0, %v5971
  %v5973 = vpop.f32.mrb[0].mxu0
  %v5974 = vpop.f32.mrb[0].mxu0
  %v5975 = vadd.f32 0.0, %v5974
  %v5976 = vpop.f32.mrb[0].mxu0
  %5977 = vdwg.mxu0
  %v5978 = vadd.f32 %v5610, %v5916
  %v5979 = vadd.f32 %v5613, %v5919
  %v5980 = vadd.f32 %v5618, %v5924
  %v5981 = vadd.f32 %v5621, %v5927
  %v5982 = vadd.f32 %v5626, %v5932
  %v5983 = vadd.f32 %v5629, %v5935
  %v5984 = vadd.f32 %v5634, %v5940
  %v5985 = vadd.f32 %v5637, %v5943
  %v5986 = vadd.f32 %v5642, %v5948
  %v5987 = vadd.f32 %v5645, %v5951
  %v5988 = vadd.f32 %v5650, %v5956
  %v5989 = vadd.f32 %v5653, %v5959
  %v5990 = vadd.f32 %v5658, %v5964
  %v5991 = vadd.f32 %v5661, %v5967
  %v5992 = vadd.f32 %v5666, %v5972
  %v5993 = vadd.f32 %v5669, %v5975
  %v5994 = vld [vmem:[%s4916] sm:$0xf]
  %v5995 = vld [vmem:[%s4916 + $0x8] sm:$0xf]
  %v5996 = vld [vmem:[%s4916 + $0x10] sm:$0xf]
  %v5997 = vld [vmem:[%s4916 + $0x18] sm:$0xf]
  %v5998 = vld [vmem:[%s4916 + $0x20] sm:$0xf]
  %v5999 = vld [vmem:[%s4916 + $0x28] sm:$0xf]
  %v6000 = vld [vmem:[%s4916 + $0x30] sm:$0xf]
  %v6001 = vld [vmem:[%s4916 + $0x38] sm:$0xf]
  %v6002 = vld [vmem:[%s4916 + $0x50] sm:$0xf]
  %v6003 = vld [vmem:[%s4916 + $0x58] sm:$0xf]
  %v6004 = vld [vmem:[%s4916 + $0x60] sm:$0xf]
  %v6005 = vld [vmem:[%s4916 + $0x68] sm:$0xf]
  %v6006 = vld [vmem:[%s4916 + $0x70] sm:$0xf]
  %v6007 = vld [vmem:[%s4916 + $0x78] sm:$0xf]
  %v6008 = vld [vmem:[%s4916 + $0x80] sm:$0xf]
  %v6009 = vld [vmem:[%s4916 + $0x88] sm:$0xf]
  %s6010 = scalar_lea.vmem %s4, 192
  %v6011 = vld [vmem:[%s6010] sm:$0xf]
  %v6012 = vld [vmem:[%s6010 + $0x4] sm:$0xf]
  %v6013 = vld [vmem:[%s6010 + $0x8] sm:$0xf]
  %v6014 = vld [vmem:[%s6010 + $0xc] sm:$0xf]
  %v6015 = vld [vmem:[%s6010 + $0x10] sm:$0xf]
  %v6016 = vld [vmem:[%s6010 + $0x14] sm:$0xf]
  %v6017 = vld [vmem:[%s6010 + $0x18] sm:$0xf]
  %v6018 = vld [vmem:[%s6010 + $0x1c] sm:$0xf]
  %v6019 = vld [vmem:[%s6010 + $0x20] sm:$0xf]
  %v6020 = vld [vmem:[%s6010 + $0x24] sm:$0xf]
  %v6021 = vld [vmem:[%s6010 + $0x28] sm:$0xf]
  %v6022 = vld [vmem:[%s6010 + $0x2c] sm:$0xf]
  %v6023 = vld [vmem:[%s6010 + $0x30] sm:$0xf]
  %v6024 = vld [vmem:[%s6010 + $0x34] sm:$0xf]
  %v6025 = vld [vmem:[%s6010 + $0x38] sm:$0xf]
  %v6026 = vld [vmem:[%s6010 + $0x3c] sm:$0xf]
  %v6043 = vunpack.c.l.b16 %v5994
  %v6044 = vunpack.c.l.b16 %v5995
  %v6045 = vunpack.c.l.b16 %v5996
  %v6046 = vunpack.c.l.b16 %v5997
  %v6047 = vunpack.c.l.b16 %v5998
  %v6048 = vunpack.c.l.b16 %v5999
  %v6049 = vunpack.c.l.b16 %v6000
  %v6050 = vunpack.c.l.b16 %v6001
  %v6051 = vunpack.c.l.b16 %v6002
  %v6052 = vunpack.c.l.b16 %v6003
  %v6053 = vunpack.c.l.b16 %v6004
  %v6054 = vunpack.c.l.b16 %v6005
  %v6055 = vunpack.c.l.b16 %v6006
  %v6056 = vunpack.c.l.b16 %v6007
  %v6057 = vunpack.c.l.b16 %v6008
  %v6058 = vunpack.c.l.b16 %v6009
  %v6059 = vpack.c.b16 %v6044, %v6043
  %v6060 = vpack.c.b16 %v6046, %v6045
  %v6061 = vpack.c.b16 %v6048, %v6047
  %v6062 = vpack.c.b16 %v6050, %v6049
  %v6063 = vpack.c.b16 %v6052, %v6051
  %v6064 = vpack.c.b16 %v6054, %v6053
  %v6065 = vpack.c.b16 %v6056, %v6055
  %v6066 = vpack.c.b16 %v6058, %v6057
  %v6091 = vunpack.c.l.b16 %v6011
  %v6092 = vunpack.c.l.b16 %v6012
  %v6093 = vunpack.c.l.b16 %v6013
  %v6094 = vunpack.c.l.b16 %v6014
  %v6095 = vunpack.c.l.b16 %v6015
  %v6096 = vunpack.c.l.b16 %v6016
  %v6097 = vunpack.c.l.b16 %v6017
  %v6098 = vunpack.c.l.b16 %v6018
  %v6099 = vunpack.c.l.b16 %v6019
  %v6100 = vunpack.c.l.b16 %v6020
  %v6101 = vunpack.c.l.b16 %v6021
  %v6102 = vunpack.c.l.b16 %v6022
  %v6103 = vunpack.c.l.b16 %v6023
  %v6104 = vunpack.c.l.b16 %v6024
  %v6105 = vunpack.c.l.b16 %v6025
  %v6106 = vunpack.c.l.b16 %v6026
  %v6107 = vpack.c.b16 %v6092, %v6091
  %v6108 = vpack.c.b16 %v6094, %v6093
  %v6109 = vpack.c.b16 %v6096, %v6095
  %v6110 = vpack.c.b16 %v6098, %v6097
  %v6111 = vpack.c.b16 %v6100, %v6099
  %v6112 = vpack.c.b16 %v6102, %v6101
  %v6113 = vpack.c.b16 %v6104, %v6103
  %v6114 = vpack.c.b16 %v6106, %v6105
  %6123 = vmatprep.subr.bf16.mxu0 0
  %6124 = vmatpush1.bf16.msra.mxu0 %v6107
  %6125 = vmatprep.subr.bf16.mxu0 0
  %6126 = vmatpush1.bf16.msra.mxu0 %v6108
  %6127 = vmatprep.subr.bf16.mxu0 0
  %6128 = vmatpush1.bf16.msra.mxu0 %v6109
  %6129 = vmatprep.subr.bf16.mxu0 0
  %6130 = vmatpush1.bf16.msra.mxu0 %v6110
  %6131 = vmatprep.subr.bf16.mxu0 0
  %6132 = vmatpush1.bf16.msra.mxu0 %v6111
  %6133 = vmatprep.subr.bf16.mxu0 0
  %6134 = vmatpush1.bf16.msra.mxu0 %v6112
  %6135 = vmatprep.subr.bf16.mxu0 0
  %6136 = vmatpush1.bf16.msra.mxu0 %v6113
  %6137 = vmatprep.subr.bf16.mxu0 0
  %6138 = vmatpush1.bf16.msra.mxu0 %v6114
  %6139 = vmatprep.subr.bf16.mxu0 0
  %6140 = vmatpush1.bf16.msra.mxu0 0
  %6141 = vmatprep.subr.bf16.mxu0 0
  %6142 = vmatpush1.bf16.msra.mxu0 0
  %6143 = vmatprep.subr.bf16.mxu0 0
  %6144 = vmatpush1.bf16.msra.mxu0 0
  %6145 = vmatprep.subr.bf16.mxu0 0
  %6146 = vmatpush1.bf16.msra.mxu0 0
  %6147 = vmatprep.subr.bf16.mxu0 0
  %6148 = vmatpush1.bf16.msra.mxu0 0
  %6149 = vmatprep.subr.bf16.mxu0 0
  %6150 = vmatpush1.bf16.msra.mxu0 0
  %6151 = vmatprep.subr.bf16.mxu0 0
  %6152 = vmatpush1.bf16.msra.mxu0 0
  %6153 = vmatprep.subr.bf16.mxu0 0
  %6154 = vmatpush1.bf16.msra.mxu0 0
  %6155 = vmatprep.mubr.bf16.mxu0 0
  %6156 = vmatmul.mubr.bf16.gmra.mrb[0].mxu0 %v6059
  %v6157 = vpop.f32.mrb[0].mxu0
  %v6158 = vadd.f32 0.0, %v6157
  %v6159 = vpop.f32.mrb[0].mxu0
  %v6160 = vpop.f32.mrb[0].mxu0
  %v6161 = vadd.f32 0.0, %v6160
  %v6162 = vpop.f32.mrb[0].mxu0
  %6163 = vmatprep.mubr.bf16.mxu0 0
  %6164 = vmatmul.mubr.bf16.gmra.mrb[0].mxu0 %v6060
  %v6165 = vpop.f32.mrb[0].mxu0
  %v6166 = vadd.f32 0.0, %v6165
  %v6167 = vpop.f32.mrb[0].mxu0
  %v6168 = vpop.f32.mrb[0].mxu0
  %v6169 = vadd.f32 0.0, %v6168
  %v6170 = vpop.f32.mrb[0].mxu0
  %6171 = vmatprep.mubr.bf16.mxu0 0
  %6172 = vmatmul.mubr.bf16.gmra.mrb[0].mxu0 %v6061
  %v6173 = vpop.f32.mrb[0].mxu0
  %v6174 = vadd.f32 0.0, %v6173
  %v6175 = vpop.f32.mrb[0].mxu0
  %v6176 = vpop.f32.mrb[0].mxu0
  %v6177 = vadd.f32 0.0, %v6176
  %v6178 = vpop.f32.mrb[0].mxu0
  %6179 = vmatprep.mubr.bf16.mxu0 0
  %6180 = vmatmul.mubr.bf16.gmra.mrb[0].mxu0 %v6062
  %v6181 = vpop.f32.mrb[0].mxu0
  %v6182 = vadd.f32 0.0, %v6181
  %v6183 = vpop.f32.mrb[0].mxu0
  %v6184 = vpop.f32.mrb[0].mxu0
  %v6185 = vadd.f32 0.0, %v6184
  %v6186 = vpop.f32.mrb[0].mxu0
  %6187 = vmatprep.mubr.bf16.mxu0 0
  %6188 = vmatmul.mubr.bf16.gmra.mrb[0].mxu0 %v6063
  %v6189 = vpop.f32.mrb[0].mxu0
  %v6190 = vadd.f32 0.0, %v6189
  %v6191 = vpop.f32.mrb[0].mxu0
  %v6192 = vpop.f32.mrb[0].mxu0
  %v6193 = vadd.f32 0.0, %v6192
  %v6194 = vpop.f32.mrb[0].mxu0
  %6195 = vmatprep.mubr.bf16.mxu0 0
  %6196 = vmatmul.mubr.bf16.gmra.mrb[0].mxu0 %v6064
  %v6197 = vpop.f32.mrb[0].mxu0
  %v6198 = vadd.f32 0.0, %v6197
  %v6199 = vpop.f32.mrb[0].mxu0
  %v6200 = vpop.f32.mrb[0].mxu0
  %v6201 = vadd.f32 0.0, %v6200
  %v6202 = vpop.f32.mrb[0].mxu0
  %6203 = vmatprep.mubr.bf16.mxu0 0
  %6204 = vmatmul.mubr.bf16.gmra.mrb[0].mxu0 %v6065
  %v6205 = vpop.f32.mrb[0].mxu0
  %v6206 = vadd.f32 0.0, %v6205
  %v6207 = vpop.f32.mrb[0].mxu0
  %v6208 = vpop.f32.mrb[0].mxu0
  %v6209 = vadd.f32 0.0, %v6208
  %v6210 = vpop.f32.mrb[0].mxu0
  %6211 = vmatprep.mubr.bf16.mxu0 0
  %6212 = vmatmul.mubr.bf16.gmra.mrb[0].mxu0 %v6066
  %v6213 = vpop.f32.mrb[0].mxu0
  %v6214 = vadd.f32 0.0, %v6213
  %v6215 = vpop.f32.mrb[0].mxu0
  %v6216 = vpop.f32.mrb[0].mxu0
  %v6217 = vadd.f32 0.0, %v6216
  %v6218 = vpop.f32.mrb[0].mxu0
  %6219 = vdwg.mxu0
  %v6220 = vadd.f32 %v5978, %v6158
  %v6221 = vadd.f32 %v5979, %v6161
  %v6222 = vadd.f32 %v5980, %v6166
  %v6223 = vadd.f32 %v5981, %v6169
  %v6224 = vadd.f32 %v5982, %v6174
  %v6225 = vadd.f32 %v5983, %v6177
  %v6226 = vadd.f32 %v5984, %v6182
  %v6227 = vadd.f32 %v5985, %v6185
  %v6228 = vadd.f32 %v5986, %v6190
  %v6229 = vadd.f32 %v5987, %v6193
  %v6230 = vadd.f32 %v5988, %v6198
  %v6231 = vadd.f32 %v5989, %v6201
  %v6232 = vadd.f32 %v5990, %v6206
  %v6233 = vadd.f32 %v5991, %v6209
  %v6234 = vadd.f32 %v5992, %v6214
  %v6235 = vadd.f32 %v5993, %v6217
  %v6236 = vld [vmem:[%s4916] sm:$0xf]
  %v6237 = vld [vmem:[%s4916 + $0x4] sm:$0x1]
  %v6238 = vld [vmem:[%s4916 + $0x8] sm:$0xf]
  %v6239 = vld [vmem:[%s4916 + $0xc] sm:$0x1]
  %v6240 = vld [vmem:[%s4916 + $0x10] sm:$0xf]
  %v6241 = vld [vmem:[%s4916 + $0x14] sm:$0x1]
  %v6242 = vld [vmem:[%s4916 + $0x18] sm:$0xf]
  %v6243 = vld [vmem:[%s4916 + $0x1c] sm:$0x1]
  %v6244 = vld [vmem:[%s4916 + $0x20] sm:$0xf]
  %v6245 = vld [vmem:[%s4916 + $0x24] sm:$0x1]
  %v6246 = vld [vmem:[%s4916 + $0x28] sm:$0xf]
  %v6247 = vld [vmem:[%s4916 + $0x2c] sm:$0x1]
  %v6248 = vld [vmem:[%s4916 + $0x30] sm:$0xf]
  %v6249 = vld [vmem:[%s4916 + $0x34] sm:$0x1]
  %v6250 = vld [vmem:[%s4916 + $0x38] sm:$0xf]
  %v6251 = vld [vmem:[%s4916 + $0x3c] sm:$0x1]
  %v6252 = vld [vmem:[%s4916 + $0x50] sm:$0xf]
  %v6253 = vld [vmem:[%s4916 + $0x54] sm:$0x1]
  %v6254 = vld [vmem:[%s4916 + $0x58] sm:$0xf]
  %v6255 = vld [vmem:[%s4916 + $0x5c] sm:$0x1]
  %v6256 = vld [vmem:[%s4916 + $0x60] sm:$0xf]
  %v6257 = vld [vmem:[%s4916 + $0x64] sm:$0x1]
  %v6258 = vld [vmem:[%s4916 + $0x68] sm:$0xf]
  %v6259 = vld [vmem:[%s4916 + $0x6c] sm:$0x1]
  %v6260 = vld [vmem:[%s4916 + $0x70] sm:$0xf]
  %v6261 = vld [vmem:[%s4916 + $0x74] sm:$0x1]
  %v6262 = vld [vmem:[%s4916 + $0x78] sm:$0xf]
  %v6263 = vld [vmem:[%s4916 + $0x7c] sm:$0x1]
  %v6264 = vld [vmem:[%s4916 + $0x80] sm:$0xf]
  %v6265 = vld [vmem:[%s4916 + $0x84] sm:$0x1]
  %v6266 = vld [vmem:[%s4916 + $0x88] sm:$0xf]
  %v6267 = vld [vmem:[%s4916 + $0x8c] sm:$0x1]
  %v6269 = vshrl.u32 %v6236, 16
  %v6271 = vrot.slane %v6269, 4
  %v6272 = vshll.u32 %v6236, 16
  %v6274 = vrot.slane %v6272, 5
  %v6275 = vor.u32 %v6271, %v6274
  %v6276 = vrot.slane %v6275, 4
  %v6278 = vshll.u32 %v6237, 16
  %v6280 = vrot.slane %v6278, 5
  %v6281 = vsel %vm784, %v6276, %v6280
  %v6283 = vshrl.u32 %v6238, 16
  %v6285 = vrot.slane %v6283, 4
  %v6286 = vshll.u32 %v6238, 16
  %v6288 = vrot.slane %v6286, 5
  %v6289 = vor.u32 %v6285, %v6288
  %v6290 = vrot.slane %v6289, 4
  %v6292 = vshll.u32 %v6239, 16
  %v6294 = vrot.slane %v6292, 5
  %v6295 = vsel %vm784, %v6290, %v6294
  %v6297 = vshrl.u32 %v6240, 16
  %v6299 = vrot.slane %v6297, 4
  %v6300 = vshll.u32 %v6240, 16
  %v6302 = vrot.slane %v6300, 5
  %v6303 = vor.u32 %v6299, %v6302
  %v6304 = vrot.slane %v6303, 4
  %v6306 = vshll.u32 %v6241, 16
  %v6308 = vrot.slane %v6306, 5
  %v6309 = vsel %vm784, %v6304, %v6308
  %v6311 = vshrl.u32 %v6242, 16
  %v6313 = vrot.slane %v6311, 4
  %v6314 = vshll.u32 %v6242, 16
  %v6316 = vrot.slane %v6314, 5
  %v6317 = vor.u32 %v6313, %v6316
  %v6318 = vrot.slane %v6317, 4
  %v6320 = vshll.u32 %v6243, 16
  %v6322 = vrot.slane %v6320, 5
  %v6323 = vsel %vm784, %v6318, %v6322
  %v6325 = vshrl.u32 %v6244, 16
  %v6327 = vrot.slane %v6325, 4
  %v6328 = vshll.u32 %v6244, 16
  %v6330 = vrot.slane %v6328, 5
  %v6331 = vor.u32 %v6327, %v6330
  %v6332 = vrot.slane %v6331, 4
  %v6334 = vshll.u32 %v6245, 16
  %v6336 = vrot.slane %v6334, 5
  %v6337 = vsel %vm784, %v6332, %v6336
  %v6339 = vshrl.u32 %v6246, 16
  %v6341 = vrot.slane %v6339, 4
  %v6342 = vshll.u32 %v6246, 16
  %v6344 = vrot.slane %v6342, 5
  %v6345 = vor.u32 %v6341, %v6344
  %v6346 = vrot.slane %v6345, 4
  %v6348 = vshll.u32 %v6247, 16
  %v6350 = vrot.slane %v6348, 5
  %v6351 = vsel %vm784, %v6346, %v6350
  %v6353 = vshrl.u32 %v6248, 16
  %v6355 = vrot.slane %v6353, 4
  %v6356 = vshll.u32 %v6248, 16
  %v6358 = vrot.slane %v6356, 5
  %v6359 = vor.u32 %v6355, %v6358
  %v6360 = vrot.slane %v6359, 4
  %v6362 = vshll.u32 %v6249, 16
  %v6364 = vrot.slane %v6362, 5
  %v6365 = vsel %vm784, %v6360, %v6364
  %v6367 = vshrl.u32 %v6250, 16
  %v6369 = vrot.slane %v6367, 4
  %v6370 = vshll.u32 %v6250, 16
  %v6372 = vrot.slane %v6370, 5
  %v6373 = vor.u32 %v6369, %v6372
  %v6374 = vrot.slane %v6373, 4
  %v6376 = vshll.u32 %v6251, 16
  %v6378 = vrot.slane %v6376, 5
  %v6379 = vsel %vm784, %v6374, %v6378
  %v6381 = vshrl.u32 %v6252, 16
  %v6383 = vrot.slane %v6381, 4
  %v6384 = vshll.u32 %v6252, 16
  %v6386 = vrot.slane %v6384, 5
  %v6387 = vor.u32 %v6383, %v6386
  %v6388 = vrot.slane %v6387, 4
  %v6390 = vshll.u32 %v6253, 16
  %v6392 = vrot.slane %v6390, 5
  %v6393 = vsel %vm784, %v6388, %v6392
  %v6395 = vshrl.u32 %v6254, 16
  %v6397 = vrot.slane %v6395, 4
  %v6398 = vshll.u32 %v6254, 16
  %v6400 = vrot.slane %v6398, 5
  %v6401 = vor.u32 %v6397, %v6400
  %v6402 = vrot.slane %v6401, 4
  %v6404 = vshll.u32 %v6255, 16
  %v6406 = vrot.slane %v6404, 5
  %v6407 = vsel %vm784, %v6402, %v6406
  %v6409 = vshrl.u32 %v6256, 16
  %v6411 = vrot.slane %v6409, 4
  %v6412 = vshll.u32 %v6256, 16
  %v6414 = vrot.slane %v6412, 5
  %v6415 = vor.u32 %v6411, %v6414
  %v6416 = vrot.slane %v6415, 4
  %v6418 = vshll.u32 %v6257, 16
  %v6420 = vrot.slane %v6418, 5
  %v6421 = vsel %vm784, %v6416, %v6420
  %v6423 = vshrl.u32 %v6258, 16
  %v6425 = vrot.slane %v6423, 4
  %v6426 = vshll.u32 %v6258, 16
  %v6428 = vrot.slane %v6426, 5
  %v6429 = vor.u32 %v6425, %v6428
  %v6430 = vrot.slane %v6429, 4
  %v6432 = vshll.u32 %v6259, 16
  %v6434 = vrot.slane %v6432, 5
  %v6435 = vsel %vm784, %v6430, %v6434
  %v6437 = vshrl.u32 %v6260, 16
  %v6439 = vrot.slane %v6437, 4
  %v6440 = vshll.u32 %v6260, 16
  %v6442 = vrot.slane %v6440, 5
  %v6443 = vor.u32 %v6439, %v6442
  %v6444 = vrot.slane %v6443, 4
  %v6446 = vshll.u32 %v6261, 16
  %v6448 = vrot.slane %v6446, 5
  %v6449 = vsel %vm784, %v6444, %v6448
  %v6451 = vshrl.u32 %v6262, 16
  %v6453 = vrot.slane %v6451, 4
  %v6454 = vshll.u32 %v6262, 16
  %v6456 = vrot.slane %v6454, 5
  %v6457 = vor.u32 %v6453, %v6456
  %v6458 = vrot.slane %v6457, 4
  %v6460 = vshll.u32 %v6263, 16
  %v6462 = vrot.slane %v6460, 5
  %v6463 = vsel %vm784, %v6458, %v6462
  %v6465 = vshrl.u32 %v6264, 16
  %v6467 = vrot.slane %v6465, 4
  %v6468 = vshll.u32 %v6264, 16
  %v6470 = vrot.slane %v6468, 5
  %v6471 = vor.u32 %v6467, %v6470
  %v6472 = vrot.slane %v6471, 4
  %v6474 = vshll.u32 %v6265, 16
  %v6476 = vrot.slane %v6474, 5
  %v6477 = vsel %vm784, %v6472, %v6476
  %v6479 = vshrl.u32 %v6266, 16
  %v6481 = vrot.slane %v6479, 4
  %v6482 = vshll.u32 %v6266, 16
  %v6484 = vrot.slane %v6482, 5
  %v6485 = vor.u32 %v6481, %v6484
  %v6486 = vrot.slane %v6485, 4
  %v6488 = vshll.u32 %v6267, 16
  %v6490 = vrot.slane %v6488, 5
  %v6491 = vsel %vm784, %v6486, %v6490
  %s6492 = scalar_lea.vmem %s4, 256
  %v6493 = vld [vmem:[%s6492] sm:$0xf]
  %v6494 = vld [vmem:[%s6492 + $0x4] sm:$0xf]
  %v6495 = vld [vmem:[%s6492 + $0x8] sm:$0xf]
  %v6496 = vld [vmem:[%s6492 + $0xc] sm:$0xf]
  %v6497 = vld [vmem:[%s6492 + $0x10] sm:$0xf]
  %v6498 = vld [vmem:[%s6492 + $0x14] sm:$0xf]
  %v6499 = vld [vmem:[%s6492 + $0x18] sm:$0xf]
  %v6500 = vld [vmem:[%s6492 + $0x1c] sm:$0xf]
  %v6501 = vld [vmem:[%s6492 + $0x20] sm:$0xf]
  %v6502 = vld [vmem:[%s6492 + $0x24] sm:$0xf]
  %v6503 = vld [vmem:[%s6492 + $0x28] sm:$0xf]
  %v6504 = vld [vmem:[%s6492 + $0x2c] sm:$0xf]
  %v6505 = vld [vmem:[%s6492 + $0x30] sm:$0xf]
  %v6506 = vld [vmem:[%s6492 + $0x34] sm:$0xf]
  %v6507 = vld [vmem:[%s6492 + $0x38] sm:$0xf]
  %v6508 = vld [vmem:[%s6492 + $0x3c] sm:$0xf]
  %v6509 = vunpack.c.l.b16 %v6281
  %v6510 = vunpack.c.l.b16 %v6295
  %v6511 = vunpack.c.l.b16 %v6309
  %v6512 = vunpack.c.l.b16 %v6323
  %v6513 = vunpack.c.l.b16 %v6337
  %v6514 = vunpack.c.l.b16 %v6351
  %v6515 = vunpack.c.l.b16 %v6365
  %v6516 = vunpack.c.l.b16 %v6379
  %v6517 = vunpack.c.l.b16 %v6393
  %v6518 = vunpack.c.l.b16 %v6407
  %v6519 = vunpack.c.l.b16 %v6421
  %v6520 = vunpack.c.l.b16 %v6435
  %v6521 = vunpack.c.l.b16 %v6449
  %v6522 = vunpack.c.l.b16 %v6463
  %v6523 = vunpack.c.l.b16 %v6477
  %v6524 = vunpack.c.l.b16 %v6491
  %v6525 = vpack.c.b16 %v6510, %v6509
  %v6526 = vpack.c.b16 %v6512, %v6511
  %v6527 = vpack.c.b16 %v6514, %v6513
  %v6528 = vpack.c.b16 %v6516, %v6515
  %v6529 = vpack.c.b16 %v6518, %v6517
  %v6530 = vpack.c.b16 %v6520, %v6519
  %v6531 = vpack.c.b16 %v6522, %v6521
  %v6532 = vpack.c.b16 %v6524, %v6523
  %v6557 = vunpack.c.l.b16 %v6493
  %v6558 = vunpack.c.l.b16 %v6494
  %v6559 = vunpack.c.l.b16 %v6495
  %v6560 = vunpack.c.l.b16 %v6496
  %v6561 = vunpack.c.l.b16 %v6497
  %v6562 = vunpack.c.l.b16 %v6498
  %v6563 = vunpack.c.l.b16 %v6499
  %v6564 = vunpack.c.l.b16 %v6500
  %v6565 = vunpack.c.l.b16 %v6501
  %v6566 = vunpack.c.l.b16 %v6502
  %v6567 = vunpack.c.l.b16 %v6503
  %v6568 = vunpack.c.l.b16 %v6504
  %v6569 = vunpack.c.l.b16 %v6505
  %v6570 = vunpack.c.l.b16 %v6506
  %v6571 = vunpack.c.l.b16 %v6507
  %v6572 = vunpack.c.l.b16 %v6508
  %v6573 = vpack.c.b16 %v6558, %v6557
  %v6574 = vpack.c.b16 %v6560, %v6559
  %v6575 = vpack.c.b16 %v6562, %v6561
  %v6576 = vpack.c.b16 %v6564, %v6563
  %v6577 = vpack.c.b16 %v6566, %v6565
  %v6578 = vpack.c.b16 %v6568, %v6567
  %v6579 = vpack.c.b16 %v6570, %v6569
  %v6580 = vpack.c.b16 %v6572, %v6571
  %6589 = vmatprep.subr.bf16.mxu0 0
  %6590 = vmatpush1.bf16.msra.mxu0 %v6573
  %6591 = vmatprep.subr.bf16.mxu0 0
  %6592 = vmatpush1.bf16.msra.mxu0 %v6574
  %6593 = vmatprep.subr.bf16.mxu0 0
  %6594 = vmatpush1.bf16.msra.mxu0 %v6575
  %6595 = vmatprep.subr.bf16.mxu0 0
  %6596 = vmatpush1.bf16.msra.mxu0 %v6576
  %6597 = vmatprep.subr.bf16.mxu0 0
  %6598 = vmatpush1.bf16.msra.mxu0 %v6577
  %6599 = vmatprep.subr.bf16.mxu0 0
  %6600 = vmatpush1.bf16.msra.mxu0 %v6578
  %6601 = vmatprep.subr.bf16.mxu0 0
  %6602 = vmatpush1.bf16.msra.mxu0 %v6579
  %6603 = vmatprep.subr.bf16.mxu0 0
  %6604 = vmatpush1.bf16.msra.mxu0 %v6580
  %6605 = vmatprep.subr.bf16.mxu0 0
  %6606 = vmatpush1.bf16.msra.mxu0 0
  %6607 = vmatprep.subr.bf16.mxu0 0
  %6608 = vmatpush1.bf16.msra.mxu0 0
  %6609 = vmatprep.subr.bf16.mxu0 0
  %6610 = vmatpush1.bf16.msra.mxu0 0
  %6611 = vmatprep.subr.bf16.mxu0 0
  %6612 = vmatpush1.bf16.msra.mxu0 0
  %6613 = vmatprep.subr.bf16.mxu0 0
  %6614 = vmatpush1.bf16.msra.mxu0 0
  %6615 = vmatprep.subr.bf16.mxu0 0
  %6616 = vmatpush1.bf16.msra.mxu0 0
  %6617 = vmatprep.subr.bf16.mxu0 0
  %6618 = vmatpush1.bf16.msra.mxu0 0
  %6619 = vmatprep.subr.bf16.mxu0 0
  %6620 = vmatpush1.bf16.msra.mxu0 0
  %6621 = vmatprep.mubr.bf16.mxu0 0
  %6622 = vmatmul.mubr.bf16.gmra.mrb[0].mxu0 %v6525
  %v6623 = vpop.f32.mrb[0].mxu0
  %v6624 = vadd.f32 0.0, %v6623
  %v6625 = vpop.f32.mrb[0].mxu0
  %v6626 = vpop.f32.mrb[0].mxu0
  %v6627 = vadd.f32 0.0, %v6626
  %v6628 = vpop.f32.mrb[0].mxu0
  %6629 = vmatprep.mubr.bf16.mxu0 0
  %6630 = vmatmul.mubr.bf16.gmra.mrb[0].mxu0 %v6526
  %v6631 = vpop.f32.mrb[0].mxu0
  %v6632 = vadd.f32 0.0, %v6631
  %v6633 = vpop.f32.mrb[0].mxu0
  %v6634 = vpop.f32.mrb[0].mxu0
  %v6635 = vadd.f32 0.0, %v6634
  %v6636 = vpop.f32.mrb[0].mxu0
  %6637 = vmatprep.mubr.bf16.mxu0 0
  %6638 = vmatmul.mubr.bf16.gmra.mrb[0].mxu0 %v6527
  %v6639 = vpop.f32.mrb[0].mxu0
  %v6640 = vadd.f32 0.0, %v6639
  %v6641 = vpop.f32.mrb[0].mxu0
  %v6642 = vpop.f32.mrb[0].mxu0
  %v6643 = vadd.f32 0.0, %v6642
  %v6644 = vpop.f32.mrb[0].mxu0
  %6645 = vmatprep.mubr.bf16.mxu0 0
  %6646 = vmatmul.mubr.bf16.gmra.mrb[0].mxu0 %v6528
  %v6647 = vpop.f32.mrb[0].mxu0
  %v6648 = vadd.f32 0.0, %v6647
  %v6649 = vpop.f32.mrb[0].mxu0
  %v6650 = vpop.f32.mrb[0].mxu0
  %v6651 = vadd.f32 0.0, %v6650
  %v6652 = vpop.f32.mrb[0].mxu0
  %6653 = vmatprep.mubr.bf16.mxu0 0
  %6654 = vmatmul.mubr.bf16.gmra.mrb[0].mxu0 %v6529
  %v6655 = vpop.f32.mrb[0].mxu0
  %v6656 = vadd.f32 0.0, %v6655
  %v6657 = vpop.f32.mrb[0].mxu0
  %v6658 = vpop.f32.mrb[0].mxu0
  %v6659 = vadd.f32 0.0, %v6658
  %v6660 = vpop.f32.mrb[0].mxu0
  %6661 = vmatprep.mubr.bf16.mxu0 0
  %6662 = vmatmul.mubr.bf16.gmra.mrb[0].mxu0 %v6530
  %v6663 = vpop.f32.mrb[0].mxu0
  %v6664 = vadd.f32 0.0, %v6663
  %v6665 = vpop.f32.mrb[0].mxu0
  %v6666 = vpop.f32.mrb[0].mxu0
  %v6667 = vadd.f32 0.0, %v6666
  %v6668 = vpop.f32.mrb[0].mxu0
  %6669 = vmatprep.mubr.bf16.mxu0 0
  %6670 = vmatmul.mubr.bf16.gmra.mrb[0].mxu0 %v6531
  %v6671 = vpop.f32.mrb[0].mxu0
  %v6672 = vadd.f32 0.0, %v6671
  %v6673 = vpop.f32.mrb[0].mxu0
  %v6674 = vpop.f32.mrb[0].mxu0
  %v6675 = vadd.f32 0.0, %v6674
  %v6676 = vpop.f32.mrb[0].mxu0
  %6677 = vmatprep.mubr.bf16.mxu0 0
  %6678 = vmatmul.mubr.bf16.gmra.mrb[0].mxu0 %v6532
  %v6679 = vpop.f32.mrb[0].mxu0
  %v6680 = vadd.f32 0.0, %v6679
  %v6681 = vpop.f32.mrb[0].mxu0
  %v6682 = vpop.f32.mrb[0].mxu0
  %v6683 = vadd.f32 0.0, %v6682
  %v6684 = vpop.f32.mrb[0].mxu0
  %6685 = vdwg.mxu0
  %v6686 = vadd.f32 %v6220, %v6624
  %v6687 = vadd.f32 %v6221, %v6627
  %v6688 = vadd.f32 %v6222, %v6632
  %v6689 = vadd.f32 %v6223, %v6635
  %v6690 = vadd.f32 %v6224, %v6640
  %v6691 = vadd.f32 %v6225, %v6643
  %v6692 = vadd.f32 %v6226, %v6648
  %v6693 = vadd.f32 %v6227, %v6651
  %v6694 = vadd.f32 %v6228, %v6656
  %v6695 = vadd.f32 %v6229, %v6659
  %v6696 = vadd.f32 %v6230, %v6664
  %v6697 = vadd.f32 %v6231, %v6667
  %v6698 = vadd.f32 %v6232, %v6672
  %v6699 = vadd.f32 %v6233, %v6675
  %v6700 = vadd.f32 %v6234, %v6680
  %v6701 = vadd.f32 %v6235, %v6683
  %v6702 = vld [vmem:[%s4916] sm:$0xe]
  %v6703 = vld [vmem:[%s4916 + $0x8] sm:$0xe]
  %v6704 = vld [vmem:[%s4916 + $0x10] sm:$0xe]
  %v6705 = vld [vmem:[%s4916 + $0x18] sm:$0xe]
  %v6706 = vld [vmem:[%s4916 + $0x20] sm:$0xe]
  %v6707 = vld [vmem:[%s4916 + $0x28] sm:$0xe]
  %v6708 = vld [vmem:[%s4916 + $0x30] sm:$0xe]
  %v6709 = vld [vmem:[%s4916 + $0x38] sm:$0xe]
  %v6710 = vld [vmem:[%s4916 + $0x50] sm:$0xe]
  %v6711 = vld [vmem:[%s4916 + $0x58] sm:$0xe]
  %v6712 = vld [vmem:[%s4916 + $0x60] sm:$0xe]
  %v6713 = vld [vmem:[%s4916 + $0x68] sm:$0xe]
  %v6714 = vld [vmem:[%s4916 + $0x70] sm:$0xe]
  %v6715 = vld [vmem:[%s4916 + $0x78] sm:$0xe]
  %v6716 = vld [vmem:[%s4916 + $0x80] sm:$0xe]
  %v6717 = vld [vmem:[%s4916 + $0x88] sm:$0xe]
  %v6750 = vrot.slane %v6702, 5
  %v6751 = vrot.slane %v6750, 4
  %v6752 = vrot.slane %v6237, 5
  %v6753 = vsel %vm1622, %v6751, %v6752
  %v6754 = vrot.slane %v6703, 5
  %v6755 = vrot.slane %v6754, 4
  %v6756 = vrot.slane %v6239, 5
  %v6757 = vsel %vm1622, %v6755, %v6756
  %v6758 = vrot.slane %v6704, 5
  %v6759 = vrot.slane %v6758, 4
  %v6760 = vrot.slane %v6241, 5
  %v6761 = vsel %vm1622, %v6759, %v6760
  %v6762 = vrot.slane %v6705, 5
  %v6763 = vrot.slane %v6762, 4
  %v6764 = vrot.slane %v6243, 5
  %v6765 = vsel %vm1622, %v6763, %v6764
  %v6766 = vrot.slane %v6706, 5
  %v6767 = vrot.slane %v6766, 4
  %v6768 = vrot.slane %v6245, 5
  %v6769 = vsel %vm1622, %v6767, %v6768
  %v6770 = vrot.slane %v6707, 5
  %v6771 = vrot.slane %v6770, 4
  %v6772 = vrot.slane %v6247, 5
  %v6773 = vsel %vm1622, %v6771, %v6772
  %v6774 = vrot.slane %v6708, 5
  %v6775 = vrot.slane %v6774, 4
  %v6776 = vrot.slane %v6249, 5
  %v6777 = vsel %vm1622, %v6775, %v6776
  %v6778 = vrot.slane %v6709, 5
  %v6779 = vrot.slane %v6778, 4
  %v6780 = vrot.slane %v6251, 5
  %v6781 = vsel %vm1622, %v6779, %v6780
  %v6782 = vrot.slane %v6710, 5
  %v6783 = vrot.slane %v6782, 4
  %v6784 = vrot.slane %v6253, 5
  %v6785 = vsel %vm1622, %v6783, %v6784
  %v6786 = vrot.slane %v6711, 5
  %v6787 = vrot.slane %v6786, 4
  %v6788 = vrot.slane %v6255, 5
  %v6789 = vsel %vm1622, %v6787, %v6788
  %v6790 = vrot.slane %v6712, 5
  %v6791 = vrot.slane %v6790, 4
  %v6792 = vrot.slane %v6257, 5
  %v6793 = vsel %vm1622, %v6791, %v6792
  %v6794 = vrot.slane %v6713, 5
  %v6795 = vrot.slane %v6794, 4
  %v6796 = vrot.slane %v6259, 5
  %v6797 = vsel %vm1622, %v6795, %v6796
  %v6798 = vrot.slane %v6714, 5
  %v6799 = vrot.slane %v6798, 4
  %v6800 = vrot.slane %v6261, 5
  %v6801 = vsel %vm1622, %v6799, %v6800
  %v6802 = vrot.slane %v6715, 5
  %v6803 = vrot.slane %v6802, 4
  %v6804 = vrot.slane %v6263, 5
  %v6805 = vsel %vm1622, %v6803, %v6804
  %v6806 = vrot.slane %v6716, 5
  %v6807 = vrot.slane %v6806, 4
  %v6808 = vrot.slane %v6265, 5
  %v6809 = vsel %vm1622, %v6807, %v6808
  %v6810 = vrot.slane %v6717, 5
  %v6811 = vrot.slane %v6810, 4
  %v6812 = vrot.slane %v6267, 5
  %v6813 = vsel %vm1622, %v6811, %v6812
  %s6814 = scalar_lea.vmem %s4, 320
  %v6815 = vld [vmem:[%s6814] sm:$0xf]
  %v6816 = vld [vmem:[%s6814 + $0x4] sm:$0xf]
  %v6817 = vld [vmem:[%s6814 + $0x8] sm:$0xf]
  %v6818 = vld [vmem:[%s6814 + $0xc] sm:$0xf]
  %v6819 = vld [vmem:[%s6814 + $0x10] sm:$0xf]
  %v6820 = vld [vmem:[%s6814 + $0x14] sm:$0xf]
  %v6821 = vld [vmem:[%s6814 + $0x18] sm:$0xf]
  %v6822 = vld [vmem:[%s6814 + $0x1c] sm:$0xf]
  %v6823 = vld [vmem:[%s6814 + $0x20] sm:$0xf]
  %v6824 = vld [vmem:[%s6814 + $0x24] sm:$0xf]
  %v6825 = vld [vmem:[%s6814 + $0x28] sm:$0xf]
  %v6826 = vld [vmem:[%s6814 + $0x2c] sm:$0xf]
  %v6827 = vld [vmem:[%s6814 + $0x30] sm:$0xf]
  %v6828 = vld [vmem:[%s6814 + $0x34] sm:$0xf]
  %v6829 = vld [vmem:[%s6814 + $0x38] sm:$0xf]
  %v6830 = vld [vmem:[%s6814 + $0x3c] sm:$0xf]
  %v6831 = vunpack.c.l.b16 %v6753
  %v6832 = vunpack.c.l.b16 %v6757
  %v6833 = vunpack.c.l.b16 %v6761
  %v6834 = vunpack.c.l.b16 %v6765
  %v6835 = vunpack.c.l.b16 %v6769
  %v6836 = vunpack.c.l.b16 %v6773
  %v6837 = vunpack.c.l.b16 %v6777
  %v6838 = vunpack.c.l.b16 %v6781
  %v6839 = vunpack.c.l.b16 %v6785
  %v6840 = vunpack.c.l.b16 %v6789
  %v6841 = vunpack.c.l.b16 %v6793
  %v6842 = vunpack.c.l.b16 %v6797
  %v6843 = vunpack.c.l.b16 %v6801
  %v6844 = vunpack.c.l.b16 %v6805
  %v6845 = vunpack.c.l.b16 %v6809
  %v6846 = vunpack.c.l.b16 %v6813
  %v6847 = vpack.c.b16 %v6832, %v6831
  %v6848 = vpack.c.b16 %v6834, %v6833
  %v6849 = vpack.c.b16 %v6836, %v6835
  %v6850 = vpack.c.b16 %v6838, %v6837
  %v6851 = vpack.c.b16 %v6840, %v6839
  %v6852 = vpack.c.b16 %v6842, %v6841
  %v6853 = vpack.c.b16 %v6844, %v6843
  %v6854 = vpack.c.b16 %v6846, %v6845
  %v6879 = vunpack.c.l.b16 %v6815
  %v6880 = vunpack.c.l.b16 %v6816
  %v6881 = vunpack.c.l.b16 %v6817
  %v6882 = vunpack.c.l.b16 %v6818
  %v6883 = vunpack.c.l.b16 %v6819
  %v6884 = vunpack.c.l.b16 %v6820
  %v6885 = vunpack.c.l.b16 %v6821
  %v6886 = vunpack.c.l.b16 %v6822
  %v6887 = vunpack.c.l.b16 %v6823
  %v6888 = vunpack.c.l.b16 %v6824
  %v6889 = vunpack.c.l.b16 %v6825
  %v6890 = vunpack.c.l.b16 %v6826
  %v6891 = vunpack.c.l.b16 %v6827
  %v6892 = vunpack.c.l.b16 %v6828
  %v6893 = vunpack.c.l.b16 %v6829
  %v6894 = vunpack.c.l.b16 %v6830
  %v6895 = vpack.c.b16 %v6880, %v6879
  %v6896 = vpack.c.b16 %v6882, %v6881
  %v6897 = vpack.c.b16 %v6884, %v6883
  %v6898 = vpack.c.b16 %v6886, %v6885
  %v6899 = vpack.c.b16 %v6888, %v6887
  %v6900 = vpack.c.b16 %v6890, %v6889
  %v6901 = vpack.c.b16 %v6892, %v6891
  %v6902 = vpack.c.b16 %v6894, %v6893
  %6911 = vmatprep.subr.bf16.mxu0 0
  %6912 = vmatpush1.bf16.msra.mxu0 %v6895
  %6913 = vmatprep.subr.bf16.mxu0 0
  %6914 = vmatpush1.bf16.msra.mxu0 %v6896
  %6915 = vmatprep.subr.bf16.mxu0 0
  %6916 = vmatpush1.bf16.msra.mxu0 %v6897
  %6917 = vmatprep.subr.bf16.mxu0 0
  %6918 = vmatpush1.bf16.msra.mxu0 %v6898
  %6919 = vmatprep.subr.bf16.mxu0 0
  %6920 = vmatpush1.bf16.msra.mxu0 %v6899
  %6921 = vmatprep.subr.bf16.mxu0 0
  %6922 = vmatpush1.bf16.msra.mxu0 %v6900
  %6923 = vmatprep.subr.bf16.mxu0 0
  %6924 = vmatpush1.bf16.msra.mxu0 %v6901
  %6925 = vmatprep.subr.bf16.mxu0 0
  %6926 = vmatpush1.bf16.msra.mxu0 %v6902
  %6927 = vmatprep.subr.bf16.mxu0 0
  %6928 = vmatpush1.bf16.msra.mxu0 0
  %6929 = vmatprep.subr.bf16.mxu0 0
  %6930 = vmatpush1.bf16.msra.mxu0 0
  %6931 = vmatprep.subr.bf16.mxu0 0
  %6932 = vmatpush1.bf16.msra.mxu0 0
  %6933 = vmatprep.subr.bf16.mxu0 0
  %6934 = vmatpush1.bf16.msra.mxu0 0
  %6935 = vmatprep.subr.bf16.mxu0 0
  %6936 = vmatpush1.bf16.msra.mxu0 0
  %6937 = vmatprep.subr.bf16.mxu0 0
  %6938 = vmatpush1.bf16.msra.mxu0 0
  %6939 = vmatprep.subr.bf16.mxu0 0
  %6940 = vmatpush1.bf16.msra.mxu0 0
  %6941 = vmatprep.subr.bf16.mxu0 0
  %6942 = vmatpush1.bf16.msra.mxu0 0
  %6943 = vmatprep.mubr.bf16.mxu0 0
  %6944 = vmatmul.mubr.bf16.gmra.mrb[0].mxu0 %v6847
  %v6945 = vpop.f32.mrb[0].mxu0
  %v6946 = vadd.f32 0.0, %v6945
  %v6947 = vpop.f32.mrb[0].mxu0
  %v6948 = vpop.f32.mrb[0].mxu0
  %v6949 = vadd.f32 0.0, %v6948
  %v6950 = vpop.f32.mrb[0].mxu0
  %6951 = vmatprep.mubr.bf16.mxu0 0
  %6952 = vmatmul.mubr.bf16.gmra.mrb[0].mxu0 %v6848
  %v6953 = vpop.f32.mrb[0].mxu0
  %v6954 = vadd.f32 0.0, %v6953
  %v6955 = vpop.f32.mrb[0].mxu0
  %v6956 = vpop.f32.mrb[0].mxu0
  %v6957 = vadd.f32 0.0, %v6956
  %v6958 = vpop.f32.mrb[0].mxu0
  %6959 = vmatprep.mubr.bf16.mxu0 0
  %6960 = vmatmul.mubr.bf16.gmra.mrb[0].mxu0 %v6849
  %v6961 = vpop.f32.mrb[0].mxu0
  %v6962 = vadd.f32 0.0, %v6961
  %v6963 = vpop.f32.mrb[0].mxu0
  %v6964 = vpop.f32.mrb[0].mxu0
  %v6965 = vadd.f32 0.0, %v6964
  %v6966 = vpop.f32.mrb[0].mxu0
  %6967 = vmatprep.mubr.bf16.mxu0 0
  %6968 = vmatmul.mubr.bf16.gmra.mrb[0].mxu0 %v6850
  %v6969 = vpop.f32.mrb[0].mxu0
  %v6970 = vadd.f32 0.0, %v6969
  %v6971 = vpop.f32.mrb[0].mxu0
  %v6972 = vpop.f32.mrb[0].mxu0
  %v6973 = vadd.f32 0.0, %v6972
  %v6974 = vpop.f32.mrb[0].mxu0
  %6975 = vmatprep.mubr.bf16.mxu0 0
  %6976 = vmatmul.mubr.bf16.gmra.mrb[0].mxu0 %v6851
  %v6977 = vpop.f32.mrb[0].mxu0
  %v6978 = vadd.f32 0.0, %v6977
  %v6979 = vpop.f32.mrb[0].mxu0
  %v6980 = vpop.f32.mrb[0].mxu0
  %v6981 = vadd.f32 0.0, %v6980
  %v6982 = vpop.f32.mrb[0].mxu0
  %6983 = vmatprep.mubr.bf16.mxu0 0
  %6984 = vmatmul.mubr.bf16.gmra.mrb[0].mxu0 %v6852
  %v6985 = vpop.f32.mrb[0].mxu0
  %v6986 = vadd.f32 0.0, %v6985
  %v6987 = vpop.f32.mrb[0].mxu0
  %v6988 = vpop.f32.mrb[0].mxu0
  %v6989 = vadd.f32 0.0, %v6988
  %v6990 = vpop.f32.mrb[0].mxu0
  %6991 = vmatprep.mubr.bf16.mxu0 0
  %6992 = vmatmul.mubr.bf16.gmra.mrb[0].mxu0 %v6853
  %v6993 = vpop.f32.mrb[0].mxu0
  %v6994 = vadd.f32 0.0, %v6993
  %v6995 = vpop.f32.mrb[0].mxu0
  %v6996 = vpop.f32.mrb[0].mxu0
  %v6997 = vadd.f32 0.0, %v6996
  %v6998 = vpop.f32.mrb[0].mxu0
  %6999 = vmatprep.mubr.bf16.mxu0 0
  %7000 = vmatmul.mubr.bf16.gmra.mrb[0].mxu0 %v6854
  %v7001 = vpop.f32.mrb[0].mxu0
  %v7002 = vadd.f32 0.0, %v7001
  %v7003 = vpop.f32.mrb[0].mxu0
  %v7004 = vpop.f32.mrb[0].mxu0
  %v7005 = vadd.f32 0.0, %v7004
  %v7006 = vpop.f32.mrb[0].mxu0
  %7007 = vdwg.mxu0
  %v7008 = vadd.f32 %v6686, %v6946
  %v7009 = vadd.f32 %v6687, %v6949
  %v7010 = vadd.f32 %v6688, %v6954
  %v7011 = vadd.f32 %v6689, %v6957
  %v7012 = vadd.f32 %v6690, %v6962
  %v7013 = vadd.f32 %v6691, %v6965
  %v7014 = vadd.f32 %v6692, %v6970
  %v7015 = vadd.f32 %v6693, %v6973
  %v7016 = vadd.f32 %v6694, %v6978
  %v7017 = vadd.f32 %v6695, %v6981
  %v7018 = vadd.f32 %v6696, %v6986
  %v7019 = vadd.f32 %v6697, %v6989
  %v7020 = vadd.f32 %v6698, %v6994
  %v7021 = vadd.f32 %v6699, %v6997
  %v7022 = vadd.f32 %v6700, %v7002
  %v7023 = vadd.f32 %v6701, %v7005
  %s7024 = scalar_lea.vmem [#allocation3], 16
  %v7025 = vld [vmem:[%s7024] sm:$0xf]
  %v7026 = vld [vmem:[%s7024 + $0x8] sm:$0xf]
  %v7027 = vld [vmem:[%s7024 + $0x10] sm:$0xf]
  %v7028 = vld [vmem:[%s7024 + $0x18] sm:$0xf]
  %v7029 = vld [vmem:[%s7024 + $0x20] sm:$0xf]
  %v7030 = vld [vmem:[%s7024 + $0x28] sm:$0xf]
  %v7031 = vld [vmem:[%s7024 + $0x30] sm:$0xf]
  %v7032 = vld [vmem:[%s7024 + $0x38] sm:$0xf]
  %v7033 = vld [vmem:[%s7024 + $0x50] sm:$0xf]
  %v7034 = vld [vmem:[%s7024 + $0x58] sm:$0xf]
  %v7035 = vld [vmem:[%s7024 + $0x60] sm:$0xf]
  %v7036 = vld [vmem:[%s7024 + $0x68] sm:$0xf]
  %v7037 = vld [vmem:[%s7024 + $0x70] sm:$0xf]
  %v7038 = vld [vmem:[%s7024 + $0x78] sm:$0xf]
  %v7039 = vld [vmem:[%s7024 + $0x80] sm:$0xf]
  %v7040 = vld [vmem:[%s7024 + $0x88] sm:$0xf]
  %s7041 = scalar_lea.vmem %s4, 384
  %v7042 = vld [vmem:[%s7041] sm:$0xf]
  %v7043 = vld [vmem:[%s7041 + $0x4] sm:$0xf]
  %v7044 = vld [vmem:[%s7041 + $0x8] sm:$0xf]
  %v7045 = vld [vmem:[%s7041 + $0xc] sm:$0xf]
  %v7046 = vld [vmem:[%s7041 + $0x10] sm:$0xf]
  %v7047 = vld [vmem:[%s7041 + $0x14] sm:$0xf]
  %v7048 = vld [vmem:[%s7041 + $0x18] sm:$0xf]
  %v7049 = vld [vmem:[%s7041 + $0x1c] sm:$0xf]
  %v7050 = vld [vmem:[%s7041 + $0x20] sm:$0xf]
  %v7051 = vld [vmem:[%s7041 + $0x24] sm:$0xf]
  %v7052 = vld [vmem:[%s7041 + $0x28] sm:$0xf]
  %v7053 = vld [vmem:[%s7041 + $0x2c] sm:$0xf]
  %v7054 = vld [vmem:[%s7041 + $0x30] sm:$0xf]
  %v7055 = vld [vmem:[%s7041 + $0x34] sm:$0xf]
  %v7056 = vld [vmem:[%s7041 + $0x38] sm:$0xf]
  %v7057 = vld [vmem:[%s7041 + $0x3c] sm:$0xf]
  %v7074 = vunpack.c.l.b16 %v7025
  %v7075 = vunpack.c.l.b16 %v7026
  %v7076 = vunpack.c.l.b16 %v7027
  %v7077 = vunpack.c.l.b16 %v7028
  %v7078 = vunpack.c.l.b16 %v7029
  %v7079 = vunpack.c.l.b16 %v7030
  %v7080 = vunpack.c.l.b16 %v7031
  %v7081 = vunpack.c.l.b16 %v7032
  %v7082 = vunpack.c.l.b16 %v7033
  %v7083 = vunpack.c.l.b16 %v7034
  %v7084 = vunpack.c.l.b16 %v7035
  %v7085 = vunpack.c.l.b16 %v7036
  %v7086 = vunpack.c.l.b16 %v7037
  %v7087 = vunpack.c.l.b16 %v7038
  %v7088 = vunpack.c.l.b16 %v7039
  %v7089 = vunpack.c.l.b16 %v7040
  %v7090 = vpack.c.b16 %v7075, %v7074
  %v7091 = vpack.c.b16 %v7077, %v7076
  %v7092 = vpack.c.b16 %v7079, %v7078
  %v7093 = vpack.c.b16 %v7081, %v7080
  %v7094 = vpack.c.b16 %v7083, %v7082
  %v7095 = vpack.c.b16 %v7085, %v7084
  %v7096 = vpack.c.b16 %v7087, %v7086
  %v7097 = vpack.c.b16 %v7089, %v7088
  %v7122 = vunpack.c.l.b16 %v7042
  %v7123 = vunpack.c.l.b16 %v7043
  %v7124 = vunpack.c.l.b16 %v7044
  %v7125 = vunpack.c.l.b16 %v7045
  %v7126 = vunpack.c.l.b16 %v7046
  %v7127 = vunpack.c.l.b16 %v7047
  %v7128 = vunpack.c.l.b16 %v7048
  %v7129 = vunpack.c.l.b16 %v7049
  %v7130 = vunpack.c.l.b16 %v7050
  %v7131 = vunpack.c.l.b16 %v7051
  %v7132 = vunpack.c.l.b16 %v7052
  %v7133 = vunpack.c.l.b16 %v7053
  %v7134 = vunpack.c.l.b16 %v7054
  %v7135 = vunpack.c.l.b16 %v7055
  %v7136 = vunpack.c.l.b16 %v7056
  %v7137 = vunpack.c.l.b16 %v7057
  %v7138 = vpack.c.b16 %v7123, %v7122
  %v7139 = vpack.c.b16 %v7125, %v7124
  %v7140 = vpack.c.b16 %v7127, %v7126
  %v7141 = vpack.c.b16 %v7129, %v7128
  %v7142 = vpack.c.b16 %v7131, %v7130
  %v7143 = vpack.c.b16 %v7133, %v7132
  %v7144 = vpack.c.b16 %v7135, %v7134
  %v7145 = vpack.c.b16 %v7137, %v7136
  %7154 = vmatprep.subr.bf16.mxu0 0
  %7155 = vmatpush1.bf16.msra.mxu0 %v7138
  %7156 = vmatprep.subr.bf16.mxu0 0
  %7157 = vmatpush1.bf16.msra.mxu0 %v7139
  %7158 = vmatprep.subr.bf16.mxu0 0
  %7159 = vmatpush1.bf16.msra.mxu0 %v7140
  %7160 = vmatprep.subr.bf16.mxu0 0
  %7161 = vmatpush1.bf16.msra.mxu0 %v7141
  %7162 = vmatprep.subr.bf16.mxu0 0
  %7163 = vmatpush1.bf16.msra.mxu0 %v7142
  %7164 = vmatprep.subr.bf16.mxu0 0
  %7165 = vmatpush1.bf16.msra.mxu0 %v7143
  %7166 = vmatprep.subr.bf16.mxu0 0
  %7167 = vmatpush1.bf16.msra.mxu0 %v7144
  %7168 = vmatprep.subr.bf16.mxu0 0
  %7169 = vmatpush1.bf16.msra.mxu0 %v7145
  %7170 = vmatprep.subr.bf16.mxu0 0
  %7171 = vmatpush1.bf16.msra.mxu0 0
  %7172 = vmatprep.subr.bf16.mxu0 0
  %7173 = vmatpush1.bf16.msra.mxu0 0
  %7174 = vmatprep.subr.bf16.mxu0 0
  %7175 = vmatpush1.bf16.msra.mxu0 0
  %7176 = vmatprep.subr.bf16.mxu0 0
  %7177 = vmatpush1.bf16.msra.mxu0 0
  %7178 = vmatprep.subr.bf16.mxu0 0
  %7179 = vmatpush1.bf16.msra.mxu0 0
  %7180 = vmatprep.subr.bf16.mxu0 0
  %7181 = vmatpush1.bf16.msra.mxu0 0
  %7182 = vmatprep.subr.bf16.mxu0 0
  %7183 = vmatpush1.bf16.msra.mxu0 0
  %7184 = vmatprep.subr.bf16.mxu0 0
  %7185 = vmatpush1.bf16.msra.mxu0 0
  %7186 = vmatprep.mubr.bf16.mxu0 0
  %7187 = vmatmul.mubr.bf16.gmra.mrb[0].mxu0 %v7090
  %v7188 = vpop.f32.mrb[0].mxu0
  %v7189 = vadd.f32 0.0, %v7188
  %v7190 = vpop.f32.mrb[0].mxu0
  %v7191 = vpop.f32.mrb[0].mxu0
  %v7192 = vadd.f32 0.0, %v7191
  %v7193 = vpop.f32.mrb[0].mxu0
  %7194 = vmatprep.mubr.bf16.mxu0 0
  %7195 = vmatmul.mubr.bf16.gmra.mrb[0].mxu0 %v7091
  %v7196 = vpop.f32.mrb[0].mxu0
  %v7197 = vadd.f32 0.0, %v7196
  %v7198 = vpop.f32.mrb[0].mxu0
  %v7199 = vpop.f32.mrb[0].mxu0
  %v7200 = vadd.f32 0.0, %v7199
  %v7201 = vpop.f32.mrb[0].mxu0
  %7202 = vmatprep.mubr.bf16.mxu0 0
  %7203 = vmatmul.mubr.bf16.gmra.mrb[0].mxu0 %v7092
  %v7204 = vpop.f32.mrb[0].mxu0
  %v7205 = vadd.f32 0.0, %v7204
  %v7206 = vpop.f32.mrb[0].mxu0
  %v7207 = vpop.f32.mrb[0].mxu0
  %v7208 = vadd.f32 0.0, %v7207
  %v7209 = vpop.f32.mrb[0].mxu0
  %7210 = vmatprep.mubr.bf16.mxu0 0
  %7211 = vmatmul.mubr.bf16.gmra.mrb[0].mxu0 %v7093
  %v7212 = vpop.f32.mrb[0].mxu0
  %v7213 = vadd.f32 0.0, %v7212
  %v7214 = vpop.f32.mrb[0].mxu0
  %v7215 = vpop.f32.mrb[0].mxu0
  %v7216 = vadd.f32 0.0, %v7215
  %v7217 = vpop.f32.mrb[0].mxu0
  %7218 = vmatprep.mubr.bf16.mxu0 0
  %7219 = vmatmul.mubr.bf16.gmra.mrb[0].mxu0 %v7094
  %v7220 = vpop.f32.mrb[0].mxu0
  %v7221 = vadd.f32 0.0, %v7220
  %v7222 = vpop.f32.mrb[0].mxu0
  %v7223 = vpop.f32.mrb[0].mxu0
  %v7224 = vadd.f32 0.0, %v7223
  %v7225 = vpop.f32.mrb[0].mxu0
  %7226 = vmatprep.mubr.bf16.mxu0 0
  %7227 = vmatmul.mubr.bf16.gmra.mrb[0].mxu0 %v7095
  %v7228 = vpop.f32.mrb[0].mxu0
  %v7229 = vadd.f32 0.0, %v7228
  %v7230 = vpop.f32.mrb[0].mxu0
  %v7231 = vpop.f32.mrb[0].mxu0
  %v7232 = vadd.f32 0.0, %v7231
  %v7233 = vpop.f32.mrb[0].mxu0
  %7234 = vmatprep.mubr.bf16.mxu0 0
  %7235 = vmatmul.mubr.bf16.gmra.mrb[0].mxu0 %v7096
  %v7236 = vpop.f32.mrb[0].mxu0
  %v7237 = vadd.f32 0.0, %v7236
  %v7238 = vpop.f32.mrb[0].mxu0
  %v7239 = vpop.f32.mrb[0].mxu0
  %v7240 = vadd.f32 0.0, %v7239
  %v7241 = vpop.f32.mrb[0].mxu0
  %7242 = vmatprep.mubr.bf16.mxu0 0
  %7243 = vmatmul.mubr.bf16.gmra.mrb[0].mxu0 %v7097
  %v7244 = vpop.f32.mrb[0].mxu0
  %v7245 = vadd.f32 0.0, %v7244
  %v7246 = vpop.f32.mrb[0].mxu0
  %v7247 = vpop.f32.mrb[0].mxu0
  %v7248 = vadd.f32 0.0, %v7247
  %v7249 = vpop.f32.mrb[0].mxu0
  %7250 = vdwg.mxu0
  %v7251 = vadd.f32 %v7008, %v7189
  %v7252 = vadd.f32 %v7009, %v7192
  %v7253 = vadd.f32 %v7010, %v7197
  %v7254 = vadd.f32 %v7011, %v7200
  %v7255 = vadd.f32 %v7012, %v7205
  %v7256 = vadd.f32 %v7013, %v7208
  %v7257 = vadd.f32 %v7014, %v7213
  %v7258 = vadd.f32 %v7015, %v7216
  %v7259 = vadd.f32 %v7016, %v7221
  %v7260 = vadd.f32 %v7017, %v7224
  %v7261 = vadd.f32 %v7018, %v7229
  %v7262 = vadd.f32 %v7019, %v7232
  %v7263 = vadd.f32 %v7020, %v7237
  %v7264 = vadd.f32 %v7021, %v7240
  %v7265 = vadd.f32 %v7022, %v7245
  %v7266 = vadd.f32 %v7023, %v7248
  %v7267 = vld [vmem:[%s7024] sm:$0xf]
  %v7268 = vld [vmem:[%s7024 + $0x4] sm:$0x1]
  %v7269 = vld [vmem:[%s7024 + $0x8] sm:$0xf]
  %v7270 = vld [vmem:[%s7024 + $0xc] sm:$0x1]
  %v7271 = vld [vmem:[%s7024 + $0x10] sm:$0xf]
  %v7272 = vld [vmem:[%s7024 + $0x14] sm:$0x1]
  %v7273 = vld [vmem:[%s7024 + $0x18] sm:$0xf]
  %v7274 = vld [vmem:[%s7024 + $0x1c] sm:$0x1]
  %v7275 = vld [vmem:[%s7024 + $0x20] sm:$0xf]
  %v7276 = vld [vmem:[%s7024 + $0x24] sm:$0x1]
  %v7277 = vld [vmem:[%s7024 + $0x28] sm:$0xf]
  %v7278 = vld [vmem:[%s7024 + $0x2c] sm:$0x1]
  %v7279 = vld [vmem:[%s7024 + $0x30] sm:$0xf]
  %v7280 = vld [vmem:[%s7024 + $0x34] sm:$0x1]
  %v7281 = vld [vmem:[%s7024 + $0x38] sm:$0xf]
  %v7282 = vld [vmem:[%s7024 + $0x3c] sm:$0x1]
  %v7283 = vld [vmem:[%s7024 + $0x50] sm:$0xf]
  %v7284 = vld [vmem:[%s7024 + $0x54] sm:$0x1]
  %v7285 = vld [vmem:[%s7024 + $0x58] sm:$0xf]
  %v7286 = vld [vmem:[%s7024 + $0x5c] sm:$0x1]
  %v7287 = vld [vmem:[%s7024 + $0x60] sm:$0xf]
  %v7288 = vld [vmem:[%s7024 + $0x64] sm:$0x1]
  %v7289 = vld [vmem:[%s7024 + $0x68] sm:$0xf]
  %v7290 = vld [vmem:[%s7024 + $0x6c] sm:$0x1]
  %v7291 = vld [vmem:[%s7024 + $0x70] sm:$0xf]
  %v7292 = vld [vmem:[%s7024 + $0x74] sm:$0x1]
  %v7293 = vld [vmem:[%s7024 + $0x78] sm:$0xf]
  %v7294 = vld [vmem:[%s7024 + $0x7c] sm:$0x1]
  %v7295 = vld [vmem:[%s7024 + $0x80] sm:$0xf]
  %v7296 = vld [vmem:[%s7024 + $0x84] sm:$0x1]
  %v7297 = vld [vmem:[%s7024 + $0x88] sm:$0xf]
  %v7298 = vld [vmem:[%s7024 + $0x8c] sm:$0x1]
  %v7300 = vshrl.u32 %v7267, 16
  %v7302 = vrot.slane %v7300, 4
  %v7303 = vshll.u32 %v7267, 16
  %v7305 = vrot.slane %v7303, 5
  %v7306 = vor.u32 %v7302, %v7305
  %v7307 = vrot.slane %v7306, 4
  %v7309 = vshll.u32 %v7268, 16
  %v7311 = vrot.slane %v7309, 5
  %v7312 = vsel %vm784, %v7307, %v7311
  %v7314 = vshrl.u32 %v7269, 16
  %v7316 = vrot.slane %v7314, 4
  %v7317 = vshll.u32 %v7269, 16
  %v7319 = vrot.slane %v7317, 5
  %v7320 = vor.u32 %v7316, %v7319
  %v7321 = vrot.slane %v7320, 4
  %v7323 = vshll.u32 %v7270, 16
  %v7325 = vrot.slane %v7323, 5
  %v7326 = vsel %vm784, %v7321, %v7325
  %v7328 = vshrl.u32 %v7271, 16
  %v7330 = vrot.slane %v7328, 4
  %v7331 = vshll.u32 %v7271, 16
  %v7333 = vrot.slane %v7331, 5
  %v7334 = vor.u32 %v7330, %v7333
  %v7335 = vrot.slane %v7334, 4
  %v7337 = vshll.u32 %v7272, 16
  %v7339 = vrot.slane %v7337, 5
  %v7340 = vsel %vm784, %v7335, %v7339
  %v7342 = vshrl.u32 %v7273, 16
  %v7344 = vrot.slane %v7342, 4
  %v7345 = vshll.u32 %v7273, 16
  %v7347 = vrot.slane %v7345, 5
  %v7348 = vor.u32 %v7344, %v7347
  %v7349 = vrot.slane %v7348, 4
  %v7351 = vshll.u32 %v7274, 16
  %v7353 = vrot.slane %v7351, 5
  %v7354 = vsel %vm784, %v7349, %v7353
  %v7356 = vshrl.u32 %v7275, 16
  %v7358 = vrot.slane %v7356, 4
  %v7359 = vshll.u32 %v7275, 16
  %v7361 = vrot.slane %v7359, 5
  %v7362 = vor.u32 %v7358, %v7361
  %v7363 = vrot.slane %v7362, 4
  %v7365 = vshll.u32 %v7276, 16
  %v7367 = vrot.slane %v7365, 5
  %v7368 = vsel %vm784, %v7363, %v7367
  %v7370 = vshrl.u32 %v7277, 16
  %v7372 = vrot.slane %v7370, 4
  %v7373 = vshll.u32 %v7277, 16
  %v7375 = vrot.slane %v7373, 5
  %v7376 = vor.u32 %v7372, %v7375
  %v7377 = vrot.slane %v7376, 4
  %v7379 = vshll.u32 %v7278, 16
  %v7381 = vrot.slane %v7379, 5
  %v7382 = vsel %vm784, %v7377, %v7381
  %v7384 = vshrl.u32 %v7279, 16
  %v7386 = vrot.slane %v7384, 4
  %v7387 = vshll.u32 %v7279, 16
  %v7389 = vrot.slane %v7387, 5
  %v7390 = vor.u32 %v7386, %v7389
  %v7391 = vrot.slane %v7390, 4
  %v7393 = vshll.u32 %v7280, 16
  %v7395 = vrot.slane %v7393, 5
  %v7396 = vsel %vm784, %v7391, %v7395
  %v7398 = vshrl.u32 %v7281, 16
  %v7400 = vrot.slane %v7398, 4
  %v7401 = vshll.u32 %v7281, 16
  %v7403 = vrot.slane %v7401, 5
  %v7404 = vor.u32 %v7400, %v7403
  %v7405 = vrot.slane %v7404, 4
  %v7407 = vshll.u32 %v7282, 16
  %v7409 = vrot.slane %v7407, 5
  %v7410 = vsel %vm784, %v7405, %v7409
  %v7412 = vshrl.u32 %v7283, 16
  %v7414 = vrot.slane %v7412, 4
  %v7415 = vshll.u32 %v7283, 16
  %v7417 = vrot.slane %v7415, 5
  %v7418 = vor.u32 %v7414, %v7417
  %v7419 = vrot.slane %v7418, 4
  %v7421 = vshll.u32 %v7284, 16
  %v7423 = vrot.slane %v7421, 5
  %v7424 = vsel %vm784, %v7419, %v7423
  %v7426 = vshrl.u32 %v7285, 16
  %v7428 = vrot.slane %v7426, 4
  %v7429 = vshll.u32 %v7285, 16
  %v7431 = vrot.slane %v7429, 5
  %v7432 = vor.u32 %v7428, %v7431
  %v7433 = vrot.slane %v7432, 4
  %v7435 = vshll.u32 %v7286, 16
  %v7437 = vrot.slane %v7435, 5
  %v7438 = vsel %vm784, %v7433, %v7437
  %v7440 = vshrl.u32 %v7287, 16
  %v7442 = vrot.slane %v7440, 4
  %v7443 = vshll.u32 %v7287, 16
  %v7445 = vrot.slane %v7443, 5
  %v7446 = vor.u32 %v7442, %v7445
  %v7447 = vrot.slane %v7446, 4
  %v7449 = vshll.u32 %v7288, 16
  %v7451 = vrot.slane %v7449, 5
  %v7452 = vsel %vm784, %v7447, %v7451
  %v7454 = vshrl.u32 %v7289, 16
  %v7456 = vrot.slane %v7454, 4
  %v7457 = vshll.u32 %v7289, 16
  %v7459 = vrot.slane %v7457, 5
  %v7460 = vor.u32 %v7456, %v7459
  %v7461 = vrot.slane %v7460, 4
  %v7463 = vshll.u32 %v7290, 16
  %v7465 = vrot.slane %v7463, 5
  %v7466 = vsel %vm784, %v7461, %v7465
  %v7468 = vshrl.u32 %v7291, 16
  %v7470 = vrot.slane %v7468, 4
  %v7471 = vshll.u32 %v7291, 16
  %v7473 = vrot.slane %v7471, 5
  %v7474 = vor.u32 %v7470, %v7473
  %v7475 = vrot.slane %v7474, 4
  %v7477 = vshll.u32 %v7292, 16
  %v7479 = vrot.slane %v7477, 5
  %v7480 = vsel %vm784, %v7475, %v7479
  %v7482 = vshrl.u32 %v7293, 16
  %v7484 = vrot.slane %v7482, 4
  %v7485 = vshll.u32 %v7293, 16
  %v7487 = vrot.slane %v7485, 5
  %v7488 = vor.u32 %v7484, %v7487
  %v7489 = vrot.slane %v7488, 4
  %v7491 = vshll.u32 %v7294, 16
  %v7493 = vrot.slane %v7491, 5
  %v7494 = vsel %vm784, %v7489, %v7493
  %v7496 = vshrl.u32 %v7295, 16
  %v7498 = vrot.slane %v7496, 4
  %v7499 = vshll.u32 %v7295, 16
  %v7501 = vrot.slane %v7499, 5
  %v7502 = vor.u32 %v7498, %v7501
  %v7503 = vrot.slane %v7502, 4
  %v7505 = vshll.u32 %v7296, 16
  %v7507 = vrot.slane %v7505, 5
  %v7508 = vsel %vm784, %v7503, %v7507
  %v7510 = vshrl.u32 %v7297, 16
  %v7512 = vrot.slane %v7510, 4
  %v7513 = vshll.u32 %v7297, 16
  %v7515 = vrot.slane %v7513, 5
  %v7516 = vor.u32 %v7512, %v7515
  %v7517 = vrot.slane %v7516, 4
  %v7519 = vshll.u32 %v7298, 16
  %v7521 = vrot.slane %v7519, 5
  %v7522 = vsel %vm784, %v7517, %v7521
  %s7523 = scalar_lea.vmem %s4, 448
  %v7524 = vld [vmem:[%s7523] sm:$0xf]
  %v7525 = vld [vmem:[%s7523 + $0x4] sm:$0xf]
  %v7526 = vld [vmem:[%s7523 + $0x8] sm:$0xf]
  %v7527 = vld [vmem:[%s7523 + $0xc] sm:$0xf]
  %v7528 = vld [vmem:[%s7523 + $0x10] sm:$0xf]
  %v7529 = vld [vmem:[%s7523 + $0x14] sm:$0xf]
  %v7530 = vld [vmem:[%s7523 + $0x18] sm:$0xf]
  %v7531 = vld [vmem:[%s7523 + $0x1c] sm:$0xf]
  %v7532 = vld [vmem:[%s7523 + $0x20] sm:$0xf]
  %v7533 = vld [vmem:[%s7523 + $0x24] sm:$0xf]
  %v7534 = vld [vmem:[%s7523 + $0x28] sm:$0xf]
  %v7535 = vld [vmem:[%s7523 + $0x2c] sm:$0xf]
  %v7536 = vld [vmem:[%s7523 + $0x30] sm:$0xf]
  %v7537 = vld [vmem:[%s7523 + $0x34] sm:$0xf]
  %v7538 = vld [vmem:[%s7523 + $0x38] sm:$0xf]
  %v7539 = vld [vmem:[%s7523 + $0x3c] sm:$0xf]
  %v7540 = vunpack.c.l.b16 %v7312
  %v7541 = vunpack.c.l.b16 %v7326
  %v7542 = vunpack.c.l.b16 %v7340
  %v7543 = vunpack.c.l.b16 %v7354
  %v7544 = vunpack.c.l.b16 %v7368
  %v7545 = vunpack.c.l.b16 %v7382
  %v7546 = vunpack.c.l.b16 %v7396
  %v7547 = vunpack.c.l.b16 %v7410
  %v7548 = vunpack.c.l.b16 %v7424
  %v7549 = vunpack.c.l.b16 %v7438
  %v7550 = vunpack.c.l.b16 %v7452
  %v7551 = vunpack.c.l.b16 %v7466
  %v7552 = vunpack.c.l.b16 %v7480
  %v7553 = vunpack.c.l.b16 %v7494
  %v7554 = vunpack.c.l.b16 %v7508
  %v7555 = vunpack.c.l.b16 %v7522
  %v7556 = vpack.c.b16 %v7541, %v7540
  %v7557 = vpack.c.b16 %v7543, %v7542
  %v7558 = vpack.c.b16 %v7545, %v7544
  %v7559 = vpack.c.b16 %v7547, %v7546
  %v7560 = vpack.c.b16 %v7549, %v7548
  %v7561 = vpack.c.b16 %v7551, %v7550
  %v7562 = vpack.c.b16 %v7553, %v7552
  %v7563 = vpack.c.b16 %v7555, %v7554
  %v7588 = vunpack.c.l.b16 %v7524
  %v7589 = vunpack.c.l.b16 %v7525
  %v7590 = vunpack.c.l.b16 %v7526
  %v7591 = vunpack.c.l.b16 %v7527
  %v7592 = vunpack.c.l.b16 %v7528
  %v7593 = vunpack.c.l.b16 %v7529
  %v7594 = vunpack.c.l.b16 %v7530
  %v7595 = vunpack.c.l.b16 %v7531
  %v7596 = vunpack.c.l.b16 %v7532
  %v7597 = vunpack.c.l.b16 %v7533
  %v7598 = vunpack.c.l.b16 %v7534
  %v7599 = vunpack.c.l.b16 %v7535
  %v7600 = vunpack.c.l.b16 %v7536
  %v7601 = vunpack.c.l.b16 %v7537
  %v7602 = vunpack.c.l.b16 %v7538
  %v7603 = vunpack.c.l.b16 %v7539
  %v7604 = vpack.c.b16 %v7589, %v7588
  %v7605 = vpack.c.b16 %v7591, %v7590
  %v7606 = vpack.c.b16 %v7593, %v7592
  %v7607 = vpack.c.b16 %v7595, %v7594
  %v7608 = vpack.c.b16 %v7597, %v7596
  %v7609 = vpack.c.b16 %v7599, %v7598
  %v7610 = vpack.c.b16 %v7601, %v7600
  %v7611 = vpack.c.b16 %v7603, %v7602
  %7620 = vmatprep.subr.bf16.mxu0 0
  %7621 = vmatpush1.bf16.msra.mxu0 %v7604
  %7622 = vmatprep.subr.bf16.mxu0 0
  %7623 = vmatpush1.bf16.msra.mxu0 %v7605
  %7624 = vmatprep.subr.bf16.mxu0 0
  %7625 = vmatpush1.bf16.msra.mxu0 %v7606
  %7626 = vmatprep.subr.bf16.mxu0 0
  %7627 = vmatpush1.bf16.msra.mxu0 %v7607
  %7628 = vmatprep.subr.bf16.mxu0 0
  %7629 = vmatpush1.bf16.msra.mxu0 %v7608
  %7630 = vmatprep.subr.bf16.mxu0 0
  %7631 = vmatpush1.bf16.msra.mxu0 %v7609
  %7632 = vmatprep.subr.bf16.mxu0 0
  %7633 = vmatpush1.bf16.msra.mxu0 %v7610
  %7634 = vmatprep.subr.bf16.mxu0 0
  %7635 = vmatpush1.bf16.msra.mxu0 %v7611
  %7636 = vmatprep.subr.bf16.mxu0 0
  %7637 = vmatpush1.bf16.msra.mxu0 0
  %7638 = vmatprep.subr.bf16.mxu0 0
  %7639 = vmatpush1.bf16.msra.mxu0 0
  %7640 = vmatprep.subr.bf16.mxu0 0
  %7641 = vmatpush1.bf16.msra.mxu0 0
  %7642 = vmatprep.subr.bf16.mxu0 0
  %7643 = vmatpush1.bf16.msra.mxu0 0
  %7644 = vmatprep.subr.bf16.mxu0 0
  %7645 = vmatpush1.bf16.msra.mxu0 0
  %7646 = vmatprep.subr.bf16.mxu0 0
  %7647 = vmatpush1.bf16.msra.mxu0 0
  %7648 = vmatprep.subr.bf16.mxu0 0
  %7649 = vmatpush1.bf16.msra.mxu0 0
  %7650 = vmatprep.subr.bf16.mxu0 0
  %7651 = vmatpush1.bf16.msra.mxu0 0
  %7652 = vmatprep.mubr.bf16.mxu0 0
  %7653 = vmatmul.mubr.bf16.gmra.mrb[0].mxu0 %v7556
  %v7654 = vpop.f32.mrb[0].mxu0
  %v7655 = vadd.f32 0.0, %v7654
  %v7656 = vpop.f32.mrb[0].mxu0
  %v7657 = vpop.f32.mrb[0].mxu0
  %v7658 = vadd.f32 0.0, %v7657
  %v7659 = vpop.f32.mrb[0].mxu0
  %7660 = vmatprep.mubr.bf16.mxu0 0
  %7661 = vmatmul.mubr.bf16.gmra.mrb[0].mxu0 %v7557
  %v7662 = vpop.f32.mrb[0].mxu0
  %v7663 = vadd.f32 0.0, %v7662
  %v7664 = vpop.f32.mrb[0].mxu0
  %v7665 = vpop.f32.mrb[0].mxu0
  %v7666 = vadd.f32 0.0, %v7665
  %v7667 = vpop.f32.mrb[0].mxu0
  %7668 = vmatprep.mubr.bf16.mxu0 0
  %7669 = vmatmul.mubr.bf16.gmra.mrb[0].mxu0 %v7558
  %v7670 = vpop.f32.mrb[0].mxu0
  %v7671 = vadd.f32 0.0, %v7670
  %v7672 = vpop.f32.mrb[0].mxu0
  %v7673 = vpop.f32.mrb[0].mxu0
  %v7674 = vadd.f32 0.0, %v7673
  %v7675 = vpop.f32.mrb[0].mxu0
  %7676 = vmatprep.mubr.bf16.mxu0 0
  %7677 = vmatmul.mubr.bf16.gmra.mrb[0].mxu0 %v7559
  %v7678 = vpop.f32.mrb[0].mxu0
  %v7679 = vadd.f32 0.0, %v7678
  %v7680 = vpop.f32.mrb[0].mxu0
  %v7681 = vpop.f32.mrb[0].mxu0
  %v7682 = vadd.f32 0.0, %v7681
  %v7683 = vpop.f32.mrb[0].mxu0
  %7684 = vmatprep.mubr.bf16.mxu0 0
  %7685 = vmatmul.mubr.bf16.gmra.mrb[0].mxu0 %v7560
  %v7686 = vpop.f32.mrb[0].mxu0
  %v7687 = vadd.f32 0.0, %v7686
  %v7688 = vpop.f32.mrb[0].mxu0
  %v7689 = vpop.f32.mrb[0].mxu0
  %v7690 = vadd.f32 0.0, %v7689
  %v7691 = vpop.f32.mrb[0].mxu0
  %7692 = vmatprep.mubr.bf16.mxu0 0
  %7693 = vmatmul.mubr.bf16.gmra.mrb[0].mxu0 %v7561
  %v7694 = vpop.f32.mrb[0].mxu0
  %v7695 = vadd.f32 0.0, %v7694
  %v7696 = vpop.f32.mrb[0].mxu0
  %v7697 = vpop.f32.mrb[0].mxu0
  %v7698 = vadd.f32 0.0, %v7697
  %v7699 = vpop.f32.mrb[0].mxu0
  %7700 = vmatprep.mubr.bf16.mxu0 0
  %7701 = vmatmul.mubr.bf16.gmra.mrb[0].mxu0 %v7562
  %v7702 = vpop.f32.mrb[0].mxu0
  %v7703 = vadd.f32 0.0, %v7702
  %v7704 = vpop.f32.mrb[0].mxu0
  %v7705 = vpop.f32.mrb[0].mxu0
  %v7706 = vadd.f32 0.0, %v7705
  %v7707 = vpop.f32.mrb[0].mxu0
  %7708 = vmatprep.mubr.bf16.mxu0 0
  %7709 = vmatmul.mubr.bf16.gmra.mrb[0].mxu0 %v7563
  %v7710 = vpop.f32.mrb[0].mxu0
  %v7711 = vadd.f32 0.0, %v7710
  %v7712 = vpop.f32.mrb[0].mxu0
  %v7713 = vpop.f32.mrb[0].mxu0
  %v7714 = vadd.f32 0.0, %v7713
  %v7715 = vpop.f32.mrb[0].mxu0
  %7716 = vdwg.mxu0
  %v7717 = vadd.f32 %v7251, %v7655
  %v7718 = vadd.f32 %v7252, %v7658
  %v7719 = vadd.f32 %v7253, %v7663
  %v7720 = vadd.f32 %v7254, %v7666
  %v7721 = vadd.f32 %v7255, %v7671
  %v7722 = vadd.f32 %v7256, %v7674
  %v7723 = vadd.f32 %v7257, %v7679
  %v7724 = vadd.f32 %v7258, %v7682
  %v7725 = vadd.f32 %v7259, %v7687
  %v7726 = vadd.f32 %v7260, %v7690
  %v7727 = vadd.f32 %v7261, %v7695
  %v7728 = vadd.f32 %v7262, %v7698
  %v7729 = vadd.f32 %v7263, %v7703
  %v7730 = vadd.f32 %v7264, %v7706
  %v7731 = vadd.f32 %v7265, %v7711
  %v7732 = vadd.f32 %v7266, %v7714
  %v7733 = vld [vmem:[%s7024] sm:$0xe]
  %v7734 = vld [vmem:[%s7024 + $0x8] sm:$0xe]
  %v7735 = vld [vmem:[%s7024 + $0x10] sm:$0xe]
  %v7736 = vld [vmem:[%s7024 + $0x18] sm:$0xe]
  %v7737 = vld [vmem:[%s7024 + $0x20] sm:$0xe]
  %v7738 = vld [vmem:[%s7024 + $0x28] sm:$0xe]
  %v7739 = vld [vmem:[%s7024 + $0x30] sm:$0xe]
  %v7740 = vld [vmem:[%s7024 + $0x38] sm:$0xe]
  %v7741 = vld [vmem:[%s7024 + $0x50] sm:$0xe]
  %v7742 = vld [vmem:[%s7024 + $0x58] sm:$0xe]
  %v7743 = vld [vmem:[%s7024 + $0x60] sm:$0xe]
  %v7744 = vld [vmem:[%s7024 + $0x68] sm:$0xe]
  %v7745 = vld [vmem:[%s7024 + $0x70] sm:$0xe]
  %v7746 = vld [vmem:[%s7024 + $0x78] sm:$0xe]
  %v7747 = vld [vmem:[%s7024 + $0x80] sm:$0xe]
  %v7748 = vld [vmem:[%s7024 + $0x88] sm:$0xe]
  %v7781 = vrot.slane %v7733, 5
  %v7782 = vrot.slane %v7781, 4
  %v7783 = vrot.slane %v7268, 5
  %v7784 = vsel %vm1622, %v7782, %v7783
  %v7785 = vrot.slane %v7734, 5
  %v7786 = vrot.slane %v7785, 4
  %v7787 = vrot.slane %v7270, 5
  %v7788 = vsel %vm1622, %v7786, %v7787
  %v7789 = vrot.slane %v7735, 5
  %v7790 = vrot.slane %v7789, 4
  %v7791 = vrot.slane %v7272, 5
  %v7792 = vsel %vm1622, %v7790, %v7791
  %v7793 = vrot.slane %v7736, 5
  %v7794 = vrot.slane %v7793, 4
  %v7795 = vrot.slane %v7274, 5
  %v7796 = vsel %vm1622, %v7794, %v7795
  %v7797 = vrot.slane %v7737, 5
  %v7798 = vrot.slane %v7797, 4
  %v7799 = vrot.slane %v7276, 5
  %v7800 = vsel %vm1622, %v7798, %v7799
  %v7801 = vrot.slane %v7738, 5
  %v7802 = vrot.slane %v7801, 4
  %v7803 = vrot.slane %v7278, 5
  %v7804 = vsel %vm1622, %v7802, %v7803
  %v7805 = vrot.slane %v7739, 5
  %v7806 = vrot.slane %v7805, 4
  %v7807 = vrot.slane %v7280, 5
  %v7808 = vsel %vm1622, %v7806, %v7807
  %v7809 = vrot.slane %v7740, 5
  %v7810 = vrot.slane %v7809, 4
  %v7811 = vrot.slane %v7282, 5
  %v7812 = vsel %vm1622, %v7810, %v7811
  %v7813 = vrot.slane %v7741, 5
  %v7814 = vrot.slane %v7813, 4
  %v7815 = vrot.slane %v7284, 5
  %v7816 = vsel %vm1622, %v7814, %v7815
  %v7817 = vrot.slane %v7742, 5
  %v7818 = vrot.slane %v7817, 4
  %v7819 = vrot.slane %v7286, 5
  %v7820 = vsel %vm1622, %v7818, %v7819
  %v7821 = vrot.slane %v7743, 5
  %v7822 = vrot.slane %v7821, 4
  %v7823 = vrot.slane %v7288, 5
  %v7824 = vsel %vm1622, %v7822, %v7823
  %v7825 = vrot.slane %v7744, 5
  %v7826 = vrot.slane %v7825, 4
  %v7827 = vrot.slane %v7290, 5
  %v7828 = vsel %vm1622, %v7826, %v7827
  %v7829 = vrot.slane %v7745, 5
  %v7830 = vrot.slane %v7829, 4
  %v7831 = vrot.slane %v7292, 5
  %v7832 = vsel %vm1622, %v7830, %v7831
  %v7833 = vrot.slane %v7746, 5
  %v7834 = vrot.slane %v7833, 4
  %v7835 = vrot.slane %v7294, 5
  %v7836 = vsel %vm1622, %v7834, %v7835
  %v7837 = vrot.slane %v7747, 5
  %v7838 = vrot.slane %v7837, 4
  %v7839 = vrot.slane %v7296, 5
  %v7840 = vsel %vm1622, %v7838, %v7839
  %v7841 = vrot.slane %v7748, 5
  %v7842 = vrot.slane %v7841, 4
  %v7843 = vrot.slane %v7298, 5
  %v7844 = vsel %vm1622, %v7842, %v7843
  %s7845 = scalar_lea.vmem %s4, 512
  %v7846 = vld [vmem:[%s7845] sm:$0xf]
  %v7847 = vld [vmem:[%s7845 + $0x4] sm:$0xf]
  %v7848 = vld [vmem:[%s7845 + $0x8] sm:$0xf]
  %v7849 = vld [vmem:[%s7845 + $0xc] sm:$0xf]
  %v7850 = vld [vmem:[%s7845 + $0x10] sm:$0xf]
  %v7851 = vld [vmem:[%s7845 + $0x14] sm:$0xf]
  %v7852 = vld [vmem:[%s7845 + $0x18] sm:$0xf]
  %v7853 = vld [vmem:[%s7845 + $0x1c] sm:$0xf]
  %v7854 = vld [vmem:[%s7845 + $0x20] sm:$0xf]
  %v7855 = vld [vmem:[%s7845 + $0x24] sm:$0xf]
  %v7856 = vld [vmem:[%s7845 + $0x28] sm:$0xf]
  %v7857 = vld [vmem:[%s7845 + $0x2c] sm:$0xf]
  %v7858 = vld [vmem:[%s7845 + $0x30] sm:$0xf]
  %v7859 = vld [vmem:[%s7845 + $0x34] sm:$0xf]
  %v7860 = vld [vmem:[%s7845 + $0x38] sm:$0xf]
  %v7861 = vld [vmem:[%s7845 + $0x3c] sm:$0xf]
  %v7862 = vunpack.c.l.b16 %v7784
  %v7863 = vunpack.c.l.b16 %v7788
  %v7864 = vunpack.c.l.b16 %v7792
  %v7865 = vunpack.c.l.b16 %v7796
  %v7866 = vunpack.c.l.b16 %v7800
  %v7867 = vunpack.c.l.b16 %v7804
  %v7868 = vunpack.c.l.b16 %v7808
  %v7869 = vunpack.c.l.b16 %v7812
  %v7870 = vunpack.c.l.b16 %v7816
  %v7871 = vunpack.c.l.b16 %v7820
  %v7872 = vunpack.c.l.b16 %v7824
  %v7873 = vunpack.c.l.b16 %v7828
  %v7874 = vunpack.c.l.b16 %v7832
  %v7875 = vunpack.c.l.b16 %v7836
  %v7876 = vunpack.c.l.b16 %v7840
  %v7877 = vunpack.c.l.b16 %v7844
  %v7878 = vpack.c.b16 %v7863, %v7862
  %v7879 = vpack.c.b16 %v7865, %v7864
  %v7880 = vpack.c.b16 %v7867, %v7866
  %v7881 = vpack.c.b16 %v7869, %v7868
  %v7882 = vpack.c.b16 %v7871, %v7870
  %v7883 = vpack.c.b16 %v7873, %v7872
  %v7884 = vpack.c.b16 %v7875, %v7874
  %v7885 = vpack.c.b16 %v7877, %v7876
  %v7910 = vunpack.c.l.b16 %v7846
  %v7911 = vunpack.c.l.b16 %v7847
  %v7912 = vunpack.c.l.b16 %v7848
  %v7913 = vunpack.c.l.b16 %v7849
  %v7914 = vunpack.c.l.b16 %v7850
  %v7915 = vunpack.c.l.b16 %v7851
  %v7916 = vunpack.c.l.b16 %v7852
  %v7917 = vunpack.c.l.b16 %v7853
  %v7918 = vunpack.c.l.b16 %v7854
  %v7919 = vunpack.c.l.b16 %v7855
  %v7920 = vunpack.c.l.b16 %v7856
  %v7921 = vunpack.c.l.b16 %v7857
  %v7922 = vunpack.c.l.b16 %v7858
  %v7923 = vunpack.c.l.b16 %v7859
  %v7924 = vunpack.c.l.b16 %v7860
  %v7925 = vunpack.c.l.b16 %v7861
  %v7926 = vpack.c.b16 %v7911, %v7910
  %v7927 = vpack.c.b16 %v7913, %v7912
  %v7928 = vpack.c.b16 %v7915, %v7914
  %v7929 = vpack.c.b16 %v7917, %v7916
  %v7930 = vpack.c.b16 %v7919, %v7918
  %v7931 = vpack.c.b16 %v7921, %v7920
  %v7932 = vpack.c.b16 %v7923, %v7922
  %v7933 = vpack.c.b16 %v7925, %v7924
  %7942 = vmatprep.subr.bf16.mxu0 0
  %7943 = vmatpush1.bf16.msra.mxu0 %v7926
  %7944 = vmatprep.subr.bf16.mxu0 0
  %7945 = vmatpush1.bf16.msra.mxu0 %v7927
  %7946 = vmatprep.subr.bf16.mxu0 0
  %7947 = vmatpush1.bf16.msra.mxu0 %v7928
  %7948 = vmatprep.subr.bf16.mxu0 0
  %7949 = vmatpush1.bf16.msra.mxu0 %v7929
  %7950 = vmatprep.subr.bf16.mxu0 0
  %7951 = vmatpush1.bf16.msra.mxu0 %v7930
  %7952 = vmatprep.subr.bf16.mxu0 0
  %7953 = vmatpush1.bf16.msra.mxu0 %v7931
  %7954 = vmatprep.subr.bf16.mxu0 0
  %7955 = vmatpush1.bf16.msra.mxu0 %v7932
  %7956 = vmatprep.subr.bf16.mxu0 0
  %7957 = vmatpush1.bf16.msra.mxu0 %v7933
  %7958 = vmatprep.subr.bf16.mxu0 0
  %7959 = vmatpush1.bf16.msra.mxu0 0
  %7960 = vmatprep.subr.bf16.mxu0 0
  %7961 = vmatpush1.bf16.msra.mxu0 0
  %7962 = vmatprep.subr.bf16.mxu0 0
  %7963 = vmatpush1.bf16.msra.mxu0 0
  %7964 = vmatprep.subr.bf16.mxu0 0
  %7965 = vmatpush1.bf16.msra.mxu0 0
  %7966 = vmatprep.subr.bf16.mxu0 0
  %7967 = vmatpush1.bf16.msra.mxu0 0
  %7968 = vmatprep.subr.bf16.mxu0 0
  %7969 = vmatpush1.bf16.msra.mxu0 0
  %7970 = vmatprep.subr.bf16.mxu0 0
  %7971 = vmatpush1.bf16.msra.mxu0 0
  %7972 = vmatprep.subr.bf16.mxu0 0
  %7973 = vmatpush1.bf16.msra.mxu0 0
  %7974 = vmatprep.mubr.bf16.mxu0 0
  %7975 = vmatmul.mubr.bf16.gmra.mrb[0].mxu0 %v7878
  %v7976 = vpop.f32.mrb[0].mxu0
  %v7977 = vadd.f32 0.0, %v7976
  %v7978 = vpop.f32.mrb[0].mxu0
  %v7979 = vpop.f32.mrb[0].mxu0
  %v7980 = vadd.f32 0.0, %v7979
  %v7981 = vpop.f32.mrb[0].mxu0
  %7982 = vmatprep.mubr.bf16.mxu0 0
  %7983 = vmatmul.mubr.bf16.gmra.mrb[0].mxu0 %v7879
  %v7984 = vpop.f32.mrb[0].mxu0
  %v7985 = vadd.f32 0.0, %v7984
  %v7986 = vpop.f32.mrb[0].mxu0
  %v7987 = vpop.f32.mrb[0].mxu0
  %v7988 = vadd.f32 0.0, %v7987
  %v7989 = vpop.f32.mrb[0].mxu0
  %7990 = vmatprep.mubr.bf16.mxu0 0
  %7991 = vmatmul.mubr.bf16.gmra.mrb[0].mxu0 %v7880
  %v7992 = vpop.f32.mrb[0].mxu0
  %v7993 = vadd.f32 0.0, %v7992
  %v7994 = vpop.f32.mrb[0].mxu0
  %v7995 = vpop.f32.mrb[0].mxu0
  %v7996 = vadd.f32 0.0, %v7995
  %v7997 = vpop.f32.mrb[0].mxu0
  %7998 = vmatprep.mubr.bf16.mxu0 0
  %7999 = vmatmul.mubr.bf16.gmra.mrb[0].mxu0 %v7881
  %v8000 = vpop.f32.mrb[0].mxu0
  %v8001 = vadd.f32 0.0, %v8000
  %v8002 = vpop.f32.mrb[0].mxu0
  %v8003 = vpop.f32.mrb[0].mxu0
  %v8004 = vadd.f32 0.0, %v8003
  %v8005 = vpop.f32.mrb[0].mxu0
  %8006 = vmatprep.mubr.bf16.mxu0 0
  %8007 = vmatmul.mubr.bf16.gmra.mrb[0].mxu0 %v7882
  %v8008 = vpop.f32.mrb[0].mxu0
  %v8009 = vadd.f32 0.0, %v8008
  %v8010 = vpop.f32.mrb[0].mxu0
  %v8011 = vpop.f32.mrb[0].mxu0
  %v8012 = vadd.f32 0.0, %v8011
  %v8013 = vpop.f32.mrb[0].mxu0
  %8014 = vmatprep.mubr.bf16.mxu0 0
  %8015 = vmatmul.mubr.bf16.gmra.mrb[0].mxu0 %v7883
  %v8016 = vpop.f32.mrb[0].mxu0
  %v8017 = vadd.f32 0.0, %v8016
  %v8018 = vpop.f32.mrb[0].mxu0
  %v8019 = vpop.f32.mrb[0].mxu0
  %v8020 = vadd.f32 0.0, %v8019
  %v8021 = vpop.f32.mrb[0].mxu0
  %8022 = vmatprep.mubr.bf16.mxu0 0
  %8023 = vmatmul.mubr.bf16.gmra.mrb[0].mxu0 %v7884
  %v8024 = vpop.f32.mrb[0].mxu0
  %v8025 = vadd.f32 0.0, %v8024
  %v8026 = vpop.f32.mrb[0].mxu0
  %v8027 = vpop.f32.mrb[0].mxu0
  %v8028 = vadd.f32 0.0, %v8027
  %v8029 = vpop.f32.mrb[0].mxu0
  %8030 = vmatprep.mubr.bf16.mxu0 0
  %8031 = vmatmul.mubr.bf16.gmra.mrb[0].mxu0 %v7885
  %v8032 = vpop.f32.mrb[0].mxu0
  %v8033 = vadd.f32 0.0, %v8032
  %v8034 = vpop.f32.mrb[0].mxu0
  %v8035 = vpop.f32.mrb[0].mxu0
  %v8036 = vadd.f32 0.0, %v8035
  %v8037 = vpop.f32.mrb[0].mxu0
  %8038 = vdwg.mxu0
  %v8039 = vadd.f32 %v7717, %v7977
  %v8040 = vadd.f32 %v7718, %v7980
  %v8041 = vadd.f32 %v7719, %v7985
  %v8042 = vadd.f32 %v7720, %v7988
  %v8043 = vadd.f32 %v7721, %v7993
  %v8044 = vadd.f32 %v7722, %v7996
  %v8045 = vadd.f32 %v7723, %v8001
  %v8046 = vadd.f32 %v7724, %v8004
  %v8047 = vadd.f32 %v7725, %v8009
  %v8048 = vadd.f32 %v7726, %v8012
  %v8049 = vadd.f32 %v7727, %v8017
  %v8050 = vadd.f32 %v7728, %v8020
  %v8051 = vadd.f32 %v7729, %v8025
  %v8052 = vadd.f32 %v7730, %v8028
  %v8053 = vadd.f32 %v7731, %v8033
  %v8054 = vadd.f32 %v7732, %v8036
  %v8055 = vld [vmem:[%s5] sm:$0x1]
  %v8057 = vlaneseq
  %v8058 = vshrl.u32 %v8057, 7
  %v8059 = vsub.s32 0, %v8058
  %v8060 = vrot.slane %v8055, %v8059
  %v8062 = vmul.f32 %v8039, %v8060
  %v8063 = vmul.f32 %v8040, %v8060
  %v8064 = vmul.f32 %v8041, %v8060
  %v8065 = vmul.f32 %v8042, %v8060
  %v8066 = vmul.f32 %v8043, %v8060
  %v8067 = vmul.f32 %v8044, %v8060
  %v8068 = vmul.f32 %v8045, %v8060
  %v8069 = vmul.f32 %v8046, %v8060
  %v8070 = vmul.f32 %v8047, %v8060
  %v8071 = vmul.f32 %v8048, %v8060
  %v8072 = vmul.f32 %v8049, %v8060
  %v8073 = vmul.f32 %v8050, %v8060
  %v8074 = vmul.f32 %v8051, %v8060
  %v8075 = vmul.f32 %v8052, %v8060
  %v8076 = vmul.f32 %v8053, %v8060
  %v8077 = vmul.f32 %v8054, %v8060
  %v8078 = vld [vmem:[%s6] sm:$0x1]
  %v8080 = vlaneseq
  %v8081 = vshrl.u32 %v8080, 7
  %v8082 = vsub.s32 0, %v8081
  %v8083 = vrot.slane %v8078, %v8082
  %v8085 = vadd.f32 %v8062, %v8083
  %v8086 = vadd.f32 %v8063, %v8083
  %v8087 = vadd.f32 %v8064, %v8083
  %v8088 = vadd.f32 %v8065, %v8083
  %v8089 = vadd.f32 %v8066, %v8083
  %v8090 = vadd.f32 %v8067, %v8083
  %v8091 = vadd.f32 %v8068, %v8083
  %v8092 = vadd.f32 %v8069, %v8083
  %v8093 = vadd.f32 %v8070, %v8083
  %v8094 = vadd.f32 %v8071, %v8083
  %v8095 = vadd.f32 %v8072, %v8083
  %v8096 = vadd.f32 %v8073, %v8083
  %v8097 = vadd.f32 %v8074, %v8083
  %v8098 = vadd.f32 %v8075, %v8083
  %v8099 = vadd.f32 %v8076, %v8083
  %v8100 = vadd.f32 %v8077, %v8083
  %v8101 = vmax.f32 %v8085, 0.0
  %v8102 = vmax.f32 %v8086, 0.0
  %v8103 = vmax.f32 %v8087, 0.0
  %v8104 = vmax.f32 %v8088, 0.0
  %v8105 = vmax.f32 %v8089, 0.0
  %v8106 = vmax.f32 %v8090, 0.0
  %v8107 = vmax.f32 %v8091, 0.0
  %v8108 = vmax.f32 %v8092, 0.0
  %v8109 = vmax.f32 %v8093, 0.0
  %v8110 = vmax.f32 %v8094, 0.0
  %v8111 = vmax.f32 %v8095, 0.0
  %v8112 = vmax.f32 %v8096, 0.0
  %v8113 = vmax.f32 %v8097, 0.0
  %v8114 = vmax.f32 %v8098, 0.0
  %v8115 = vmax.f32 %v8099, 0.0
  %v8116 = vmax.f32 %v8100, 0.0
  %v8117 = vpack.c.bf16 %v8101, %v8101
  %v8118 = vpack.c.bf16 %v8102, %v8102
  %v8119 = vpack.c.bf16 %v8103, %v8103
  %v8120 = vpack.c.bf16 %v8104, %v8104
  %v8121 = vpack.c.bf16 %v8105, %v8105
  %v8122 = vpack.c.bf16 %v8106, %v8106
  %v8123 = vpack.c.bf16 %v8107, %v8107
  %v8124 = vpack.c.bf16 %v8108, %v8108
  %v8125 = vpack.c.bf16 %v8109, %v8109
  %v8126 = vpack.c.bf16 %v8110, %v8110
  %v8127 = vpack.c.bf16 %v8111, %v8111
  %v8128 = vpack.c.bf16 %v8112, %v8112
  %v8129 = vpack.c.bf16 %v8113, %v8113
  %v8130 = vpack.c.bf16 %v8114, %v8114
  %v8131 = vpack.c.bf16 %v8115, %v8115
  %v8132 = vpack.c.bf16 %v8116, %v8116
  %v8149 = vunpack.c.l.b16 %v8117
  %v8150 = vunpack.c.l.b16 %v8118
  %v8151 = vunpack.c.l.b16 %v8119
  %v8152 = vunpack.c.l.b16 %v8120
  %v8153 = vunpack.c.l.b16 %v8121
  %v8154 = vunpack.c.l.b16 %v8122
  %v8155 = vunpack.c.l.b16 %v8123
  %v8156 = vunpack.c.l.b16 %v8124
  %v8157 = vunpack.c.l.b16 %v8125
  %v8158 = vunpack.c.l.b16 %v8126
  %v8159 = vunpack.c.l.b16 %v8127
  %v8160 = vunpack.c.l.b16 %v8128
  %v8161 = vunpack.c.l.b16 %v8129
  %v8162 = vunpack.c.l.b16 %v8130
  %v8163 = vunpack.c.l.b16 %v8131
  %v8164 = vunpack.c.l.b16 %v8132
  %v8165 = vpack.c.b16 %v8149, %v8149
  %v8166 = vpack.c.b16 %v8150, %v8150
  %v8167 = vpack.c.b16 %v8151, %v8151
  %v8168 = vpack.c.b16 %v8152, %v8152
  %v8169 = vpack.c.b16 %v8153, %v8153
  %v8170 = vpack.c.b16 %v8154, %v8154
  %v8171 = vpack.c.b16 %v8155, %v8155
  %v8172 = vpack.c.b16 %v8156, %v8156
  %v8173 = vpack.c.b16 %v8157, %v8157
  %v8174 = vpack.c.b16 %v8158, %v8158
  %v8175 = vpack.c.b16 %v8159, %v8159
  %v8176 = vpack.c.b16 %v8160, %v8160
  %v8177 = vpack.c.b16 %v8161, %v8161
  %v8178 = vpack.c.b16 %v8162, %v8162
  %v8179 = vpack.c.b16 %v8163, %v8163
  %v8180 = vpack.c.b16 %v8164, %v8164
  %v8182 = vshrl.u32 %v8165, 16
  %v8184 = vrot.slane %v8182, 7
  %v8185 = vshll.u32 %v8165, 16
  %v8187 = vor.u32 %v8184, %v8185
  %v8188 = vrot.slane %v8184, 4
  %v8190 = vshrl.u32 %v8166, 16
  %v8192 = vrot.slane %v8190, 7
  %v8193 = vshll.u32 %v8166, 16
  %v8195 = vor.u32 %v8192, %v8193
  %v8196 = vrot.slane %v8192, 4
  %v8198 = vshrl.u32 %v8167, 16
  %v8200 = vrot.slane %v8198, 7
  %v8201 = vshll.u32 %v8167, 16
  %v8203 = vor.u32 %v8200, %v8201
  %v8204 = vrot.slane %v8200, 4
  %v8206 = vshrl.u32 %v8168, 16
  %v8208 = vrot.slane %v8206, 7
  %v8209 = vshll.u32 %v8168, 16
  %v8211 = vor.u32 %v8208, %v8209
  %v8212 = vrot.slane %v8208, 4
  %v8214 = vshrl.u32 %v8169, 16
  %v8216 = vrot.slane %v8214, 7
  %v8217 = vshll.u32 %v8169, 16
  %v8219 = vor.u32 %v8216, %v8217
  %v8220 = vrot.slane %v8216, 4
  %v8222 = vshrl.u32 %v8170, 16
  %v8224 = vrot.slane %v8222, 7
  %v8225 = vshll.u32 %v8170, 16
  %v8227 = vor.u32 %v8224, %v8225
  %v8228 = vrot.slane %v8224, 4
  %v8230 = vshrl.u32 %v8171, 16
  %v8232 = vrot.slane %v8230, 7
  %v8233 = vshll.u32 %v8171, 16
  %v8235 = vor.u32 %v8232, %v8233
  %v8236 = vrot.slane %v8232, 4
  %v8238 = vshrl.u32 %v8172, 16
  %v8240 = vrot.slane %v8238, 7
  %v8241 = vshll.u32 %v8172, 16
  %v8243 = vor.u32 %v8240, %v8241
  %v8244 = vrot.slane %v8240, 4
  %v8246 = vshrl.u32 %v8173, 16
  %v8248 = vrot.slane %v8246, 7
  %v8249 = vshll.u32 %v8173, 16
  %v8251 = vor.u32 %v8248, %v8249
  %v8252 = vrot.slane %v8248, 4
  %v8254 = vshrl.u32 %v8174, 16
  %v8256 = vrot.slane %v8254, 7
  %v8257 = vshll.u32 %v8174, 16
  %v8259 = vor.u32 %v8256, %v8257
  %v8260 = vrot.slane %v8256, 4
  %v8262 = vshrl.u32 %v8175, 16
  %v8264 = vrot.slane %v8262, 7
  %v8265 = vshll.u32 %v8175, 16
  %v8267 = vor.u32 %v8264, %v8265
  %v8268 = vrot.slane %v8264, 4
  %v8270 = vshrl.u32 %v8176, 16
  %v8272 = vrot.slane %v8270, 7
  %v8273 = vshll.u32 %v8176, 16
  %v8275 = vor.u32 %v8272, %v8273
  %v8276 = vrot.slane %v8272, 4
  %v8278 = vshrl.u32 %v8177, 16
  %v8280 = vrot.slane %v8278, 7
  %v8281 = vshll.u32 %v8177, 16
  %v8283 = vor.u32 %v8280, %v8281
  %v8284 = vrot.slane %v8280, 4
  %v8286 = vshrl.u32 %v8178, 16
  %v8288 = vrot.slane %v8286, 7
  %v8289 = vshll.u32 %v8178, 16
  %v8291 = vor.u32 %v8288, %v8289
  %v8292 = vrot.slane %v8288, 4
  %v8294 = vshrl.u32 %v8179, 16
  %v8296 = vrot.slane %v8294, 7
  %v8297 = vshll.u32 %v8179, 16
  %v8299 = vor.u32 %v8296, %v8297
  %v8300 = vrot.slane %v8296, 4
  %v8302 = vshrl.u32 %v8180, 16
  %v8304 = vrot.slane %v8302, 7
  %v8305 = vshll.u32 %v8180, 16
  %v8307 = vor.u32 %v8304, %v8305
  %v8308 = vrot.slane %v8304, 4
  %s8341 = scalar_lea.vmem [#allocation4], 8
  %vm8342 = vcmask 519168
  %vm8343 = vmand %vm8342, %vm112
  %v8344 = vld [vmem:[%s8341] sm:$0xf]
  %v8345 = vsel %vm8343, %v8187, %v8344
  %8346 = vst [vmem:[%s8341] sm:$0xf] %v8345
  %v8347 = vld [vmem:[%s8341 + $0x4] sm:$0x1]
  %v8348 = vsel %vm318, %v8188, %v8347
  %8349 = vst [vmem:[%s8341 + $0x4] sm:$0x1] %v8348
  %v8350 = vld [vmem:[%s8341 + $0x8] sm:$0xf]
  %v8351 = vsel %vm8343, %v8195, %v8350
  %8352 = vst [vmem:[%s8341 + $0x8] sm:$0xf] %v8351
  %v8353 = vld [vmem:[%s8341 + $0xc] sm:$0x1]
  %v8354 = vsel %vm318, %v8196, %v8353
  %8355 = vst [vmem:[%s8341 + $0xc] sm:$0x1] %v8354
  %v8356 = vld [vmem:[%s8341 + $0x10] sm:$0xf]
  %v8357 = vsel %vm8343, %v8203, %v8356
  %8358 = vst [vmem:[%s8341 + $0x10] sm:$0xf] %v8357
  %v8359 = vld [vmem:[%s8341 + $0x14] sm:$0x1]
  %v8360 = vsel %vm318, %v8204, %v8359
  %8361 = vst [vmem:[%s8341 + $0x14] sm:$0x1] %v8360
  %v8362 = vld [vmem:[%s8341 + $0x18] sm:$0xf]
  %v8363 = vsel %vm8343, %v8211, %v8362
  %8364 = vst [vmem:[%s8341 + $0x18] sm:$0xf] %v8363
  %v8365 = vld [vmem:[%s8341 + $0x1c] sm:$0x1]
  %v8366 = vsel %vm318, %v8212, %v8365
  %8367 = vst [vmem:[%s8341 + $0x1c] sm:$0x1] %v8366
  %v8368 = vld [vmem:[%s8341 + $0x20] sm:$0xf]
  %v8369 = vsel %vm8343, %v8219, %v8368
  %8370 = vst [vmem:[%s8341 + $0x20] sm:$0xf] %v8369
  %v8371 = vld [vmem:[%s8341 + $0x24] sm:$0x1]
  %v8372 = vsel %vm318, %v8220, %v8371
  %8373 = vst [vmem:[%s8341 + $0x24] sm:$0x1] %v8372
  %v8374 = vld [vmem:[%s8341 + $0x28] sm:$0xf]
  %v8375 = vsel %vm8343, %v8227, %v8374
  %8376 = vst [vmem:[%s8341 + $0x28] sm:$0xf] %v8375
  %v8377 = vld [vmem:[%s8341 + $0x2c] sm:$0x1]
  %v8378 = vsel %vm318, %v8228, %v8377
  %8379 = vst [vmem:[%s8341 + $0x2c] sm:$0x1] %v8378
  %v8380 = vld [vmem:[%s8341 + $0x30] sm:$0xf]
  %v8381 = vsel %vm8343, %v8235, %v8380
  %8382 = vst [vmem:[%s8341 + $0x30] sm:$0xf] %v8381
  %v8383 = vld [vmem:[%s8341 + $0x34] sm:$0x1]
  %v8384 = vsel %vm318, %v8236, %v8383
  %8385 = vst [vmem:[%s8341 + $0x34] sm:$0x1] %v8384
  %v8386 = vld [vmem:[%s8341 + $0x38] sm:$0xf]
  %v8387 = vsel %vm8343, %v8243, %v8386
  %8388 = vst [vmem:[%s8341 + $0x38] sm:$0xf] %v8387
  %v8389 = vld [vmem:[%s8341 + $0x3c] sm:$0x1]
  %v8390 = vsel %vm318, %v8244, %v8389
  %8391 = vst [vmem:[%s8341 + $0x3c] sm:$0x1] %v8390
  %v8392 = vld [vmem:[%s8341 + $0x50] sm:$0xf]
  %v8393 = vsel %vm8343, %v8251, %v8392
  %8394 = vst [vmem:[%s8341 + $0x50] sm:$0xf] %v8393
  %v8395 = vld [vmem:[%s8341 + $0x54] sm:$0x1]
  %v8396 = vsel %vm318, %v8252, %v8395
  %8397 = vst [vmem:[%s8341 + $0x54] sm:$0x1] %v8396
  %v8398 = vld [vmem:[%s8341 + $0x58] sm:$0xf]
  %v8399 = vsel %vm8343, %v8259, %v8398
  %8400 = vst [vmem:[%s8341 + $0x58] sm:$0xf] %v8399
  %v8401 = vld [vmem:[%s8341 + $0x5c] sm:$0x1]
  %v8402 = vsel %vm318, %v8260, %v8401
  %8403 = vst [vmem:[%s8341 + $0x5c] sm:$0x1] %v8402
  %v8404 = vld [vmem:[%s8341 + $0x60] sm:$0xf]
  %v8405 = vsel %vm8343, %v8267, %v8404
  %8406 = vst [vmem:[%s8341 + $0x60] sm:$0xf] %v8405
  %v8407 = vld [vmem:[%s8341 + $0x64] sm:$0x1]
  %v8408 = vsel %vm318, %v8268, %v8407
  %8409 = vst [vmem:[%s8341 + $0x64] sm:$0x1] %v8408
  %v8410 = vld [vmem:[%s8341 + $0x68] sm:$0xf]
  %v8411 = vsel %vm8343, %v8275, %v8410
  %8412 = vst [vmem:[%s8341 + $0x68] sm:$0xf] %v8411
  %v8413 = vld [vmem:[%s8341 + $0x6c] sm:$0x1]
  %v8414 = vsel %vm318, %v8276, %v8413
  %8415 = vst [vmem:[%s8341 + $0x6c] sm:$0x1] %v8414
  %v8416 = vld [vmem:[%s8341 + $0x70] sm:$0xf]
  %v8417 = vsel %vm8343, %v8283, %v8416
  %8418 = vst [vmem:[%s8341 + $0x70] sm:$0xf] %v8417
  %v8419 = vld [vmem:[%s8341 + $0x74] sm:$0x1]
  %v8420 = vsel %vm318, %v8284, %v8419
  %8421 = vst [vmem:[%s8341 + $0x74] sm:$0x1] %v8420
  %v8422 = vld [vmem:[%s8341 + $0x78] sm:$0xf]
  %v8423 = vsel %vm8343, %v8291, %v8422
  %8424 = vst [vmem:[%s8341 + $0x78] sm:$0xf] %v8423
  %v8425 = vld [vmem:[%s8341 + $0x7c] sm:$0x1]
  %v8426 = vsel %vm318, %v8292, %v8425
  %8427 = vst [vmem:[%s8341 + $0x7c] sm:$0x1] %v8426
  %v8428 = vld [vmem:[%s8341 + $0x80] sm:$0xf]
  %v8429 = vsel %vm8343, %v8299, %v8428
  %8430 = vst [vmem:[%s8341 + $0x80] sm:$0xf] %v8429
  %v8431 = vld [vmem:[%s8341 + $0x84] sm:$0x1]
  %v8432 = vsel %vm318, %v8300, %v8431
  %8433 = vst [vmem:[%s8341 + $0x84] sm:$0x1] %v8432
  %v8434 = vld [vmem:[%s8341 + $0x88] sm:$0xf]
  %v8435 = vsel %vm8343, %v8307, %v8434
  %8436 = vst [vmem:[%s8341 + $0x88] sm:$0xf] %v8435
  %v8437 = vld [vmem:[%s8341 + $0x8c] sm:$0x1]
  %v8438 = vsel %vm318, %v8308, %v8437
  %8439 = vst [vmem:[%s8341 + $0x8c] sm:$0x1] %v8438
  %v8440 = vld [vmem:[#allocation4] sm:$0xf]
  %v8441 = vld [vmem:[#allocation4 + $0x8] sm:$0xf]
  %v8442 = vld [vmem:[#allocation4 + $0x10] sm:$0xf]
  %v8443 = vld [vmem:[#allocation4 + $0x18] sm:$0xf]
  %v8444 = vld [vmem:[#allocation4 + $0x20] sm:$0xf]
  %v8445 = vld [vmem:[#allocation4 + $0x28] sm:$0xf]
  %v8446 = vld [vmem:[#allocation4 + $0x30] sm:$0xf]
  %v8447 = vld [vmem:[#allocation4 + $0x38] sm:$0xf]
  %v8448 = vld [vmem:[#allocation4 + $0x50] sm:$0xf]
  %v8449 = vld [vmem:[#allocation4 + $0x58] sm:$0xf]
  %v8450 = vld [vmem:[#allocation4 + $0x60] sm:$0xf]
  %v8451 = vld [vmem:[#allocation4 + $0x68] sm:$0xf]
  %v8452 = vld [vmem:[#allocation4 + $0x70] sm:$0xf]
  %v8453 = vld [vmem:[#allocation4 + $0x78] sm:$0xf]
  %v8454 = vld [vmem:[#allocation4 + $0x80] sm:$0xf]
  %v8455 = vld [vmem:[#allocation4 + $0x88] sm:$0xf]
  %v8456 = vld [vmem:[%s7] sm:$0xf]
  %v8457 = vld [vmem:[%s7 + $0x4] sm:$0xf]
  %v8458 = vld [vmem:[%s7 + $0x8] sm:$0xf]
  %v8459 = vld [vmem:[%s7 + $0xc] sm:$0xf]
  %v8460 = vld [vmem:[%s7 + $0x10] sm:$0xf]
  %v8461 = vld [vmem:[%s7 + $0x14] sm:$0xf]
  %v8462 = vld [vmem:[%s7 + $0x18] sm:$0xf]
  %v8463 = vld [vmem:[%s7 + $0x1c] sm:$0xf]
  %v8464 = vld [vmem:[#allocation4 + $0x4] sm:$0x1]
  %v8465 = vld [vmem:[#allocation4 + $0xc] sm:$0x1]
  %v8466 = vld [vmem:[#allocation4 + $0x14] sm:$0x1]
  %v8467 = vld [vmem:[#allocation4 + $0x1c] sm:$0x1]
  %v8468 = vld [vmem:[#allocation4 + $0x24] sm:$0x1]
  %v8469 = vld [vmem:[#allocation4 + $0x2c] sm:$0x1]
  %v8470 = vld [vmem:[#allocation4 + $0x34] sm:$0x1]
  %v8471 = vld [vmem:[#allocation4 + $0x3c] sm:$0x1]
  %v8472 = vld [vmem:[#allocation4 + $0x54] sm:$0x1]
  %v8473 = vld [vmem:[#allocation4 + $0x5c] sm:$0x1]
  %v8474 = vld [vmem:[#allocation4 + $0x64] sm:$0x1]
  %v8475 = vld [vmem:[#allocation4 + $0x6c] sm:$0x1]
  %v8476 = vld [vmem:[#allocation4 + $0x74] sm:$0x1]
  %v8477 = vld [vmem:[#allocation4 + $0x7c] sm:$0x1]
  %v8478 = vld [vmem:[#allocation4 + $0x84] sm:$0x1]
  %v8479 = vld [vmem:[#allocation4 + $0x8c] sm:$0x1]
  %v8481 = vshrl.u32 %v8440, 16
  %v8483 = vrot.slane %v8481, 4
  %v8484 = vshll.u32 %v8440, 16
  %v8486 = vrot.slane %v8484, 5
  %v8487 = vor.u32 %v8483, %v8486
  %v8488 = vrot.slane %v8487, 4
  %v8490 = vshll.u32 %v8464, 16
  %v8492 = vrot.slane %v8490, 5
  %v8493 = vsel %vm784, %v8488, %v8492
  %v8495 = vshrl.u32 %v8441, 16
  %v8497 = vrot.slane %v8495, 4
  %v8498 = vshll.u32 %v8441, 16
  %v8500 = vrot.slane %v8498, 5
  %v8501 = vor.u32 %v8497, %v8500
  %v8502 = vrot.slane %v8501, 4
  %v8504 = vshll.u32 %v8465, 16
  %v8506 = vrot.slane %v8504, 5
  %v8507 = vsel %vm784, %v8502, %v8506
  %v8509 = vshrl.u32 %v8442, 16
  %v8511 = vrot.slane %v8509, 4
  %v8512 = vshll.u32 %v8442, 16
  %v8514 = vrot.slane %v8512, 5
  %v8515 = vor.u32 %v8511, %v8514
  %v8516 = vrot.slane %v8515, 4
  %v8518 = vshll.u32 %v8466, 16
  %v8520 = vrot.slane %v8518, 5
  %v8521 = vsel %vm784, %v8516, %v8520
  %v8523 = vshrl.u32 %v8443, 16
  %v8525 = vrot.slane %v8523, 4
  %v8526 = vshll.u32 %v8443, 16
  %v8528 = vrot.slane %v8526, 5
  %v8529 = vor.u32 %v8525, %v8528
  %v8530 = vrot.slane %v8529, 4
  %v8532 = vshll.u32 %v8467, 16
  %v8534 = vrot.slane %v8532, 5
  %v8535 = vsel %vm784, %v8530, %v8534
  %v8537 = vshrl.u32 %v8444, 16
  %v8539 = vrot.slane %v8537, 4
  %v8540 = vshll.u32 %v8444, 16
  %v8542 = vrot.slane %v8540, 5
  %v8543 = vor.u32 %v8539, %v8542
  %v8544 = vrot.slane %v8543, 4
  %v8546 = vshll.u32 %v8468, 16
  %v8548 = vrot.slane %v8546, 5
  %v8549 = vsel %vm784, %v8544, %v8548
  %v8551 = vshrl.u32 %v8445, 16
  %v8553 = vrot.slane %v8551, 4
  %v8554 = vshll.u32 %v8445, 16
  %v8556 = vrot.slane %v8554, 5
  %v8557 = vor.u32 %v8553, %v8556
  %v8558 = vrot.slane %v8557, 4
  %v8560 = vshll.u32 %v8469, 16
  %v8562 = vrot.slane %v8560, 5
  %v8563 = vsel %vm784, %v8558, %v8562
  %v8565 = vshrl.u32 %v8446, 16
  %v8567 = vrot.slane %v8565, 4
  %v8568 = vshll.u32 %v8446, 16
  %v8570 = vrot.slane %v8568, 5
  %v8571 = vor.u32 %v8567, %v8570
  %v8572 = vrot.slane %v8571, 4
  %v8574 = vshll.u32 %v8470, 16
  %v8576 = vrot.slane %v8574, 5
  %v8577 = vsel %vm784, %v8572, %v8576
  %v8579 = vshrl.u32 %v8447, 16
  %v8581 = vrot.slane %v8579, 4
  %v8582 = vshll.u32 %v8447, 16
  %v8584 = vrot.slane %v8582, 5
  %v8585 = vor.u32 %v8581, %v8584
  %v8586 = vrot.slane %v8585, 4
  %v8588 = vshll.u32 %v8471, 16
  %v8590 = vrot.slane %v8588, 5
  %v8591 = vsel %vm784, %v8586, %v8590
  %v8593 = vshrl.u32 %v8448, 16
  %v8595 = vrot.slane %v8593, 4
  %v8596 = vshll.u32 %v8448, 16
  %v8598 = vrot.slane %v8596, 5
  %v8599 = vor.u32 %v8595, %v8598
  %v8600 = vrot.slane %v8599, 4
  %v8602 = vshll.u32 %v8472, 16
  %v8604 = vrot.slane %v8602, 5
  %v8605 = vsel %vm784, %v8600, %v8604
  %v8607 = vshrl.u32 %v8449, 16
  %v8609 = vrot.slane %v8607, 4
  %v8610 = vshll.u32 %v8449, 16
  %v8612 = vrot.slane %v8610, 5
  %v8613 = vor.u32 %v8609, %v8612
  %v8614 = vrot.slane %v8613, 4
  %v8616 = vshll.u32 %v8473, 16
  %v8618 = vrot.slane %v8616, 5
  %v8619 = vsel %vm784, %v8614, %v8618
  %v8621 = vshrl.u32 %v8450, 16
  %v8623 = vrot.slane %v8621, 4
  %v8624 = vshll.u32 %v8450, 16
  %v8626 = vrot.slane %v8624, 5
  %v8627 = vor.u32 %v8623, %v8626
  %v8628 = vrot.slane %v8627, 4
  %v8630 = vshll.u32 %v8474, 16
  %v8632 = vrot.slane %v8630, 5
  %v8633 = vsel %vm784, %v8628, %v8632
  %v8635 = vshrl.u32 %v8451, 16
  %v8637 = vrot.slane %v8635, 4
  %v8638 = vshll.u32 %v8451, 16
  %v8640 = vrot.slane %v8638, 5
  %v8641 = vor.u32 %v8637, %v8640
  %v8642 = vrot.slane %v8641, 4
  %v8644 = vshll.u32 %v8475, 16
  %v8646 = vrot.slane %v8644, 5
  %v8647 = vsel %vm784, %v8642, %v8646
  %v8649 = vshrl.u32 %v8452, 16
  %v8651 = vrot.slane %v8649, 4
  %v8652 = vshll.u32 %v8452, 16
  %v8654 = vrot.slane %v8652, 5
  %v8655 = vor.u32 %v8651, %v8654
  %v8656 = vrot.slane %v8655, 4
  %v8658 = vshll.u32 %v8476, 16
  %v8660 = vrot.slane %v8658, 5
  %v8661 = vsel %vm784, %v8656, %v8660
  %v8663 = vshrl.u32 %v8453, 16
  %v8665 = vrot.slane %v8663, 4
  %v8666 = vshll.u32 %v8453, 16
  %v8668 = vrot.slane %v8666, 5
  %v8669 = vor.u32 %v8665, %v8668
  %v8670 = vrot.slane %v8669, 4
  %v8672 = vshll.u32 %v8477, 16
  %v8674 = vrot.slane %v8672, 5
  %v8675 = vsel %vm784, %v8670, %v8674
  %v8677 = vshrl.u32 %v8454, 16
  %v8679 = vrot.slane %v8677, 4
  %v8680 = vshll.u32 %v8454, 16
  %v8682 = vrot.slane %v8680, 5
  %v8683 = vor.u32 %v8679, %v8682
  %v8684 = vrot.slane %v8683, 4
  %v8686 = vshll.u32 %v8478, 16
  %v8688 = vrot.slane %v8686, 5
  %v8689 = vsel %vm784, %v8684, %v8688
  %v8691 = vshrl.u32 %v8455, 16
  %v8693 = vrot.slane %v8691, 4
  %v8694 = vshll.u32 %v8455, 16
  %v8696 = vrot.slane %v8694, 5
  %v8697 = vor.u32 %v8693, %v8696
  %v8698 = vrot.slane %v8697, 4
  %v8700 = vshll.u32 %v8479, 16
  %v8702 = vrot.slane %v8700, 5
  %v8703 = vsel %vm784, %v8698, %v8702
  %s8704 = scalar_lea.vmem %s7, 32
  %v8705 = vld [vmem:[%s8704] sm:$0xf]
  %v8706 = vld [vmem:[%s8704 + $0x4] sm:$0xf]
  %v8707 = vld [vmem:[%s8704 + $0x8] sm:$0xf]
  %v8708 = vld [vmem:[%s8704 + $0xc] sm:$0xf]
  %v8709 = vld [vmem:[%s8704 + $0x10] sm:$0xf]
  %v8710 = vld [vmem:[%s8704 + $0x14] sm:$0xf]
  %v8711 = vld [vmem:[%s8704 + $0x18] sm:$0xf]
  %v8712 = vld [vmem:[%s8704 + $0x1c] sm:$0xf]
  %v8713 = vunpack.c.l.b16 %v8493
  %v8714 = vunpack.c.l.b16 %v8507
  %v8715 = vunpack.c.l.b16 %v8521
  %v8716 = vunpack.c.l.b16 %v8535
  %v8717 = vunpack.c.l.b16 %v8549
  %v8718 = vunpack.c.l.b16 %v8563
  %v8719 = vunpack.c.l.b16 %v8577
  %v8720 = vunpack.c.l.b16 %v8591
  %v8721 = vunpack.c.l.b16 %v8605
  %v8722 = vunpack.c.l.b16 %v8619
  %v8723 = vunpack.c.l.b16 %v8633
  %v8724 = vunpack.c.l.b16 %v8647
  %v8725 = vunpack.c.l.b16 %v8661
  %v8726 = vunpack.c.l.b16 %v8675
  %v8727 = vunpack.c.l.b16 %v8689
  %v8728 = vunpack.c.l.b16 %v8703
  %v8729 = vpack.c.b16 %v8714, %v8713
  %v8730 = vpack.c.b16 %v8716, %v8715
  %v8731 = vpack.c.b16 %v8718, %v8717
  %v8732 = vpack.c.b16 %v8720, %v8719
  %v8733 = vpack.c.b16 %v8722, %v8721
  %v8734 = vpack.c.b16 %v8724, %v8723
  %v8735 = vpack.c.b16 %v8726, %v8725
  %v8736 = vpack.c.b16 %v8728, %v8727
  %v8745 = vunpack.c.l.b16 %v8705
  %v8746 = vunpack.c.l.b16 %v8706
  %v8747 = vunpack.c.l.b16 %v8707
  %v8748 = vunpack.c.l.b16 %v8708
  %v8749 = vunpack.c.l.b16 %v8709
  %v8750 = vunpack.c.l.b16 %v8710
  %v8751 = vunpack.c.l.b16 %v8711
  %v8752 = vunpack.c.l.b16 %v8712
  %v8753 = vpack.c.b16 %v8746, %v8745
  %v8754 = vpack.c.b16 %v8748, %v8747
  %v8755 = vpack.c.b16 %v8750, %v8749
  %v8756 = vpack.c.b16 %v8752, %v8751
  %vm8761 = vcmask 523264
  %v8763 = vsel %vm8761, %v8729, 0
  %v8766 = vsel %vm8761, %v8730, 0
  %v8769 = vsel %vm8761, %v8731, 0
  %v8772 = vsel %vm8761, %v8732, 0
  %v8775 = vsel %vm8761, %v8733, 0
  %v8778 = vsel %vm8761, %v8734, 0
  %v8781 = vsel %vm8761, %v8735, 0
  %v8784 = vsel %vm8761, %v8736, 0
  %8786 = vmatprep.subr.bf16.mxu0 0
  %8787 = vmatpush1.bf16.msra.mxu0 %v8753
  %8788 = vmatprep.subr.bf16.mxu0 0
  %8789 = vmatpush1.bf16.msra.mxu0 %v8754
  %8790 = vmatprep.subr.bf16.mxu0 0
  %8791 = vmatpush1.bf16.msra.mxu0 %v8755
  %8792 = vmatprep.subr.bf16.mxu0 0
  %8793 = vmatpush1.bf16.msra.mxu0 %v8756
  %8794 = vmatprep.subr.bf16.mxu0 0
  %8795 = vmatpush1.bf16.msra.mxu0 0
  %8796 = vmatprep.subr.bf16.mxu0 0
  %8797 = vmatpush1.bf16.msra.mxu0 0
  %8798 = vmatprep.subr.bf16.mxu0 0
  %8799 = vmatpush1.bf16.msra.mxu0 0
  %8800 = vmatprep.subr.bf16.mxu0 0
  %8801 = vmatpush1.bf16.msra.mxu0 0
  %8802 = vmatprep.subr.bf16.mxu0 0
  %8803 = vmatpush1.bf16.msra.mxu0 0
  %8804 = vmatprep.subr.bf16.mxu0 0
  %8805 = vmatpush1.bf16.msra.mxu0 0
  %8806 = vmatprep.subr.bf16.mxu0 0
  %8807 = vmatpush1.bf16.msra.mxu0 0
  %8808 = vmatprep.subr.bf16.mxu0 0
  %8809 = vmatpush1.bf16.msra.mxu0 0
  %8810 = vmatprep.subr.bf16.mxu0 0
  %8811 = vmatpush1.bf16.msra.mxu0 0
  %8812 = vmatprep.subr.bf16.mxu0 0
  %8813 = vmatpush1.bf16.msra.mxu0 0
  %8814 = vmatprep.subr.bf16.mxu0 0
  %8815 = vmatpush1.bf16.msra.mxu0 0
  %8816 = vmatprep.subr.bf16.mxu0 0
  %8817 = vmatpush1.bf16.msra.mxu0 0
  %8818 = vmatprep.mubr.bf16.mxu0 0
  %8819 = vmatmul.mubr.bf16.gmra.mrb[0].mxu0 %v8763
  %v8820 = vpop.f32.mrb[0].mxu0
  %v8821 = vadd.f32 0.0, %v8820
  %v8822 = vpop.f32.mrb[0].mxu0
  %v8823 = vpop.f32.mrb[0].mxu0
  %v8824 = vadd.f32 0.0, %v8823
  %v8825 = vpop.f32.mrb[0].mxu0
  %8826 = vmatprep.mubr.bf16.mxu0 0
  %8827 = vmatmul.mubr.bf16.gmra.mrb[0].mxu0 %v8766
  %v8828 = vpop.f32.mrb[0].mxu0
  %v8829 = vadd.f32 0.0, %v8828
  %v8830 = vpop.f32.mrb[0].mxu0
  %v8831 = vpop.f32.mrb[0].mxu0
  %v8832 = vadd.f32 0.0, %v8831
  %v8833 = vpop.f32.mrb[0].mxu0
  %8834 = vmatprep.mubr.bf16.mxu0 0
  %8835 = vmatmul.mubr.bf16.gmra.mrb[0].mxu0 %v8769
  %v8836 = vpop.f32.mrb[0].mxu0
  %v8837 = vadd.f32 0.0, %v8836
  %v8838 = vpop.f32.mrb[0].mxu0
  %v8839 = vpop.f32.mrb[0].mxu0
  %v8840 = vadd.f32 0.0, %v8839
  %v8841 = vpop.f32.mrb[0].mxu0
  %8842 = vmatprep.mubr.bf16.mxu0 0
  %8843 = vmatmul.mubr.bf16.gmra.mrb[0].mxu0 %v8772
  %v8844 = vpop.f32.mrb[0].mxu0
  %v8845 = vadd.f32 0.0, %v8844
  %v8846 = vpop.f32.mrb[0].mxu0
  %v8847 = vpop.f32.mrb[0].mxu0
  %v8848 = vadd.f32 0.0, %v8847
  %v8849 = vpop.f32.mrb[0].mxu0
  %8850 = vmatprep.mubr.bf16.mxu0 0
  %8851 = vmatmul.mubr.bf16.gmra.mrb[0].mxu0 %v8775
  %v8852 = vpop.f32.mrb[0].mxu0
  %v8853 = vadd.f32 0.0, %v8852
  %v8854 = vpop.f32.mrb[0].mxu0
  %v8855 = vpop.f32.mrb[0].mxu0
  %v8856 = vadd.f32 0.0, %v8855
  %v8857 = vpop.f32.mrb[0].mxu0
  %8858 = vmatprep.mubr.bf16.mxu0 0
  %8859 = vmatmul.mubr.bf16.gmra.mrb[0].mxu0 %v8778
  %v8860 = vpop.f32.mrb[0].mxu0
  %v8861 = vadd.f32 0.0, %v8860
  %v8862 = vpop.f32.mrb[0].mxu0
  %v8863 = vpop.f32.mrb[0].mxu0
  %v8864 = vadd.f32 0.0, %v8863
  %v8865 = vpop.f32.mrb[0].mxu0
  %8866 = vmatprep.mubr.bf16.mxu0 0
  %8867 = vmatmul.mubr.bf16.gmra.mrb[0].mxu0 %v8781
  %v8868 = vpop.f32.mrb[0].mxu0
  %v8869 = vadd.f32 0.0, %v8868
  %v8870 = vpop.f32.mrb[0].mxu0
  %v8871 = vpop.f32.mrb[0].mxu0
  %v8872 = vadd.f32 0.0, %v8871
  %v8873 = vpop.f32.mrb[0].mxu0
  %8874 = vmatprep.mubr.bf16.mxu0 0
  %8875 = vmatmul.mubr.bf16.gmra.mrb[0].mxu0 %v8784
  %v8876 = vpop.f32.mrb[0].mxu0
  %v8877 = vadd.f32 0.0, %v8876
  %v8878 = vpop.f32.mrb[0].mxu0
  %v8879 = vpop.f32.mrb[0].mxu0
  %v8880 = vadd.f32 0.0, %v8879
  %v8881 = vpop.f32.mrb[0].mxu0
  %8882 = vdwg.mxu0
  %v8899 = vunpack.c.l.b16 %v8440
  %v8900 = vunpack.c.l.b16 %v8441
  %v8901 = vunpack.c.l.b16 %v8442
  %v8902 = vunpack.c.l.b16 %v8443
  %v8903 = vunpack.c.l.b16 %v8444
  %v8904 = vunpack.c.l.b16 %v8445
  %v8905 = vunpack.c.l.b16 %v8446
  %v8906 = vunpack.c.l.b16 %v8447
  %v8907 = vunpack.c.l.b16 %v8448
  %v8908 = vunpack.c.l.b16 %v8449
  %v8909 = vunpack.c.l.b16 %v8450
  %v8910 = vunpack.c.l.b16 %v8451
  %v8911 = vunpack.c.l.b16 %v8452
  %v8912 = vunpack.c.l.b16 %v8453
  %v8913 = vunpack.c.l.b16 %v8454
  %v8914 = vunpack.c.l.b16 %v8455
  %v8915 = vpack.c.b16 %v8900, %v8899
  %v8916 = vpack.c.b16 %v8902, %v8901
  %v8917 = vpack.c.b16 %v8904, %v8903
  %v8918 = vpack.c.b16 %v8906, %v8905
  %v8919 = vpack.c.b16 %v8908, %v8907
  %v8920 = vpack.c.b16 %v8910, %v8909
  %v8921 = vpack.c.b16 %v8912, %v8911
  %v8922 = vpack.c.b16 %v8914, %v8913
  %v8931 = vunpack.c.l.b16 %v8456
  %v8932 = vunpack.c.l.b16 %v8457
  %v8933 = vunpack.c.l.b16 %v8458
  %v8934 = vunpack.c.l.b16 %v8459
  %v8935 = vunpack.c.l.b16 %v8460
  %v8936 = vunpack.c.l.b16 %v8461
  %v8937 = vunpack.c.l.b16 %v8462
  %v8938 = vunpack.c.l.b16 %v8463
  %v8939 = vpack.c.b16 %v8932, %v8931
  %v8940 = vpack.c.b16 %v8934, %v8933
  %v8941 = vpack.c.b16 %v8936, %v8935
  %v8942 = vpack.c.b16 %v8938, %v8937
  %v8948 = vsel %vm8761, %v8915, 0
  %v8951 = vsel %vm8761, %v8916, 0
  %v8954 = vsel %vm8761, %v8917, 0
  %v8957 = vsel %vm8761, %v8918, 0
  %v8960 = vsel %vm8761, %v8919, 0
  %v8963 = vsel %vm8761, %v8920, 0
  %v8966 = vsel %vm8761, %v8921, 0
  %v8969 = vsel %vm8761, %v8922, 0
  %8971 = vmatprep.subr.bf16.mxu0 0
  %8972 = vmatpush1.bf16.msra.mxu0 %v8939
  %8973 = vmatprep.subr.bf16.mxu0 0
  %8974 = vmatpush1.bf16.msra.mxu0 %v8940
  %8975 = vmatprep.subr.bf16.mxu0 0
  %8976 = vmatpush1.bf16.msra.mxu0 %v8941
  %8977 = vmatprep.subr.bf16.mxu0 0
  %8978 = vmatpush1.bf16.msra.mxu0 %v8942
  %8979 = vmatprep.subr.bf16.mxu0 0
  %8980 = vmatpush1.bf16.msra.mxu0 0
  %8981 = vmatprep.subr.bf16.mxu0 0
  %8982 = vmatpush1.bf16.msra.mxu0 0
  %8983 = vmatprep.subr.bf16.mxu0 0
  %8984 = vmatpush1.bf16.msra.mxu0 0
  %8985 = vmatprep.subr.bf16.mxu0 0
  %8986 = vmatpush1.bf16.msra.mxu0 0
  %8987 = vmatprep.subr.bf16.mxu0 0
  %8988 = vmatpush1.bf16.msra.mxu0 0
  %8989 = vmatprep.subr.bf16.mxu0 0
  %8990 = vmatpush1.bf16.msra.mxu0 0
  %8991 = vmatprep.subr.bf16.mxu0 0
  %8992 = vmatpush1.bf16.msra.mxu0 0
  %8993 = vmatprep.subr.bf16.mxu0 0
  %8994 = vmatpush1.bf16.msra.mxu0 0
  %8995 = vmatprep.subr.bf16.mxu0 0
  %8996 = vmatpush1.bf16.msra.mxu0 0
  %8997 = vmatprep.subr.bf16.mxu0 0
  %8998 = vmatpush1.bf16.msra.mxu0 0
  %8999 = vmatprep.subr.bf16.mxu0 0
  %9000 = vmatpush1.bf16.msra.mxu0 0
  %9001 = vmatprep.subr.bf16.mxu0 0
  %9002 = vmatpush1.bf16.msra.mxu0 0
  %9003 = vmatprep.mubr.bf16.mxu0 0
  %9004 = vmatmul.mubr.bf16.gmra.mrb[0].mxu0 %v8948
  %v9005 = vpop.f32.mrb[0].mxu0
  %v9006 = vadd.f32 %v8821, %v9005
  %v9007 = vpop.f32.mrb[0].mxu0
  %v9008 = vpop.f32.mrb[0].mxu0
  %v9009 = vadd.f32 %v8824, %v9008
  %v9010 = vpop.f32.mrb[0].mxu0
  %9011 = vmatprep.mubr.bf16.mxu0 0
  %9012 = vmatmul.mubr.bf16.gmra.mrb[0].mxu0 %v8951
  %v9013 = vpop.f32.mrb[0].mxu0
  %v9014 = vadd.f32 %v8829, %v9013
  %v9015 = vpop.f32.mrb[0].mxu0
  %v9016 = vpop.f32.mrb[0].mxu0
  %v9017 = vadd.f32 %v8832, %v9016
  %v9018 = vpop.f32.mrb[0].mxu0
  %9019 = vmatprep.mubr.bf16.mxu0 0
  %9020 = vmatmul.mubr.bf16.gmra.mrb[0].mxu0 %v8954
  %v9021 = vpop.f32.mrb[0].mxu0
  %v9022 = vadd.f32 %v8837, %v9021
  %v9023 = vpop.f32.mrb[0].mxu0
  %v9024 = vpop.f32.mrb[0].mxu0
  %v9025 = vadd.f32 %v8840, %v9024
  %v9026 = vpop.f32.mrb[0].mxu0
  %9027 = vmatprep.mubr.bf16.mxu0 0
  %9028 = vmatmul.mubr.bf16.gmra.mrb[0].mxu0 %v8957
  %v9029 = vpop.f32.mrb[0].mxu0
  %v9030 = vadd.f32 %v8845, %v9029
  %v9031 = vpop.f32.mrb[0].mxu0
  %v9032 = vpop.f32.mrb[0].mxu0
  %v9033 = vadd.f32 %v8848, %v9032
  %v9034 = vpop.f32.mrb[0].mxu0
  %9035 = vmatprep.mubr.bf16.mxu0 0
  %9036 = vmatmul.mubr.bf16.gmra.mrb[0].mxu0 %v8960
  %v9037 = vpop.f32.mrb[0].mxu0
  %v9038 = vadd.f32 %v8853, %v9037
  %v9039 = vpop.f32.mrb[0].mxu0
  %v9040 = vpop.f32.mrb[0].mxu0
  %v9041 = vadd.f32 %v8856, %v9040
  %v9042 = vpop.f32.mrb[0].mxu0
  %9043 = vmatprep.mubr.bf16.mxu0 0
  %9044 = vmatmul.mubr.bf16.gmra.mrb[0].mxu0 %v8963
  %v9045 = vpop.f32.mrb[0].mxu0
  %v9046 = vadd.f32 %v8861, %v9045
  %v9047 = vpop.f32.mrb[0].mxu0
  %v9048 = vpop.f32.mrb[0].mxu0
  %v9049 = vadd.f32 %v8864, %v9048
  %v9050 = vpop.f32.mrb[0].mxu0
  %9051 = vmatprep.mubr.bf16.mxu0 0
  %9052 = vmatmul.mubr.bf16.gmra.mrb[0].mxu0 %v8966
  %v9053 = vpop.f32.mrb[0].mxu0
  %v9054 = vadd.f32 %v8869, %v9053
  %v9055 = vpop.f32.mrb[0].mxu0
  %v9056 = vpop.f32.mrb[0].mxu0
  %v9057 = vadd.f32 %v8872, %v9056
  %v9058 = vpop.f32.mrb[0].mxu0
  %9059 = vmatprep.mubr.bf16.mxu0 0
  %9060 = vmatmul.mubr.bf16.gmra.mrb[0].mxu0 %v8969
  %v9061 = vpop.f32.mrb[0].mxu0
  %v9062 = vadd.f32 %v8877, %v9061
  %v9063 = vpop.f32.mrb[0].mxu0
  %v9064 = vpop.f32.mrb[0].mxu0
  %v9065 = vadd.f32 %v8880, %v9064
  %v9066 = vpop.f32.mrb[0].mxu0
  %9067 = vdwg.mxu0
  %v9068 = vld [vmem:[#allocation4] sm:$0xe]
  %v9069 = vld [vmem:[#allocation4 + $0x8] sm:$0xe]
  %v9070 = vld [vmem:[#allocation4 + $0x10] sm:$0xe]
  %v9071 = vld [vmem:[#allocation4 + $0x18] sm:$0xe]
  %v9072 = vld [vmem:[#allocation4 + $0x20] sm:$0xe]
  %v9073 = vld [vmem:[#allocation4 + $0x28] sm:$0xe]
  %v9074 = vld [vmem:[#allocation4 + $0x30] sm:$0xe]
  %v9075 = vld [vmem:[#allocation4 + $0x38] sm:$0xe]
  %v9076 = vld [vmem:[#allocation4 + $0x50] sm:$0xe]
  %v9077 = vld [vmem:[#allocation4 + $0x58] sm:$0xe]
  %v9078 = vld [vmem:[#allocation4 + $0x60] sm:$0xe]
  %v9079 = vld [vmem:[#allocation4 + $0x68] sm:$0xe]
  %v9080 = vld [vmem:[#allocation4 + $0x70] sm:$0xe]
  %v9081 = vld [vmem:[#allocation4 + $0x78] sm:$0xe]
  %v9082 = vld [vmem:[#allocation4 + $0x80] sm:$0xe]
  %v9083 = vld [vmem:[#allocation4 + $0x88] sm:$0xe]
  %v9116 = vrot.slane %v9068, 5
  %v9117 = vrot.slane %v9116, 4
  %v9118 = vrot.slane %v8464, 5
  %v9119 = vsel %vm1622, %v9117, %v9118
  %v9120 = vrot.slane %v9069, 5
  %v9121 = vrot.slane %v9120, 4
  %v9122 = vrot.slane %v8465, 5
  %v9123 = vsel %vm1622, %v9121, %v9122
  %v9124 = vrot.slane %v9070, 5
  %v9125 = vrot.slane %v9124, 4
  %v9126 = vrot.slane %v8466, 5
  %v9127 = vsel %vm1622, %v9125, %v9126
  %v9128 = vrot.slane %v9071, 5
  %v9129 = vrot.slane %v9128, 4
  %v9130 = vrot.slane %v8467, 5
  %v9131 = vsel %vm1622, %v9129, %v9130
  %v9132 = vrot.slane %v9072, 5
  %v9133 = vrot.slane %v9132, 4
  %v9134 = vrot.slane %v8468, 5
  %v9135 = vsel %vm1622, %v9133, %v9134
  %v9136 = vrot.slane %v9073, 5
  %v9137 = vrot.slane %v9136, 4
  %v9138 = vrot.slane %v8469, 5
  %v9139 = vsel %vm1622, %v9137, %v9138
  %v9140 = vrot.slane %v9074, 5
  %v9141 = vrot.slane %v9140, 4
  %v9142 = vrot.slane %v8470, 5
  %v9143 = vsel %vm1622, %v9141, %v9142
  %v9144 = vrot.slane %v9075, 5
  %v9145 = vrot.slane %v9144, 4
  %v9146 = vrot.slane %v8471, 5
  %v9147 = vsel %vm1622, %v9145, %v9146
  %v9148 = vrot.slane %v9076, 5
  %v9149 = vrot.slane %v9148, 4
  %v9150 = vrot.slane %v8472, 5
  %v9151 = vsel %vm1622, %v9149, %v9150
  %v9152 = vrot.slane %v9077, 5
  %v9153 = vrot.slane %v9152, 4
  %v9154 = vrot.slane %v8473, 5
  %v9155 = vsel %vm1622, %v9153, %v9154
  %v9156 = vrot.slane %v9078, 5
  %v9157 = vrot.slane %v9156, 4
  %v9158 = vrot.slane %v8474, 5
  %v9159 = vsel %vm1622, %v9157, %v9158
  %v9160 = vrot.slane %v9079, 5
  %v9161 = vrot.slane %v9160, 4
  %v9162 = vrot.slane %v8475, 5
  %v9163 = vsel %vm1622, %v9161, %v9162
  %v9164 = vrot.slane %v9080, 5
  %v9165 = vrot.slane %v9164, 4
  %v9166 = vrot.slane %v8476, 5
  %v9167 = vsel %vm1622, %v9165, %v9166
  %v9168 = vrot.slane %v9081, 5
  %v9169 = vrot.slane %v9168, 4
  %v9170 = vrot.slane %v8477, 5
  %v9171 = vsel %vm1622, %v9169, %v9170
  %v9172 = vrot.slane %v9082, 5
  %v9173 = vrot.slane %v9172, 4
  %v9174 = vrot.slane %v8478, 5
  %v9175 = vsel %vm1622, %v9173, %v9174
  %v9176 = vrot.slane %v9083, 5
  %v9177 = vrot.slane %v9176, 4
  %v9178 = vrot.slane %v8479, 5
  %v9179 = vsel %vm1622, %v9177, %v9178
  %s9180 = scalar_lea.vmem %s7, 64
  %v9181 = vld [vmem:[%s9180] sm:$0xf]
  %v9182 = vld [vmem:[%s9180 + $0x4] sm:$0xf]
  %v9183 = vld [vmem:[%s9180 + $0x8] sm:$0xf]
  %v9184 = vld [vmem:[%s9180 + $0xc] sm:$0xf]
  %v9185 = vld [vmem:[%s9180 + $0x10] sm:$0xf]
  %v9186 = vld [vmem:[%s9180 + $0x14] sm:$0xf]
  %v9187 = vld [vmem:[%s9180 + $0x18] sm:$0xf]
  %v9188 = vld [vmem:[%s9180 + $0x1c] sm:$0xf]
  %v9189 = vunpack.c.l.b16 %v9119
  %v9190 = vunpack.c.l.b16 %v9123
  %v9191 = vunpack.c.l.b16 %v9127
  %v9192 = vunpack.c.l.b16 %v9131
  %v9193 = vunpack.c.l.b16 %v9135
  %v9194 = vunpack.c.l.b16 %v9139
  %v9195 = vunpack.c.l.b16 %v9143
  %v9196 = vunpack.c.l.b16 %v9147
  %v9197 = vunpack.c.l.b16 %v9151
  %v9198 = vunpack.c.l.b16 %v9155
  %v9199 = vunpack.c.l.b16 %v9159
  %v9200 = vunpack.c.l.b16 %v9163
  %v9201 = vunpack.c.l.b16 %v9167
  %v9202 = vunpack.c.l.b16 %v9171
  %v9203 = vunpack.c.l.b16 %v9175
  %v9204 = vunpack.c.l.b16 %v9179
  %v9205 = vpack.c.b16 %v9190, %v9189
  %v9206 = vpack.c.b16 %v9192, %v9191
  %v9207 = vpack.c.b16 %v9194, %v9193
  %v9208 = vpack.c.b16 %v9196, %v9195
  %v9209 = vpack.c.b16 %v9198, %v9197
  %v9210 = vpack.c.b16 %v9200, %v9199
  %v9211 = vpack.c.b16 %v9202, %v9201
  %v9212 = vpack.c.b16 %v9204, %v9203
  %v9221 = vunpack.c.l.b16 %v9181
  %v9222 = vunpack.c.l.b16 %v9182
  %v9223 = vunpack.c.l.b16 %v9183
  %v9224 = vunpack.c.l.b16 %v9184
  %v9225 = vunpack.c.l.b16 %v9185
  %v9226 = vunpack.c.l.b16 %v9186
  %v9227 = vunpack.c.l.b16 %v9187
  %v9228 = vunpack.c.l.b16 %v9188
  %v9229 = vpack.c.b16 %v9222, %v9221
  %v9230 = vpack.c.b16 %v9224, %v9223
  %v9231 = vpack.c.b16 %v9226, %v9225
  %v9232 = vpack.c.b16 %v9228, %v9227
  %v9238 = vsel %vm8761, %v9205, 0
  %v9241 = vsel %vm8761, %v9206, 0
  %v9244 = vsel %vm8761, %v9207, 0
  %v9247 = vsel %vm8761, %v9208, 0
  %v9250 = vsel %vm8761, %v9209, 0
  %v9253 = vsel %vm8761, %v9210, 0
  %v9256 = vsel %vm8761, %v9211, 0
  %v9259 = vsel %vm8761, %v9212, 0
  %9261 = vmatprep.subr.bf16.mxu0 0
  %9262 = vmatpush1.bf16.msra.mxu0 %v9229
  %9263 = vmatprep.subr.bf16.mxu0 0
  %9264 = vmatpush1.bf16.msra.mxu0 %v9230
  %9265 = vmatprep.subr.bf16.mxu0 0
  %9266 = vmatpush1.bf16.msra.mxu0 %v9231
  %9267 = vmatprep.subr.bf16.mxu0 0
  %9268 = vmatpush1.bf16.msra.mxu0 %v9232
  %9269 = vmatprep.subr.bf16.mxu0 0
  %9270 = vmatpush1.bf16.msra.mxu0 0
  %9271 = vmatprep.subr.bf16.mxu0 0
  %9272 = vmatpush1.bf16.msra.mxu0 0
  %9273 = vmatprep.subr.bf16.mxu0 0
  %9274 = vmatpush1.bf16.msra.mxu0 0
  %9275 = vmatprep.subr.bf16.mxu0 0
  %9276 = vmatpush1.bf16.msra.mxu0 0
  %9277 = vmatprep.subr.bf16.mxu0 0
  %9278 = vmatpush1.bf16.msra.mxu0 0
  %9279 = vmatprep.subr.bf16.mxu0 0
  %9280 = vmatpush1.bf16.msra.mxu0 0
  %9281 = vmatprep.subr.bf16.mxu0 0
  %9282 = vmatpush1.bf16.msra.mxu0 0
  %9283 = vmatprep.subr.bf16.mxu0 0
  %9284 = vmatpush1.bf16.msra.mxu0 0
  %9285 = vmatprep.subr.bf16.mxu0 0
  %9286 = vmatpush1.bf16.msra.mxu0 0
  %9287 = vmatprep.subr.bf16.mxu0 0
  %9288 = vmatpush1.bf16.msra.mxu0 0
  %9289 = vmatprep.subr.bf16.mxu0 0
  %9290 = vmatpush1.bf16.msra.mxu0 0
  %9291 = vmatprep.subr.bf16.mxu0 0
  %9292 = vmatpush1.bf16.msra.mxu0 0
  %9293 = vmatprep.mubr.bf16.mxu0 0
  %9294 = vmatmul.mubr.bf16.gmra.mrb[0].mxu0 %v9238
  %v9295 = vpop.f32.mrb[0].mxu0
  %v9296 = vadd.f32 0.0, %v9295
  %v9297 = vpop.f32.mrb[0].mxu0
  %v9298 = vpop.f32.mrb[0].mxu0
  %v9299 = vadd.f32 0.0, %v9298
  %v9300 = vpop.f32.mrb[0].mxu0
  %9301 = vmatprep.mubr.bf16.mxu0 0
  %9302 = vmatmul.mubr.bf16.gmra.mrb[0].mxu0 %v9241
  %v9303 = vpop.f32.mrb[0].mxu0
  %v9304 = vadd.f32 0.0, %v9303
  %v9305 = vpop.f32.mrb[0].mxu0
  %v9306 = vpop.f32.mrb[0].mxu0
  %v9307 = vadd.f32 0.0, %v9306
  %v9308 = vpop.f32.mrb[0].mxu0
  %9309 = vmatprep.mubr.bf16.mxu0 0
  %9310 = vmatmul.mubr.bf16.gmra.mrb[0].mxu0 %v9244
  %v9311 = vpop.f32.mrb[0].mxu0
  %v9312 = vadd.f32 0.0, %v9311
  %v9313 = vpop.f32.mrb[0].mxu0
  %v9314 = vpop.f32.mrb[0].mxu0
  %v9315 = vadd.f32 0.0, %v9314
  %v9316 = vpop.f32.mrb[0].mxu0
  %9317 = vmatprep.mubr.bf16.mxu0 0
  %9318 = vmatmul.mubr.bf16.gmra.mrb[0].mxu0 %v9247
  %v9319 = vpop.f32.mrb[0].mxu0
  %v9320 = vadd.f32 0.0, %v9319
  %v9321 = vpop.f32.mrb[0].mxu0
  %v9322 = vpop.f32.mrb[0].mxu0
  %v9323 = vadd.f32 0.0, %v9322
  %v9324 = vpop.f32.mrb[0].mxu0
  %9325 = vmatprep.mubr.bf16.mxu0 0
  %9326 = vmatmul.mubr.bf16.gmra.mrb[0].mxu0 %v9250
  %v9327 = vpop.f32.mrb[0].mxu0
  %v9328 = vadd.f32 0.0, %v9327
  %v9329 = vpop.f32.mrb[0].mxu0
  %v9330 = vpop.f32.mrb[0].mxu0
  %v9331 = vadd.f32 0.0, %v9330
  %v9332 = vpop.f32.mrb[0].mxu0
  %9333 = vmatprep.mubr.bf16.mxu0 0
  %9334 = vmatmul.mubr.bf16.gmra.mrb[0].mxu0 %v9253
  %v9335 = vpop.f32.mrb[0].mxu0
  %v9336 = vadd.f32 0.0, %v9335
  %v9337 = vpop.f32.mrb[0].mxu0
  %v9338 = vpop.f32.mrb[0].mxu0
  %v9339 = vadd.f32 0.0, %v9338
  %v9340 = vpop.f32.mrb[0].mxu0
  %9341 = vmatprep.mubr.bf16.mxu0 0
  %9342 = vmatmul.mubr.bf16.gmra.mrb[0].mxu0 %v9256
  %v9343 = vpop.f32.mrb[0].mxu0
  %v9344 = vadd.f32 0.0, %v9343
  %v9345 = vpop.f32.mrb[0].mxu0
  %v9346 = vpop.f32.mrb[0].mxu0
  %v9347 = vadd.f32 0.0, %v9346
  %v9348 = vpop.f32.mrb[0].mxu0
  %9349 = vmatprep.mubr.bf16.mxu0 0
  %9350 = vmatmul.mubr.bf16.gmra.mrb[0].mxu0 %v9259
  %v9351 = vpop.f32.mrb[0].mxu0
  %v9352 = vadd.f32 0.0, %v9351
  %v9353 = vpop.f32.mrb[0].mxu0
  %v9354 = vpop.f32.mrb[0].mxu0
  %v9355 = vadd.f32 0.0, %v9354
  %v9356 = vpop.f32.mrb[0].mxu0
  %9357 = vdwg.mxu0
  %v9358 = vadd.f32 %v9006, %v9296
  %v9359 = vadd.f32 %v9009, %v9299
  %v9360 = vadd.f32 %v9014, %v9304
  %v9361 = vadd.f32 %v9017, %v9307
  %v9362 = vadd.f32 %v9022, %v9312
  %v9363 = vadd.f32 %v9025, %v9315
  %v9364 = vadd.f32 %v9030, %v9320
  %v9365 = vadd.f32 %v9033, %v9323
  %v9366 = vadd.f32 %v9038, %v9328
  %v9367 = vadd.f32 %v9041, %v9331
  %v9368 = vadd.f32 %v9046, %v9336
  %v9369 = vadd.f32 %v9049, %v9339
  %v9370 = vadd.f32 %v9054, %v9344
  %v9371 = vadd.f32 %v9057, %v9347
  %v9372 = vadd.f32 %v9062, %v9352
  %v9373 = vadd.f32 %v9065, %v9355
  %v9374 = vld [vmem:[%s8341] sm:$0xf]
  %v9375 = vld [vmem:[%s8341 + $0x8] sm:$0xf]
  %v9376 = vld [vmem:[%s8341 + $0x10] sm:$0xf]
  %v9377 = vld [vmem:[%s8341 + $0x18] sm:$0xf]
  %v9378 = vld [vmem:[%s8341 + $0x20] sm:$0xf]
  %v9379 = vld [vmem:[%s8341 + $0x28] sm:$0xf]
  %v9380 = vld [vmem:[%s8341 + $0x30] sm:$0xf]
  %v9381 = vld [vmem:[%s8341 + $0x38] sm:$0xf]
  %v9382 = vld [vmem:[%s8341 + $0x50] sm:$0xf]
  %v9383 = vld [vmem:[%s8341 + $0x58] sm:$0xf]
  %v9384 = vld [vmem:[%s8341 + $0x60] sm:$0xf]
  %v9385 = vld [vmem:[%s8341 + $0x68] sm:$0xf]
  %v9386 = vld [vmem:[%s8341 + $0x70] sm:$0xf]
  %v9387 = vld [vmem:[%s8341 + $0x78] sm:$0xf]
  %v9388 = vld [vmem:[%s8341 + $0x80] sm:$0xf]
  %v9389 = vld [vmem:[%s8341 + $0x88] sm:$0xf]
  %s9390 = scalar_lea.vmem %s7, 96
  %v9391 = vld [vmem:[%s9390] sm:$0xf]
  %v9392 = vld [vmem:[%s9390 + $0x4] sm:$0xf]
  %v9393 = vld [vmem:[%s9390 + $0x8] sm:$0xf]
  %v9394 = vld [vmem:[%s9390 + $0xc] sm:$0xf]
  %v9395 = vld [vmem:[%s9390 + $0x10] sm:$0xf]
  %v9396 = vld [vmem:[%s9390 + $0x14] sm:$0xf]
  %v9397 = vld [vmem:[%s9390 + $0x18] sm:$0xf]
  %v9398 = vld [vmem:[%s9390 + $0x1c] sm:$0xf]
  %v9415 = vunpack.c.l.b16 %v9374
  %v9416 = vunpack.c.l.b16 %v9375
  %v9417 = vunpack.c.l.b16 %v9376
  %v9418 = vunpack.c.l.b16 %v9377
  %v9419 = vunpack.c.l.b16 %v9378
  %v9420 = vunpack.c.l.b16 %v9379
  %v9421 = vunpack.c.l.b16 %v9380
  %v9422 = vunpack.c.l.b16 %v9381
  %v9423 = vunpack.c.l.b16 %v9382
  %v9424 = vunpack.c.l.b16 %v9383
  %v9425 = vunpack.c.l.b16 %v9384
  %v9426 = vunpack.c.l.b16 %v9385
  %v9427 = vunpack.c.l.b16 %v9386
  %v9428 = vunpack.c.l.b16 %v9387
  %v9429 = vunpack.c.l.b16 %v9388
  %v9430 = vunpack.c.l.b16 %v9389
  %v9431 = vpack.c.b16 %v9416, %v9415
  %v9432 = vpack.c.b16 %v9418, %v9417
  %v9433 = vpack.c.b16 %v9420, %v9419
  %v9434 = vpack.c.b16 %v9422, %v9421
  %v9435 = vpack.c.b16 %v9424, %v9423
  %v9436 = vpack.c.b16 %v9426, %v9425
  %v9437 = vpack.c.b16 %v9428, %v9427
  %v9438 = vpack.c.b16 %v9430, %v9429
  %v9447 = vunpack.c.l.b16 %v9391
  %v9448 = vunpack.c.l.b16 %v9392
  %v9449 = vunpack.c.l.b16 %v9393
  %v9450 = vunpack.c.l.b16 %v9394
  %v9451 = vunpack.c.l.b16 %v9395
  %v9452 = vunpack.c.l.b16 %v9396
  %v9453 = vunpack.c.l.b16 %v9397
  %v9454 = vunpack.c.l.b16 %v9398
  %v9455 = vpack.c.b16 %v9448, %v9447
  %v9456 = vpack.c.b16 %v9450, %v9449
  %v9457 = vpack.c.b16 %v9452, %v9451
  %v9458 = vpack.c.b16 %v9454, %v9453
  %v9464 = vsel %vm8761, %v9431, 0
  %v9467 = vsel %vm8761, %v9432, 0
  %v9470 = vsel %vm8761, %v9433, 0
  %v9473 = vsel %vm8761, %v9434, 0
  %v9476 = vsel %vm8761, %v9435, 0
  %v9479 = vsel %vm8761, %v9436, 0
  %v9482 = vsel %vm8761, %v9437, 0
  %v9485 = vsel %vm8761, %v9438, 0
  %9487 = vmatprep.subr.bf16.mxu0 0
  %9488 = vmatpush1.bf16.msra.mxu0 %v9455
  %9489 = vmatprep.subr.bf16.mxu0 0
  %9490 = vmatpush1.bf16.msra.mxu0 %v9456
  %9491 = vmatprep.subr.bf16.mxu0 0
  %9492 = vmatpush1.bf16.msra.mxu0 %v9457
  %9493 = vmatprep.subr.bf16.mxu0 0
  %9494 = vmatpush1.bf16.msra.mxu0 %v9458
  %9495 = vmatprep.subr.bf16.mxu0 0
  %9496 = vmatpush1.bf16.msra.mxu0 0
  %9497 = vmatprep.subr.bf16.mxu0 0
  %9498 = vmatpush1.bf16.msra.mxu0 0
  %9499 = vmatprep.subr.bf16.mxu0 0
  %9500 = vmatpush1.bf16.msra.mxu0 0
  %9501 = vmatprep.subr.bf16.mxu0 0
  %9502 = vmatpush1.bf16.msra.mxu0 0
  %9503 = vmatprep.subr.bf16.mxu0 0
  %9504 = vmatpush1.bf16.msra.mxu0 0
  %9505 = vmatprep.subr.bf16.mxu0 0
  %9506 = vmatpush1.bf16.msra.mxu0 0
  %9507 = vmatprep.subr.bf16.mxu0 0
  %9508 = vmatpush1.bf16.msra.mxu0 0
  %9509 = vmatprep.subr.bf16.mxu0 0
  %9510 = vmatpush1.bf16.msra.mxu0 0
  %9511 = vmatprep.subr.bf16.mxu0 0
  %9512 = vmatpush1.bf16.msra.mxu0 0
  %9513 = vmatprep.subr.bf16.mxu0 0
  %9514 = vmatpush1.bf16.msra.mxu0 0
  %9515 = vmatprep.subr.bf16.mxu0 0
  %9516 = vmatpush1.bf16.msra.mxu0 0
  %9517 = vmatprep.subr.bf16.mxu0 0
  %9518 = vmatpush1.bf16.msra.mxu0 0
  %9519 = vmatprep.mubr.bf16.mxu0 0
  %9520 = vmatmul.mubr.bf16.gmra.mrb[0].mxu0 %v9464
  %v9521 = vpop.f32.mrb[0].mxu0
  %v9522 = vadd.f32 0.0, %v9521
  %v9523 = vpop.f32.mrb[0].mxu0
  %v9524 = vpop.f32.mrb[0].mxu0
  %v9525 = vadd.f32 0.0, %v9524
  %v9526 = vpop.f32.mrb[0].mxu0
  %9527 = vmatprep.mubr.bf16.mxu0 0
  %9528 = vmatmul.mubr.bf16.gmra.mrb[0].mxu0 %v9467
  %v9529 = vpop.f32.mrb[0].mxu0
  %v9530 = vadd.f32 0.0, %v9529
  %v9531 = vpop.f32.mrb[0].mxu0
  %v9532 = vpop.f32.mrb[0].mxu0
  %v9533 = vadd.f32 0.0, %v9532
  %v9534 = vpop.f32.mrb[0].mxu0
  %9535 = vmatprep.mubr.bf16.mxu0 0
  %9536 = vmatmul.mubr.bf16.gmra.mrb[0].mxu0 %v9470
  %v9537 = vpop.f32.mrb[0].mxu0
  %v9538 = vadd.f32 0.0, %v9537
  %v9539 = vpop.f32.mrb[0].mxu0
  %v9540 = vpop.f32.mrb[0].mxu0
  %v9541 = vadd.f32 0.0, %v9540
  %v9542 = vpop.f32.mrb[0].mxu0
  %9543 = vmatprep.mubr.bf16.mxu0 0
  %9544 = vmatmul.mubr.bf16.gmra.mrb[0].mxu0 %v9473
  %v9545 = vpop.f32.mrb[0].mxu0
  %v9546 = vadd.f32 0.0, %v9545
  %v9547 = vpop.f32.mrb[0].mxu0
  %v9548 = vpop.f32.mrb[0].mxu0
  %v9549 = vadd.f32 0.0, %v9548
  %v9550 = vpop.f32.mrb[0].mxu0
  %9551 = vmatprep.mubr.bf16.mxu0 0
  %9552 = vmatmul.mubr.bf16.gmra.mrb[0].mxu0 %v9476
  %v9553 = vpop.f32.mrb[0].mxu0
  %v9554 = vadd.f32 0.0, %v9553
  %v9555 = vpop.f32.mrb[0].mxu0
  %v9556 = vpop.f32.mrb[0].mxu0
  %v9557 = vadd.f32 0.0, %v9556
  %v9558 = vpop.f32.mrb[0].mxu0
  %9559 = vmatprep.mubr.bf16.mxu0 0
  %9560 = vmatmul.mubr.bf16.gmra.mrb[0].mxu0 %v9479
  %v9561 = vpop.f32.mrb[0].mxu0
  %v9562 = vadd.f32 0.0, %v9561
  %v9563 = vpop.f32.mrb[0].mxu0
  %v9564 = vpop.f32.mrb[0].mxu0
  %v9565 = vadd.f32 0.0, %v9564
  %v9566 = vpop.f32.mrb[0].mxu0
  %9567 = vmatprep.mubr.bf16.mxu0 0
  %9568 = vmatmul.mubr.bf16.gmra.mrb[0].mxu0 %v9482
  %v9569 = vpop.f32.mrb[0].mxu0
  %v9570 = vadd.f32 0.0, %v9569
  %v9571 = vpop.f32.mrb[0].mxu0
  %v9572 = vpop.f32.mrb[0].mxu0
  %v9573 = vadd.f32 0.0, %v9572
  %v9574 = vpop.f32.mrb[0].mxu0
  %9575 = vmatprep.mubr.bf16.mxu0 0
  %9576 = vmatmul.mubr.bf16.gmra.mrb[0].mxu0 %v9485
  %v9577 = vpop.f32.mrb[0].mxu0
  %v9578 = vadd.f32 0.0, %v9577
  %v9579 = vpop.f32.mrb[0].mxu0
  %v9580 = vpop.f32.mrb[0].mxu0
  %v9581 = vadd.f32 0.0, %v9580
  %v9582 = vpop.f32.mrb[0].mxu0
  %9583 = vdwg.mxu0
  %v9584 = vadd.f32 %v9358, %v9522
  %v9585 = vadd.f32 %v9359, %v9525
  %v9586 = vadd.f32 %v9360, %v9530
  %v9587 = vadd.f32 %v9361, %v9533
  %v9588 = vadd.f32 %v9362, %v9538
  %v9589 = vadd.f32 %v9363, %v9541
  %v9590 = vadd.f32 %v9364, %v9546
  %v9591 = vadd.f32 %v9365, %v9549
  %v9592 = vadd.f32 %v9366, %v9554
  %v9593 = vadd.f32 %v9367, %v9557
  %v9594 = vadd.f32 %v9368, %v9562
  %v9595 = vadd.f32 %v9369, %v9565
  %v9596 = vadd.f32 %v9370, %v9570
  %v9597 = vadd.f32 %v9371, %v9573
  %v9598 = vadd.f32 %v9372, %v9578
  %v9599 = vadd.f32 %v9373, %v9581
  %v9600 = vld [vmem:[%s8341] sm:$0xf]
  %v9601 = vld [vmem:[%s8341 + $0x4] sm:$0x1]
  %v9602 = vld [vmem:[%s8341 + $0x8] sm:$0xf]
  %v9603 = vld [vmem:[%s8341 + $0xc] sm:$0x1]
  %v9604 = vld [vmem:[%s8341 + $0x10] sm:$0xf]
  %v9605 = vld [vmem:[%s8341 + $0x14] sm:$0x1]
  %v9606 = vld [vmem:[%s8341 + $0x18] sm:$0xf]
  %v9607 = vld [vmem:[%s8341 + $0x1c] sm:$0x1]
  %v9608 = vld [vmem:[%s8341 + $0x20] sm:$0xf]
  %v9609 = vld [vmem:[%s8341 + $0x24] sm:$0x1]
  %v9610 = vld [vmem:[%s8341 + $0x28] sm:$0xf]
  %v9611 = vld [vmem:[%s8341 + $0x2c] sm:$0x1]
  %v9612 = vld [vmem:[%s8341 + $0x30] sm:$0xf]
  %v9613 = vld [vmem:[%s8341 + $0x34] sm:$0x1]
  %v9614 = vld [vmem:[%s8341 + $0x38] sm:$0xf]
  %v9615 = vld [vmem:[%s8341 + $0x3c] sm:$0x1]
  %v9616 = vld [vmem:[%s8341 + $0x50] sm:$0xf]
  %v9617 = vld [vmem:[%s8341 + $0x54] sm:$0x1]
  %v9618 = vld [vmem:[%s8341 + $0x58] sm:$0xf]
  %v9619 = vld [vmem:[%s8341 + $0x5c] sm:$0x1]
  %v9620 = vld [vmem:[%s8341 + $0x60] sm:$0xf]
  %v9621 = vld [vmem:[%s8341 + $0x64] sm:$0x1]
  %v9622 = vld [vmem:[%s8341 + $0x68] sm:$0xf]
  %v9623 = vld [vmem:[%s8341 + $0x6c] sm:$0x1]
  %v9624 = vld [vmem:[%s8341 + $0x70] sm:$0xf]
  %v9625 = vld [vmem:[%s8341 + $0x74] sm:$0x1]
  %v9626 = vld [vmem:[%s8341 + $0x78] sm:$0xf]
  %v9627 = vld [vmem:[%s8341 + $0x7c] sm:$0x1]
  %v9628 = vld [vmem:[%s8341 + $0x80] sm:$0xf]
  %v9629 = vld [vmem:[%s8341 + $0x84] sm:$0x1]
  %v9630 = vld [vmem:[%s8341 + $0x88] sm:$0xf]
  %v9631 = vld [vmem:[%s8341 + $0x8c] sm:$0x1]
  %v9633 = vshrl.u32 %v9600, 16
  %v9635 = vrot.slane %v9633, 4
  %v9636 = vshll.u32 %v9600, 16
  %v9638 = vrot.slane %v9636, 5
  %v9639 = vor.u32 %v9635, %v9638
  %v9640 = vrot.slane %v9639, 4
  %v9642 = vshll.u32 %v9601, 16
  %v9644 = vrot.slane %v9642, 5
  %v9645 = vsel %vm784, %v9640, %v9644
  %v9647 = vshrl.u32 %v9602, 16
  %v9649 = vrot.slane %v9647, 4
  %v9650 = vshll.u32 %v9602, 16
  %v9652 = vrot.slane %v9650, 5
  %v9653 = vor.u32 %v9649, %v9652
  %v9654 = vrot.slane %v9653, 4
  %v9656 = vshll.u32 %v9603, 16
  %v9658 = vrot.slane %v9656, 5
  %v9659 = vsel %vm784, %v9654, %v9658
  %v9661 = vshrl.u32 %v9604, 16
  %v9663 = vrot.slane %v9661, 4
  %v9664 = vshll.u32 %v9604, 16
  %v9666 = vrot.slane %v9664, 5
  %v9667 = vor.u32 %v9663, %v9666
  %v9668 = vrot.slane %v9667, 4
  %v9670 = vshll.u32 %v9605, 16
  %v9672 = vrot.slane %v9670, 5
  %v9673 = vsel %vm784, %v9668, %v9672
  %v9675 = vshrl.u32 %v9606, 16
  %v9677 = vrot.slane %v9675, 4
  %v9678 = vshll.u32 %v9606, 16
  %v9680 = vrot.slane %v9678, 5
  %v9681 = vor.u32 %v9677, %v9680
  %v9682 = vrot.slane %v9681, 4
  %v9684 = vshll.u32 %v9607, 16
  %v9686 = vrot.slane %v9684, 5
  %v9687 = vsel %vm784, %v9682, %v9686
  %v9689 = vshrl.u32 %v9608, 16
  %v9691 = vrot.slane %v9689, 4
  %v9692 = vshll.u32 %v9608, 16
  %v9694 = vrot.slane %v9692, 5
  %v9695 = vor.u32 %v9691, %v9694
  %v9696 = vrot.slane %v9695, 4
  %v9698 = vshll.u32 %v9609, 16
  %v9700 = vrot.slane %v9698, 5
  %v9701 = vsel %vm784, %v9696, %v9700
  %v9703 = vshrl.u32 %v9610, 16
  %v9705 = vrot.slane %v9703, 4
  %v9706 = vshll.u32 %v9610, 16
  %v9708 = vrot.slane %v9706, 5
  %v9709 = vor.u32 %v9705, %v9708
  %v9710 = vrot.slane %v9709, 4
  %v9712 = vshll.u32 %v9611, 16
  %v9714 = vrot.slane %v9712, 5
  %v9715 = vsel %vm784, %v9710, %v9714
  %v9717 = vshrl.u32 %v9612, 16
  %v9719 = vrot.slane %v9717, 4
  %v9720 = vshll.u32 %v9612, 16
  %v9722 = vrot.slane %v9720, 5
  %v9723 = vor.u32 %v9719, %v9722
  %v9724 = vrot.slane %v9723, 4
  %v9726 = vshll.u32 %v9613, 16
  %v9728 = vrot.slane %v9726, 5
  %v9729 = vsel %vm784, %v9724, %v9728
  %v9731 = vshrl.u32 %v9614, 16
  %v9733 = vrot.slane %v9731, 4
  %v9734 = vshll.u32 %v9614, 16
  %v9736 = vrot.slane %v9734, 5
  %v9737 = vor.u32 %v9733, %v9736
  %v9738 = vrot.slane %v9737, 4
  %v9740 = vshll.u32 %v9615, 16
  %v9742 = vrot.slane %v9740, 5
  %v9743 = vsel %vm784, %v9738, %v9742
  %v9745 = vshrl.u32 %v9616, 16
  %v9747 = vrot.slane %v9745, 4
  %v9748 = vshll.u32 %v9616, 16
  %v9750 = vrot.slane %v9748, 5
  %v9751 = vor.u32 %v9747, %v9750
  %v9752 = vrot.slane %v9751, 4
  %v9754 = vshll.u32 %v9617, 16
  %v9756 = vrot.slane %v9754, 5
  %v9757 = vsel %vm784, %v9752, %v9756
  %v9759 = vshrl.u32 %v9618, 16
  %v9761 = vrot.slane %v9759, 4
  %v9762 = vshll.u32 %v9618, 16
  %v9764 = vrot.slane %v9762, 5
  %v9765 = vor.u32 %v9761, %v9764
  %v9766 = vrot.slane %v9765, 4
  %v9768 = vshll.u32 %v9619, 16
  %v9770 = vrot.slane %v9768, 5
  %v9771 = vsel %vm784, %v9766, %v9770
  %v9773 = vshrl.u32 %v9620, 16
  %v9775 = vrot.slane %v9773, 4
  %v9776 = vshll.u32 %v9620, 16
  %v9778 = vrot.slane %v9776, 5
  %v9779 = vor.u32 %v9775, %v9778
  %v9780 = vrot.slane %v9779, 4
  %v9782 = vshll.u32 %v9621, 16
  %v9784 = vrot.slane %v9782, 5
  %v9785 = vsel %vm784, %v9780, %v9784
  %v9787 = vshrl.u32 %v9622, 16
  %v9789 = vrot.slane %v9787, 4
  %v9790 = vshll.u32 %v9622, 16
  %v9792 = vrot.slane %v9790, 5
  %v9793 = vor.u32 %v9789, %v9792
  %v9794 = vrot.slane %v9793, 4
  %v9796 = vshll.u32 %v9623, 16
  %v9798 = vrot.slane %v9796, 5
  %v9799 = vsel %vm784, %v9794, %v9798
  %v9801 = vshrl.u32 %v9624, 16
  %v9803 = vrot.slane %v9801, 4
  %v9804 = vshll.u32 %v9624, 16
  %v9806 = vrot.slane %v9804, 5
  %v9807 = vor.u32 %v9803, %v9806
  %v9808 = vrot.slane %v9807, 4
  %v9810 = vshll.u32 %v9625, 16
  %v9812 = vrot.slane %v9810, 5
  %v9813 = vsel %vm784, %v9808, %v9812
  %v9815 = vshrl.u32 %v9626, 16
  %v9817 = vrot.slane %v9815, 4
  %v9818 = vshll.u32 %v9626, 16
  %v9820 = vrot.slane %v9818, 5
  %v9821 = vor.u32 %v9817, %v9820
  %v9822 = vrot.slane %v9821, 4
  %v9824 = vshll.u32 %v9627, 16
  %v9826 = vrot.slane %v9824, 5
  %v9827 = vsel %vm784, %v9822, %v9826
  %v9829 = vshrl.u32 %v9628, 16
  %v9831 = vrot.slane %v9829, 4
  %v9832 = vshll.u32 %v9628, 16
  %v9834 = vrot.slane %v9832, 5
  %v9835 = vor.u32 %v9831, %v9834
  %v9836 = vrot.slane %v9835, 4
  %v9838 = vshll.u32 %v9629, 16
  %v9840 = vrot.slane %v9838, 5
  %v9841 = vsel %vm784, %v9836, %v9840
  %v9843 = vshrl.u32 %v9630, 16
  %v9845 = vrot.slane %v9843, 4
  %v9846 = vshll.u32 %v9630, 16
  %v9848 = vrot.slane %v9846, 5
  %v9849 = vor.u32 %v9845, %v9848
  %v9850 = vrot.slane %v9849, 4
  %v9852 = vshll.u32 %v9631, 16
  %v9854 = vrot.slane %v9852, 5
  %v9855 = vsel %vm784, %v9850, %v9854
  %s9856 = scalar_lea.vmem %s7, 128
  %v9857 = vld [vmem:[%s9856] sm:$0xf]
  %v9858 = vld [vmem:[%s9856 + $0x4] sm:$0xf]
  %v9859 = vld [vmem:[%s9856 + $0x8] sm:$0xf]
  %v9860 = vld [vmem:[%s9856 + $0xc] sm:$0xf]
  %v9861 = vld [vmem:[%s9856 + $0x10] sm:$0xf]
  %v9862 = vld [vmem:[%s9856 + $0x14] sm:$0xf]
  %v9863 = vld [vmem:[%s9856 + $0x18] sm:$0xf]
  %v9864 = vld [vmem:[%s9856 + $0x1c] sm:$0xf]
  %v9865 = vunpack.c.l.b16 %v9645
  %v9866 = vunpack.c.l.b16 %v9659
  %v9867 = vunpack.c.l.b16 %v9673
  %v9868 = vunpack.c.l.b16 %v9687
  %v9869 = vunpack.c.l.b16 %v9701
  %v9870 = vunpack.c.l.b16 %v9715
  %v9871 = vunpack.c.l.b16 %v9729
  %v9872 = vunpack.c.l.b16 %v9743
  %v9873 = vunpack.c.l.b16 %v9757
  %v9874 = vunpack.c.l.b16 %v9771
  %v9875 = vunpack.c.l.b16 %v9785
  %v9876 = vunpack.c.l.b16 %v9799
  %v9877 = vunpack.c.l.b16 %v9813
  %v9878 = vunpack.c.l.b16 %v9827
  %v9879 = vunpack.c.l.b16 %v9841
  %v9880 = vunpack.c.l.b16 %v9855
  %v9881 = vpack.c.b16 %v9866, %v9865
  %v9882 = vpack.c.b16 %v9868, %v9867
  %v9883 = vpack.c.b16 %v9870, %v9869
  %v9884 = vpack.c.b16 %v9872, %v9871
  %v9885 = vpack.c.b16 %v9874, %v9873
  %v9886 = vpack.c.b16 %v9876, %v9875
  %v9887 = vpack.c.b16 %v9878, %v9877
  %v9888 = vpack.c.b16 %v9880, %v9879
  %v9897 = vunpack.c.l.b16 %v9857
  %v9898 = vunpack.c.l.b16 %v9858
  %v9899 = vunpack.c.l.b16 %v9859
  %v9900 = vunpack.c.l.b16 %v9860
  %v9901 = vunpack.c.l.b16 %v9861
  %v9902 = vunpack.c.l.b16 %v9862
  %v9903 = vunpack.c.l.b16 %v9863
  %v9904 = vunpack.c.l.b16 %v9864
  %v9905 = vpack.c.b16 %v9898, %v9897
  %v9906 = vpack.c.b16 %v9900, %v9899
  %v9907 = vpack.c.b16 %v9902, %v9901
  %v9908 = vpack.c.b16 %v9904, %v9903
  %v9914 = vsel %vm8761, %v9881, 0
  %v9917 = vsel %vm8761, %v9882, 0
  %v9920 = vsel %vm8761, %v9883, 0
  %v9923 = vsel %vm8761, %v9884, 0
  %v9926 = vsel %vm8761, %v9885, 0
  %v9929 = vsel %vm8761, %v9886, 0
  %v9932 = vsel %vm8761, %v9887, 0
  %v9935 = vsel %vm8761, %v9888, 0
  %9937 = vmatprep.subr.bf16.mxu0 0
  %9938 = vmatpush1.bf16.msra.mxu0 %v9905
  %9939 = vmatprep.subr.bf16.mxu0 0
  %9940 = vmatpush1.bf16.msra.mxu0 %v9906
  %9941 = vmatprep.subr.bf16.mxu0 0
  %9942 = vmatpush1.bf16.msra.mxu0 %v9907
  %9943 = vmatprep.subr.bf16.mxu0 0
  %9944 = vmatpush1.bf16.msra.mxu0 %v9908
  %9945 = vmatprep.subr.bf16.mxu0 0
  %9946 = vmatpush1.bf16.msra.mxu0 0
  %9947 = vmatprep.subr.bf16.mxu0 0
  %9948 = vmatpush1.bf16.msra.mxu0 0
  %9949 = vmatprep.subr.bf16.mxu0 0
  %9950 = vmatpush1.bf16.msra.mxu0 0
  %9951 = vmatprep.subr.bf16.mxu0 0
  %9952 = vmatpush1.bf16.msra.mxu0 0
  %9953 = vmatprep.subr.bf16.mxu0 0
  %9954 = vmatpush1.bf16.msra.mxu0 0
  %9955 = vmatprep.subr.bf16.mxu0 0
  %9956 = vmatpush1.bf16.msra.mxu0 0
  %9957 = vmatprep.subr.bf16.mxu0 0
  %9958 = vmatpush1.bf16.msra.mxu0 0
  %9959 = vmatprep.subr.bf16.mxu0 0
  %9960 = vmatpush1.bf16.msra.mxu0 0
  %9961 = vmatprep.subr.bf16.mxu0 0
  %9962 = vmatpush1.bf16.msra.mxu0 0
  %9963 = vmatprep.subr.bf16.mxu0 0
  %9964 = vmatpush1.bf16.msra.mxu0 0
  %9965 = vmatprep.subr.bf16.mxu0 0
  %9966 = vmatpush1.bf16.msra.mxu0 0
  %9967 = vmatprep.subr.bf16.mxu0 0
  %9968 = vmatpush1.bf16.msra.mxu0 0
  %9969 = vmatprep.mubr.bf16.mxu0 0
  %9970 = vmatmul.mubr.bf16.gmra.mrb[0].mxu0 %v9914
  %v9971 = vpop.f32.mrb[0].mxu0
  %v9972 = vadd.f32 0.0, %v9971
  %v9973 = vpop.f32.mrb[0].mxu0
  %v9974 = vpop.f32.mrb[0].mxu0
  %v9975 = vadd.f32 0.0, %v9974
  %v9976 = vpop.f32.mrb[0].mxu0
  %9977 = vmatprep.mubr.bf16.mxu0 0
  %9978 = vmatmul.mubr.bf16.gmra.mrb[0].mxu0 %v9917
  %v9979 = vpop.f32.mrb[0].mxu0
  %v9980 = vadd.f32 0.0, %v9979
  %v9981 = vpop.f32.mrb[0].mxu0
  %v9982 = vpop.f32.mrb[0].mxu0
  %v9983 = vadd.f32 0.0, %v9982
  %v9984 = vpop.f32.mrb[0].mxu0
  %9985 = vmatprep.mubr.bf16.mxu0 0
  %9986 = vmatmul.mubr.bf16.gmra.mrb[0].mxu0 %v9920
  %v9987 = vpop.f32.mrb[0].mxu0
  %v9988 = vadd.f32 0.0, %v9987
  %v9989 = vpop.f32.mrb[0].mxu0
  %v9990 = vpop.f32.mrb[0].mxu0
  %v9991 = vadd.f32 0.0, %v9990
  %v9992 = vpop.f32.mrb[0].mxu0
  %9993 = vmatprep.mubr.bf16.mxu0 0
  %9994 = vmatmul.mubr.bf16.gmra.mrb[0].mxu0 %v9923
  %v9995 = vpop.f32.mrb[0].mxu0
  %v9996 = vadd.f32 0.0, %v9995
  %v9997 = vpop.f32.mrb[0].mxu0
  %v9998 = vpop.f32.mrb[0].mxu0
  %v9999 = vadd.f32 0.0, %v9998
  %v10000 = vpop.f32.mrb[0].mxu0
  %10001 = vmatprep.mubr.bf16.mxu0 0
  %10002 = vmatmul.mubr.bf16.gmra.mrb[0].mxu0 %v9926
  %v10003 = vpop.f32.mrb[0].mxu0
  %v10004 = vadd.f32 0.0, %v10003
  %v10005 = vpop.f32.mrb[0].mxu0
  %v10006 = vpop.f32.mrb[0].mxu0
  %v10007 = vadd.f32 0.0, %v10006
  %v10008 = vpop.f32.mrb[0].mxu0
  %10009 = vmatprep.mubr.bf16.mxu0 0
  %10010 = vmatmul.mubr.bf16.gmra.mrb[0].mxu0 %v9929
  %v10011 = vpop.f32.mrb[0].mxu0
  %v10012 = vadd.f32 0.0, %v10011
  %v10013 = vpop.f32.mrb[0].mxu0
  %v10014 = vpop.f32.mrb[0].mxu0
  %v10015 = vadd.f32 0.0, %v10014
  %v10016 = vpop.f32.mrb[0].mxu0
  %10017 = vmatprep.mubr.bf16.mxu0 0
  %10018 = vmatmul.mubr.bf16.gmra.mrb[0].mxu0 %v9932
  %v10019 = vpop.f32.mrb[0].mxu0
  %v10020 = vadd.f32 0.0, %v10019
  %v10021 = vpop.f32.mrb[0].mxu0
  %v10022 = vpop.f32.mrb[0].mxu0
  %v10023 = vadd.f32 0.0, %v10022
  %v10024 = vpop.f32.mrb[0].mxu0
  %10025 = vmatprep.mubr.bf16.mxu0 0
  %10026 = vmatmul.mubr.bf16.gmra.mrb[0].mxu0 %v9935
  %v10027 = vpop.f32.mrb[0].mxu0
  %v10028 = vadd.f32 0.0, %v10027
  %v10029 = vpop.f32.mrb[0].mxu0
  %v10030 = vpop.f32.mrb[0].mxu0
  %v10031 = vadd.f32 0.0, %v10030
  %v10032 = vpop.f32.mrb[0].mxu0
  %10033 = vdwg.mxu0
  %v10034 = vadd.f32 %v9584, %v9972
  %v10035 = vadd.f32 %v9585, %v9975
  %v10036 = vadd.f32 %v9586, %v9980
  %v10037 = vadd.f32 %v9587, %v9983
  %v10038 = vadd.f32 %v9588, %v9988
  %v10039 = vadd.f32 %v9589, %v9991
  %v10040 = vadd.f32 %v9590, %v9996
  %v10041 = vadd.f32 %v9591, %v9999
  %v10042 = vadd.f32 %v9592, %v10004
  %v10043 = vadd.f32 %v9593, %v10007
  %v10044 = vadd.f32 %v9594, %v10012
  %v10045 = vadd.f32 %v9595, %v10015
  %v10046 = vadd.f32 %v9596, %v10020
  %v10047 = vadd.f32 %v9597, %v10023
  %v10048 = vadd.f32 %v9598, %v10028
  %v10049 = vadd.f32 %v9599, %v10031
  %v10050 = vld [vmem:[%s8341] sm:$0xe]
  %v10051 = vld [vmem:[%s8341 + $0x8] sm:$0xe]
  %v10052 = vld [vmem:[%s8341 + $0x10] sm:$0xe]
  %v10053 = vld [vmem:[%s8341 + $0x18] sm:$0xe]
  %v10054 = vld [vmem:[%s8341 + $0x20] sm:$0xe]
  %v10055 = vld [vmem:[%s8341 + $0x28] sm:$0xe]
  %v10056 = vld [vmem:[%s8341 + $0x30] sm:$0xe]
  %v10057 = vld [vmem:[%s8341 + $0x38] sm:$0xe]
  %v10058 = vld [vmem:[%s8341 + $0x50] sm:$0xe]
  %v10059 = vld [vmem:[%s8341 + $0x58] sm:$0xe]
  %v10060 = vld [vmem:[%s8341 + $0x60] sm:$0xe]
  %v10061 = vld [vmem:[%s8341 + $0x68] sm:$0xe]
  %v10062 = vld [vmem:[%s8341 + $0x70] sm:$0xe]
  %v10063 = vld [vmem:[%s8341 + $0x78] sm:$0xe]
  %v10064 = vld [vmem:[%s8341 + $0x80] sm:$0xe]
  %v10065 = vld [vmem:[%s8341 + $0x88] sm:$0xe]
  %v10098 = vrot.slane %v10050, 5
  %v10099 = vrot.slane %v10098, 4
  %v10100 = vrot.slane %v9601, 5
  %v10101 = vsel %vm1622, %v10099, %v10100
  %v10102 = vrot.slane %v10051, 5
  %v10103 = vrot.slane %v10102, 4
  %v10104 = vrot.slane %v9603, 5
  %v10105 = vsel %vm1622, %v10103, %v10104
  %v10106 = vrot.slane %v10052, 5
  %v10107 = vrot.slane %v10106, 4
  %v10108 = vrot.slane %v9605, 5
  %v10109 = vsel %vm1622, %v10107, %v10108
  %v10110 = vrot.slane %v10053, 5
  %v10111 = vrot.slane %v10110, 4
  %v10112 = vrot.slane %v9607, 5
  %v10113 = vsel %vm1622, %v10111, %v10112
  %v10114 = vrot.slane %v10054, 5
  %v10115 = vrot.slane %v10114, 4
  %v10116 = vrot.slane %v9609, 5
  %v10117 = vsel %vm1622, %v10115, %v10116
  %v10118 = vrot.slane %v10055, 5
  %v10119 = vrot.slane %v10118, 4
  %v10120 = vrot.slane %v9611, 5
  %v10121 = vsel %vm1622, %v10119, %v10120
  %v10122 = vrot.slane %v10056, 5
  %v10123 = vrot.slane %v10122, 4
  %v10124 = vrot.slane %v9613, 5
  %v10125 = vsel %vm1622, %v10123, %v10124
  %v10126 = vrot.slane %v10057, 5
  %v10127 = vrot.slane %v10126, 4
  %v10128 = vrot.slane %v9615, 5
  %v10129 = vsel %vm1622, %v10127, %v10128
  %v10130 = vrot.slane %v10058, 5
  %v10131 = vrot.slane %v10130, 4
  %v10132 = vrot.slane %v9617, 5
  %v10133 = vsel %vm1622, %v10131, %v10132
  %v10134 = vrot.slane %v10059, 5
  %v10135 = vrot.slane %v10134, 4
  %v10136 = vrot.slane %v9619, 5
  %v10137 = vsel %vm1622, %v10135, %v10136
  %v10138 = vrot.slane %v10060, 5
  %v10139 = vrot.slane %v10138, 4
  %v10140 = vrot.slane %v9621, 5
  %v10141 = vsel %vm1622, %v10139, %v10140
  %v10142 = vrot.slane %v10061, 5
  %v10143 = vrot.slane %v10142, 4
  %v10144 = vrot.slane %v9623, 5
  %v10145 = vsel %vm1622, %v10143, %v10144
  %v10146 = vrot.slane %v10062, 5
  %v10147 = vrot.slane %v10146, 4
  %v10148 = vrot.slane %v9625, 5
  %v10149 = vsel %vm1622, %v10147, %v10148
  %v10150 = vrot.slane %v10063, 5
  %v10151 = vrot.slane %v10150, 4
  %v10152 = vrot.slane %v9627, 5
  %v10153 = vsel %vm1622, %v10151, %v10152
  %v10154 = vrot.slane %v10064, 5
  %v10155 = vrot.slane %v10154, 4
  %v10156 = vrot.slane %v9629, 5
  %v10157 = vsel %vm1622, %v10155, %v10156
  %v10158 = vrot.slane %v10065, 5
  %v10159 = vrot.slane %v10158, 4
  %v10160 = vrot.slane %v9631, 5
  %v10161 = vsel %vm1622, %v10159, %v10160
  %s10162 = scalar_lea.vmem %s7, 160
  %v10163 = vld [vmem:[%s10162] sm:$0xf]
  %v10164 = vld [vmem:[%s10162 + $0x4] sm:$0xf]
  %v10165 = vld [vmem:[%s10162 + $0x8] sm:$0xf]
  %v10166 = vld [vmem:[%s10162 + $0xc] sm:$0xf]
  %v10167 = vld [vmem:[%s10162 + $0x10] sm:$0xf]
  %v10168 = vld [vmem:[%s10162 + $0x14] sm:$0xf]
  %v10169 = vld [vmem:[%s10162 + $0x18] sm:$0xf]
  %v10170 = vld [vmem:[%s10162 + $0x1c] sm:$0xf]
  %v10171 = vunpack.c.l.b16 %v10101
  %v10172 = vunpack.c.l.b16 %v10105
  %v10173 = vunpack.c.l.b16 %v10109
  %v10174 = vunpack.c.l.b16 %v10113
  %v10175 = vunpack.c.l.b16 %v10117
  %v10176 = vunpack.c.l.b16 %v10121
  %v10177 = vunpack.c.l.b16 %v10125
  %v10178 = vunpack.c.l.b16 %v10129
  %v10179 = vunpack.c.l.b16 %v10133
  %v10180 = vunpack.c.l.b16 %v10137
  %v10181 = vunpack.c.l.b16 %v10141
  %v10182 = vunpack.c.l.b16 %v10145
  %v10183 = vunpack.c.l.b16 %v10149
  %v10184 = vunpack.c.l.b16 %v10153
  %v10185 = vunpack.c.l.b16 %v10157
  %v10186 = vunpack.c.l.b16 %v10161
  %v10187 = vpack.c.b16 %v10172, %v10171
  %v10188 = vpack.c.b16 %v10174, %v10173
  %v10189 = vpack.c.b16 %v10176, %v10175
  %v10190 = vpack.c.b16 %v10178, %v10177
  %v10191 = vpack.c.b16 %v10180, %v10179
  %v10192 = vpack.c.b16 %v10182, %v10181
  %v10193 = vpack.c.b16 %v10184, %v10183
  %v10194 = vpack.c.b16 %v10186, %v10185
  %v10203 = vunpack.c.l.b16 %v10163
  %v10204 = vunpack.c.l.b16 %v10164
  %v10205 = vunpack.c.l.b16 %v10165
  %v10206 = vunpack.c.l.b16 %v10166
  %v10207 = vunpack.c.l.b16 %v10167
  %v10208 = vunpack.c.l.b16 %v10168
  %v10209 = vunpack.c.l.b16 %v10169
  %v10210 = vunpack.c.l.b16 %v10170
  %v10211 = vpack.c.b16 %v10204, %v10203
  %v10212 = vpack.c.b16 %v10206, %v10205
  %v10213 = vpack.c.b16 %v10208, %v10207
  %v10214 = vpack.c.b16 %v10210, %v10209
  %v10220 = vsel %vm8761, %v10187, 0
  %v10223 = vsel %vm8761, %v10188, 0
  %v10226 = vsel %vm8761, %v10189, 0
  %v10229 = vsel %vm8761, %v10190, 0
  %v10232 = vsel %vm8761, %v10191, 0
  %v10235 = vsel %vm8761, %v10192, 0
  %v10238 = vsel %vm8761, %v10193, 0
  %v10241 = vsel %vm8761, %v10194, 0
  %10243 = vmatprep.subr.bf16.mxu0 0
  %10244 = vmatpush1.bf16.msra.mxu0 %v10211
  %10245 = vmatprep.subr.bf16.mxu0 0
  %10246 = vmatpush1.bf16.msra.mxu0 %v10212
  %10247 = vmatprep.subr.bf16.mxu0 0
  %10248 = vmatpush1.bf16.msra.mxu0 %v10213
  %10249 = vmatprep.subr.bf16.mxu0 0
  %10250 = vmatpush1.bf16.msra.mxu0 %v10214
  %10251 = vmatprep.subr.bf16.mxu0 0
  %10252 = vmatpush1.bf16.msra.mxu0 0
  %10253 = vmatprep.subr.bf16.mxu0 0
  %10254 = vmatpush1.bf16.msra.mxu0 0
  %10255 = vmatprep.subr.bf16.mxu0 0
  %10256 = vmatpush1.bf16.msra.mxu0 0
  %10257 = vmatprep.subr.bf16.mxu0 0
  %10258 = vmatpush1.bf16.msra.mxu0 0
  %10259 = vmatprep.subr.bf16.mxu0 0
  %10260 = vmatpush1.bf16.msra.mxu0 0
  %10261 = vmatprep.subr.bf16.mxu0 0
  %10262 = vmatpush1.bf16.msra.mxu0 0
  %10263 = vmatprep.subr.bf16.mxu0 0
  %10264 = vmatpush1.bf16.msra.mxu0 0
  %10265 = vmatprep.subr.bf16.mxu0 0
  %10266 = vmatpush1.bf16.msra.mxu0 0
  %10267 = vmatprep.subr.bf16.mxu0 0
  %10268 = vmatpush1.bf16.msra.mxu0 0
  %10269 = vmatprep.subr.bf16.mxu0 0
  %10270 = vmatpush1.bf16.msra.mxu0 0
  %10271 = vmatprep.subr.bf16.mxu0 0
  %10272 = vmatpush1.bf16.msra.mxu0 0
  %10273 = vmatprep.subr.bf16.mxu0 0
  %10274 = vmatpush1.bf16.msra.mxu0 0
  %10275 = vmatprep.mubr.bf16.mxu0 0
  %10276 = vmatmul.mubr.bf16.gmra.mrb[0].mxu0 %v10220
  %v10277 = vpop.f32.mrb[0].mxu0
  %v10278 = vadd.f32 0.0, %v10277
  %v10279 = vpop.f32.mrb[0].mxu0
  %v10280 = vpop.f32.mrb[0].mxu0
  %v10281 = vadd.f32 0.0, %v10280
  %v10282 = vpop.f32.mrb[0].mxu0
  %10283 = vmatprep.mubr.bf16.mxu0 0
  %10284 = vmatmul.mubr.bf16.gmra.mrb[0].mxu0 %v10223
  %v10285 = vpop.f32.mrb[0].mxu0
  %v10286 = vadd.f32 0.0, %v10285
  %v10287 = vpop.f32.mrb[0].mxu0
  %v10288 = vpop.f32.mrb[0].mxu0
  %v10289 = vadd.f32 0.0, %v10288
  %v10290 = vpop.f32.mrb[0].mxu0
  %10291 = vmatprep.mubr.bf16.mxu0 0
  %10292 = vmatmul.mubr.bf16.gmra.mrb[0].mxu0 %v10226
  %v10293 = vpop.f32.mrb[0].mxu0
  %v10294 = vadd.f32 0.0, %v10293
  %v10295 = vpop.f32.mrb[0].mxu0
  %v10296 = vpop.f32.mrb[0].mxu0
  %v10297 = vadd.f32 0.0, %v10296
  %v10298 = vpop.f32.mrb[0].mxu0
  %10299 = vmatprep.mubr.bf16.mxu0 0
  %10300 = vmatmul.mubr.bf16.gmra.mrb[0].mxu0 %v10229
  %v10301 = vpop.f32.mrb[0].mxu0
  %v10302 = vadd.f32 0.0, %v10301
  %v10303 = vpop.f32.mrb[0].mxu0
  %v10304 = vpop.f32.mrb[0].mxu0
  %v10305 = vadd.f32 0.0, %v10304
  %v10306 = vpop.f32.mrb[0].mxu0
  %10307 = vmatprep.mubr.bf16.mxu0 0
  %10308 = vmatmul.mubr.bf16.gmra.mrb[0].mxu0 %v10232
  %v10309 = vpop.f32.mrb[0].mxu0
  %v10310 = vadd.f32 0.0, %v10309
  %v10311 = vpop.f32.mrb[0].mxu0
  %v10312 = vpop.f32.mrb[0].mxu0
  %v10313 = vadd.f32 0.0, %v10312
  %v10314 = vpop.f32.mrb[0].mxu0
  %10315 = vmatprep.mubr.bf16.mxu0 0
  %10316 = vmatmul.mubr.bf16.gmra.mrb[0].mxu0 %v10235
  %v10317 = vpop.f32.mrb[0].mxu0
  %v10318 = vadd.f32 0.0, %v10317
  %v10319 = vpop.f32.mrb[0].mxu0
  %v10320 = vpop.f32.mrb[0].mxu0
  %v10321 = vadd.f32 0.0, %v10320
  %v10322 = vpop.f32.mrb[0].mxu0
  %10323 = vmatprep.mubr.bf16.mxu0 0
  %10324 = vmatmul.mubr.bf16.gmra.mrb[0].mxu0 %v10238
  %v10325 = vpop.f32.mrb[0].mxu0
  %v10326 = vadd.f32 0.0, %v10325
  %v10327 = vpop.f32.mrb[0].mxu0
  %v10328 = vpop.f32.mrb[0].mxu0
  %v10329 = vadd.f32 0.0, %v10328
  %v10330 = vpop.f32.mrb[0].mxu0
  %10331 = vmatprep.mubr.bf16.mxu0 0
  %10332 = vmatmul.mubr.bf16.gmra.mrb[0].mxu0 %v10241
  %v10333 = vpop.f32.mrb[0].mxu0
  %v10334 = vadd.f32 0.0, %v10333
  %v10335 = vpop.f32.mrb[0].mxu0
  %v10336 = vpop.f32.mrb[0].mxu0
  %v10337 = vadd.f32 0.0, %v10336
  %v10338 = vpop.f32.mrb[0].mxu0
  %10339 = vdwg.mxu0
  %v10340 = vadd.f32 %v10034, %v10278
  %v10341 = vadd.f32 %v10035, %v10281
  %v10342 = vadd.f32 %v10036, %v10286
  %v10343 = vadd.f32 %v10037, %v10289
  %v10344 = vadd.f32 %v10038, %v10294
  %v10345 = vadd.f32 %v10039, %v10297
  %v10346 = vadd.f32 %v10040, %v10302
  %v10347 = vadd.f32 %v10041, %v10305
  %v10348 = vadd.f32 %v10042, %v10310
  %v10349 = vadd.f32 %v10043, %v10313
  %v10350 = vadd.f32 %v10044, %v10318
  %v10351 = vadd.f32 %v10045, %v10321
  %v10352 = vadd.f32 %v10046, %v10326
  %v10353 = vadd.f32 %v10047, %v10329
  %v10354 = vadd.f32 %v10048, %v10334
  %v10355 = vadd.f32 %v10049, %v10337
  %s10356 = scalar_lea.vmem [#allocation4], 16
  %v10357 = vld [vmem:[%s10356] sm:$0xf]
  %v10358 = vld [vmem:[%s10356 + $0x8] sm:$0xf]
  %v10359 = vld [vmem:[%s10356 + $0x10] sm:$0xf]
  %v10360 = vld [vmem:[%s10356 + $0x18] sm:$0xf]
  %v10361 = vld [vmem:[%s10356 + $0x20] sm:$0xf]
  %v10362 = vld [vmem:[%s10356 + $0x28] sm:$0xf]
  %v10363 = vld [vmem:[%s10356 + $0x30] sm:$0xf]
  %v10364 = vld [vmem:[%s10356 + $0x38] sm:$0xf]
  %v10365 = vld [vmem:[%s10356 + $0x50] sm:$0xf]
  %v10366 = vld [vmem:[%s10356 + $0x58] sm:$0xf]
  %v10367 = vld [vmem:[%s10356 + $0x60] sm:$0xf]
  %v10368 = vld [vmem:[%s10356 + $0x68] sm:$0xf]
  %v10369 = vld [vmem:[%s10356 + $0x70] sm:$0xf]
  %v10370 = vld [vmem:[%s10356 + $0x78] sm:$0xf]
  %v10371 = vld [vmem:[%s10356 + $0x80] sm:$0xf]
  %v10372 = vld [vmem:[%s10356 + $0x88] sm:$0xf]
  %s10373 = scalar_lea.vmem %s7, 192
  %v10374 = vld [vmem:[%s10373] sm:$0xf]
  %v10375 = vld [vmem:[%s10373 + $0x4] sm:$0xf]
  %v10376 = vld [vmem:[%s10373 + $0x8] sm:$0xf]
  %v10377 = vld [vmem:[%s10373 + $0xc] sm:$0xf]
  %v10378 = vld [vmem:[%s10373 + $0x10] sm:$0xf]
  %v10379 = vld [vmem:[%s10373 + $0x14] sm:$0xf]
  %v10380 = vld [vmem:[%s10373 + $0x18] sm:$0xf]
  %v10381 = vld [vmem:[%s10373 + $0x1c] sm:$0xf]
  %v10398 = vunpack.c.l.b16 %v10357
  %v10399 = vunpack.c.l.b16 %v10358
  %v10400 = vunpack.c.l.b16 %v10359
  %v10401 = vunpack.c.l.b16 %v10360
  %v10402 = vunpack.c.l.b16 %v10361
  %v10403 = vunpack.c.l.b16 %v10362
  %v10404 = vunpack.c.l.b16 %v10363
  %v10405 = vunpack.c.l.b16 %v10364
  %v10406 = vunpack.c.l.b16 %v10365
  %v10407 = vunpack.c.l.b16 %v10366
  %v10408 = vunpack.c.l.b16 %v10367
  %v10409 = vunpack.c.l.b16 %v10368
  %v10410 = vunpack.c.l.b16 %v10369
  %v10411 = vunpack.c.l.b16 %v10370
  %v10412 = vunpack.c.l.b16 %v10371
  %v10413 = vunpack.c.l.b16 %v10372
  %v10414 = vpack.c.b16 %v10399, %v10398
  %v10415 = vpack.c.b16 %v10401, %v10400
  %v10416 = vpack.c.b16 %v10403, %v10402
  %v10417 = vpack.c.b16 %v10405, %v10404
  %v10418 = vpack.c.b16 %v10407, %v10406
  %v10419 = vpack.c.b16 %v10409, %v10408
  %v10420 = vpack.c.b16 %v10411, %v10410
  %v10421 = vpack.c.b16 %v10413, %v10412
  %v10430 = vunpack.c.l.b16 %v10374
  %v10431 = vunpack.c.l.b16 %v10375
  %v10432 = vunpack.c.l.b16 %v10376
  %v10433 = vunpack.c.l.b16 %v10377
  %v10434 = vunpack.c.l.b16 %v10378
  %v10435 = vunpack.c.l.b16 %v10379
  %v10436 = vunpack.c.l.b16 %v10380
  %v10437 = vunpack.c.l.b16 %v10381
  %v10438 = vpack.c.b16 %v10431, %v10430
  %v10439 = vpack.c.b16 %v10433, %v10432
  %v10440 = vpack.c.b16 %v10435, %v10434
  %v10441 = vpack.c.b16 %v10437, %v10436
  %v10447 = vsel %vm8761, %v10414, 0
  %v10450 = vsel %vm8761, %v10415, 0
  %v10453 = vsel %vm8761, %v10416, 0
  %v10456 = vsel %vm8761, %v10417, 0
  %v10459 = vsel %vm8761, %v10418, 0
  %v10462 = vsel %vm8761, %v10419, 0
  %v10465 = vsel %vm8761, %v10420, 0
  %v10468 = vsel %vm8761, %v10421, 0
  %10470 = vmatprep.subr.bf16.mxu0 0
  %10471 = vmatpush1.bf16.msra.mxu0 %v10438
  %10472 = vmatprep.subr.bf16.mxu0 0
  %10473 = vmatpush1.bf16.msra.mxu0 %v10439
  %10474 = vmatprep.subr.bf16.mxu0 0
  %10475 = vmatpush1.bf16.msra.mxu0 %v10440
  %10476 = vmatprep.subr.bf16.mxu0 0
  %10477 = vmatpush1.bf16.msra.mxu0 %v10441
  %10478 = vmatprep.subr.bf16.mxu0 0
  %10479 = vmatpush1.bf16.msra.mxu0 0
  %10480 = vmatprep.subr.bf16.mxu0 0
  %10481 = vmatpush1.bf16.msra.mxu0 0
  %10482 = vmatprep.subr.bf16.mxu0 0
  %10483 = vmatpush1.bf16.msra.mxu0 0
  %10484 = vmatprep.subr.bf16.mxu0 0
  %10485 = vmatpush1.bf16.msra.mxu0 0
  %10486 = vmatprep.subr.bf16.mxu0 0
  %10487 = vmatpush1.bf16.msra.mxu0 0
  %10488 = vmatprep.subr.bf16.mxu0 0
  %10489 = vmatpush1.bf16.msra.mxu0 0
  %10490 = vmatprep.subr.bf16.mxu0 0
  %10491 = vmatpush1.bf16.msra.mxu0 0
  %10492 = vmatprep.subr.bf16.mxu0 0
  %10493 = vmatpush1.bf16.msra.mxu0 0
  %10494 = vmatprep.subr.bf16.mxu0 0
  %10495 = vmatpush1.bf16.msra.mxu0 0
  %10496 = vmatprep.subr.bf16.mxu0 0
  %10497 = vmatpush1.bf16.msra.mxu0 0
  %10498 = vmatprep.subr.bf16.mxu0 0
  %10499 = vmatpush1.bf16.msra.mxu0 0
  %10500 = vmatprep.subr.bf16.mxu0 0
  %10501 = vmatpush1.bf16.msra.mxu0 0
  %10502 = vmatprep.mubr.bf16.mxu0 0
  %10503 = vmatmul.mubr.bf16.gmra.mrb[0].mxu0 %v10447
  %v10504 = vpop.f32.mrb[0].mxu0
  %v10505 = vadd.f32 0.0, %v10504
  %v10506 = vpop.f32.mrb[0].mxu0
  %v10507 = vpop.f32.mrb[0].mxu0
  %v10508 = vadd.f32 0.0, %v10507
  %v10509 = vpop.f32.mrb[0].mxu0
  %10510 = vmatprep.mubr.bf16.mxu0 0
  %10511 = vmatmul.mubr.bf16.gmra.mrb[0].mxu0 %v10450
  %v10512 = vpop.f32.mrb[0].mxu0
  %v10513 = vadd.f32 0.0, %v10512
  %v10514 = vpop.f32.mrb[0].mxu0
  %v10515 = vpop.f32.mrb[0].mxu0
  %v10516 = vadd.f32 0.0, %v10515
  %v10517 = vpop.f32.mrb[0].mxu0
  %10518 = vmatprep.mubr.bf16.mxu0 0
  %10519 = vmatmul.mubr.bf16.gmra.mrb[0].mxu0 %v10453
  %v10520 = vpop.f32.mrb[0].mxu0
  %v10521 = vadd.f32 0.0, %v10520
  %v10522 = vpop.f32.mrb[0].mxu0
  %v10523 = vpop.f32.mrb[0].mxu0
  %v10524 = vadd.f32 0.0, %v10523
  %v10525 = vpop.f32.mrb[0].mxu0
  %10526 = vmatprep.mubr.bf16.mxu0 0
  %10527 = vmatmul.mubr.bf16.gmra.mrb[0].mxu0 %v10456
  %v10528 = vpop.f32.mrb[0].mxu0
  %v10529 = vadd.f32 0.0, %v10528
  %v10530 = vpop.f32.mrb[0].mxu0
  %v10531 = vpop.f32.mrb[0].mxu0
  %v10532 = vadd.f32 0.0, %v10531
  %v10533 = vpop.f32.mrb[0].mxu0
  %10534 = vmatprep.mubr.bf16.mxu0 0
  %10535 = vmatmul.mubr.bf16.gmra.mrb[0].mxu0 %v10459
  %v10536 = vpop.f32.mrb[0].mxu0
  %v10537 = vadd.f32 0.0, %v10536
  %v10538 = vpop.f32.mrb[0].mxu0
  %v10539 = vpop.f32.mrb[0].mxu0
  %v10540 = vadd.f32 0.0, %v10539
  %v10541 = vpop.f32.mrb[0].mxu0
  %10542 = vmatprep.mubr.bf16.mxu0 0
  %10543 = vmatmul.mubr.bf16.gmra.mrb[0].mxu0 %v10462
  %v10544 = vpop.f32.mrb[0].mxu0
  %v10545 = vadd.f32 0.0, %v10544
  %v10546 = vpop.f32.mrb[0].mxu0
  %v10547 = vpop.f32.mrb[0].mxu0
  %v10548 = vadd.f32 0.0, %v10547
  %v10549 = vpop.f32.mrb[0].mxu0
  %10550 = vmatprep.mubr.bf16.mxu0 0
  %10551 = vmatmul.mubr.bf16.gmra.mrb[0].mxu0 %v10465
  %v10552 = vpop.f32.mrb[0].mxu0
  %v10553 = vadd.f32 0.0, %v10552
  %v10554 = vpop.f32.mrb[0].mxu0
  %v10555 = vpop.f32.mrb[0].mxu0
  %v10556 = vadd.f32 0.0, %v10555
  %v10557 = vpop.f32.mrb[0].mxu0
  %10558 = vmatprep.mubr.bf16.mxu0 0
  %10559 = vmatmul.mubr.bf16.gmra.mrb[0].mxu0 %v10468
  %v10560 = vpop.f32.mrb[0].mxu0
  %v10561 = vadd.f32 0.0, %v10560
  %v10562 = vpop.f32.mrb[0].mxu0
  %v10563 = vpop.f32.mrb[0].mxu0
  %v10564 = vadd.f32 0.0, %v10563
  %v10565 = vpop.f32.mrb[0].mxu0
  %10566 = vdwg.mxu0
  %v10567 = vadd.f32 %v10340, %v10505
  %v10568 = vadd.f32 %v10341, %v10508
  %v10569 = vadd.f32 %v10342, %v10513
  %v10570 = vadd.f32 %v10343, %v10516
  %v10571 = vadd.f32 %v10344, %v10521
  %v10572 = vadd.f32 %v10345, %v10524
  %v10573 = vadd.f32 %v10346, %v10529
  %v10574 = vadd.f32 %v10347, %v10532
  %v10575 = vadd.f32 %v10348, %v10537
  %v10576 = vadd.f32 %v10349, %v10540
  %v10577 = vadd.f32 %v10350, %v10545
  %v10578 = vadd.f32 %v10351, %v10548
  %v10579 = vadd.f32 %v10352, %v10553
  %v10580 = vadd.f32 %v10353, %v10556
  %v10581 = vadd.f32 %v10354, %v10561
  %v10582 = vadd.f32 %v10355, %v10564
  %v10583 = vld [vmem:[%s10356] sm:$0xf]
  %v10584 = vld [vmem:[%s10356 + $0x4] sm:$0x1]
  %v10585 = vld [vmem:[%s10356 + $0x8] sm:$0xf]
  %v10586 = vld [vmem:[%s10356 + $0xc] sm:$0x1]
  %v10587 = vld [vmem:[%s10356 + $0x10] sm:$0xf]
  %v10588 = vld [vmem:[%s10356 + $0x14] sm:$0x1]
  %v10589 = vld [vmem:[%s10356 + $0x18] sm:$0xf]
  %v10590 = vld [vmem:[%s10356 + $0x1c] sm:$0x1]
  %v10591 = vld [vmem:[%s10356 + $0x20] sm:$0xf]
  %v10592 = vld [vmem:[%s10356 + $0x24] sm:$0x1]
  %v10593 = vld [vmem:[%s10356 + $0x28] sm:$0xf]
  %v10594 = vld [vmem:[%s10356 + $0x2c] sm:$0x1]
  %v10595 = vld [vmem:[%s10356 + $0x30] sm:$0xf]
  %v10596 = vld [vmem:[%s10356 + $0x34] sm:$0x1]
  %v10597 = vld [vmem:[%s10356 + $0x38] sm:$0xf]
  %v10598 = vld [vmem:[%s10356 + $0x3c] sm:$0x1]
  %v10599 = vld [vmem:[%s10356 + $0x50] sm:$0xf]
  %v10600 = vld [vmem:[%s10356 + $0x54] sm:$0x1]
  %v10601 = vld [vmem:[%s10356 + $0x58] sm:$0xf]
  %v10602 = vld [vmem:[%s10356 + $0x5c] sm:$0x1]
  %v10603 = vld [vmem:[%s10356 + $0x60] sm:$0xf]
  %v10604 = vld [vmem:[%s10356 + $0x64] sm:$0x1]
  %v10605 = vld [vmem:[%s10356 + $0x68] sm:$0xf]
  %v10606 = vld [vmem:[%s10356 + $0x6c] sm:$0x1]
  %v10607 = vld [vmem:[%s10356 + $0x70] sm:$0xf]
  %v10608 = vld [vmem:[%s10356 + $0x74] sm:$0x1]
  %v10609 = vld [vmem:[%s10356 + $0x78] sm:$0xf]
  %v10610 = vld [vmem:[%s10356 + $0x7c] sm:$0x1]
  %v10611 = vld [vmem:[%s10356 + $0x80] sm:$0xf]
  %v10612 = vld [vmem:[%s10356 + $0x84] sm:$0x1]
  %v10613 = vld [vmem:[%s10356 + $0x88] sm:$0xf]
  %v10614 = vld [vmem:[%s10356 + $0x8c] sm:$0x1]
  %v10616 = vshrl.u32 %v10583, 16
  %v10618 = vrot.slane %v10616, 4
  %v10619 = vshll.u32 %v10583, 16
  %v10621 = vrot.slane %v10619, 5
  %v10622 = vor.u32 %v10618, %v10621
  %v10623 = vrot.slane %v10622, 4
  %v10625 = vshll.u32 %v10584, 16
  %v10627 = vrot.slane %v10625, 5
  %v10628 = vsel %vm784, %v10623, %v10627
  %v10630 = vshrl.u32 %v10585, 16
  %v10632 = vrot.slane %v10630, 4
  %v10633 = vshll.u32 %v10585, 16
  %v10635 = vrot.slane %v10633, 5
  %v10636 = vor.u32 %v10632, %v10635
  %v10637 = vrot.slane %v10636, 4
  %v10639 = vshll.u32 %v10586, 16
  %v10641 = vrot.slane %v10639, 5
  %v10642 = vsel %vm784, %v10637, %v10641
  %v10644 = vshrl.u32 %v10587, 16
  %v10646 = vrot.slane %v10644, 4
  %v10647 = vshll.u32 %v10587, 16
  %v10649 = vrot.slane %v10647, 5
  %v10650 = vor.u32 %v10646, %v10649
  %v10651 = vrot.slane %v10650, 4
  %v10653 = vshll.u32 %v10588, 16
  %v10655 = vrot.slane %v10653, 5
  %v10656 = vsel %vm784, %v10651, %v10655
  %v10658 = vshrl.u32 %v10589, 16
  %v10660 = vrot.slane %v10658, 4
  %v10661 = vshll.u32 %v10589, 16
  %v10663 = vrot.slane %v10661, 5
  %v10664 = vor.u32 %v10660, %v10663
  %v10665 = vrot.slane %v10664, 4
  %v10667 = vshll.u32 %v10590, 16
  %v10669 = vrot.slane %v10667, 5
  %v10670 = vsel %vm784, %v10665, %v10669
  %v10672 = vshrl.u32 %v10591, 16
  %v10674 = vrot.slane %v10672, 4
  %v10675 = vshll.u32 %v10591, 16
  %v10677 = vrot.slane %v10675, 5
  %v10678 = vor.u32 %v10674, %v10677
  %v10679 = vrot.slane %v10678, 4
  %v10681 = vshll.u32 %v10592, 16
  %v10683 = vrot.slane %v10681, 5
  %v10684 = vsel %vm784, %v10679, %v10683
  %v10686 = vshrl.u32 %v10593, 16
  %v10688 = vrot.slane %v10686, 4
  %v10689 = vshll.u32 %v10593, 16
  %v10691 = vrot.slane %v10689, 5
  %v10692 = vor.u32 %v10688, %v10691
  %v10693 = vrot.slane %v10692, 4
  %v10695 = vshll.u32 %v10594, 16
  %v10697 = vrot.slane %v10695, 5
  %v10698 = vsel %vm784, %v10693, %v10697
  %v10700 = vshrl.u32 %v10595, 16
  %v10702 = vrot.slane %v10700, 4
  %v10703 = vshll.u32 %v10595, 16
  %v10705 = vrot.slane %v10703, 5
  %v10706 = vor.u32 %v10702, %v10705
  %v10707 = vrot.slane %v10706, 4
  %v10709 = vshll.u32 %v10596, 16
  %v10711 = vrot.slane %v10709, 5
  %v10712 = vsel %vm784, %v10707, %v10711
  %v10714 = vshrl.u32 %v10597, 16
  %v10716 = vrot.slane %v10714, 4
  %v10717 = vshll.u32 %v10597, 16
  %v10719 = vrot.slane %v10717, 5
  %v10720 = vor.u32 %v10716, %v10719
  %v10721 = vrot.slane %v10720, 4
  %v10723 = vshll.u32 %v10598, 16
  %v10725 = vrot.slane %v10723, 5
  %v10726 = vsel %vm784, %v10721, %v10725
  %v10728 = vshrl.u32 %v10599, 16
  %v10730 = vrot.slane %v10728, 4
  %v10731 = vshll.u32 %v10599, 16
  %v10733 = vrot.slane %v10731, 5
  %v10734 = vor.u32 %v10730, %v10733
  %v10735 = vrot.slane %v10734, 4
  %v10737 = vshll.u32 %v10600, 16
  %v10739 = vrot.slane %v10737, 5
  %v10740 = vsel %vm784, %v10735, %v10739
  %v10742 = vshrl.u32 %v10601, 16
  %v10744 = vrot.slane %v10742, 4
  %v10745 = vshll.u32 %v10601, 16
  %v10747 = vrot.slane %v10745, 5
  %v10748 = vor.u32 %v10744, %v10747
  %v10749 = vrot.slane %v10748, 4
  %v10751 = vshll.u32 %v10602, 16
  %v10753 = vrot.slane %v10751, 5
  %v10754 = vsel %vm784, %v10749, %v10753
  %v10756 = vshrl.u32 %v10603, 16
  %v10758 = vrot.slane %v10756, 4
  %v10759 = vshll.u32 %v10603, 16
  %v10761 = vrot.slane %v10759, 5
  %v10762 = vor.u32 %v10758, %v10761
  %v10763 = vrot.slane %v10762, 4
  %v10765 = vshll.u32 %v10604, 16
  %v10767 = vrot.slane %v10765, 5
  %v10768 = vsel %vm784, %v10763, %v10767
  %v10770 = vshrl.u32 %v10605, 16
  %v10772 = vrot.slane %v10770, 4
  %v10773 = vshll.u32 %v10605, 16
  %v10775 = vrot.slane %v10773, 5
  %v10776 = vor.u32 %v10772, %v10775
  %v10777 = vrot.slane %v10776, 4
  %v10779 = vshll.u32 %v10606, 16
  %v10781 = vrot.slane %v10779, 5
  %v10782 = vsel %vm784, %v10777, %v10781
  %v10784 = vshrl.u32 %v10607, 16
  %v10786 = vrot.slane %v10784, 4
  %v10787 = vshll.u32 %v10607, 16
  %v10789 = vrot.slane %v10787, 5
  %v10790 = vor.u32 %v10786, %v10789
  %v10791 = vrot.slane %v10790, 4
  %v10793 = vshll.u32 %v10608, 16
  %v10795 = vrot.slane %v10793, 5
  %v10796 = vsel %vm784, %v10791, %v10795
  %v10798 = vshrl.u32 %v10609, 16
  %v10800 = vrot.slane %v10798, 4
  %v10801 = vshll.u32 %v10609, 16
  %v10803 = vrot.slane %v10801, 5
  %v10804 = vor.u32 %v10800, %v10803
  %v10805 = vrot.slane %v10804, 4
  %v10807 = vshll.u32 %v10610, 16
  %v10809 = vrot.slane %v10807, 5
  %v10810 = vsel %vm784, %v10805, %v10809
  %v10812 = vshrl.u32 %v10611, 16
  %v10814 = vrot.slane %v10812, 4
  %v10815 = vshll.u32 %v10611, 16
  %v10817 = vrot.slane %v10815, 5
  %v10818 = vor.u32 %v10814, %v10817
  %v10819 = vrot.slane %v10818, 4
  %v10821 = vshll.u32 %v10612, 16
  %v10823 = vrot.slane %v10821, 5
  %v10824 = vsel %vm784, %v10819, %v10823
  %v10826 = vshrl.u32 %v10613, 16
  %v10828 = vrot.slane %v10826, 4
  %v10829 = vshll.u32 %v10613, 16
  %v10831 = vrot.slane %v10829, 5
  %v10832 = vor.u32 %v10828, %v10831
  %v10833 = vrot.slane %v10832, 4
  %v10835 = vshll.u32 %v10614, 16
  %v10837 = vrot.slane %v10835, 5
  %v10838 = vsel %vm784, %v10833, %v10837
  %s10839 = scalar_lea.vmem %s7, 224
  %v10840 = vld [vmem:[%s10839] sm:$0xf]
  %v10841 = vld [vmem:[%s10839 + $0x4] sm:$0xf]
  %v10842 = vld [vmem:[%s10839 + $0x8] sm:$0xf]
  %v10843 = vld [vmem:[%s10839 + $0xc] sm:$0xf]
  %v10844 = vld [vmem:[%s10839 + $0x10] sm:$0xf]
  %v10845 = vld [vmem:[%s10839 + $0x14] sm:$0xf]
  %v10846 = vld [vmem:[%s10839 + $0x18] sm:$0xf]
  %v10847 = vld [vmem:[%s10839 + $0x1c] sm:$0xf]
  %v10848 = vunpack.c.l.b16 %v10628
  %v10849 = vunpack.c.l.b16 %v10642
  %v10850 = vunpack.c.l.b16 %v10656
  %v10851 = vunpack.c.l.b16 %v10670
  %v10852 = vunpack.c.l.b16 %v10684
  %v10853 = vunpack.c.l.b16 %v10698
  %v10854 = vunpack.c.l.b16 %v10712
  %v10855 = vunpack.c.l.b16 %v10726
  %v10856 = vunpack.c.l.b16 %v10740
  %v10857 = vunpack.c.l.b16 %v10754
  %v10858 = vunpack.c.l.b16 %v10768
  %v10859 = vunpack.c.l.b16 %v10782
  %v10860 = vunpack.c.l.b16 %v10796
  %v10861 = vunpack.c.l.b16 %v10810
  %v10862 = vunpack.c.l.b16 %v10824
  %v10863 = vunpack.c.l.b16 %v10838
  %v10864 = vpack.c.b16 %v10849, %v10848
  %v10865 = vpack.c.b16 %v10851, %v10850
  %v10866 = vpack.c.b16 %v10853, %v10852
  %v10867 = vpack.c.b16 %v10855, %v10854
  %v10868 = vpack.c.b16 %v10857, %v10856
  %v10869 = vpack.c.b16 %v10859, %v10858
  %v10870 = vpack.c.b16 %v10861, %v10860
  %v10871 = vpack.c.b16 %v10863, %v10862
  %v10880 = vunpack.c.l.b16 %v10840
  %v10881 = vunpack.c.l.b16 %v10841
  %v10882 = vunpack.c.l.b16 %v10842
  %v10883 = vunpack.c.l.b16 %v10843
  %v10884 = vunpack.c.l.b16 %v10844
  %v10885 = vunpack.c.l.b16 %v10845
  %v10886 = vunpack.c.l.b16 %v10846
  %v10887 = vunpack.c.l.b16 %v10847
  %v10888 = vpack.c.b16 %v10881, %v10880
  %v10889 = vpack.c.b16 %v10883, %v10882
  %v10890 = vpack.c.b16 %v10885, %v10884
  %v10891 = vpack.c.b16 %v10887, %v10886
  %v10897 = vsel %vm8761, %v10864, 0
  %v10900 = vsel %vm8761, %v10865, 0
  %v10903 = vsel %vm8761, %v10866, 0
  %v10906 = vsel %vm8761, %v10867, 0
  %v10909 = vsel %vm8761, %v10868, 0
  %v10912 = vsel %vm8761, %v10869, 0
  %v10915 = vsel %vm8761, %v10870, 0
  %v10918 = vsel %vm8761, %v10871, 0
  %10920 = vmatprep.subr.bf16.mxu0 0
  %10921 = vmatpush1.bf16.msra.mxu0 %v10888
  %10922 = vmatprep.subr.bf16.mxu0 0
  %10923 = vmatpush1.bf16.msra.mxu0 %v10889
  %10924 = vmatprep.subr.bf16.mxu0 0
  %10925 = vmatpush1.bf16.msra.mxu0 %v10890
  %10926 = vmatprep.subr.bf16.mxu0 0
  %10927 = vmatpush1.bf16.msra.mxu0 %v10891
  %10928 = vmatprep.subr.bf16.mxu0 0
  %10929 = vmatpush1.bf16.msra.mxu0 0
  %10930 = vmatprep.subr.bf16.mxu0 0
  %10931 = vmatpush1.bf16.msra.mxu0 0
  %10932 = vmatprep.subr.bf16.mxu0 0
  %10933 = vmatpush1.bf16.msra.mxu0 0
  %10934 = vmatprep.subr.bf16.mxu0 0
  %10935 = vmatpush1.bf16.msra.mxu0 0
  %10936 = vmatprep.subr.bf16.mxu0 0
  %10937 = vmatpush1.bf16.msra.mxu0 0
  %10938 = vmatprep.subr.bf16.mxu0 0
  %10939 = vmatpush1.bf16.msra.mxu0 0
  %10940 = vmatprep.subr.bf16.mxu0 0
  %10941 = vmatpush1.bf16.msra.mxu0 0
  %10942 = vmatprep.subr.bf16.mxu0 0
  %10943 = vmatpush1.bf16.msra.mxu0 0
  %10944 = vmatprep.subr.bf16.mxu0 0
  %10945 = vmatpush1.bf16.msra.mxu0 0
  %10946 = vmatprep.subr.bf16.mxu0 0
  %10947 = vmatpush1.bf16.msra.mxu0 0
  %10948 = vmatprep.subr.bf16.mxu0 0
  %10949 = vmatpush1.bf16.msra.mxu0 0
  %10950 = vmatprep.subr.bf16.mxu0 0
  %10951 = vmatpush1.bf16.msra.mxu0 0
  %10952 = vmatprep.mubr.bf16.mxu0 0
  %10953 = vmatmul.mubr.bf16.gmra.mrb[0].mxu0 %v10897
  %v10954 = vpop.f32.mrb[0].mxu0
  %v10955 = vadd.f32 0.0, %v10954
  %v10956 = vpop.f32.mrb[0].mxu0
  %v10957 = vpop.f32.mrb[0].mxu0
  %v10958 = vadd.f32 0.0, %v10957
  %v10959 = vpop.f32.mrb[0].mxu0
  %10960 = vmatprep.mubr.bf16.mxu0 0
  %10961 = vmatmul.mubr.bf16.gmra.mrb[0].mxu0 %v10900
  %v10962 = vpop.f32.mrb[0].mxu0
  %v10963 = vadd.f32 0.0, %v10962
  %v10964 = vpop.f32.mrb[0].mxu0
  %v10965 = vpop.f32.mrb[0].mxu0
  %v10966 = vadd.f32 0.0, %v10965
  %v10967 = vpop.f32.mrb[0].mxu0
  %10968 = vmatprep.mubr.bf16.mxu0 0
  %10969 = vmatmul.mubr.bf16.gmra.mrb[0].mxu0 %v10903
  %v10970 = vpop.f32.mrb[0].mxu0
  %v10971 = vadd.f32 0.0, %v10970
  %v10972 = vpop.f32.mrb[0].mxu0
  %v10973 = vpop.f32.mrb[0].mxu0
  %v10974 = vadd.f32 0.0, %v10973
  %v10975 = vpop.f32.mrb[0].mxu0
  %10976 = vmatprep.mubr.bf16.mxu0 0
  %10977 = vmatmul.mubr.bf16.gmra.mrb[0].mxu0 %v10906
  %v10978 = vpop.f32.mrb[0].mxu0
  %v10979 = vadd.f32 0.0, %v10978
  %v10980 = vpop.f32.mrb[0].mxu0
  %v10981 = vpop.f32.mrb[0].mxu0
  %v10982 = vadd.f32 0.0, %v10981
  %v10983 = vpop.f32.mrb[0].mxu0
  %10984 = vmatprep.mubr.bf16.mxu0 0
  %10985 = vmatmul.mubr.bf16.gmra.mrb[0].mxu0 %v10909
  %v10986 = vpop.f32.mrb[0].mxu0
  %v10987 = vadd.f32 0.0, %v10986
  %v10988 = vpop.f32.mrb[0].mxu0
  %v10989 = vpop.f32.mrb[0].mxu0
  %v10990 = vadd.f32 0.0, %v10989
  %v10991 = vpop.f32.mrb[0].mxu0
  %10992 = vmatprep.mubr.bf16.mxu0 0
  %10993 = vmatmul.mubr.bf16.gmra.mrb[0].mxu0 %v10912
  %v10994 = vpop.f32.mrb[0].mxu0
  %v10995 = vadd.f32 0.0, %v10994
  %v10996 = vpop.f32.mrb[0].mxu0
  %v10997 = vpop.f32.mrb[0].mxu0
  %v10998 = vadd.f32 0.0, %v10997
  %v10999 = vpop.f32.mrb[0].mxu0
  %11000 = vmatprep.mubr.bf16.mxu0 0
  %11001 = vmatmul.mubr.bf16.gmra.mrb[0].mxu0 %v10915
  %v11002 = vpop.f32.mrb[0].mxu0
  %v11003 = vadd.f32 0.0, %v11002
  %v11004 = vpop.f32.mrb[0].mxu0
  %v11005 = vpop.f32.mrb[0].mxu0
  %v11006 = vadd.f32 0.0, %v11005
  %v11007 = vpop.f32.mrb[0].mxu0
  %11008 = vmatprep.mubr.bf16.mxu0 0
  %11009 = vmatmul.mubr.bf16.gmra.mrb[0].mxu0 %v10918
  %v11010 = vpop.f32.mrb[0].mxu0
  %v11011 = vadd.f32 0.0, %v11010
  %v11012 = vpop.f32.mrb[0].mxu0
  %v11013 = vpop.f32.mrb[0].mxu0
  %v11014 = vadd.f32 0.0, %v11013
  %v11015 = vpop.f32.mrb[0].mxu0
  %11016 = vdwg.mxu0
  %v11017 = vadd.f32 %v10567, %v10955
  %v11018 = vadd.f32 %v10568, %v10958
  %v11019 = vadd.f32 %v10569, %v10963
  %v11020 = vadd.f32 %v10570, %v10966
  %v11021 = vadd.f32 %v10571, %v10971
  %v11022 = vadd.f32 %v10572, %v10974
  %v11023 = vadd.f32 %v10573, %v10979
  %v11024 = vadd.f32 %v10574, %v10982
  %v11025 = vadd.f32 %v10575, %v10987
  %v11026 = vadd.f32 %v10576, %v10990
  %v11027 = vadd.f32 %v10577, %v10995
  %v11028 = vadd.f32 %v10578, %v10998
  %v11029 = vadd.f32 %v10579, %v11003
  %v11030 = vadd.f32 %v10580, %v11006
  %v11031 = vadd.f32 %v10581, %v11011
  %v11032 = vadd.f32 %v10582, %v11014
  %v11033 = vld [vmem:[%s10356] sm:$0xe]
  %v11034 = vld [vmem:[%s10356 + $0x8] sm:$0xe]
  %v11035 = vld [vmem:[%s10356 + $0x10] sm:$0xe]
  %v11036 = vld [vmem:[%s10356 + $0x18] sm:$0xe]
  %v11037 = vld [vmem:[%s10356 + $0x20] sm:$0xe]
  %v11038 = vld [vmem:[%s10356 + $0x28] sm:$0xe]
  %v11039 = vld [vmem:[%s10356 + $0x30] sm:$0xe]
  %v11040 = vld [vmem:[%s10356 + $0x38] sm:$0xe]
  %v11041 = vld [vmem:[%s10356 + $0x50] sm:$0xe]
  %v11042 = vld [vmem:[%s10356 + $0x58] sm:$0xe]
  %v11043 = vld [vmem:[%s10356 + $0x60] sm:$0xe]
  %v11044 = vld [vmem:[%s10356 + $0x68] sm:$0xe]
  %v11045 = vld [vmem:[%s10356 + $0x70] sm:$0xe]
  %v11046 = vld [vmem:[%s10356 + $0x78] sm:$0xe]
  %v11047 = vld [vmem:[%s10356 + $0x80] sm:$0xe]
  %v11048 = vld [vmem:[%s10356 + $0x88] sm:$0xe]
  %v11081 = vrot.slane %v11033, 5
  %v11082 = vrot.slane %v11081, 4
  %v11083 = vrot.slane %v10584, 5
  %v11084 = vsel %vm1622, %v11082, %v11083
  %v11085 = vrot.slane %v11034, 5
  %v11086 = vrot.slane %v11085, 4
  %v11087 = vrot.slane %v10586, 5
  %v11088 = vsel %vm1622, %v11086, %v11087
  %v11089 = vrot.slane %v11035, 5
  %v11090 = vrot.slane %v11089, 4
  %v11091 = vrot.slane %v10588, 5
  %v11092 = vsel %vm1622, %v11090, %v11091
  %v11093 = vrot.slane %v11036, 5
  %v11094 = vrot.slane %v11093, 4
  %v11095 = vrot.slane %v10590, 5
  %v11096 = vsel %vm1622, %v11094, %v11095
  %v11097 = vrot.slane %v11037, 5
  %v11098 = vrot.slane %v11097, 4
  %v11099 = vrot.slane %v10592, 5
  %v11100 = vsel %vm1622, %v11098, %v11099
  %v11101 = vrot.slane %v11038, 5
  %v11102 = vrot.slane %v11101, 4
  %v11103 = vrot.slane %v10594, 5
  %v11104 = vsel %vm1622, %v11102, %v11103
  %v11105 = vrot.slane %v11039, 5
  %v11106 = vrot.slane %v11105, 4
  %v11107 = vrot.slane %v10596, 5
  %v11108 = vsel %vm1622, %v11106, %v11107
  %v11109 = vrot.slane %v11040, 5
  %v11110 = vrot.slane %v11109, 4
  %v11111 = vrot.slane %v10598, 5
  %v11112 = vsel %vm1622, %v11110, %v11111
  %v11113 = vrot.slane %v11041, 5
  %v11114 = vrot.slane %v11113, 4
  %v11115 = vrot.slane %v10600, 5
  %v11116 = vsel %vm1622, %v11114, %v11115
  %v11117 = vrot.slane %v11042, 5
  %v11118 = vrot.slane %v11117, 4
  %v11119 = vrot.slane %v10602, 5
  %v11120 = vsel %vm1622, %v11118, %v11119
  %v11121 = vrot.slane %v11043, 5
  %v11122 = vrot.slane %v11121, 4
  %v11123 = vrot.slane %v10604, 5
  %v11124 = vsel %vm1622, %v11122, %v11123
  %v11125 = vrot.slane %v11044, 5
  %v11126 = vrot.slane %v11125, 4
  %v11127 = vrot.slane %v10606, 5
  %v11128 = vsel %vm1622, %v11126, %v11127
  %v11129 = vrot.slane %v11045, 5
  %v11130 = vrot.slane %v11129, 4
  %v11131 = vrot.slane %v10608, 5
  %v11132 = vsel %vm1622, %v11130, %v11131
  %v11133 = vrot.slane %v11046, 5
  %v11134 = vrot.slane %v11133, 4
  %v11135 = vrot.slane %v10610, 5
  %v11136 = vsel %vm1622, %v11134, %v11135
  %v11137 = vrot.slane %v11047, 5
  %v11138 = vrot.slane %v11137, 4
  %v11139 = vrot.slane %v10612, 5
  %v11140 = vsel %vm1622, %v11138, %v11139
  %v11141 = vrot.slane %v11048, 5
  %v11142 = vrot.slane %v11141, 4
  %v11143 = vrot.slane %v10614, 5
  %v11144 = vsel %vm1622, %v11142, %v11143
  %s11145 = scalar_lea.vmem %s7, 256
  %v11146 = vld [vmem:[%s11145] sm:$0xf]
  %v11147 = vld [vmem:[%s11145 + $0x4] sm:$0xf]
  %v11148 = vld [vmem:[%s11145 + $0x8] sm:$0xf]
  %v11149 = vld [vmem:[%s11145 + $0xc] sm:$0xf]
  %v11150 = vld [vmem:[%s11145 + $0x10] sm:$0xf]
  %v11151 = vld [vmem:[%s11145 + $0x14] sm:$0xf]
  %v11152 = vld [vmem:[%s11145 + $0x18] sm:$0xf]
  %v11153 = vld [vmem:[%s11145 + $0x1c] sm:$0xf]
  %v11154 = vunpack.c.l.b16 %v11084
  %v11155 = vunpack.c.l.b16 %v11088
  %v11156 = vunpack.c.l.b16 %v11092
  %v11157 = vunpack.c.l.b16 %v11096
  %v11158 = vunpack.c.l.b16 %v11100
  %v11159 = vunpack.c.l.b16 %v11104
  %v11160 = vunpack.c.l.b16 %v11108
  %v11161 = vunpack.c.l.b16 %v11112
  %v11162 = vunpack.c.l.b16 %v11116
  %v11163 = vunpack.c.l.b16 %v11120
  %v11164 = vunpack.c.l.b16 %v11124
  %v11165 = vunpack.c.l.b16 %v11128
  %v11166 = vunpack.c.l.b16 %v11132
  %v11167 = vunpack.c.l.b16 %v11136
  %v11168 = vunpack.c.l.b16 %v11140
  %v11169 = vunpack.c.l.b16 %v11144
  %v11170 = vpack.c.b16 %v11155, %v11154
  %v11171 = vpack.c.b16 %v11157, %v11156
  %v11172 = vpack.c.b16 %v11159, %v11158
  %v11173 = vpack.c.b16 %v11161, %v11160
  %v11174 = vpack.c.b16 %v11163, %v11162
  %v11175 = vpack.c.b16 %v11165, %v11164
  %v11176 = vpack.c.b16 %v11167, %v11166
  %v11177 = vpack.c.b16 %v11169, %v11168
  %v11186 = vunpack.c.l.b16 %v11146
  %v11187 = vunpack.c.l.b16 %v11147
  %v11188 = vunpack.c.l.b16 %v11148
  %v11189 = vunpack.c.l.b16 %v11149
  %v11190 = vunpack.c.l.b16 %v11150
  %v11191 = vunpack.c.l.b16 %v11151
  %v11192 = vunpack.c.l.b16 %v11152
  %v11193 = vunpack.c.l.b16 %v11153
  %v11194 = vpack.c.b16 %v11187, %v11186
  %v11195 = vpack.c.b16 %v11189, %v11188
  %v11196 = vpack.c.b16 %v11191, %v11190
  %v11197 = vpack.c.b16 %v11193, %v11192
  %v11203 = vsel %vm8761, %v11170, 0
  %v11206 = vsel %vm8761, %v11171, 0
  %v11209 = vsel %vm8761, %v11172, 0
  %v11212 = vsel %vm8761, %v11173, 0
  %v11215 = vsel %vm8761, %v11174, 0
  %v11218 = vsel %vm8761, %v11175, 0
  %v11221 = vsel %vm8761, %v11176, 0
  %v11224 = vsel %vm8761, %v11177, 0
  %11226 = vmatprep.subr.bf16.mxu0 0
  %11227 = vmatpush1.bf16.msra.mxu0 %v11194
  %11228 = vmatprep.subr.bf16.mxu0 0
  %11229 = vmatpush1.bf16.msra.mxu0 %v11195
  %11230 = vmatprep.subr.bf16.mxu0 0
  %11231 = vmatpush1.bf16.msra.mxu0 %v11196
  %11232 = vmatprep.subr.bf16.mxu0 0
  %11233 = vmatpush1.bf16.msra.mxu0 %v11197
  %11234 = vmatprep.subr.bf16.mxu0 0
  %11235 = vmatpush1.bf16.msra.mxu0 0
  %11236 = vmatprep.subr.bf16.mxu0 0
  %11237 = vmatpush1.bf16.msra.mxu0 0
  %11238 = vmatprep.subr.bf16.mxu0 0
  %11239 = vmatpush1.bf16.msra.mxu0 0
  %11240 = vmatprep.subr.bf16.mxu0 0
  %11241 = vmatpush1.bf16.msra.mxu0 0
  %11242 = vmatprep.subr.bf16.mxu0 0
  %11243 = vmatpush1.bf16.msra.mxu0 0
  %11244 = vmatprep.subr.bf16.mxu0 0
  %11245 = vmatpush1.bf16.msra.mxu0 0
  %11246 = vmatprep.subr.bf16.mxu0 0
  %11247 = vmatpush1.bf16.msra.mxu0 0
  %11248 = vmatprep.subr.bf16.mxu0 0
  %11249 = vmatpush1.bf16.msra.mxu0 0
  %11250 = vmatprep.subr.bf16.mxu0 0
  %11251 = vmatpush1.bf16.msra.mxu0 0
  %11252 = vmatprep.subr.bf16.mxu0 0
  %11253 = vmatpush1.bf16.msra.mxu0 0
  %11254 = vmatprep.subr.bf16.mxu0 0
  %11255 = vmatpush1.bf16.msra.mxu0 0
  %11256 = vmatprep.subr.bf16.mxu0 0
  %11257 = vmatpush1.bf16.msra.mxu0 0
  %11258 = vmatprep.mubr.bf16.mxu0 0
  %11259 = vmatmul.mubr.bf16.gmra.mrb[0].mxu0 %v11203
  %v11260 = vpop.f32.mrb[0].mxu0
  %v11261 = vadd.f32 0.0, %v11260
  %v11262 = vpop.f32.mrb[0].mxu0
  %v11263 = vpop.f32.mrb[0].mxu0
  %v11264 = vadd.f32 0.0, %v11263
  %v11265 = vpop.f32.mrb[0].mxu0
  %11266 = vmatprep.mubr.bf16.mxu0 0
  %11267 = vmatmul.mubr.bf16.gmra.mrb[0].mxu0 %v11206
  %v11268 = vpop.f32.mrb[0].mxu0
  %v11269 = vadd.f32 0.0, %v11268
  %v11270 = vpop.f32.mrb[0].mxu0
  %v11271 = vpop.f32.mrb[0].mxu0
  %v11272 = vadd.f32 0.0, %v11271
  %v11273 = vpop.f32.mrb[0].mxu0
  %11274 = vmatprep.mubr.bf16.mxu0 0
  %11275 = vmatmul.mubr.bf16.gmra.mrb[0].mxu0 %v11209
  %v11276 = vpop.f32.mrb[0].mxu0
  %v11277 = vadd.f32 0.0, %v11276
  %v11278 = vpop.f32.mrb[0].mxu0
  %v11279 = vpop.f32.mrb[0].mxu0
  %v11280 = vadd.f32 0.0, %v11279
  %v11281 = vpop.f32.mrb[0].mxu0
  %11282 = vmatprep.mubr.bf16.mxu0 0
  %11283 = vmatmul.mubr.bf16.gmra.mrb[0].mxu0 %v11212
  %v11284 = vpop.f32.mrb[0].mxu0
  %v11285 = vadd.f32 0.0, %v11284
  %v11286 = vpop.f32.mrb[0].mxu0
  %v11287 = vpop.f32.mrb[0].mxu0
  %v11288 = vadd.f32 0.0, %v11287
  %v11289 = vpop.f32.mrb[0].mxu0
  %11290 = vmatprep.mubr.bf16.mxu0 0
  %11291 = vmatmul.mubr.bf16.gmra.mrb[0].mxu0 %v11215
  %v11292 = vpop.f32.mrb[0].mxu0
  %v11293 = vadd.f32 0.0, %v11292
  %v11294 = vpop.f32.mrb[0].mxu0
  %v11295 = vpop.f32.mrb[0].mxu0
  %v11296 = vadd.f32 0.0, %v11295
  %v11297 = vpop.f32.mrb[0].mxu0
  %11298 = vmatprep.mubr.bf16.mxu0 0
  %11299 = vmatmul.mubr.bf16.gmra.mrb[0].mxu0 %v11218
  %v11300 = vpop.f32.mrb[0].mxu0
  %v11301 = vadd.f32 0.0, %v11300
  %v11302 = vpop.f32.mrb[0].mxu0
  %v11303 = vpop.f32.mrb[0].mxu0
  %v11304 = vadd.f32 0.0, %v11303
  %v11305 = vpop.f32.mrb[0].mxu0
  %11306 = vmatprep.mubr.bf16.mxu0 0
  %11307 = vmatmul.mubr.bf16.gmra.mrb[0].mxu0 %v11221
  %v11308 = vpop.f32.mrb[0].mxu0
  %v11309 = vadd.f32 0.0, %v11308
  %v11310 = vpop.f32.mrb[0].mxu0
  %v11311 = vpop.f32.mrb[0].mxu0
  %v11312 = vadd.f32 0.0, %v11311
  %v11313 = vpop.f32.mrb[0].mxu0
  %11314 = vmatprep.mubr.bf16.mxu0 0
  %11315 = vmatmul.mubr.bf16.gmra.mrb[0].mxu0 %v11224
  %v11316 = vpop.f32.mrb[0].mxu0
  %v11317 = vadd.f32 0.0, %v11316
  %v11318 = vpop.f32.mrb[0].mxu0
  %v11319 = vpop.f32.mrb[0].mxu0
  %v11320 = vadd.f32 0.0, %v11319
  %v11321 = vpop.f32.mrb[0].mxu0
  %11322 = vdwg.mxu0
  %v11323 = vadd.f32 %v11017, %v11261
  %v11324 = vadd.f32 %v11018, %v11264
  %v11325 = vadd.f32 %v11019, %v11269
  %v11326 = vadd.f32 %v11020, %v11272
  %v11327 = vadd.f32 %v11021, %v11277
  %v11328 = vadd.f32 %v11022, %v11280
  %v11329 = vadd.f32 %v11023, %v11285
  %v11330 = vadd.f32 %v11024, %v11288
  %v11331 = vadd.f32 %v11025, %v11293
  %v11332 = vadd.f32 %v11026, %v11296
  %v11333 = vadd.f32 %v11027, %v11301
  %v11334 = vadd.f32 %v11028, %v11304
  %v11335 = vadd.f32 %v11029, %v11309
  %v11336 = vadd.f32 %v11030, %v11312
  %v11337 = vadd.f32 %v11031, %v11317
  %v11338 = vadd.f32 %v11032, %v11320
  %v11339 = vld [vmem:[%s8] sm:$0x1]
  %v11341 = vlaneseq
  %v11342 = vshrl.u32 %v11341, 7
  %v11343 = vsub.s32 0, %v11342
  %v11344 = vrot.slane %v11339, %v11343
  %v11346 = vmul.f32 %v11323, %v11344
  %v11347 = vmul.f32 %v11324, %v11344
  %v11348 = vmul.f32 %v11325, %v11344
  %v11349 = vmul.f32 %v11326, %v11344
  %v11350 = vmul.f32 %v11327, %v11344
  %v11351 = vmul.f32 %v11328, %v11344
  %v11352 = vmul.f32 %v11329, %v11344
  %v11353 = vmul.f32 %v11330, %v11344
  %v11354 = vmul.f32 %v11331, %v11344
  %v11355 = vmul.f32 %v11332, %v11344
  %v11356 = vmul.f32 %v11333, %v11344
  %v11357 = vmul.f32 %v11334, %v11344
  %v11358 = vmul.f32 %v11335, %v11344
  %v11359 = vmul.f32 %v11336, %v11344
  %v11360 = vmul.f32 %v11337, %v11344
  %v11361 = vmul.f32 %v11338, %v11344
  %v11362 = vld [vmem:[%s9] sm:$0x1]
  %v11364 = vlaneseq
  %v11365 = vshrl.u32 %v11364, 7
  %v11366 = vsub.s32 0, %v11365
  %v11367 = vrot.slane %v11362, %v11366
  %v11369 = vadd.f32 %v11346, %v11367
  %v11370 = vadd.f32 %v11347, %v11367
  %v11371 = vadd.f32 %v11348, %v11367
  %v11372 = vadd.f32 %v11349, %v11367
  %v11373 = vadd.f32 %v11350, %v11367
  %v11374 = vadd.f32 %v11351, %v11367
  %v11375 = vadd.f32 %v11352, %v11367
  %v11376 = vadd.f32 %v11353, %v11367
  %v11377 = vadd.f32 %v11354, %v11367
  %v11378 = vadd.f32 %v11355, %v11367
  %v11379 = vadd.f32 %v11356, %v11367
  %v11380 = vadd.f32 %v11357, %v11367
  %v11381 = vadd.f32 %v11358, %v11367
  %v11382 = vadd.f32 %v11359, %v11367
  %v11383 = vadd.f32 %v11360, %v11367
  %v11384 = vadd.f32 %v11361, %v11367
  %v11385 = vmax.f32 %v11369, 0.0
  %v11386 = vmax.f32 %v11370, 0.0
  %v11387 = vmax.f32 %v11371, 0.0
  %v11388 = vmax.f32 %v11372, 0.0
  %v11389 = vmax.f32 %v11373, 0.0
  %v11390 = vmax.f32 %v11374, 0.0
  %v11391 = vmax.f32 %v11375, 0.0
  %v11392 = vmax.f32 %v11376, 0.0
  %v11393 = vmax.f32 %v11377, 0.0
  %v11394 = vmax.f32 %v11378, 0.0
  %v11395 = vmax.f32 %v11379, 0.0
  %v11396 = vmax.f32 %v11380, 0.0
  %v11397 = vmax.f32 %v11381, 0.0
  %v11398 = vmax.f32 %v11382, 0.0
  %v11399 = vmax.f32 %v11383, 0.0
  %v11400 = vmax.f32 %v11384, 0.0
  %11417 = vrot.lane.b32.xlu0 %v11385, 127
  %v11418 = vpop.permute.xlu0 %11417
  %11419 = vrot.lane.b32.xlu0 %v11386, 127
  %v11420 = vpop.permute.xlu0 %11419
  %11421 = vrot.lane.b32.xlu0 %v11387, 127
  %v11422 = vpop.permute.xlu0 %11421
  %11423 = vrot.lane.b32.xlu0 %v11388, 127
  %v11424 = vpop.permute.xlu0 %11423
  %11425 = vrot.lane.b32.xlu0 %v11389, 127
  %v11426 = vpop.permute.xlu0 %11425
  %11427 = vrot.lane.b32.xlu0 %v11390, 127
  %v11428 = vpop.permute.xlu0 %11427
  %11429 = vrot.lane.b32.xlu0 %v11391, 127
  %v11430 = vpop.permute.xlu0 %11429
  %11431 = vrot.lane.b32.xlu0 %v11392, 127
  %v11432 = vpop.permute.xlu0 %11431
  %11433 = vrot.lane.b32.xlu0 %v11393, 127
  %v11434 = vpop.permute.xlu0 %11433
  %11435 = vrot.lane.b32.xlu0 %v11394, 127
  %v11436 = vpop.permute.xlu0 %11435
  %11437 = vrot.lane.b32.xlu0 %v11395, 127
  %v11438 = vpop.permute.xlu0 %11437
  %11439 = vrot.lane.b32.xlu0 %v11396, 127
  %v11440 = vpop.permute.xlu0 %11439
  %11441 = vrot.lane.b32.xlu0 %v11397, 127
  %v11442 = vpop.permute.xlu0 %11441
  %11443 = vrot.lane.b32.xlu0 %v11398, 127
  %v11444 = vpop.permute.xlu0 %11443
  %11445 = vrot.lane.b32.xlu0 %v11399, 127
  %v11446 = vpop.permute.xlu0 %11445
  %11447 = vrot.lane.b32.xlu0 %v11400, 127
  %v11448 = vpop.permute.xlu0 %11447
  %v11465 = vsub.f32 %v11385, %v11418
  %v11466 = vsub.f32 %v11386, %v11420
  %v11467 = vsub.f32 %v11387, %v11422
  %v11468 = vsub.f32 %v11388, %v11424
  %v11469 = vsub.f32 %v11389, %v11426
  %v11470 = vsub.f32 %v11390, %v11428
  %v11471 = vsub.f32 %v11391, %v11430
  %v11472 = vsub.f32 %v11392, %v11432
  %v11473 = vsub.f32 %v11393, %v11434
  %v11474 = vsub.f32 %v11394, %v11436
  %v11475 = vsub.f32 %v11395, %v11438
  %v11476 = vsub.f32 %v11396, %v11440
  %v11477 = vsub.f32 %v11397, %v11442
  %v11478 = vsub.f32 %v11398, %v11444
  %v11479 = vsub.f32 %v11399, %v11446
  %v11480 = vsub.f32 %v11400, %v11448
  %v11481 = vmul.f32 %v11465, 0.5
  %v11482 = vmul.f32 %v11466, 0.5
  %v11483 = vmul.f32 %v11467, 0.5
  %v11484 = vmul.f32 %v11468, 0.5
  %v11485 = vmul.f32 %v11469, 0.5
  %v11486 = vmul.f32 %v11470, 0.5
  %v11487 = vmul.f32 %v11471, 0.5
  %v11488 = vmul.f32 %v11472, 0.5
  %v11489 = vmul.f32 %v11473, 0.5
  %v11490 = vmul.f32 %v11474, 0.5
  %v11491 = vmul.f32 %v11475, 0.5
  %v11492 = vmul.f32 %v11476, 0.5
  %v11493 = vmul.f32 %v11477, 0.5
  %v11494 = vmul.f32 %v11478, 0.5
  %v11495 = vmul.f32 %v11479, 0.5
  %v11496 = vmul.f32 %v11480, 0.5
  %v11497 = vtanh.pop %v11481
  %v11498 = vtanh.pop %v11482
  %v11499 = vtanh.pop %v11483
  %v11500 = vtanh.pop %v11484
  %v11501 = vtanh.pop %v11485
  %v11502 = vtanh.pop %v11486
  %v11503 = vtanh.pop %v11487
  %v11504 = vtanh.pop %v11488
  %v11505 = vtanh.pop %v11489
  %v11506 = vtanh.pop %v11490
  %v11507 = vtanh.pop %v11491
  %v11508 = vtanh.pop %v11492
  %v11509 = vtanh.pop %v11493
  %v11510 = vtanh.pop %v11494
  %v11511 = vtanh.pop %v11495
  %v11512 = vtanh.pop %v11496
  %v11513 = vadd.f32 %v11497, 1.0
  %v11514 = vadd.f32 %v11498, 1.0
  %v11515 = vadd.f32 %v11499, 1.0
  %v11516 = vadd.f32 %v11500, 1.0
  %v11517 = vadd.f32 %v11501, 1.0
  %v11518 = vadd.f32 %v11502, 1.0
  %v11519 = vadd.f32 %v11503, 1.0
  %v11520 = vadd.f32 %v11504, 1.0
  %v11521 = vadd.f32 %v11505, 1.0
  %v11522 = vadd.f32 %v11506, 1.0
  %v11523 = vadd.f32 %v11507, 1.0
  %v11524 = vadd.f32 %v11508, 1.0
  %v11525 = vadd.f32 %v11509, 1.0
  %v11526 = vadd.f32 %v11510, 1.0
  %v11527 = vadd.f32 %v11511, 1.0
  %v11528 = vadd.f32 %v11512, 1.0
  %v11529 = vmul.f32 %v11513, 0.5
  %v11530 = vmul.f32 %v11514, 0.5
  %v11531 = vmul.f32 %v11515, 0.5
  %v11532 = vmul.f32 %v11516, 0.5
  %v11533 = vmul.f32 %v11517, 0.5
  %v11534 = vmul.f32 %v11518, 0.5
  %v11535 = vmul.f32 %v11519, 0.5
  %v11536 = vmul.f32 %v11520, 0.5
  %v11537 = vmul.f32 %v11521, 0.5
  %v11538 = vmul.f32 %v11522, 0.5
  %v11539 = vmul.f32 %v11523, 0.5
  %v11540 = vmul.f32 %v11524, 0.5
  %v11541 = vmul.f32 %v11525, 0.5
  %v11542 = vmul.f32 %v11526, 0.5
  %v11543 = vmul.f32 %v11527, 0.5
  %v11544 = vmul.f32 %v11528, 0.5
  %v11545 = vsub.f32 1.0, %v11529
  %v11546 = vsub.f32 1.0, %v11530
  %v11547 = vsub.f32 1.0, %v11531
  %v11548 = vsub.f32 1.0, %v11532
  %v11549 = vsub.f32 1.0, %v11533
  %v11550 = vsub.f32 1.0, %v11534
  %v11551 = vsub.f32 1.0, %v11535
  %v11552 = vsub.f32 1.0, %v11536
  %v11553 = vsub.f32 1.0, %v11537
  %v11554 = vsub.f32 1.0, %v11538
  %v11555 = vsub.f32 1.0, %v11539
  %v11556 = vsub.f32 1.0, %v11540
  %v11557 = vsub.f32 1.0, %v11541
  %v11558 = vsub.f32 1.0, %v11542
  %v11559 = vsub.f32 1.0, %v11543
  %v11560 = vsub.f32 1.0, %v11544
  %11577 = vset.pattern.permute.xlu0 0
  %11578 = vperm.xlu0 %11577, %v11529
  %v11579 = vpop.permute.xlu0 %11578
  %11580 = vset.pattern.permute.xlu0 0
  %11581 = vperm.xlu0 %11580, %v11530
  %v11582 = vpop.permute.xlu0 %11581
  %11583 = vset.pattern.permute.xlu0 0
  %11584 = vperm.xlu0 %11583, %v11531
  %v11585 = vpop.permute.xlu0 %11584
  %11586 = vset.pattern.permute.xlu0 0
  %11587 = vperm.xlu0 %11586, %v11532
  %v11588 = vpop.permute.xlu0 %11587
  %11589 = vset.pattern.permute.xlu0 0
  %11590 = vperm.xlu0 %11589, %v11533
  %v11591 = vpop.permute.xlu0 %11590
  %11592 = vset.pattern.permute.xlu0 0
  %11593 = vperm.xlu0 %11592, %v11534
  %v11594 = vpop.permute.xlu0 %11593
  %11595 = vset.pattern.permute.xlu0 0
  %11596 = vperm.xlu0 %11595, %v11535
  %v11597 = vpop.permute.xlu0 %11596
  %11598 = vset.pattern.permute.xlu0 0
  %11599 = vperm.xlu0 %11598, %v11536
  %v11600 = vpop.permute.xlu0 %11599
  %11601 = vset.pattern.permute.xlu0 0
  %11602 = vperm.xlu0 %11601, %v11537
  %v11603 = vpop.permute.xlu0 %11602
  %11604 = vset.pattern.permute.xlu0 0
  %11605 = vperm.xlu0 %11604, %v11538
  %v11606 = vpop.permute.xlu0 %11605
  %11607 = vset.pattern.permute.xlu0 0
  %11608 = vperm.xlu0 %11607, %v11539
  %v11609 = vpop.permute.xlu0 %11608
  %11610 = vset.pattern.permute.xlu0 0
  %11611 = vperm.xlu0 %11610, %v11540
  %v11612 = vpop.permute.xlu0 %11611
  %11613 = vset.pattern.permute.xlu0 0
  %11614 = vperm.xlu0 %11613, %v11541
  %v11615 = vpop.permute.xlu0 %11614
  %11616 = vset.pattern.permute.xlu0 0
  %11617 = vperm.xlu0 %11616, %v11542
  %v11618 = vpop.permute.xlu0 %11617
  %11619 = vset.pattern.permute.xlu0 0
  %11620 = vperm.xlu0 %11619, %v11543
  %v11621 = vpop.permute.xlu0 %11620
  %11622 = vset.pattern.permute.xlu0 0
  %11623 = vperm.xlu0 %11622, %v11544
  %v11624 = vpop.permute.xlu0 %11623
  %v11625 = vlaneseq
  %v11626 = vand.u32 %v11625, 127
  %v11627 = vlaneseq
  %v11628 = vshrl.u32 %v11627, 7
  %v11629 = vsub.s32 %v11626, %v11628
  %v11630 = vrot.slane %v11579, %v11629
  %v11631 = vadd.s32 %v11626, 4294967288
  %v11632 = vlaneseq
  %v11633 = vshrl.u32 %v11632, 7
  %v11634 = vsub.s32 %v11631, %v11633
  %v11635 = vrot.slane %v11582, %v11634
  %vm11636 = vcmask 130112
  %v11637 = vsel %vm11636, %v11635, %v11630
  %v11638 = vadd.s32 %v11626, 4294967280
  %v11639 = vlaneseq
  %v11640 = vshrl.u32 %v11639, 7
  %v11641 = vsub.s32 %v11638, %v11640
  %v11642 = vrot.slane %v11585, %v11641
  %vm11643 = vcmask 195712
  %v11644 = vsel %vm11643, %v11642, %v11637
  %v11645 = vadd.s32 %v11626, 4294967272
  %v11646 = vlaneseq
  %v11647 = vshrl.u32 %v11646, 7
  %v11648 = vsub.s32 %v11645, %v11647
  %v11649 = vrot.slane %v11588, %v11648
  %vm11650 = vcmask 261312
  %v11651 = vsel %vm11650, %v11649, %v11644
  %v11652 = vadd.s32 %v11626, 4294967264
  %v11653 = vlaneseq
  %v11654 = vshrl.u32 %v11653, 7
  %v11655 = vsub.s32 %v11652, %v11654
  %v11656 = vrot.slane %v11591, %v11655
  %vm11657 = vcmask 326912
  %v11658 = vsel %vm11657, %v11656, %v11651
  %v11659 = vadd.s32 %v11626, 4294967256
  %v11660 = vlaneseq
  %v11661 = vshrl.u32 %v11660, 7
  %v11662 = vsub.s32 %v11659, %v11661
  %v11663 = vrot.slane %v11594, %v11662
  %vm11664 = vcmask 392512
  %v11665 = vsel %vm11664, %v11663, %v11658
  %v11666 = vadd.s32 %v11626, 4294967248
  %v11667 = vlaneseq
  %v11668 = vshrl.u32 %v11667, 7
  %v11669 = vsub.s32 %v11666, %v11668
  %v11670 = vrot.slane %v11597, %v11669
  %vm11671 = vcmask 458112
  %v11672 = vsel %vm11671, %v11670, %v11665
  %v11673 = vadd.s32 %v11626, 4294967240
  %v11674 = vlaneseq
  %v11675 = vshrl.u32 %v11674, 7
  %v11676 = vsub.s32 %v11673, %v11675
  %v11677 = vrot.slane %v11600, %v11676
  %vm11678 = vcmask 523712
  %v11679 = vsel %vm11678, %v11677, %v11672
  %v11680 = vlaneseq
  %v11681 = vshrl.u32 %v11680, 7
  %v11682 = vsub.s32 %v11626, %v11681
  %v11683 = vrot.slane %v11603, %v11682
  %v11684 = vlaneseq
  %v11685 = vshrl.u32 %v11684, 7
  %v11686 = vsub.s32 %v11631, %v11685
  %v11687 = vrot.slane %v11606, %v11686
  %v11688 = vsel %vm11636, %v11687, %v11683
  %v11689 = vlaneseq
  %v11690 = vshrl.u32 %v11689, 7
  %v11691 = vsub.s32 %v11638, %v11690
  %v11692 = vrot.slane %v11609, %v11691
  %v11693 = vsel %vm11643, %v11692, %v11688
  %v11694 = vlaneseq
  %v11695 = vshrl.u32 %v11694, 7
  %v11696 = vsub.s32 %v11645, %v11695
  %v11697 = vrot.slane %v11612, %v11696
  %v11698 = vsel %vm11650, %v11697, %v11693
  %v11699 = vlaneseq
  %v11700 = vshrl.u32 %v11699, 7
  %v11701 = vsub.s32 %v11652, %v11700
  %v11702 = vrot.slane %v11615, %v11701
  %v11703 = vsel %vm11657, %v11702, %v11698
  %v11704 = vlaneseq
  %v11705 = vshrl.u32 %v11704, 7
  %v11706 = vsub.s32 %v11659, %v11705
  %v11707 = vrot.slane %v11618, %v11706
  %v11708 = vsel %vm11664, %v11707, %v11703
  %v11709 = vlaneseq
  %v11710 = vshrl.u32 %v11709, 7
  %v11711 = vsub.s32 %v11666, %v11710
  %v11712 = vrot.slane %v11621, %v11711
  %v11713 = vsel %vm11671, %v11712, %v11708
  %v11714 = vlaneseq
  %v11715 = vshrl.u32 %v11714, 7
  %v11716 = vsub.s32 %v11673, %v11715
  %v11717 = vrot.slane %v11624, %v11716
  %v11718 = vsel %vm11678, %v11717, %v11713
  %vm11719 = vcmask 1041409
  %v11720 = vsel %vm11719, %v11718, %v11679
  %11738 = vset.pattern.permute.xlu0 0
  %11739 = vperm.xlu0 %11738, %v11545
  %v11740 = vpop.permute.xlu0 %11739
  %11741 = vset.pattern.permute.xlu0 0
  %11742 = vperm.xlu0 %11741, %v11546
  %v11743 = vpop.permute.xlu0 %11742
  %11744 = vset.pattern.permute.xlu0 0
  %11745 = vperm.xlu0 %11744, %v11547
  %v11746 = vpop.permute.xlu0 %11745
  %11747 = vset.pattern.permute.xlu0 0
  %11748 = vperm.xlu0 %11747, %v11548
  %v11749 = vpop.permute.xlu0 %11748
  %11750 = vset.pattern.permute.xlu0 0
  %11751 = vperm.xlu0 %11750, %v11549
  %v11752 = vpop.permute.xlu0 %11751
  %11753 = vset.pattern.permute.xlu0 0
  %11754 = vperm.xlu0 %11753, %v11550
  %v11755 = vpop.permute.xlu0 %11754
  %11756 = vset.pattern.permute.xlu0 0
  %11757 = vperm.xlu0 %11756, %v11551
  %v11758 = vpop.permute.xlu0 %11757
  %11759 = vset.pattern.permute.xlu0 0
  %11760 = vperm.xlu0 %11759, %v11552
  %v11761 = vpop.permute.xlu0 %11760
  %11762 = vset.pattern.permute.xlu0 0
  %11763 = vperm.xlu0 %11762, %v11553
  %v11764 = vpop.permute.xlu0 %11763
  %11765 = vset.pattern.permute.xlu0 0
  %11766 = vperm.xlu0 %11765, %v11554
  %v11767 = vpop.permute.xlu0 %11766
  %11768 = vset.pattern.permute.xlu0 0
  %11769 = vperm.xlu0 %11768, %v11555
  %v11770 = vpop.permute.xlu0 %11769
  %11771 = vset.pattern.permute.xlu0 0
  %11772 = vperm.xlu0 %11771, %v11556
  %v11773 = vpop.permute.xlu0 %11772
  %11774 = vset.pattern.permute.xlu0 0
  %11775 = vperm.xlu0 %11774, %v11557
  %v11776 = vpop.permute.xlu0 %11775
  %11777 = vset.pattern.permute.xlu0 0
  %11778 = vperm.xlu0 %11777, %v11558
  %v11779 = vpop.permute.xlu0 %11778
  %11780 = vset.pattern.permute.xlu0 0
  %11781 = vperm.xlu0 %11780, %v11559
  %v11782 = vpop.permute.xlu0 %11781
  %11783 = vset.pattern.permute.xlu0 0
  %11784 = vperm.xlu0 %11783, %v11560
  %v11785 = vpop.permute.xlu0 %11784
  %v11786 = vadd.s32 %v11626, 4294967232
  %v11787 = vlaneseq
  %v11788 = vshrl.u32 %v11787, 7
  %v11789 = vsub.s32 %v11786, %v11788
  %v11790 = vrot.slane %v11740, %v11789
  %v11791 = vadd.s32 %v11626, 4294967224
  %v11792 = vlaneseq
  %v11793 = vshrl.u32 %v11792, 7
  %v11794 = vsub.s32 %v11791, %v11793
  %v11795 = vrot.slane %v11743, %v11794
  %vm11796 = vcmask 654912
  %v11797 = vsel %vm11796, %v11795, %v11790
  %v11798 = vadd.s32 %v11626, 4294967216
  %v11799 = vlaneseq
  %v11800 = vshrl.u32 %v11799, 7
  %v11801 = vsub.s32 %v11798, %v11800
  %v11802 = vrot.slane %v11746, %v11801
  %vm11803 = vcmask 720512
  %v11804 = vsel %vm11803, %v11802, %v11797
  %v11805 = vadd.s32 %v11626, 4294967208
  %v11806 = vlaneseq
  %v11807 = vshrl.u32 %v11806, 7
  %v11808 = vsub.s32 %v11805, %v11807
  %v11809 = vrot.slane %v11749, %v11808
  %vm11810 = vcmask 786112
  %v11811 = vsel %vm11810, %v11809, %v11804
  %v11812 = vadd.s32 %v11626, 4294967200
  %v11813 = vlaneseq
  %v11814 = vshrl.u32 %v11813, 7
  %v11815 = vsub.s32 %v11812, %v11814
  %v11816 = vrot.slane %v11752, %v11815
  %vm11817 = vcmask 851712
  %v11818 = vsel %vm11817, %v11816, %v11811
  %v11819 = vadd.s32 %v11626, 4294967192
  %v11820 = vlaneseq
  %v11821 = vshrl.u32 %v11820, 7
  %v11822 = vsub.s32 %v11819, %v11821
  %v11823 = vrot.slane %v11755, %v11822
  %vm11824 = vcmask 917312
  %v11825 = vsel %vm11824, %v11823, %v11818
  %v11826 = vadd.s32 %v11626, 4294967184
  %v11827 = vlaneseq
  %v11828 = vshrl.u32 %v11827, 7
  %v11829 = vsub.s32 %v11826, %v11828
  %v11830 = vrot.slane %v11758, %v11829
  %vm11831 = vcmask 982912
  %v11832 = vsel %vm11831, %v11830, %v11825
  %v11833 = vadd.s32 %v11626, 4294967176
  %v11834 = vlaneseq
  %v11835 = vshrl.u32 %v11834, 7
  %v11836 = vsub.s32 %v11833, %v11835
  %v11837 = vrot.slane %v11761, %v11836
  %vm11838 = vcmask 1048512
  %v11839 = vsel %vm11838, %v11837, %v11832
  %v11840 = vlaneseq
  %v11841 = vshrl.u32 %v11840, 7
  %v11842 = vsub.s32 %v11786, %v11841
  %v11843 = vrot.slane %v11764, %v11842
  %v11844 = vlaneseq
  %v11845 = vshrl.u32 %v11844, 7
  %v11846 = vsub.s32 %v11791, %v11845
  %v11847 = vrot.slane %v11767, %v11846
  %v11848 = vsel %vm11796, %v11847, %v11843
  %v11849 = vlaneseq
  %v11850 = vshrl.u32 %v11849, 7
  %v11851 = vsub.s32 %v11798, %v11850
  %v11852 = vrot.slane %v11770, %v11851
  %v11853 = vsel %vm11803, %v11852, %v11848
  %v11854 = vlaneseq
  %v11855 = vshrl.u32 %v11854, 7
  %v11856 = vsub.s32 %v11805, %v11855
  %v11857 = vrot.slane %v11773, %v11856
  %v11858 = vsel %vm11810, %v11857, %v11853
  %v11859 = vlaneseq
  %v11860 = vshrl.u32 %v11859, 7
  %v11861 = vsub.s32 %v11812, %v11860
  %v11862 = vrot.slane %v11776, %v11861
  %v11863 = vsel %vm11817, %v11862, %v11858
  %v11864 = vlaneseq
  %v11865 = vshrl.u32 %v11864, 7
  %v11866 = vsub.s32 %v11819, %v11865
  %v11867 = vrot.slane %v11779, %v11866
  %v11868 = vsel %vm11824, %v11867, %v11863
  %v11869 = vlaneseq
  %v11870 = vshrl.u32 %v11869, 7
  %v11871 = vsub.s32 %v11826, %v11870
  %v11872 = vrot.slane %v11782, %v11871
  %v11873 = vsel %vm11831, %v11872, %v11868
  %v11874 = vlaneseq
  %v11875 = vshrl.u32 %v11874, 7
  %v11876 = vsub.s32 %v11833, %v11875
  %v11877 = vrot.slane %v11785, %v11876
  %v11878 = vsel %vm11838, %v11877, %v11873
  %v11879 = vsel %vm11719, %v11878, %v11839
  %v11881 = vsel %vm8761, %v11720, %v11879
  %v11884 = vunpack.c.l.s4 1966171168
  %v11885 = vunpack.c.0.s8 %v11884
  %v11886 = vlaneseq
  %v11887 = vshrl.u32 %v11886, 7
  %v11888 = vsub.s32 %v11885, %v11887
  %v11889 = vrot.slane %v11881, %v11888
  %v11890 = vcombine.high %v11889, %v11889
  %v11892 = vunpack.c.l.s4 1966171168
  %v11893 = vunpack.c.0.s8 %v11892
  %v11894 = vlaneseq
  %v11895 = vshrl.u32 %v11894, 7
  %v11896 = vsub.s32 %v11893, %v11895
  %v11897 = vrot.slane %v11889, %v11896
  %v11899 = vunpack.c.l.s4 1966171168
  %v11900 = vunpack.c.0.s8 %v11899
  %v11901 = vlaneseq
  %v11902 = vshrl.u32 %v11901, 7
  %v11903 = vsub.s32 %v11900, %v11902
  %v11904 = vrot.slane %v11890, %v11903
  %11907 = vst [vmem:[%s10] sm:$0x1] %v11897
  %11908 = vst [vmem:[%s10 + $0x1] sm:$0x1] %v11904
  // Predicated region
  $region42: #{state_mask_embed_forward.1} parent=0 // pred_check
    _
  $region43: #{state_mask_embed_forward.1} parent=0 // pred_check_branch
    %11910 = sbr.rel (0) target = $region45
  $region44: #{state_mask_embed_forward.1} parent=0 // pred_region
    _
  $region45: #{state_mask_embed_forward.1} parent=0 // pred_fallthru
    _
  // Predicated region
  $region46: #{state_mask_embed_forward.1} parent=0 // pred_check
    _
  $region47: #{state_mask_embed_forward.1} parent=0 // pred_check_branch
    %11912 = sbr.rel (0) target = $region49
  $region48: #{state_mask_embed_forward.1} parent=0 // pred_region
    _
  $region49: #{state_mask_embed_forward.1} parent=0 // pred_fallthru
    _

</llo_original>
